<compile_context>
chip_gen: v7x
topology: tpu7x:2x2x1
jax: 0.10.0
libtpu: 0.0.40
codegen_flags: <defaults>
</compile_context>

<pallas_src>
import functools

import jax
import jax.numpy as jnp
from jax.experimental import pallas as pl
from jax.experimental.pallas import tpu as pltpu


def _rescal_kernel(lhs_ref, rel_ref, out_ref):
    # lhs_ref: (TB, R)   rel_ref: (TB, R, R)   out_ref: (TB, R)
    # out[b, j] = sum_k lhs[b, k] * rel[b, k, j]
    # VPU broadcast-multiply + XLU sublane reduce (no MXU weight reloads).
    lhs = lhs_ref[...].astype(jnp.float32)          # (TB, R)
    rel = rel_ref[...].astype(jnp.float32)          # (TB, R, R)
    prod = lhs[:, :, None] * rel                    # (TB, R, R)
    out_ref[...] = jnp.sum(prod, axis=1).astype(out_ref.dtype)


@functools.partial(jax.jit, static_argnames=("rank", "block_b"))
def rescal_forward(lhs, rel_flat, *, rank, block_b=64):
    """lhs: (B, rank), rel_flat: (B, rank*rank) -> (B, rank).

    block_b must be a multiple of 8 (f32 sublane rule).  64 fits all three
    generations' default scoped VMEM; use 128 on v6e / v7x for a bit less
    per-step overhead (keep >= 2 grid steps for v7x megacore).
    """
    B = lhs.shape[0]
    out_dtype = lhs.dtype
    rel = rel_flat.reshape(B, rank, rank)
    tb = block_b

    itemsize = jnp.dtype(rel.dtype).itemsize
    cost = pl.CostEstimate(
        flops=2 * B * rank * rank,
        transcendentals=0,
        bytes_accessed=B * rank * rank * itemsize + 2 * B * rank * itemsize,
    )

    return pl.pallas_call(
        _rescal_kernel,
        out_shape=jax.ShapeDtypeStruct((B, rank), out_dtype),
        grid_spec=pltpu.PrefetchScalarGridSpec(
            num_scalar_prefetch=0,
            grid=(pl.cdiv(B, tb),),
            in_specs=[
                pl.BlockSpec((tb, rank), lambda b: (b, 0)),
                pl.BlockSpec((tb, rank, rank), lambda b: (b, 0, 0)),
            ],
            out_specs=pl.BlockSpec((tb, rank), lambda b: (b, 0)),
        ),
        compiler_params=pltpu.CompilerParams(
            dimension_semantics=("parallel",),
        ),
        cost_estimate=cost,
    )(lhs, rel)


class RescalJax:
    """Deterministic, synthetic RESCAL parameterization (mirrors __init__)."""

    def __init__(self, num_ents, num_rels, rank, key):
        self.rank = rank
        k_ent, k_rel = jax.random.split(key)
        init_size = 0.001
        # nn.Embedding default init is N(0, 1); module scales by init_size.
        self.ent_embedding = (
            jax.random.normal(k_ent, (num_ents, rank), jnp.float32) * init_size
        )
        self.rel_embedding = (
            jax.random.normal(k_rel, (num_rels, rank * rank), jnp.float32)
            * init_size
        )

    def forward(self, lhs, rel):
        # lhs: (B, rank), rel: (B, rank*rank)
        return rescal_forward(lhs, rel, rank=self.rank)

    def get_preds(self, pred_embedding, tgt_ent_idx=None):
        # Glue (plain JAX) — mirrors KGE.calc_preds.
        if tgt_ent_idx is None:
            return pred_embedding @ self.ent_embedding.T
        tgt = self.ent_embedding[tgt_ent_idx]             # (B, K, R)
        return jnp.einsum("bkr,br->bk", tgt, pred_embedding)

    # TODO(synk): load_from_ckpt_path (torch.load checkpoint I/O) has no
    # in-kernel equivalent and is intentionally omitted.


if __name__ == "__main__":
    num_ents, num_rels = 256, 32
    rank = 128             # dim_ent_embedding == dim_rel_embedding
    batch = 96             # 2 grid steps at TB=64; second step is a partial edge block

    key = jax.random.PRNGKey(0)
    k_model, k_lhs_idx, k_rel_idx = jax.random.split(key, 3)

    model = RescalJax(num_ents, num_rels, rank, k_model)

    lhs_idx = jax.random.randint(k_lhs_idx, (batch,), 0, num_ents)
    rel_idx = jax.random.randint(k_rel_idx, (batch,), 0, num_rels)

    lhs = model.ent_embedding[lhs_idx]        # (B, rank)
    rel = model.rel_embedding[rel_idx]        # (B, rank*rank)

    out = jax.block_until_ready(model.forward(lhs, rel))

    # Pure-JAX reference check of the torch.bmm semantics (same f32 math path).
    rel3 = rel.reshape(batch, rank, rank)
    ref = jnp.sum(lhs[:, :, None] * rel3, axis=1)
    assert out.shape == (batch, rank)
    assert jnp.allclose(out, ref, atol=1e-6, rtol=1e-5)

    # Exercise the tiny single partial-block path (B < block_b, B % 8 != 0).
    out_tail = jax.block_until_ready(model.forward(lhs[:5], rel[:5]))
    assert out_tail.shape == (5, rank)
    assert jnp.allclose(out_tail, ref[:5], atol=1e-6, rtol=1e-5)

    # get_preds glue path (plain JAX scoring).
    preds = jax.block_until_ready(model.get_preds(out))
    assert preds.shape == (batch, num_ents)

    print("KERNEL_OK")
</pallas_src>

<mosaic_0001>
module attributes {stable_mosaic.version = 11 : i64} {
  func.func @_rescal_kernel(%arg0: i32, %arg1: memref<64x128xf32, #tpu.memory_space<vmem>>, %arg2: memref<64x128x128xf32, #tpu.memory_space<vmem>>, %arg3: memref<64x128xf32, #tpu.memory_space<vmem>>) attributes {dimension_semantics = [#tpu.dimension_semantics<parallel>], iteration_bounds = array<i64: 2>, scalar_prefetch = 0 : i64, scratch_operands = 0 : i64, tpu.core_type = #tpu.core_type<tc>, window_params = [{transform_indices = @transform_0, window_bounds = array<i64: 64, 128>}, {transform_indices = @transform_1, window_bounds = array<i64: 64, 128, 128>}, {transform_indices = @transform_2, window_bounds = array<i64: 64, 128>}]} {
    %c0 = arith.constant 0 : index
    %c0_0 = arith.constant 0 : index
    %0 = vector.load %arg1[%c0, %c0_0] : memref<64x128xf32, #tpu.memory_space<vmem>>, vector<64x128xf32>
    %c0_1 = arith.constant 0 : index
    %c0_2 = arith.constant 0 : index
    %c0_3 = arith.constant 0 : index
    %1 = vector.load %arg2[%c0_1, %c0_2, %c0_3] : memref<64x128x128xf32, #tpu.memory_space<vmem>>, vector<64x128x128xf32>
    %2 = vector.shape_cast %0 : vector<64x128xf32> to vector<64x128x1xf32>
    %3 = vector.broadcast %2 : vector<64x128x1xf32> to vector<64x128x128xf32>
    %4 = arith.mulf %3, %1 : vector<64x128x128xf32>
    %cst = arith.constant dense<0.000000e+00> : vector<64x128xf32>
    %5 = vector.multi_reduction <add>, %4, %cst [1] : vector<64x128x128xf32> to vector<64x128xf32>
    %c0_4 = arith.constant 0 : index
    %c0_5 = arith.constant 0 : index
    %6 = vector.load %arg3[%c0_4, %c0_5] : memref<64x128xf32, #tpu.memory_space<vmem>>, vector<64x128xf32>
    tpu.vector_store %arg3[%c0_4, %c0_5], %5 {strides = array<i32>} : memref<64x128xf32, #tpu.memory_space<vmem>>, vector<64x128xf32>,
    return
  }
  func.func @transform_0(%arg0: i32) -> (i32, i32) {
    %c0_i32 = arith.constant 0 : i32
    %c0_i32_0 = arith.constant 0 : i32
    return %arg0, %c0_i32 : i32, i32
  }
  func.func @transform_1(%arg0: i32) -> (i32, i32, i32) {
    %c0_i32 = arith.constant 0 : i32
    %c0_i32_0 = arith.constant 0 : i32
    %c0_i32_1 = arith.constant 0 : i32
    return %arg0, %c0_i32, %c0_i32_0 : i32, i32, i32
  }
  func.func @transform_2(%arg0: i32) -> (i32, i32) {
    %c0_i32 = arith.constant 0 : i32
    %c0_i32_0 = arith.constant 0 : i32
    return %arg0, %c0_i32 : i32, i32
  }
}

</mosaic_0001>

<llo_original>
// kernel: rescal_forward.1
$region0: #{rescal_forward.1}
  #allocation0 [shape = 'u32[]', space=smem, size = 0x4, offset = 0x4, fixed_abs, tag = 'smem constant byte address 0x4 - core index']
  #allocation1 [shape = 'u32[144,128]{1,0:T(1,128)}', space=vmem, size = 0x12000, scoped, tag = 'internal scratch']
  %s0 = inlined_call_operand.vmem [shape: f32[96,128], index: 0, kind: input, shape index: {}]
  %s1 = inlined_call_operand.vmem [shape: f32[96,128,128], index: 1, kind: input, shape index: {}]
  %s2 = inlined_call_operand.hbm [shape: f32[96,128], index: 2, kind: output, shape index: {}]
  %s3 = sld [smem:[#allocation0]]
  $region41: #{rescal_forward.1} parent=0
    _
  %s5 = ssub.s32 1, %s3
  %s6 = scalar_select 0, %s5, %s3
  $region1: #{rescal_forward.1} parent=0
    #allocation2 [shape = 'u8[65536]{0}', space=vmem, size = 0x10000, scoped, tag = 'output window, operand 0']
    #allocation3 [shape = 's32[2]{0}', space=sflag, size = 0x8, scoped, tag = 'scoped memory for rescal_forward.1']
    %7 = vsyncpa [#allocation3], 0
    %s8 = scalar_lea.sflag [#allocation3], 1
    %9 = vsyncpa %s8, 0
    loop: start=0, step=1, limit=4
    $region2: #{rescal_forward.1} parent=1 // loop_pre_header
      _
    $region3: #{rescal_forward.1} parent=1 // loop_header
      %s11 = sphi 0, %s15
      %p12 = scmp.ge.s32.totalorder %s11, 4
      %s21 = sphi 0, %s23
      %s24 = sphi 0, %s21
      %s25 = sphi 0, %s24
      %s41 = sphi 0, %s25
      %s47 = sphi 0, %s49
      %s50 = sphi 0, %s47
      %s51 = sphi 0, %s50
      %s67 = sphi 0, %s51
      %s73 = sphi 0, %s75
      %s76 = sphi 0, %s73
      %s77 = sphi 0, %s76
      %s93 = sphi 0, %s77
    $region4: #{rescal_forward.1} parent=1 // loop_header_branch
      %14 = sbr.rel (%p12) target = $region8
    $region5: #{rescal_forward.1} parent=1 // loop_body
      %s16 = ssub.s32 %s11, 1
      %s17 = ssub.s32 %s11, 2
      %s18 = sadd.s32 %s11, 1
      %s19 = ssub.s32 %s11, %s18
      %p20 = scmp.eq.s32.totalorder %s19, 0
      %s22 = sadd.s32 %s21, 1
      %s23 = scalar_select %p20, %s21, %s22
      %p26 = pneg %p20
      %p27 = scmp.eq.s32.totalorder %s11, 1
      %p28 = por %p26, %p27
      %p29 = scmp.ne.s32.totalorder %s21, %s24
      %p30 = scmp.eq.s32.totalorder %s11, 0
      %p31 = por %p29, %p30
      %p32 = scmp.ne.s32.totalorder %s21, %s24
      %p33 = scmp.eq.s32.totalorder %s16, 1
      %p34 = por %p32, %p33
      %p35 = scmp.ne.s32.totalorder %s24, %s25
      %p36 = scmp.eq.s32.totalorder %s16, 0
      %p37 = por %p35, %p36
      %p38 = scmp.ne.s32.totalorder %s24, %s25
      %p39 = scmp.eq.s32.totalorder %s17, 1
      %p40 = por %p38, %p39
      %p42 = scmp.ne.s32.totalorder %s25, %s41
      %p43 = scmp.eq.s32.totalorder %s17, 0
      %p44 = por %p42, %p43
      %s45 = ssub.s32 %s11, %s18
      %p46 = scmp.eq.s32.totalorder %s45, 0
      %s48 = sadd.s32 %s47, 1
      %s49 = scalar_select %p46, %s47, %s48
      %p52 = pneg %p46
      %p53 = scmp.eq.s32.totalorder %s11, 1
      %p54 = por %p52, %p53
      %p55 = scmp.ne.s32.totalorder %s47, %s50
      %p56 = scmp.eq.s32.totalorder %s11, 0
      %p57 = por %p55, %p56
      %p58 = scmp.ne.s32.totalorder %s47, %s50
      %p59 = scmp.eq.s32.totalorder %s16, 1
      %p60 = por %p58, %p59
      %p61 = scmp.ne.s32.totalorder %s50, %s51
      %p62 = scmp.eq.s32.totalorder %s16, 0
      %p63 = por %p61, %p62
      %p64 = scmp.ne.s32.totalorder %s50, %s51
      %p65 = scmp.eq.s32.totalorder %s17, 1
      %p66 = por %p64, %p65
      %p68 = scmp.ne.s32.totalorder %s51, %s67
      %p69 = scmp.eq.s32.totalorder %s17, 0
      %p70 = por %p68, %p69
      %s71 = ssub.s32 %s11, %s18
      %p72 = scmp.eq.s32.totalorder %s71, 0
      %s74 = sadd.s32 %s73, 1
      %s75 = scalar_select %p72, %s73, %s74
      %p78 = pneg %p72
      %p79 = scmp.eq.s32.totalorder %s11, 1
      %p80 = por %p78, %p79
      %p81 = scmp.ne.s32.totalorder %s73, %s76
      %p82 = scmp.eq.s32.totalorder %s11, 0
      %p83 = por %p81, %p82
      %p84 = scmp.ne.s32.totalorder %s73, %s76
      %p85 = scmp.eq.s32.totalorder %s16, 1
      %p86 = por %p84, %p85
      %p87 = scmp.ne.s32.totalorder %s76, %s77
      %p88 = scmp.eq.s32.totalorder %s16, 0
      %p89 = por %p87, %p88
      %p90 = scmp.ne.s32.totalorder %s76, %s77
      %p91 = scmp.eq.s32.totalorder %s17, 1
      %p92 = por %p90, %p91
      %p94 = scmp.ne.s32.totalorder %s77, %s93
      %p95 = scmp.eq.s32.totalorder %s17, 0
      %p96 = por %p94, %p95
      %p97 = scmp.le.s32.totalorder 1, %s11
      %p98 = scmp.lt.s32.totalorder %s11, 3
      %p99 = pnand %p97, %p98
      %p100 = pneg %p99
      // Predicated region
      $region9: #{rescal_forward.1} parent=5 // pred_check
        _
      $region10: #{rescal_forward.1} parent=5 // pred_check_branch
        %102 = sbr.rel (%p99) target = $region12
      $region11: #{rescal_forward.1} parent=5 // pred_region
        %s103 = ssub.s32 %s11, 1
      $region12: #{rescal_forward.1} parent=5 // pred_fallthru
        _
      %p104 = scmp.lt.s32.totalorder %s11, 2
      // Predicated region
      $region13: #{rescal_forward.1} parent=5 // pred_check
        %p105 = pneg %p104
      $region14: #{rescal_forward.1} parent=5 // pred_check_branch
        %107 = sbr.rel (%p105) target = $region16
      $region15: #{rescal_forward.1} parent=5 // pred_region
        // Predicated region
        $region17: #{rescal_forward.1} parent=15 // pred_check
          %p108 = pneg %p31
        $region18: #{rescal_forward.1} parent=15 // pred_check_branch
          %110 = sbr.rel (%p108) target = $region20
        $region19: #{rescal_forward.1} parent=15 // pred_region
          %s111 = smul.u32 8, %s11
          %s112 = ssub.s32 12, %s111
          %p113 = scmp.lt.s32.totalorder %s112, 8
          %s114 = scalar_select %p113, %s112, 8
          %s115 = smul.u32 128, %s114
          %p116 = scmp.lt.s32.totalorder %s111, 11
          %s117 = scalar_select %p116, %s111, 11
          %s118 = smul.addr %s117, 8
          %s119 = scalar_lea.vmem %s0, %s118
          %s120 = smul.u32 8, %s11
          %s121 = ssub.s32 12, %s120
          %p122 = scmp.lt.s32.totalorder %s121, 8
          %s123 = scalar_select %p122, %s121, 8
          %s124 = smul.u32 128, %s123
        $region20: #{rescal_forward.1} parent=15 // pred_fallthru
          _
        // Predicated region
        $region21: #{rescal_forward.1} parent=15 // pred_check
          %p125 = pneg %p57
        $region22: #{rescal_forward.1} parent=15 // pred_check_branch
          %127 = sbr.rel (%p125) target = $region24
        $region23: #{rescal_forward.1} parent=15 // pred_region
          %s128 = smul.u32 64, %s11
          %s129 = ssub.s32 96, %s128
          %p130 = scmp.lt.s32.totalorder %s129, 64
          %s131 = scalar_select %p130, %s129, 64
          %s132 = smul.u32 128, %s131
          %s133 = smul.u32 %s132, 16
          %p134 = scmp.lt.s32.totalorder %s128, 95
          %s135 = scalar_select %p134, %s128, 95
          %s136 = smul.addr %s135, 16
          %s137 = smul.addr %s136, 8
          %s138 = scalar_lea.vmem %s1, %s137
          %s139 = smul.u32 64, %s11
          %s140 = ssub.s32 96, %s139
          %p141 = scmp.lt.s32.totalorder %s140, 64
          %s142 = scalar_select %p141, %s140, 64
          %s143 = smul.u32 128, %s142
          %s144 = smul.u32 %s143, 16
        $region24: #{rescal_forward.1} parent=15 // pred_fallthru
          _
      $region16: #{rescal_forward.1} parent=5 // pred_fallthru
        _
      %p145 = scmp.le.s32.totalorder 1, %s11
      %p146 = scmp.lt.s32.totalorder %s11, 3
      %p147 = pnand %p145, %p146
      %p148 = pneg %p147
      // Predicated region
      $region25: #{rescal_forward.1} parent=5 // pred_check
        _
      $region26: #{rescal_forward.1} parent=5 // pred_check_branch
        %150 = sbr.rel (%p147) target = $region28
      $region27: #{rescal_forward.1} parent=5 // pred_region
        %s151 = ssub.s32 %s11, 1
        %s152 = smul.u32 8, %s16
        %s153 = ssub.s32 12, %s152
        %p154 = scmp.lt.s32.totalorder %s153, 8
        %s155 = scalar_select %p154, %s153, 8
        %s156 = smul.u32 128, %s155
        %p157 = scmp.lt.s32.totalorder %s152, 11
        %s158 = scalar_select %p157, %s152, 11
        %s159 = smul.addr %s158, 8
        %s160 = scalar_lea.vmem %s0, %s159
        %p161 = pneg %p37
        %p162 = pneg %p34
        %s163 = smul.u32 64, %s16
        %s164 = ssub.s32 96, %s163
        %p165 = scmp.lt.s32.totalorder %s164, 64
        %s166 = scalar_select %p165, %s164, 64
        %s167 = smul.u32 128, %s166
        %s168 = smul.u32 %s167, 16
        %p169 = scmp.lt.s32.totalorder %s163, 95
        %s170 = scalar_select %p169, %s163, 95
        %s171 = smul.addr %s170, 16
        %s172 = smul.addr %s171, 8
        %s173 = scalar_lea.vmem %s1, %s172
        %p174 = pneg %p63
        %p175 = pneg %p60
        %p176 = pneg %p89
        %p177 = pneg %p86
        %s178 = sand.u32 %s76, 1
        %s179 = scalar_lea.sflag [#allocation3], %s178
        %s180 = sand.u32 %s76, 1
        %s181 = smul.addr %s180, 64
        %s182 = scalar_lea.vmem [#allocation2], %s181
        %s183 = smul.u32 8, %s16
        %s184 = ssub.s32 12, %s183
        %p185 = scmp.lt.s32.totalorder %s184, 8
        %s186 = scalar_select %p185, %s184, 8
        %s187 = smul.u32 128, %s186
        %p188 = scmp.lt.s32.totalorder %s183, 11
        %s189 = scalar_select %p188, %s183, 11
        %s190 = smul.addr %s189, 8
        %s191 = scalar_lea.vmem %s0, %s190
        %s192 = smul.u32 8, %s16
        %s193 = ssub.s32 12, %s192
        %p194 = scmp.lt.s32.totalorder %s193, 8
        %s195 = scalar_select %p194, %s193, 8
        %s196 = smul.u32 128, %s195
        %s197 = smul.u32 64, %s16
        %s198 = ssub.s32 96, %s197
        %p199 = scmp.lt.s32.totalorder %s198, 64
        %s200 = scalar_select %p199, %s198, 64
        %s201 = smul.u32 128, %s200
        %s202 = smul.u32 %s201, 16
        %p203 = scmp.lt.s32.totalorder %s197, 95
        %s204 = scalar_select %p203, %s197, 95
        %s205 = smul.addr %s204, 16
        %s206 = smul.addr %s205, 8
        %s207 = scalar_lea.vmem %s1, %s206
        %s208 = smul.u32 64, %s16
        %s209 = ssub.s32 96, %s208
        %p210 = scmp.lt.s32.totalorder %s209, 64
        %s211 = scalar_select %p210, %s209, 64
        %s212 = smul.u32 128, %s211
        %s213 = smul.u32 %s212, 16
        %s214 = smul.u32 8, %s16
        %s215 = ssub.s32 12, %s214
        %p216 = scmp.lt.s32.totalorder %s215, 8
        %s217 = scalar_select %p216, %s215, 8
        %s218 = smul.u32 128, %s217
        %v219 = vld [vmem:[%s191] sm:$0xff]
        %v220 = vld [vmem:[%s191 + $0x8] sm:$0xff]
        %v221 = vld [vmem:[%s191 + $0x10] sm:$0xff]
        %v222 = vld [vmem:[%s191 + $0x18] sm:$0xff]
        %v223 = vld [vmem:[%s191 + $0x20] sm:$0xff]
        %v224 = vld [vmem:[%s191 + $0x28] sm:$0xff]
        %v225 = vld [vmem:[%s191 + $0x30] sm:$0xff]
        %v226 = vld [vmem:[%s191 + $0x38] sm:$0xff]
        %v227 = vld [vmem:[%s207] sm:$0xff]
        %v228 = vld [vmem:[%s207 + $0x8] sm:$0xff]
        %v229 = vld [vmem:[%s207 + $0x10] sm:$0xff]
        %v230 = vld [vmem:[%s207 + $0x18] sm:$0xff]
        %v231 = vld [vmem:[%s207 + $0x20] sm:$0xff]
        %v232 = vld [vmem:[%s207 + $0x28] sm:$0xff]
        %v233 = vld [vmem:[%s207 + $0x30] sm:$0xff]
        %v234 = vld [vmem:[%s207 + $0x38] sm:$0xff]
        %v235 = vld [vmem:[%s207 + $0x40] sm:$0xff]
        %v236 = vld [vmem:[%s207 + $0x48] sm:$0xff]
        %v237 = vld [vmem:[%s207 + $0x50] sm:$0xff]
        %v238 = vld [vmem:[%s207 + $0x58] sm:$0xff]
        %v239 = vld [vmem:[%s207 + $0x60] sm:$0xff]
        %v240 = vld [vmem:[%s207 + $0x68] sm:$0xff]
        %v241 = vld [vmem:[%s207 + $0x70] sm:$0xff]
        %v242 = vld [vmem:[%s207 + $0x78] sm:$0xff]
        %v243 = vld [vmem:[%s207 + $0x80] sm:$0xff]
        %v244 = vld [vmem:[%s207 + $0x88] sm:$0xff]
        %v245 = vld [vmem:[%s207 + $0x90] sm:$0xff]
        %v246 = vld [vmem:[%s207 + $0x98] sm:$0xff]
        %v247 = vld [vmem:[%s207 + $0xa0] sm:$0xff]
        %v248 = vld [vmem:[%s207 + $0xa8] sm:$0xff]
        %v249 = vld [vmem:[%s207 + $0xb0] sm:$0xff]
        %v250 = vld [vmem:[%s207 + $0xb8] sm:$0xff]
        %v251 = vld [vmem:[%s207 + $0xc0] sm:$0xff]
        %v252 = vld [vmem:[%s207 + $0xc8] sm:$0xff]
        %v253 = vld [vmem:[%s207 + $0xd0] sm:$0xff]
        %v254 = vld [vmem:[%s207 + $0xd8] sm:$0xff]
        %v255 = vld [vmem:[%s207 + $0xe0] sm:$0xff]
        %v256 = vld [vmem:[%s207 + $0xe8] sm:$0xff]
        %v257 = vld [vmem:[%s207 + $0xf0] sm:$0xff]
        %v258 = vld [vmem:[%s207 + $0xf8] sm:$0xff]
        %v259 = vld [vmem:[%s207 + $0x100] sm:$0xff]
        %v260 = vld [vmem:[%s207 + $0x108] sm:$0xff]
        %v261 = vld [vmem:[%s207 + $0x110] sm:$0xff]
        %v262 = vld [vmem:[%s207 + $0x118] sm:$0xff]
        %v263 = vld [vmem:[%s207 + $0x120] sm:$0xff]
        %v264 = vld [vmem:[%s207 + $0x128] sm:$0xff]
        %v265 = vld [vmem:[%s207 + $0x130] sm:$0xff]
        %v266 = vld [vmem:[%s207 + $0x138] sm:$0xff]
        %v267 = vld [vmem:[%s207 + $0x140] sm:$0xff]
        %v268 = vld [vmem:[%s207 + $0x148] sm:$0xff]
        %v269 = vld [vmem:[%s207 + $0x150] sm:$0xff]
        %v270 = vld [vmem:[%s207 + $0x158] sm:$0xff]
        %v271 = vld [vmem:[%s207 + $0x160] sm:$0xff]
        %v272 = vld [vmem:[%s207 + $0x168] sm:$0xff]
        %v273 = vld [vmem:[%s207 + $0x170] sm:$0xff]
        %v274 = vld [vmem:[%s207 + $0x178] sm:$0xff]
        %v275 = vld [vmem:[%s207 + $0x180] sm:$0xff]
        %v276 = vld [vmem:[%s207 + $0x188] sm:$0xff]
        %v277 = vld [vmem:[%s207 + $0x190] sm:$0xff]
        %v278 = vld [vmem:[%s207 + $0x198] sm:$0xff]
        %v279 = vld [vmem:[%s207 + $0x1a0] sm:$0xff]
        %v280 = vld [vmem:[%s207 + $0x1a8] sm:$0xff]
        %v281 = vld [vmem:[%s207 + $0x1b0] sm:$0xff]
        %v282 = vld [vmem:[%s207 + $0x1b8] sm:$0xff]
        %v283 = vld [vmem:[%s207 + $0x1c0] sm:$0xff]
        %v284 = vld [vmem:[%s207 + $0x1c8] sm:$0xff]
        %v285 = vld [vmem:[%s207 + $0x1d0] sm:$0xff]
        %v286 = vld [vmem:[%s207 + $0x1d8] sm:$0xff]
        %v287 = vld [vmem:[%s207 + $0x1e0] sm:$0xff]
        %v288 = vld [vmem:[%s207 + $0x1e8] sm:$0xff]
        %v289 = vld [vmem:[%s207 + $0x1f0] sm:$0xff]
        %v290 = vld [vmem:[%s207 + $0x1f8] sm:$0xff]
        %v291 = vld [vmem:[%s207 + $0x200] sm:$0xff]
        %v292 = vld [vmem:[%s207 + $0x208] sm:$0xff]
        %v293 = vld [vmem:[%s207 + $0x210] sm:$0xff]
        %v294 = vld [vmem:[%s207 + $0x218] sm:$0xff]
        %v295 = vld [vmem:[%s207 + $0x220] sm:$0xff]
        %v296 = vld [vmem:[%s207 + $0x228] sm:$0xff]
        %v297 = vld [vmem:[%s207 + $0x230] sm:$0xff]
        %v298 = vld [vmem:[%s207 + $0x238] sm:$0xff]
        %v299 = vld [vmem:[%s207 + $0x240] sm:$0xff]
        %v300 = vld [vmem:[%s207 + $0x248] sm:$0xff]
        %v301 = vld [vmem:[%s207 + $0x250] sm:$0xff]
        %v302 = vld [vmem:[%s207 + $0x258] sm:$0xff]
        %v303 = vld [vmem:[%s207 + $0x260] sm:$0xff]
        %v304 = vld [vmem:[%s207 + $0x268] sm:$0xff]
        %v305 = vld [vmem:[%s207 + $0x270] sm:$0xff]
        %v306 = vld [vmem:[%s207 + $0x278] sm:$0xff]
        %v307 = vld [vmem:[%s207 + $0x280] sm:$0xff]
        %v308 = vld [vmem:[%s207 + $0x288] sm:$0xff]
        %v309 = vld [vmem:[%s207 + $0x290] sm:$0xff]
        %v310 = vld [vmem:[%s207 + $0x298] sm:$0xff]
        %v311 = vld [vmem:[%s207 + $0x2a0] sm:$0xff]
        %v312 = vld [vmem:[%s207 + $0x2a8] sm:$0xff]
        %v313 = vld [vmem:[%s207 + $0x2b0] sm:$0xff]
        %v314 = vld [vmem:[%s207 + $0x2b8] sm:$0xff]
        %v315 = vld [vmem:[%s207 + $0x2c0] sm:$0xff]
        %v316 = vld [vmem:[%s207 + $0x2c8] sm:$0xff]
        %v317 = vld [vmem:[%s207 + $0x2d0] sm:$0xff]
        %v318 = vld [vmem:[%s207 + $0x2d8] sm:$0xff]
        %v319 = vld [vmem:[%s207 + $0x2e0] sm:$0xff]
        %v320 = vld [vmem:[%s207 + $0x2e8] sm:$0xff]
        %v321 = vld [vmem:[%s207 + $0x2f0] sm:$0xff]
        %v322 = vld [vmem:[%s207 + $0x2f8] sm:$0xff]
        %v323 = vld [vmem:[%s207 + $0x300] sm:$0xff]
        %v324 = vld [vmem:[%s207 + $0x308] sm:$0xff]
        %v325 = vld [vmem:[%s207 + $0x310] sm:$0xff]
        %v326 = vld [vmem:[%s207 + $0x318] sm:$0xff]
        %v327 = vld [vmem:[%s207 + $0x320] sm:$0xff]
        %v328 = vld [vmem:[%s207 + $0x328] sm:$0xff]
        %v329 = vld [vmem:[%s207 + $0x330] sm:$0xff]
        %v330 = vld [vmem:[%s207 + $0x338] sm:$0xff]
        %v331 = vld [vmem:[%s207 + $0x340] sm:$0xff]
        %v332 = vld [vmem:[%s207 + $0x348] sm:$0xff]
        %v333 = vld [vmem:[%s207 + $0x350] sm:$0xff]
        %v334 = vld [vmem:[%s207 + $0x358] sm:$0xff]
        %v335 = vld [vmem:[%s207 + $0x360] sm:$0xff]
        %v336 = vld [vmem:[%s207 + $0x368] sm:$0xff]
        %v337 = vld [vmem:[%s207 + $0x370] sm:$0xff]
        %v338 = vld [vmem:[%s207 + $0x378] sm:$0xff]
        %v339 = vld [vmem:[%s207 + $0x380] sm:$0xff]
        %v340 = vld [vmem:[%s207 + $0x388] sm:$0xff]
        %v341 = vld [vmem:[%s207 + $0x390] sm:$0xff]
        %v342 = vld [vmem:[%s207 + $0x398] sm:$0xff]
        %v343 = vld [vmem:[%s207 + $0x3a0] sm:$0xff]
        %v344 = vld [vmem:[%s207 + $0x3a8] sm:$0xff]
        %v345 = vld [vmem:[%s207 + $0x3b0] sm:$0xff]
        %v346 = vld [vmem:[%s207 + $0x3b8] sm:$0xff]
        %v347 = vld [vmem:[%s207 + $0x3c0] sm:$0xff]
        %v348 = vld [vmem:[%s207 + $0x3c8] sm:$0xff]
        %v349 = vld [vmem:[%s207 + $0x3d0] sm:$0xff]
        %v350 = vld [vmem:[%s207 + $0x3d8] sm:$0xff]
        %v351 = vld [vmem:[%s207 + $0x3e0] sm:$0xff]
        %v352 = vld [vmem:[%s207 + $0x3e8] sm:$0xff]
        %v353 = vld [vmem:[%s207 + $0x3f0] sm:$0xff]
        %v354 = vld [vmem:[%s207 + $0x3f8] sm:$0xff]
        %v355 = vld [vmem:[%s207 + $0x400] sm:$0xff]
        %v356 = vld [vmem:[%s207 + $0x408] sm:$0xff]
        %v357 = vld [vmem:[%s207 + $0x410] sm:$0xff]
        %v358 = vld [vmem:[%s207 + $0x418] sm:$0xff]
        %v359 = vld [vmem:[%s207 + $0x420] sm:$0xff]
        %v360 = vld [vmem:[%s207 + $0x428] sm:$0xff]
        %v361 = vld [vmem:[%s207 + $0x430] sm:$0xff]
        %v362 = vld [vmem:[%s207 + $0x438] sm:$0xff]
        %v363 = vld [vmem:[%s207 + $0x440] sm:$0xff]
        %v364 = vld [vmem:[%s207 + $0x448] sm:$0xff]
        %v365 = vld [vmem:[%s207 + $0x450] sm:$0xff]
        %v366 = vld [vmem:[%s207 + $0x458] sm:$0xff]
        %v367 = vld [vmem:[%s207 + $0x460] sm:$0xff]
        %v368 = vld [vmem:[%s207 + $0x468] sm:$0xff]
        %v369 = vld [vmem:[%s207 + $0x470] sm:$0xff]
        %v370 = vld [vmem:[%s207 + $0x478] sm:$0xff]
        %v371 = vld [vmem:[%s207 + $0x480] sm:$0xff]
        %v372 = vld [vmem:[%s207 + $0x488] sm:$0xff]
        %v373 = vld [vmem:[%s207 + $0x490] sm:$0xff]
        %v374 = vld [vmem:[%s207 + $0x498] sm:$0xff]
        %v375 = vld [vmem:[%s207 + $0x4a0] sm:$0xff]
        %v376 = vld [vmem:[%s207 + $0x4a8] sm:$0xff]
        %v377 = vld [vmem:[%s207 + $0x4b0] sm:$0xff]
        %v378 = vld [vmem:[%s207 + $0x4b8] sm:$0xff]
        %v379 = vld [vmem:[%s207 + $0x4c0] sm:$0xff]
        %v380 = vld [vmem:[%s207 + $0x4c8] sm:$0xff]
        %v381 = vld [vmem:[%s207 + $0x4d0] sm:$0xff]
        %v382 = vld [vmem:[%s207 + $0x4d8] sm:$0xff]
        %v383 = vld [vmem:[%s207 + $0x4e0] sm:$0xff]
        %v384 = vld [vmem:[%s207 + $0x4e8] sm:$0xff]
        %v385 = vld [vmem:[%s207 + $0x4f0] sm:$0xff]
        %v386 = vld [vmem:[%s207 + $0x4f8] sm:$0xff]
        %v387 = vld [vmem:[%s207 + $0x500] sm:$0xff]
        %v388 = vld [vmem:[%s207 + $0x508] sm:$0xff]
        %v389 = vld [vmem:[%s207 + $0x510] sm:$0xff]
        %v390 = vld [vmem:[%s207 + $0x518] sm:$0xff]
        %v391 = vld [vmem:[%s207 + $0x520] sm:$0xff]
        %v392 = vld [vmem:[%s207 + $0x528] sm:$0xff]
        %v393 = vld [vmem:[%s207 + $0x530] sm:$0xff]
        %v394 = vld [vmem:[%s207 + $0x538] sm:$0xff]
        %v395 = vld [vmem:[%s207 + $0x540] sm:$0xff]
        %v396 = vld [vmem:[%s207 + $0x548] sm:$0xff]
        %v397 = vld [vmem:[%s207 + $0x550] sm:$0xff]
        %v398 = vld [vmem:[%s207 + $0x558] sm:$0xff]
        %v399 = vld [vmem:[%s207 + $0x560] sm:$0xff]
        %v400 = vld [vmem:[%s207 + $0x568] sm:$0xff]
        %v401 = vld [vmem:[%s207 + $0x570] sm:$0xff]
        %v402 = vld [vmem:[%s207 + $0x578] sm:$0xff]
        %v403 = vld [vmem:[%s207 + $0x580] sm:$0xff]
        %v404 = vld [vmem:[%s207 + $0x588] sm:$0xff]
        %v405 = vld [vmem:[%s207 + $0x590] sm:$0xff]
        %v406 = vld [vmem:[%s207 + $0x598] sm:$0xff]
        %v407 = vld [vmem:[%s207 + $0x5a0] sm:$0xff]
        %v408 = vld [vmem:[%s207 + $0x5a8] sm:$0xff]
        %v409 = vld [vmem:[%s207 + $0x5b0] sm:$0xff]
        %v410 = vld [vmem:[%s207 + $0x5b8] sm:$0xff]
        %v411 = vld [vmem:[%s207 + $0x5c0] sm:$0xff]
        %v412 = vld [vmem:[%s207 + $0x5c8] sm:$0xff]
        %v413 = vld [vmem:[%s207 + $0x5d0] sm:$0xff]
        %v414 = vld [vmem:[%s207 + $0x5d8] sm:$0xff]
        %v415 = vld [vmem:[%s207 + $0x5e0] sm:$0xff]
        %v416 = vld [vmem:[%s207 + $0x5e8] sm:$0xff]
        %v417 = vld [vmem:[%s207 + $0x5f0] sm:$0xff]
        %v418 = vld [vmem:[%s207 + $0x5f8] sm:$0xff]
        %v419 = vld [vmem:[%s207 + $0x600] sm:$0xff]
        %v420 = vld [vmem:[%s207 + $0x608] sm:$0xff]
        %v421 = vld [vmem:[%s207 + $0x610] sm:$0xff]
        %v422 = vld [vmem:[%s207 + $0x618] sm:$0xff]
        %v423 = vld [vmem:[%s207 + $0x620] sm:$0xff]
        %v424 = vld [vmem:[%s207 + $0x628] sm:$0xff]
        %v425 = vld [vmem:[%s207 + $0x630] sm:$0xff]
        %v426 = vld [vmem:[%s207 + $0x638] sm:$0xff]
        %v427 = vld [vmem:[%s207 + $0x640] sm:$0xff]
        %v428 = vld [vmem:[%s207 + $0x648] sm:$0xff]
        %v429 = vld [vmem:[%s207 + $0x650] sm:$0xff]
        %v430 = vld [vmem:[%s207 + $0x658] sm:$0xff]
        %v431 = vld [vmem:[%s207 + $0x660] sm:$0xff]
        %v432 = vld [vmem:[%s207 + $0x668] sm:$0xff]
        %v433 = vld [vmem:[%s207 + $0x670] sm:$0xff]
        %v434 = vld [vmem:[%s207 + $0x678] sm:$0xff]
        %v435 = vld [vmem:[%s207 + $0x680] sm:$0xff]
        %v436 = vld [vmem:[%s207 + $0x688] sm:$0xff]
        %v437 = vld [vmem:[%s207 + $0x690] sm:$0xff]
        %v438 = vld [vmem:[%s207 + $0x698] sm:$0xff]
        %v439 = vld [vmem:[%s207 + $0x6a0] sm:$0xff]
        %v440 = vld [vmem:[%s207 + $0x6a8] sm:$0xff]
        %v441 = vld [vmem:[%s207 + $0x6b0] sm:$0xff]
        %v442 = vld [vmem:[%s207 + $0x6b8] sm:$0xff]
        %v443 = vld [vmem:[%s207 + $0x6c0] sm:$0xff]
        %v444 = vld [vmem:[%s207 + $0x6c8] sm:$0xff]
        %v445 = vld [vmem:[%s207 + $0x6d0] sm:$0xff]
        %v446 = vld [vmem:[%s207 + $0x6d8] sm:$0xff]
        %v447 = vld [vmem:[%s207 + $0x6e0] sm:$0xff]
        %v448 = vld [vmem:[%s207 + $0x6e8] sm:$0xff]
        %v449 = vld [vmem:[%s207 + $0x6f0] sm:$0xff]
        %v450 = vld [vmem:[%s207 + $0x6f8] sm:$0xff]
        %v451 = vld [vmem:[%s207 + $0x700] sm:$0xff]
        %v452 = vld [vmem:[%s207 + $0x708] sm:$0xff]
        %v453 = vld [vmem:[%s207 + $0x710] sm:$0xff]
        %v454 = vld [vmem:[%s207 + $0x718] sm:$0xff]
        %v455 = vld [vmem:[%s207 + $0x720] sm:$0xff]
        %v456 = vld [vmem:[%s207 + $0x728] sm:$0xff]
        %v457 = vld [vmem:[%s207 + $0x730] sm:$0xff]
        %v458 = vld [vmem:[%s207 + $0x738] sm:$0xff]
        %v459 = vld [vmem:[%s207 + $0x740] sm:$0xff]
        %v460 = vld [vmem:[%s207 + $0x748] sm:$0xff]
        %v461 = vld [vmem:[%s207 + $0x750] sm:$0xff]
        %v462 = vld [vmem:[%s207 + $0x758] sm:$0xff]
        %v463 = vld [vmem:[%s207 + $0x760] sm:$0xff]
        %v464 = vld [vmem:[%s207 + $0x768] sm:$0xff]
        %v465 = vld [vmem:[%s207 + $0x770] sm:$0xff]
        %v466 = vld [vmem:[%s207 + $0x778] sm:$0xff]
        %v467 = vld [vmem:[%s207 + $0x780] sm:$0xff]
        %v468 = vld [vmem:[%s207 + $0x788] sm:$0xff]
        %v469 = vld [vmem:[%s207 + $0x790] sm:$0xff]
        %v470 = vld [vmem:[%s207 + $0x798] sm:$0xff]
        %v471 = vld [vmem:[%s207 + $0x7a0] sm:$0xff]
        %v472 = vld [vmem:[%s207 + $0x7a8] sm:$0xff]
        %v473 = vld [vmem:[%s207 + $0x7b0] sm:$0xff]
        %v474 = vld [vmem:[%s207 + $0x7b8] sm:$0xff]
        %v475 = vld [vmem:[%s207 + $0x7c0] sm:$0xff]
        %v476 = vld [vmem:[%s207 + $0x7c8] sm:$0xff]
        %v477 = vld [vmem:[%s207 + $0x7d0] sm:$0xff]
        %v478 = vld [vmem:[%s207 + $0x7d8] sm:$0xff]
        %v479 = vld [vmem:[%s207 + $0x7e0] sm:$0xff]
        %v480 = vld [vmem:[%s207 + $0x7e8] sm:$0xff]
        %v481 = vld [vmem:[%s207 + $0x7f0] sm:$0xff]
        %v482 = vld [vmem:[%s207 + $0x7f8] sm:$0xff]
        %v483 = vld [vmem:[%s207 + $0x800] sm:$0xff]
        %v484 = vld [vmem:[%s207 + $0x808] sm:$0xff]
        %v485 = vld [vmem:[%s207 + $0x810] sm:$0xff]
        %v486 = vld [vmem:[%s207 + $0x818] sm:$0xff]
        %v487 = vld [vmem:[%s207 + $0x820] sm:$0xff]
        %v488 = vld [vmem:[%s207 + $0x828] sm:$0xff]
        %v489 = vld [vmem:[%s207 + $0x830] sm:$0xff]
        %v490 = vld [vmem:[%s207 + $0x838] sm:$0xff]
        %v491 = vld [vmem:[%s207 + $0x840] sm:$0xff]
        %v492 = vld [vmem:[%s207 + $0x848] sm:$0xff]
        %v493 = vld [vmem:[%s207 + $0x850] sm:$0xff]
        %v494 = vld [vmem:[%s207 + $0x858] sm:$0xff]
        %v495 = vld [vmem:[%s207 + $0x860] sm:$0xff]
        %v496 = vld [vmem:[%s207 + $0x868] sm:$0xff]
        %v497 = vld [vmem:[%s207 + $0x870] sm:$0xff]
        %v498 = vld [vmem:[%s207 + $0x878] sm:$0xff]
        %v499 = vld [vmem:[%s207 + $0x880] sm:$0xff]
        %v500 = vld [vmem:[%s207 + $0x888] sm:$0xff]
        %v501 = vld [vmem:[%s207 + $0x890] sm:$0xff]
        %v502 = vld [vmem:[%s207 + $0x898] sm:$0xff]
        %v503 = vld [vmem:[%s207 + $0x8a0] sm:$0xff]
        %v504 = vld [vmem:[%s207 + $0x8a8] sm:$0xff]
        %v505 = vld [vmem:[%s207 + $0x8b0] sm:$0xff]
        %v506 = vld [vmem:[%s207 + $0x8b8] sm:$0xff]
        %v507 = vld [vmem:[%s207 + $0x8c0] sm:$0xff]
        %v508 = vld [vmem:[%s207 + $0x8c8] sm:$0xff]
        %v509 = vld [vmem:[%s207 + $0x8d0] sm:$0xff]
        %v510 = vld [vmem:[%s207 + $0x8d8] sm:$0xff]
        %v511 = vld [vmem:[%s207 + $0x8e0] sm:$0xff]
        %v512 = vld [vmem:[%s207 + $0x8e8] sm:$0xff]
        %v513 = vld [vmem:[%s207 + $0x8f0] sm:$0xff]
        %v514 = vld [vmem:[%s207 + $0x8f8] sm:$0xff]
        %v515 = vld [vmem:[%s207 + $0x900] sm:$0xff]
        %v516 = vld [vmem:[%s207 + $0x908] sm:$0xff]
        %v517 = vld [vmem:[%s207 + $0x910] sm:$0xff]
        %v518 = vld [vmem:[%s207 + $0x918] sm:$0xff]
        %v519 = vld [vmem:[%s207 + $0x920] sm:$0xff]
        %v520 = vld [vmem:[%s207 + $0x928] sm:$0xff]
        %v521 = vld [vmem:[%s207 + $0x930] sm:$0xff]
        %v522 = vld [vmem:[%s207 + $0x938] sm:$0xff]
        %v523 = vld [vmem:[%s207 + $0x940] sm:$0xff]
        %v524 = vld [vmem:[%s207 + $0x948] sm:$0xff]
        %v525 = vld [vmem:[%s207 + $0x950] sm:$0xff]
        %v526 = vld [vmem:[%s207 + $0x958] sm:$0xff]
        %v527 = vld [vmem:[%s207 + $0x960] sm:$0xff]
        %v528 = vld [vmem:[%s207 + $0x968] sm:$0xff]
        %v529 = vld [vmem:[%s207 + $0x970] sm:$0xff]
        %v530 = vld [vmem:[%s207 + $0x978] sm:$0xff]
        %v531 = vld [vmem:[%s207 + $0x980] sm:$0xff]
        %v532 = vld [vmem:[%s207 + $0x988] sm:$0xff]
        %v533 = vld [vmem:[%s207 + $0x990] sm:$0xff]
        %v534 = vld [vmem:[%s207 + $0x998] sm:$0xff]
        %v535 = vld [vmem:[%s207 + $0x9a0] sm:$0xff]
        %v536 = vld [vmem:[%s207 + $0x9a8] sm:$0xff]
        %v537 = vld [vmem:[%s207 + $0x9b0] sm:$0xff]
        %v538 = vld [vmem:[%s207 + $0x9b8] sm:$0xff]
        %v539 = vld [vmem:[%s207 + $0x9c0] sm:$0xff]
        %v540 = vld [vmem:[%s207 + $0x9c8] sm:$0xff]
        %v541 = vld [vmem:[%s207 + $0x9d0] sm:$0xff]
        %v542 = vld [vmem:[%s207 + $0x9d8] sm:$0xff]
        %v543 = vld [vmem:[%s207 + $0x9e0] sm:$0xff]
        %v544 = vld [vmem:[%s207 + $0x9e8] sm:$0xff]
        %v545 = vld [vmem:[%s207 + $0x9f0] sm:$0xff]
        %v546 = vld [vmem:[%s207 + $0x9f8] sm:$0xff]
        %v547 = vld [vmem:[%s207 + $0xa00] sm:$0xff]
        %v548 = vld [vmem:[%s207 + $0xa08] sm:$0xff]
        %v549 = vld [vmem:[%s207 + $0xa10] sm:$0xff]
        %v550 = vld [vmem:[%s207 + $0xa18] sm:$0xff]
        %v551 = vld [vmem:[%s207 + $0xa20] sm:$0xff]
        %v552 = vld [vmem:[%s207 + $0xa28] sm:$0xff]
        %v553 = vld [vmem:[%s207 + $0xa30] sm:$0xff]
        %v554 = vld [vmem:[%s207 + $0xa38] sm:$0xff]
        %v555 = vld [vmem:[%s207 + $0xa40] sm:$0xff]
        %v556 = vld [vmem:[%s207 + $0xa48] sm:$0xff]
        %v557 = vld [vmem:[%s207 + $0xa50] sm:$0xff]
        %v558 = vld [vmem:[%s207 + $0xa58] sm:$0xff]
        %v559 = vld [vmem:[%s207 + $0xa60] sm:$0xff]
        %v560 = vld [vmem:[%s207 + $0xa68] sm:$0xff]
        %v561 = vld [vmem:[%s207 + $0xa70] sm:$0xff]
        %v562 = vld [vmem:[%s207 + $0xa78] sm:$0xff]
        %v563 = vld [vmem:[%s207 + $0xa80] sm:$0xff]
        %v564 = vld [vmem:[%s207 + $0xa88] sm:$0xff]
        %v565 = vld [vmem:[%s207 + $0xa90] sm:$0xff]
        %v566 = vld [vmem:[%s207 + $0xa98] sm:$0xff]
        %v567 = vld [vmem:[%s207 + $0xaa0] sm:$0xff]
        %v568 = vld [vmem:[%s207 + $0xaa8] sm:$0xff]
        %v569 = vld [vmem:[%s207 + $0xab0] sm:$0xff]
        %v570 = vld [vmem:[%s207 + $0xab8] sm:$0xff]
        %v571 = vld [vmem:[%s207 + $0xac0] sm:$0xff]
        %v572 = vld [vmem:[%s207 + $0xac8] sm:$0xff]
        %v573 = vld [vmem:[%s207 + $0xad0] sm:$0xff]
        %v574 = vld [vmem:[%s207 + $0xad8] sm:$0xff]
        %v575 = vld [vmem:[%s207 + $0xae0] sm:$0xff]
        %v576 = vld [vmem:[%s207 + $0xae8] sm:$0xff]
        %v577 = vld [vmem:[%s207 + $0xaf0] sm:$0xff]
        %v578 = vld [vmem:[%s207 + $0xaf8] sm:$0xff]
        %v579 = vld [vmem:[%s207 + $0xb00] sm:$0xff]
        %v580 = vld [vmem:[%s207 + $0xb08] sm:$0xff]
        %v581 = vld [vmem:[%s207 + $0xb10] sm:$0xff]
        %v582 = vld [vmem:[%s207 + $0xb18] sm:$0xff]
        %v583 = vld [vmem:[%s207 + $0xb20] sm:$0xff]
        %v584 = vld [vmem:[%s207 + $0xb28] sm:$0xff]
        %v585 = vld [vmem:[%s207 + $0xb30] sm:$0xff]
        %v586 = vld [vmem:[%s207 + $0xb38] sm:$0xff]
        %v587 = vld [vmem:[%s207 + $0xb40] sm:$0xff]
        %v588 = vld [vmem:[%s207 + $0xb48] sm:$0xff]
        %v589 = vld [vmem:[%s207 + $0xb50] sm:$0xff]
        %v590 = vld [vmem:[%s207 + $0xb58] sm:$0xff]
        %v591 = vld [vmem:[%s207 + $0xb60] sm:$0xff]
        %v592 = vld [vmem:[%s207 + $0xb68] sm:$0xff]
        %v593 = vld [vmem:[%s207 + $0xb70] sm:$0xff]
        %v594 = vld [vmem:[%s207 + $0xb78] sm:$0xff]
        %v595 = vld [vmem:[%s207 + $0xb80] sm:$0xff]
        %v596 = vld [vmem:[%s207 + $0xb88] sm:$0xff]
        %v597 = vld [vmem:[%s207 + $0xb90] sm:$0xff]
        %v598 = vld [vmem:[%s207 + $0xb98] sm:$0xff]
        %v599 = vld [vmem:[%s207 + $0xba0] sm:$0xff]
        %v600 = vld [vmem:[%s207 + $0xba8] sm:$0xff]
        %v601 = vld [vmem:[%s207 + $0xbb0] sm:$0xff]
        %v602 = vld [vmem:[%s207 + $0xbb8] sm:$0xff]
        %v603 = vld [vmem:[%s207 + $0xbc0] sm:$0xff]
        %v604 = vld [vmem:[%s207 + $0xbc8] sm:$0xff]
        %v605 = vld [vmem:[%s207 + $0xbd0] sm:$0xff]
        %v606 = vld [vmem:[%s207 + $0xbd8] sm:$0xff]
        %v607 = vld [vmem:[%s207 + $0xbe0] sm:$0xff]
        %v608 = vld [vmem:[%s207 + $0xbe8] sm:$0xff]
        %v609 = vld [vmem:[%s207 + $0xbf0] sm:$0xff]
        %v610 = vld [vmem:[%s207 + $0xbf8] sm:$0xff]
        %v611 = vld [vmem:[%s207 + $0xc00] sm:$0xff]
        %v612 = vld [vmem:[%s207 + $0xc08] sm:$0xff]
        %v613 = vld [vmem:[%s207 + $0xc10] sm:$0xff]
        %v614 = vld [vmem:[%s207 + $0xc18] sm:$0xff]
        %v615 = vld [vmem:[%s207 + $0xc20] sm:$0xff]
        %v616 = vld [vmem:[%s207 + $0xc28] sm:$0xff]
        %v617 = vld [vmem:[%s207 + $0xc30] sm:$0xff]
        %v618 = vld [vmem:[%s207 + $0xc38] sm:$0xff]
        %v619 = vld [vmem:[%s207 + $0xc40] sm:$0xff]
        %v620 = vld [vmem:[%s207 + $0xc48] sm:$0xff]
        %v621 = vld [vmem:[%s207 + $0xc50] sm:$0xff]
        %v622 = vld [vmem:[%s207 + $0xc58] sm:$0xff]
        %v623 = vld [vmem:[%s207 + $0xc60] sm:$0xff]
        %v624 = vld [vmem:[%s207 + $0xc68] sm:$0xff]
        %v625 = vld [vmem:[%s207 + $0xc70] sm:$0xff]
        %v626 = vld [vmem:[%s207 + $0xc78] sm:$0xff]
        %v627 = vld [vmem:[%s207 + $0xc80] sm:$0xff]
        %v628 = vld [vmem:[%s207 + $0xc88] sm:$0xff]
        %v629 = vld [vmem:[%s207 + $0xc90] sm:$0xff]
        %v630 = vld [vmem:[%s207 + $0xc98] sm:$0xff]
        %v631 = vld [vmem:[%s207 + $0xca0] sm:$0xff]
        %v632 = vld [vmem:[%s207 + $0xca8] sm:$0xff]
        %v633 = vld [vmem:[%s207 + $0xcb0] sm:$0xff]
        %v634 = vld [vmem:[%s207 + $0xcb8] sm:$0xff]
        %v635 = vld [vmem:[%s207 + $0xcc0] sm:$0xff]
        %v636 = vld [vmem:[%s207 + $0xcc8] sm:$0xff]
        %v637 = vld [vmem:[%s207 + $0xcd0] sm:$0xff]
        %v638 = vld [vmem:[%s207 + $0xcd8] sm:$0xff]
        %v639 = vld [vmem:[%s207 + $0xce0] sm:$0xff]
        %v640 = vld [vmem:[%s207 + $0xce8] sm:$0xff]
        %v641 = vld [vmem:[%s207 + $0xcf0] sm:$0xff]
        %v642 = vld [vmem:[%s207 + $0xcf8] sm:$0xff]
        %v643 = vld [vmem:[%s207 + $0xd00] sm:$0xff]
        %v644 = vld [vmem:[%s207 + $0xd08] sm:$0xff]
        %v645 = vld [vmem:[%s207 + $0xd10] sm:$0xff]
        %v646 = vld [vmem:[%s207 + $0xd18] sm:$0xff]
        %v647 = vld [vmem:[%s207 + $0xd20] sm:$0xff]
        %v648 = vld [vmem:[%s207 + $0xd28] sm:$0xff]
        %v649 = vld [vmem:[%s207 + $0xd30] sm:$0xff]
        %v650 = vld [vmem:[%s207 + $0xd38] sm:$0xff]
        %v651 = vld [vmem:[%s207 + $0xd40] sm:$0xff]
        %v652 = vld [vmem:[%s207 + $0xd48] sm:$0xff]
        %v653 = vld [vmem:[%s207 + $0xd50] sm:$0xff]
        %v654 = vld [vmem:[%s207 + $0xd58] sm:$0xff]
        %v655 = vld [vmem:[%s207 + $0xd60] sm:$0xff]
        %v656 = vld [vmem:[%s207 + $0xd68] sm:$0xff]
        %v657 = vld [vmem:[%s207 + $0xd70] sm:$0xff]
        %v658 = vld [vmem:[%s207 + $0xd78] sm:$0xff]
        %v659 = vld [vmem:[%s207 + $0xd80] sm:$0xff]
        %v660 = vld [vmem:[%s207 + $0xd88] sm:$0xff]
        %v661 = vld [vmem:[%s207 + $0xd90] sm:$0xff]
        %v662 = vld [vmem:[%s207 + $0xd98] sm:$0xff]
        %v663 = vld [vmem:[%s207 + $0xda0] sm:$0xff]
        %v664 = vld [vmem:[%s207 + $0xda8] sm:$0xff]
        %v665 = vld [vmem:[%s207 + $0xdb0] sm:$0xff]
        %v666 = vld [vmem:[%s207 + $0xdb8] sm:$0xff]
        %v667 = vld [vmem:[%s207 + $0xdc0] sm:$0xff]
        %v668 = vld [vmem:[%s207 + $0xdc8] sm:$0xff]
        %v669 = vld [vmem:[%s207 + $0xdd0] sm:$0xff]
        %v670 = vld [vmem:[%s207 + $0xdd8] sm:$0xff]
        %v671 = vld [vmem:[%s207 + $0xde0] sm:$0xff]
        %v672 = vld [vmem:[%s207 + $0xde8] sm:$0xff]
        %v673 = vld [vmem:[%s207 + $0xdf0] sm:$0xff]
        %v674 = vld [vmem:[%s207 + $0xdf8] sm:$0xff]
        %v675 = vld [vmem:[%s207 + $0xe00] sm:$0xff]
        %v676 = vld [vmem:[%s207 + $0xe08] sm:$0xff]
        %v677 = vld [vmem:[%s207 + $0xe10] sm:$0xff]
        %v678 = vld [vmem:[%s207 + $0xe18] sm:$0xff]
        %v679 = vld [vmem:[%s207 + $0xe20] sm:$0xff]
        %v680 = vld [vmem:[%s207 + $0xe28] sm:$0xff]
        %v681 = vld [vmem:[%s207 + $0xe30] sm:$0xff]
        %v682 = vld [vmem:[%s207 + $0xe38] sm:$0xff]
        %v683 = vld [vmem:[%s207 + $0xe40] sm:$0xff]
        %v684 = vld [vmem:[%s207 + $0xe48] sm:$0xff]
        %v685 = vld [vmem:[%s207 + $0xe50] sm:$0xff]
        %v686 = vld [vmem:[%s207 + $0xe58] sm:$0xff]
        %v687 = vld [vmem:[%s207 + $0xe60] sm:$0xff]
        %v688 = vld [vmem:[%s207 + $0xe68] sm:$0xff]
        %v689 = vld [vmem:[%s207 + $0xe70] sm:$0xff]
        %v690 = vld [vmem:[%s207 + $0xe78] sm:$0xff]
        %v691 = vld [vmem:[%s207 + $0xe80] sm:$0xff]
        %v692 = vld [vmem:[%s207 + $0xe88] sm:$0xff]
        %v693 = vld [vmem:[%s207 + $0xe90] sm:$0xff]
        %v694 = vld [vmem:[%s207 + $0xe98] sm:$0xff]
        %v695 = vld [vmem:[%s207 + $0xea0] sm:$0xff]
        %v696 = vld [vmem:[%s207 + $0xea8] sm:$0xff]
        %v697 = vld [vmem:[%s207 + $0xeb0] sm:$0xff]
        %v698 = vld [vmem:[%s207 + $0xeb8] sm:$0xff]
        %v699 = vld [vmem:[%s207 + $0xec0] sm:$0xff]
        %v700 = vld [vmem:[%s207 + $0xec8] sm:$0xff]
        %v701 = vld [vmem:[%s207 + $0xed0] sm:$0xff]
        %v702 = vld [vmem:[%s207 + $0xed8] sm:$0xff]
        %v703 = vld [vmem:[%s207 + $0xee0] sm:$0xff]
        %v704 = vld [vmem:[%s207 + $0xee8] sm:$0xff]
        %v705 = vld [vmem:[%s207 + $0xef0] sm:$0xff]
        %v706 = vld [vmem:[%s207 + $0xef8] sm:$0xff]
        %v707 = vld [vmem:[%s207 + $0xf00] sm:$0xff]
        %v708 = vld [vmem:[%s207 + $0xf08] sm:$0xff]
        %v709 = vld [vmem:[%s207 + $0xf10] sm:$0xff]
        %v710 = vld [vmem:[%s207 + $0xf18] sm:$0xff]
        %v711 = vld [vmem:[%s207 + $0xf20] sm:$0xff]
        %v712 = vld [vmem:[%s207 + $0xf28] sm:$0xff]
        %v713 = vld [vmem:[%s207 + $0xf30] sm:$0xff]
        %v714 = vld [vmem:[%s207 + $0xf38] sm:$0xff]
        %v715 = vld [vmem:[%s207 + $0xf40] sm:$0xff]
        %v716 = vld [vmem:[%s207 + $0xf48] sm:$0xff]
        %v717 = vld [vmem:[%s207 + $0xf50] sm:$0xff]
        %v718 = vld [vmem:[%s207 + $0xf58] sm:$0xff]
        %v719 = vld [vmem:[%s207 + $0xf60] sm:$0xff]
        %v720 = vld [vmem:[%s207 + $0xf68] sm:$0xff]
        %v721 = vld [vmem:[%s207 + $0xf70] sm:$0xff]
        %v722 = vld [vmem:[%s207 + $0xf78] sm:$0xff]
        %v723 = vld [vmem:[%s207 + $0xf80] sm:$0xff]
        %v724 = vld [vmem:[%s207 + $0xf88] sm:$0xff]
        %v725 = vld [vmem:[%s207 + $0xf90] sm:$0xff]
        %v726 = vld [vmem:[%s207 + $0xf98] sm:$0xff]
        %v727 = vld [vmem:[%s207 + $0xfa0] sm:$0xff]
        %v728 = vld [vmem:[%s207 + $0xfa8] sm:$0xff]
        %v729 = vld [vmem:[%s207 + $0xfb0] sm:$0xff]
        %v730 = vld [vmem:[%s207 + $0xfb8] sm:$0xff]
        %v731 = vld [vmem:[%s207 + $0xfc0] sm:$0xff]
        %v732 = vld [vmem:[%s207 + $0xfc8] sm:$0xff]
        %v733 = vld [vmem:[%s207 + $0xfd0] sm:$0xff]
        %v734 = vld [vmem:[%s207 + $0xfd8] sm:$0xff]
        %v735 = vld [vmem:[%s207 + $0xfe0] sm:$0xff]
        %v736 = vld [vmem:[%s207 + $0xfe8] sm:$0xff]
        %v737 = vld [vmem:[%s207 + $0xff0] sm:$0xff]
        %v738 = vld [vmem:[%s207 + $0xff8] sm:$0xff]
        %v739 = vld [vmem:[%s207 + $0x1000] sm:$0xff]
        %v740 = vld [vmem:[%s207 + $0x1008] sm:$0xff]
        %v741 = vld [vmem:[%s207 + $0x1010] sm:$0xff]
        %v742 = vld [vmem:[%s207 + $0x1018] sm:$0xff]
        %v743 = vld [vmem:[%s207 + $0x1020] sm:$0xff]
        %v744 = vld [vmem:[%s207 + $0x1028] sm:$0xff]
        %v745 = vld [vmem:[%s207 + $0x1030] sm:$0xff]
        %v746 = vld [vmem:[%s207 + $0x1038] sm:$0xff]
        %v747 = vld [vmem:[%s207 + $0x1040] sm:$0xff]
        %v748 = vld [vmem:[%s207 + $0x1048] sm:$0xff]
        %v749 = vld [vmem:[%s207 + $0x1050] sm:$0xff]
        %v750 = vld [vmem:[%s207 + $0x1058] sm:$0xff]
        %v751 = vld [vmem:[%s207 + $0x1060] sm:$0xff]
        %v752 = vld [vmem:[%s207 + $0x1068] sm:$0xff]
        %v753 = vld [vmem:[%s207 + $0x1070] sm:$0xff]
        %v754 = vld [vmem:[%s207 + $0x1078] sm:$0xff]
        %v755 = vld [vmem:[%s207 + $0x1080] sm:$0xff]
        %v756 = vld [vmem:[%s207 + $0x1088] sm:$0xff]
        %v757 = vld [vmem:[%s207 + $0x1090] sm:$0xff]
        %v758 = vld [vmem:[%s207 + $0x1098] sm:$0xff]
        %v759 = vld [vmem:[%s207 + $0x10a0] sm:$0xff]
        %v760 = vld [vmem:[%s207 + $0x10a8] sm:$0xff]
        %v761 = vld [vmem:[%s207 + $0x10b0] sm:$0xff]
        %v762 = vld [vmem:[%s207 + $0x10b8] sm:$0xff]
        %v763 = vld [vmem:[%s207 + $0x10c0] sm:$0xff]
        %v764 = vld [vmem:[%s207 + $0x10c8] sm:$0xff]
        %v765 = vld [vmem:[%s207 + $0x10d0] sm:$0xff]
        %v766 = vld [vmem:[%s207 + $0x10d8] sm:$0xff]
        %v767 = vld [vmem:[%s207 + $0x10e0] sm:$0xff]
        %v768 = vld [vmem:[%s207 + $0x10e8] sm:$0xff]
        %v769 = vld [vmem:[%s207 + $0x10f0] sm:$0xff]
        %v770 = vld [vmem:[%s207 + $0x10f8] sm:$0xff]
        %v771 = vld [vmem:[%s207 + $0x1100] sm:$0xff]
        %v772 = vld [vmem:[%s207 + $0x1108] sm:$0xff]
        %v773 = vld [vmem:[%s207 + $0x1110] sm:$0xff]
        %v774 = vld [vmem:[%s207 + $0x1118] sm:$0xff]
        %v775 = vld [vmem:[%s207 + $0x1120] sm:$0xff]
        %v776 = vld [vmem:[%s207 + $0x1128] sm:$0xff]
        %v777 = vld [vmem:[%s207 + $0x1130] sm:$0xff]
        %v778 = vld [vmem:[%s207 + $0x1138] sm:$0xff]
        %v779 = vld [vmem:[%s207 + $0x1140] sm:$0xff]
        %v780 = vld [vmem:[%s207 + $0x1148] sm:$0xff]
        %v781 = vld [vmem:[%s207 + $0x1150] sm:$0xff]
        %v782 = vld [vmem:[%s207 + $0x1158] sm:$0xff]
        %v783 = vld [vmem:[%s207 + $0x1160] sm:$0xff]
        %v784 = vld [vmem:[%s207 + $0x1168] sm:$0xff]
        %v785 = vld [vmem:[%s207 + $0x1170] sm:$0xff]
        %v786 = vld [vmem:[%s207 + $0x1178] sm:$0xff]
        %v787 = vld [vmem:[%s207 + $0x1180] sm:$0xff]
        %v788 = vld [vmem:[%s207 + $0x1188] sm:$0xff]
        %v789 = vld [vmem:[%s207 + $0x1190] sm:$0xff]
        %v790 = vld [vmem:[%s207 + $0x1198] sm:$0xff]
        %v791 = vld [vmem:[%s207 + $0x11a0] sm:$0xff]
        %v792 = vld [vmem:[%s207 + $0x11a8] sm:$0xff]
        %v793 = vld [vmem:[%s207 + $0x11b0] sm:$0xff]
        %v794 = vld [vmem:[%s207 + $0x11b8] sm:$0xff]
        %v795 = vld [vmem:[%s207 + $0x11c0] sm:$0xff]
        %v796 = vld [vmem:[%s207 + $0x11c8] sm:$0xff]
        %v797 = vld [vmem:[%s207 + $0x11d0] sm:$0xff]
        %v798 = vld [vmem:[%s207 + $0x11d8] sm:$0xff]
        %v799 = vld [vmem:[%s207 + $0x11e0] sm:$0xff]
        %v800 = vld [vmem:[%s207 + $0x11e8] sm:$0xff]
        %v801 = vld [vmem:[%s207 + $0x11f0] sm:$0xff]
        %v802 = vld [vmem:[%s207 + $0x11f8] sm:$0xff]
        %v803 = vld [vmem:[%s207 + $0x1200] sm:$0xff]
        %v804 = vld [vmem:[%s207 + $0x1208] sm:$0xff]
        %v805 = vld [vmem:[%s207 + $0x1210] sm:$0xff]
        %v806 = vld [vmem:[%s207 + $0x1218] sm:$0xff]
        %v807 = vld [vmem:[%s207 + $0x1220] sm:$0xff]
        %v808 = vld [vmem:[%s207 + $0x1228] sm:$0xff]
        %v809 = vld [vmem:[%s207 + $0x1230] sm:$0xff]
        %v810 = vld [vmem:[%s207 + $0x1238] sm:$0xff]
        %v811 = vld [vmem:[%s207 + $0x1240] sm:$0xff]
        %v812 = vld [vmem:[%s207 + $0x1248] sm:$0xff]
        %v813 = vld [vmem:[%s207 + $0x1250] sm:$0xff]
        %v814 = vld [vmem:[%s207 + $0x1258] sm:$0xff]
        %v815 = vld [vmem:[%s207 + $0x1260] sm:$0xff]
        %v816 = vld [vmem:[%s207 + $0x1268] sm:$0xff]
        %v817 = vld [vmem:[%s207 + $0x1270] sm:$0xff]
        %v818 = vld [vmem:[%s207 + $0x1278] sm:$0xff]
        %v819 = vld [vmem:[%s207 + $0x1280] sm:$0xff]
        %v820 = vld [vmem:[%s207 + $0x1288] sm:$0xff]
        %v821 = vld [vmem:[%s207 + $0x1290] sm:$0xff]
        %v822 = vld [vmem:[%s207 + $0x1298] sm:$0xff]
        %v823 = vld [vmem:[%s207 + $0x12a0] sm:$0xff]
        %v824 = vld [vmem:[%s207 + $0x12a8] sm:$0xff]
        %v825 = vld [vmem:[%s207 + $0x12b0] sm:$0xff]
        %v826 = vld [vmem:[%s207 + $0x12b8] sm:$0xff]
        %v827 = vld [vmem:[%s207 + $0x12c0] sm:$0xff]
        %v828 = vld [vmem:[%s207 + $0x12c8] sm:$0xff]
        %v829 = vld [vmem:[%s207 + $0x12d0] sm:$0xff]
        %v830 = vld [vmem:[%s207 + $0x12d8] sm:$0xff]
        %v831 = vld [vmem:[%s207 + $0x12e0] sm:$0xff]
        %v832 = vld [vmem:[%s207 + $0x12e8] sm:$0xff]
        %v833 = vld [vmem:[%s207 + $0x12f0] sm:$0xff]
        %v834 = vld [vmem:[%s207 + $0x12f8] sm:$0xff]
        %v835 = vld [vmem:[%s207 + $0x1300] sm:$0xff]
        %v836 = vld [vmem:[%s207 + $0x1308] sm:$0xff]
        %v837 = vld [vmem:[%s207 + $0x1310] sm:$0xff]
        %v838 = vld [vmem:[%s207 + $0x1318] sm:$0xff]
        %v839 = vld [vmem:[%s207 + $0x1320] sm:$0xff]
        %v840 = vld [vmem:[%s207 + $0x1328] sm:$0xff]
        %v841 = vld [vmem:[%s207 + $0x1330] sm:$0xff]
        %v842 = vld [vmem:[%s207 + $0x1338] sm:$0xff]
        %v843 = vld [vmem:[%s207 + $0x1340] sm:$0xff]
        %v844 = vld [vmem:[%s207 + $0x1348] sm:$0xff]
        %v845 = vld [vmem:[%s207 + $0x1350] sm:$0xff]
        %v846 = vld [vmem:[%s207 + $0x1358] sm:$0xff]
        %v847 = vld [vmem:[%s207 + $0x1360] sm:$0xff]
        %v848 = vld [vmem:[%s207 + $0x1368] sm:$0xff]
        %v849 = vld [vmem:[%s207 + $0x1370] sm:$0xff]
        %v850 = vld [vmem:[%s207 + $0x1378] sm:$0xff]
        %v851 = vld [vmem:[%s207 + $0x1380] sm:$0xff]
        %v852 = vld [vmem:[%s207 + $0x1388] sm:$0xff]
        %v853 = vld [vmem:[%s207 + $0x1390] sm:$0xff]
        %v854 = vld [vmem:[%s207 + $0x1398] sm:$0xff]
        %v855 = vld [vmem:[%s207 + $0x13a0] sm:$0xff]
        %v856 = vld [vmem:[%s207 + $0x13a8] sm:$0xff]
        %v857 = vld [vmem:[%s207 + $0x13b0] sm:$0xff]
        %v858 = vld [vmem:[%s207 + $0x13b8] sm:$0xff]
        %v859 = vld [vmem:[%s207 + $0x13c0] sm:$0xff]
        %v860 = vld [vmem:[%s207 + $0x13c8] sm:$0xff]
        %v861 = vld [vmem:[%s207 + $0x13d0] sm:$0xff]
        %v862 = vld [vmem:[%s207 + $0x13d8] sm:$0xff]
        %v863 = vld [vmem:[%s207 + $0x13e0] sm:$0xff]
        %v864 = vld [vmem:[%s207 + $0x13e8] sm:$0xff]
        %v865 = vld [vmem:[%s207 + $0x13f0] sm:$0xff]
        %v866 = vld [vmem:[%s207 + $0x13f8] sm:$0xff]
        %v867 = vld [vmem:[%s207 + $0x1400] sm:$0xff]
        %v868 = vld [vmem:[%s207 + $0x1408] sm:$0xff]
        %v869 = vld [vmem:[%s207 + $0x1410] sm:$0xff]
        %v870 = vld [vmem:[%s207 + $0x1418] sm:$0xff]
        %v871 = vld [vmem:[%s207 + $0x1420] sm:$0xff]
        %v872 = vld [vmem:[%s207 + $0x1428] sm:$0xff]
        %v873 = vld [vmem:[%s207 + $0x1430] sm:$0xff]
        %v874 = vld [vmem:[%s207 + $0x1438] sm:$0xff]
        %v875 = vld [vmem:[%s207 + $0x1440] sm:$0xff]
        %v876 = vld [vmem:[%s207 + $0x1448] sm:$0xff]
        %v877 = vld [vmem:[%s207 + $0x1450] sm:$0xff]
        %v878 = vld [vmem:[%s207 + $0x1458] sm:$0xff]
        %v879 = vld [vmem:[%s207 + $0x1460] sm:$0xff]
        %v880 = vld [vmem:[%s207 + $0x1468] sm:$0xff]
        %v881 = vld [vmem:[%s207 + $0x1470] sm:$0xff]
        %v882 = vld [vmem:[%s207 + $0x1478] sm:$0xff]
        %v883 = vld [vmem:[%s207 + $0x1480] sm:$0xff]
        %v884 = vld [vmem:[%s207 + $0x1488] sm:$0xff]
        %v885 = vld [vmem:[%s207 + $0x1490] sm:$0xff]
        %v886 = vld [vmem:[%s207 + $0x1498] sm:$0xff]
        %v887 = vld [vmem:[%s207 + $0x14a0] sm:$0xff]
        %v888 = vld [vmem:[%s207 + $0x14a8] sm:$0xff]
        %v889 = vld [vmem:[%s207 + $0x14b0] sm:$0xff]
        %v890 = vld [vmem:[%s207 + $0x14b8] sm:$0xff]
        %v891 = vld [vmem:[%s207 + $0x14c0] sm:$0xff]
        %v892 = vld [vmem:[%s207 + $0x14c8] sm:$0xff]
        %v893 = vld [vmem:[%s207 + $0x14d0] sm:$0xff]
        %v894 = vld [vmem:[%s207 + $0x14d8] sm:$0xff]
        %v895 = vld [vmem:[%s207 + $0x14e0] sm:$0xff]
        %v896 = vld [vmem:[%s207 + $0x14e8] sm:$0xff]
        %v897 = vld [vmem:[%s207 + $0x14f0] sm:$0xff]
        %v898 = vld [vmem:[%s207 + $0x14f8] sm:$0xff]
        %v899 = vld [vmem:[%s207 + $0x1500] sm:$0xff]
        %v900 = vld [vmem:[%s207 + $0x1508] sm:$0xff]
        %v901 = vld [vmem:[%s207 + $0x1510] sm:$0xff]
        %v902 = vld [vmem:[%s207 + $0x1518] sm:$0xff]
        %v903 = vld [vmem:[%s207 + $0x1520] sm:$0xff]
        %v904 = vld [vmem:[%s207 + $0x1528] sm:$0xff]
        %v905 = vld [vmem:[%s207 + $0x1530] sm:$0xff]
        %v906 = vld [vmem:[%s207 + $0x1538] sm:$0xff]
        %v907 = vld [vmem:[%s207 + $0x1540] sm:$0xff]
        %v908 = vld [vmem:[%s207 + $0x1548] sm:$0xff]
        %v909 = vld [vmem:[%s207 + $0x1550] sm:$0xff]
        %v910 = vld [vmem:[%s207 + $0x1558] sm:$0xff]
        %v911 = vld [vmem:[%s207 + $0x1560] sm:$0xff]
        %v912 = vld [vmem:[%s207 + $0x1568] sm:$0xff]
        %v913 = vld [vmem:[%s207 + $0x1570] sm:$0xff]
        %v914 = vld [vmem:[%s207 + $0x1578] sm:$0xff]
        %v915 = vld [vmem:[%s207 + $0x1580] sm:$0xff]
        %v916 = vld [vmem:[%s207 + $0x1588] sm:$0xff]
        %v917 = vld [vmem:[%s207 + $0x1590] sm:$0xff]
        %v918 = vld [vmem:[%s207 + $0x1598] sm:$0xff]
        %v919 = vld [vmem:[%s207 + $0x15a0] sm:$0xff]
        %v920 = vld [vmem:[%s207 + $0x15a8] sm:$0xff]
        %v921 = vld [vmem:[%s207 + $0x15b0] sm:$0xff]
        %v922 = vld [vmem:[%s207 + $0x15b8] sm:$0xff]
        %v923 = vld [vmem:[%s207 + $0x15c0] sm:$0xff]
        %v924 = vld [vmem:[%s207 + $0x15c8] sm:$0xff]
        %v925 = vld [vmem:[%s207 + $0x15d0] sm:$0xff]
        %v926 = vld [vmem:[%s207 + $0x15d8] sm:$0xff]
        %v927 = vld [vmem:[%s207 + $0x15e0] sm:$0xff]
        %v928 = vld [vmem:[%s207 + $0x15e8] sm:$0xff]
        %v929 = vld [vmem:[%s207 + $0x15f0] sm:$0xff]
        %v930 = vld [vmem:[%s207 + $0x15f8] sm:$0xff]
        %v931 = vld [vmem:[%s207 + $0x1600] sm:$0xff]
        %v932 = vld [vmem:[%s207 + $0x1608] sm:$0xff]
        %v933 = vld [vmem:[%s207 + $0x1610] sm:$0xff]
        %v934 = vld [vmem:[%s207 + $0x1618] sm:$0xff]
        %v935 = vld [vmem:[%s207 + $0x1620] sm:$0xff]
        %v936 = vld [vmem:[%s207 + $0x1628] sm:$0xff]
        %v937 = vld [vmem:[%s207 + $0x1630] sm:$0xff]
        %v938 = vld [vmem:[%s207 + $0x1638] sm:$0xff]
        %v939 = vld [vmem:[%s207 + $0x1640] sm:$0xff]
        %v940 = vld [vmem:[%s207 + $0x1648] sm:$0xff]
        %v941 = vld [vmem:[%s207 + $0x1650] sm:$0xff]
        %v942 = vld [vmem:[%s207 + $0x1658] sm:$0xff]
        %v943 = vld [vmem:[%s207 + $0x1660] sm:$0xff]
        %v944 = vld [vmem:[%s207 + $0x1668] sm:$0xff]
        %v945 = vld [vmem:[%s207 + $0x1670] sm:$0xff]
        %v946 = vld [vmem:[%s207 + $0x1678] sm:$0xff]
        %v947 = vld [vmem:[%s207 + $0x1680] sm:$0xff]
        %v948 = vld [vmem:[%s207 + $0x1688] sm:$0xff]
        %v949 = vld [vmem:[%s207 + $0x1690] sm:$0xff]
        %v950 = vld [vmem:[%s207 + $0x1698] sm:$0xff]
        %v951 = vld [vmem:[%s207 + $0x16a0] sm:$0xff]
        %v952 = vld [vmem:[%s207 + $0x16a8] sm:$0xff]
        %v953 = vld [vmem:[%s207 + $0x16b0] sm:$0xff]
        %v954 = vld [vmem:[%s207 + $0x16b8] sm:$0xff]
        %v955 = vld [vmem:[%s207 + $0x16c0] sm:$0xff]
        %v956 = vld [vmem:[%s207 + $0x16c8] sm:$0xff]
        %v957 = vld [vmem:[%s207 + $0x16d0] sm:$0xff]
        %v958 = vld [vmem:[%s207 + $0x16d8] sm:$0xff]
        %v959 = vld [vmem:[%s207 + $0x16e0] sm:$0xff]
        %v960 = vld [vmem:[%s207 + $0x16e8] sm:$0xff]
        %v961 = vld [vmem:[%s207 + $0x16f0] sm:$0xff]
        %v962 = vld [vmem:[%s207 + $0x16f8] sm:$0xff]
        %v963 = vld [vmem:[%s207 + $0x1700] sm:$0xff]
        %v964 = vld [vmem:[%s207 + $0x1708] sm:$0xff]
        %v965 = vld [vmem:[%s207 + $0x1710] sm:$0xff]
        %v966 = vld [vmem:[%s207 + $0x1718] sm:$0xff]
        %v967 = vld [vmem:[%s207 + $0x1720] sm:$0xff]
        %v968 = vld [vmem:[%s207 + $0x1728] sm:$0xff]
        %v969 = vld [vmem:[%s207 + $0x1730] sm:$0xff]
        %v970 = vld [vmem:[%s207 + $0x1738] sm:$0xff]
        %v971 = vld [vmem:[%s207 + $0x1740] sm:$0xff]
        %v972 = vld [vmem:[%s207 + $0x1748] sm:$0xff]
        %v973 = vld [vmem:[%s207 + $0x1750] sm:$0xff]
        %v974 = vld [vmem:[%s207 + $0x1758] sm:$0xff]
        %v975 = vld [vmem:[%s207 + $0x1760] sm:$0xff]
        %v976 = vld [vmem:[%s207 + $0x1768] sm:$0xff]
        %v977 = vld [vmem:[%s207 + $0x1770] sm:$0xff]
        %v978 = vld [vmem:[%s207 + $0x1778] sm:$0xff]
        %v979 = vld [vmem:[%s207 + $0x1780] sm:$0xff]
        %v980 = vld [vmem:[%s207 + $0x1788] sm:$0xff]
        %v981 = vld [vmem:[%s207 + $0x1790] sm:$0xff]
        %v982 = vld [vmem:[%s207 + $0x1798] sm:$0xff]
        %v983 = vld [vmem:[%s207 + $0x17a0] sm:$0xff]
        %v984 = vld [vmem:[%s207 + $0x17a8] sm:$0xff]
        %v985 = vld [vmem:[%s207 + $0x17b0] sm:$0xff]
        %v986 = vld [vmem:[%s207 + $0x17b8] sm:$0xff]
        %v987 = vld [vmem:[%s207 + $0x17c0] sm:$0xff]
        %v988 = vld [vmem:[%s207 + $0x17c8] sm:$0xff]
        %v989 = vld [vmem:[%s207 + $0x17d0] sm:$0xff]
        %v990 = vld [vmem:[%s207 + $0x17d8] sm:$0xff]
        %v991 = vld [vmem:[%s207 + $0x17e0] sm:$0xff]
        %v992 = vld [vmem:[%s207 + $0x17e8] sm:$0xff]
        %v993 = vld [vmem:[%s207 + $0x17f0] sm:$0xff]
        %v994 = vld [vmem:[%s207 + $0x17f8] sm:$0xff]
        %v995 = vld [vmem:[%s207 + $0x1800] sm:$0xff]
        %v996 = vld [vmem:[%s207 + $0x1808] sm:$0xff]
        %v997 = vld [vmem:[%s207 + $0x1810] sm:$0xff]
        %v998 = vld [vmem:[%s207 + $0x1818] sm:$0xff]
        %v999 = vld [vmem:[%s207 + $0x1820] sm:$0xff]
        %v1000 = vld [vmem:[%s207 + $0x1828] sm:$0xff]
        %v1001 = vld [vmem:[%s207 + $0x1830] sm:$0xff]
        %v1002 = vld [vmem:[%s207 + $0x1838] sm:$0xff]
        %v1003 = vld [vmem:[%s207 + $0x1840] sm:$0xff]
        %v1004 = vld [vmem:[%s207 + $0x1848] sm:$0xff]
        %v1005 = vld [vmem:[%s207 + $0x1850] sm:$0xff]
        %v1006 = vld [vmem:[%s207 + $0x1858] sm:$0xff]
        %v1007 = vld [vmem:[%s207 + $0x1860] sm:$0xff]
        %v1008 = vld [vmem:[%s207 + $0x1868] sm:$0xff]
        %v1009 = vld [vmem:[%s207 + $0x1870] sm:$0xff]
        %v1010 = vld [vmem:[%s207 + $0x1878] sm:$0xff]
        %v1011 = vld [vmem:[%s207 + $0x1880] sm:$0xff]
        %v1012 = vld [vmem:[%s207 + $0x1888] sm:$0xff]
        %v1013 = vld [vmem:[%s207 + $0x1890] sm:$0xff]
        %v1014 = vld [vmem:[%s207 + $0x1898] sm:$0xff]
        %v1015 = vld [vmem:[%s207 + $0x18a0] sm:$0xff]
        %v1016 = vld [vmem:[%s207 + $0x18a8] sm:$0xff]
        %v1017 = vld [vmem:[%s207 + $0x18b0] sm:$0xff]
        %v1018 = vld [vmem:[%s207 + $0x18b8] sm:$0xff]
        %v1019 = vld [vmem:[%s207 + $0x18c0] sm:$0xff]
        %v1020 = vld [vmem:[%s207 + $0x18c8] sm:$0xff]
        %v1021 = vld [vmem:[%s207 + $0x18d0] sm:$0xff]
        %v1022 = vld [vmem:[%s207 + $0x18d8] sm:$0xff]
        %v1023 = vld [vmem:[%s207 + $0x18e0] sm:$0xff]
        %v1024 = vld [vmem:[%s207 + $0x18e8] sm:$0xff]
        %v1025 = vld [vmem:[%s207 + $0x18f0] sm:$0xff]
        %v1026 = vld [vmem:[%s207 + $0x18f8] sm:$0xff]
        %v1027 = vld [vmem:[%s207 + $0x1900] sm:$0xff]
        %v1028 = vld [vmem:[%s207 + $0x1908] sm:$0xff]
        %v1029 = vld [vmem:[%s207 + $0x1910] sm:$0xff]
        %v1030 = vld [vmem:[%s207 + $0x1918] sm:$0xff]
        %v1031 = vld [vmem:[%s207 + $0x1920] sm:$0xff]
        %v1032 = vld [vmem:[%s207 + $0x1928] sm:$0xff]
        %v1033 = vld [vmem:[%s207 + $0x1930] sm:$0xff]
        %v1034 = vld [vmem:[%s207 + $0x1938] sm:$0xff]
        %v1035 = vld [vmem:[%s207 + $0x1940] sm:$0xff]
        %v1036 = vld [vmem:[%s207 + $0x1948] sm:$0xff]
        %v1037 = vld [vmem:[%s207 + $0x1950] sm:$0xff]
        %v1038 = vld [vmem:[%s207 + $0x1958] sm:$0xff]
        %v1039 = vld [vmem:[%s207 + $0x1960] sm:$0xff]
        %v1040 = vld [vmem:[%s207 + $0x1968] sm:$0xff]
        %v1041 = vld [vmem:[%s207 + $0x1970] sm:$0xff]
        %v1042 = vld [vmem:[%s207 + $0x1978] sm:$0xff]
        %v1043 = vld [vmem:[%s207 + $0x1980] sm:$0xff]
        %v1044 = vld [vmem:[%s207 + $0x1988] sm:$0xff]
        %v1045 = vld [vmem:[%s207 + $0x1990] sm:$0xff]
        %v1046 = vld [vmem:[%s207 + $0x1998] sm:$0xff]
        %v1047 = vld [vmem:[%s207 + $0x19a0] sm:$0xff]
        %v1048 = vld [vmem:[%s207 + $0x19a8] sm:$0xff]
        %v1049 = vld [vmem:[%s207 + $0x19b0] sm:$0xff]
        %v1050 = vld [vmem:[%s207 + $0x19b8] sm:$0xff]
        %v1051 = vld [vmem:[%s207 + $0x19c0] sm:$0xff]
        %v1052 = vld [vmem:[%s207 + $0x19c8] sm:$0xff]
        %v1053 = vld [vmem:[%s207 + $0x19d0] sm:$0xff]
        %v1054 = vld [vmem:[%s207 + $0x19d8] sm:$0xff]
        %v1055 = vld [vmem:[%s207 + $0x19e0] sm:$0xff]
        %v1056 = vld [vmem:[%s207 + $0x19e8] sm:$0xff]
        %v1057 = vld [vmem:[%s207 + $0x19f0] sm:$0xff]
        %v1058 = vld [vmem:[%s207 + $0x19f8] sm:$0xff]
        %v1059 = vld [vmem:[%s207 + $0x1a00] sm:$0xff]
        %v1060 = vld [vmem:[%s207 + $0x1a08] sm:$0xff]
        %v1061 = vld [vmem:[%s207 + $0x1a10] sm:$0xff]
        %v1062 = vld [vmem:[%s207 + $0x1a18] sm:$0xff]
        %v1063 = vld [vmem:[%s207 + $0x1a20] sm:$0xff]
        %v1064 = vld [vmem:[%s207 + $0x1a28] sm:$0xff]
        %v1065 = vld [vmem:[%s207 + $0x1a30] sm:$0xff]
        %v1066 = vld [vmem:[%s207 + $0x1a38] sm:$0xff]
        %v1067 = vld [vmem:[%s207 + $0x1a40] sm:$0xff]
        %v1068 = vld [vmem:[%s207 + $0x1a48] sm:$0xff]
        %v1069 = vld [vmem:[%s207 + $0x1a50] sm:$0xff]
        %v1070 = vld [vmem:[%s207 + $0x1a58] sm:$0xff]
        %v1071 = vld [vmem:[%s207 + $0x1a60] sm:$0xff]
        %v1072 = vld [vmem:[%s207 + $0x1a68] sm:$0xff]
        %v1073 = vld [vmem:[%s207 + $0x1a70] sm:$0xff]
        %v1074 = vld [vmem:[%s207 + $0x1a78] sm:$0xff]
        %v1075 = vld [vmem:[%s207 + $0x1a80] sm:$0xff]
        %v1076 = vld [vmem:[%s207 + $0x1a88] sm:$0xff]
        %v1077 = vld [vmem:[%s207 + $0x1a90] sm:$0xff]
        %v1078 = vld [vmem:[%s207 + $0x1a98] sm:$0xff]
        %v1079 = vld [vmem:[%s207 + $0x1aa0] sm:$0xff]
        %v1080 = vld [vmem:[%s207 + $0x1aa8] sm:$0xff]
        %v1081 = vld [vmem:[%s207 + $0x1ab0] sm:$0xff]
        %v1082 = vld [vmem:[%s207 + $0x1ab8] sm:$0xff]
        %v1083 = vld [vmem:[%s207 + $0x1ac0] sm:$0xff]
        %v1084 = vld [vmem:[%s207 + $0x1ac8] sm:$0xff]
        %v1085 = vld [vmem:[%s207 + $0x1ad0] sm:$0xff]
        %v1086 = vld [vmem:[%s207 + $0x1ad8] sm:$0xff]
        %v1087 = vld [vmem:[%s207 + $0x1ae0] sm:$0xff]
        %v1088 = vld [vmem:[%s207 + $0x1ae8] sm:$0xff]
        %v1089 = vld [vmem:[%s207 + $0x1af0] sm:$0xff]
        %v1090 = vld [vmem:[%s207 + $0x1af8] sm:$0xff]
        %v1091 = vld [vmem:[%s207 + $0x1b00] sm:$0xff]
        %v1092 = vld [vmem:[%s207 + $0x1b08] sm:$0xff]
        %v1093 = vld [vmem:[%s207 + $0x1b10] sm:$0xff]
        %v1094 = vld [vmem:[%s207 + $0x1b18] sm:$0xff]
        %v1095 = vld [vmem:[%s207 + $0x1b20] sm:$0xff]
        %v1096 = vld [vmem:[%s207 + $0x1b28] sm:$0xff]
        %v1097 = vld [vmem:[%s207 + $0x1b30] sm:$0xff]
        %v1098 = vld [vmem:[%s207 + $0x1b38] sm:$0xff]
        %v1099 = vld [vmem:[%s207 + $0x1b40] sm:$0xff]
        %v1100 = vld [vmem:[%s207 + $0x1b48] sm:$0xff]
        %v1101 = vld [vmem:[%s207 + $0x1b50] sm:$0xff]
        %v1102 = vld [vmem:[%s207 + $0x1b58] sm:$0xff]
        %v1103 = vld [vmem:[%s207 + $0x1b60] sm:$0xff]
        %v1104 = vld [vmem:[%s207 + $0x1b68] sm:$0xff]
        %v1105 = vld [vmem:[%s207 + $0x1b70] sm:$0xff]
        %v1106 = vld [vmem:[%s207 + $0x1b78] sm:$0xff]
        %v1107 = vld [vmem:[%s207 + $0x1b80] sm:$0xff]
        %v1108 = vld [vmem:[%s207 + $0x1b88] sm:$0xff]
        %v1109 = vld [vmem:[%s207 + $0x1b90] sm:$0xff]
        %v1110 = vld [vmem:[%s207 + $0x1b98] sm:$0xff]
        %v1111 = vld [vmem:[%s207 + $0x1ba0] sm:$0xff]
        %v1112 = vld [vmem:[%s207 + $0x1ba8] sm:$0xff]
        %v1113 = vld [vmem:[%s207 + $0x1bb0] sm:$0xff]
        %v1114 = vld [vmem:[%s207 + $0x1bb8] sm:$0xff]
        %v1115 = vld [vmem:[%s207 + $0x1bc0] sm:$0xff]
        %v1116 = vld [vmem:[%s207 + $0x1bc8] sm:$0xff]
        %v1117 = vld [vmem:[%s207 + $0x1bd0] sm:$0xff]
        %v1118 = vld [vmem:[%s207 + $0x1bd8] sm:$0xff]
        %v1119 = vld [vmem:[%s207 + $0x1be0] sm:$0xff]
        %v1120 = vld [vmem:[%s207 + $0x1be8] sm:$0xff]
        %v1121 = vld [vmem:[%s207 + $0x1bf0] sm:$0xff]
        %v1122 = vld [vmem:[%s207 + $0x1bf8] sm:$0xff]
        %v1123 = vld [vmem:[%s207 + $0x1c00] sm:$0xff]
        %v1124 = vld [vmem:[%s207 + $0x1c08] sm:$0xff]
        %v1125 = vld [vmem:[%s207 + $0x1c10] sm:$0xff]
        %v1126 = vld [vmem:[%s207 + $0x1c18] sm:$0xff]
        %v1127 = vld [vmem:[%s207 + $0x1c20] sm:$0xff]
        %v1128 = vld [vmem:[%s207 + $0x1c28] sm:$0xff]
        %v1129 = vld [vmem:[%s207 + $0x1c30] sm:$0xff]
        %v1130 = vld [vmem:[%s207 + $0x1c38] sm:$0xff]
        %v1131 = vld [vmem:[%s207 + $0x1c40] sm:$0xff]
        %v1132 = vld [vmem:[%s207 + $0x1c48] sm:$0xff]
        %v1133 = vld [vmem:[%s207 + $0x1c50] sm:$0xff]
        %v1134 = vld [vmem:[%s207 + $0x1c58] sm:$0xff]
        %v1135 = vld [vmem:[%s207 + $0x1c60] sm:$0xff]
        %v1136 = vld [vmem:[%s207 + $0x1c68] sm:$0xff]
        %v1137 = vld [vmem:[%s207 + $0x1c70] sm:$0xff]
        %v1138 = vld [vmem:[%s207 + $0x1c78] sm:$0xff]
        %v1139 = vld [vmem:[%s207 + $0x1c80] sm:$0xff]
        %v1140 = vld [vmem:[%s207 + $0x1c88] sm:$0xff]
        %v1141 = vld [vmem:[%s207 + $0x1c90] sm:$0xff]
        %v1142 = vld [vmem:[%s207 + $0x1c98] sm:$0xff]
        %v1143 = vld [vmem:[%s207 + $0x1ca0] sm:$0xff]
        %v1144 = vld [vmem:[%s207 + $0x1ca8] sm:$0xff]
        %v1145 = vld [vmem:[%s207 + $0x1cb0] sm:$0xff]
        %v1146 = vld [vmem:[%s207 + $0x1cb8] sm:$0xff]
        %v1147 = vld [vmem:[%s207 + $0x1cc0] sm:$0xff]
        %v1148 = vld [vmem:[%s207 + $0x1cc8] sm:$0xff]
        %v1149 = vld [vmem:[%s207 + $0x1cd0] sm:$0xff]
        %v1150 = vld [vmem:[%s207 + $0x1cd8] sm:$0xff]
        %v1151 = vld [vmem:[%s207 + $0x1ce0] sm:$0xff]
        %v1152 = vld [vmem:[%s207 + $0x1ce8] sm:$0xff]
        %v1153 = vld [vmem:[%s207 + $0x1cf0] sm:$0xff]
        %v1154 = vld [vmem:[%s207 + $0x1cf8] sm:$0xff]
        %v1155 = vld [vmem:[%s207 + $0x1d00] sm:$0xff]
        %v1156 = vld [vmem:[%s207 + $0x1d08] sm:$0xff]
        %v1157 = vld [vmem:[%s207 + $0x1d10] sm:$0xff]
        %v1158 = vld [vmem:[%s207 + $0x1d18] sm:$0xff]
        %v1159 = vld [vmem:[%s207 + $0x1d20] sm:$0xff]
        %v1160 = vld [vmem:[%s207 + $0x1d28] sm:$0xff]
        %v1161 = vld [vmem:[%s207 + $0x1d30] sm:$0xff]
        %v1162 = vld [vmem:[%s207 + $0x1d38] sm:$0xff]
        %v1163 = vld [vmem:[%s207 + $0x1d40] sm:$0xff]
        %v1164 = vld [vmem:[%s207 + $0x1d48] sm:$0xff]
        %v1165 = vld [vmem:[%s207 + $0x1d50] sm:$0xff]
        %v1166 = vld [vmem:[%s207 + $0x1d58] sm:$0xff]
        %v1167 = vld [vmem:[%s207 + $0x1d60] sm:$0xff]
        %v1168 = vld [vmem:[%s207 + $0x1d68] sm:$0xff]
        %v1169 = vld [vmem:[%s207 + $0x1d70] sm:$0xff]
        %v1170 = vld [vmem:[%s207 + $0x1d78] sm:$0xff]
        %v1171 = vld [vmem:[%s207 + $0x1d80] sm:$0xff]
        %v1172 = vld [vmem:[%s207 + $0x1d88] sm:$0xff]
        %v1173 = vld [vmem:[%s207 + $0x1d90] sm:$0xff]
        %v1174 = vld [vmem:[%s207 + $0x1d98] sm:$0xff]
        %v1175 = vld [vmem:[%s207 + $0x1da0] sm:$0xff]
        %v1176 = vld [vmem:[%s207 + $0x1da8] sm:$0xff]
        %v1177 = vld [vmem:[%s207 + $0x1db0] sm:$0xff]
        %v1178 = vld [vmem:[%s207 + $0x1db8] sm:$0xff]
        %v1179 = vld [vmem:[%s207 + $0x1dc0] sm:$0xff]
        %v1180 = vld [vmem:[%s207 + $0x1dc8] sm:$0xff]
        %v1181 = vld [vmem:[%s207 + $0x1dd0] sm:$0xff]
        %v1182 = vld [vmem:[%s207 + $0x1dd8] sm:$0xff]
        %v1183 = vld [vmem:[%s207 + $0x1de0] sm:$0xff]
        %v1184 = vld [vmem:[%s207 + $0x1de8] sm:$0xff]
        %v1185 = vld [vmem:[%s207 + $0x1df0] sm:$0xff]
        %v1186 = vld [vmem:[%s207 + $0x1df8] sm:$0xff]
        %v1187 = vld [vmem:[%s207 + $0x1e00] sm:$0xff]
        %v1188 = vld [vmem:[%s207 + $0x1e08] sm:$0xff]
        %v1189 = vld [vmem:[%s207 + $0x1e10] sm:$0xff]
        %v1190 = vld [vmem:[%s207 + $0x1e18] sm:$0xff]
        %v1191 = vld [vmem:[%s207 + $0x1e20] sm:$0xff]
        %v1192 = vld [vmem:[%s207 + $0x1e28] sm:$0xff]
        %v1193 = vld [vmem:[%s207 + $0x1e30] sm:$0xff]
        %v1194 = vld [vmem:[%s207 + $0x1e38] sm:$0xff]
        %v1195 = vld [vmem:[%s207 + $0x1e40] sm:$0xff]
        %v1196 = vld [vmem:[%s207 + $0x1e48] sm:$0xff]
        %v1197 = vld [vmem:[%s207 + $0x1e50] sm:$0xff]
        %v1198 = vld [vmem:[%s207 + $0x1e58] sm:$0xff]
        %v1199 = vld [vmem:[%s207 + $0x1e60] sm:$0xff]
        %v1200 = vld [vmem:[%s207 + $0x1e68] sm:$0xff]
        %v1201 = vld [vmem:[%s207 + $0x1e70] sm:$0xff]
        %v1202 = vld [vmem:[%s207 + $0x1e78] sm:$0xff]
        %v1203 = vld [vmem:[%s207 + $0x1e80] sm:$0xff]
        %v1204 = vld [vmem:[%s207 + $0x1e88] sm:$0xff]
        %v1205 = vld [vmem:[%s207 + $0x1e90] sm:$0xff]
        %v1206 = vld [vmem:[%s207 + $0x1e98] sm:$0xff]
        %v1207 = vld [vmem:[%s207 + $0x1ea0] sm:$0xff]
        %v1208 = vld [vmem:[%s207 + $0x1ea8] sm:$0xff]
        %v1209 = vld [vmem:[%s207 + $0x1eb0] sm:$0xff]
        %v1210 = vld [vmem:[%s207 + $0x1eb8] sm:$0xff]
        %v1211 = vld [vmem:[%s207 + $0x1ec0] sm:$0xff]
        %v1212 = vld [vmem:[%s207 + $0x1ec8] sm:$0xff]
        %v1213 = vld [vmem:[%s207 + $0x1ed0] sm:$0xff]
        %v1214 = vld [vmem:[%s207 + $0x1ed8] sm:$0xff]
        %v1215 = vld [vmem:[%s207 + $0x1ee0] sm:$0xff]
        %v1216 = vld [vmem:[%s207 + $0x1ee8] sm:$0xff]
        %v1217 = vld [vmem:[%s207 + $0x1ef0] sm:$0xff]
        %v1218 = vld [vmem:[%s207 + $0x1ef8] sm:$0xff]
        %v1219 = vld [vmem:[%s207 + $0x1f00] sm:$0xff]
        %v1220 = vld [vmem:[%s207 + $0x1f08] sm:$0xff]
        %v1221 = vld [vmem:[%s207 + $0x1f10] sm:$0xff]
        %v1222 = vld [vmem:[%s207 + $0x1f18] sm:$0xff]
        %v1223 = vld [vmem:[%s207 + $0x1f20] sm:$0xff]
        %v1224 = vld [vmem:[%s207 + $0x1f28] sm:$0xff]
        %v1225 = vld [vmem:[%s207 + $0x1f30] sm:$0xff]
        %v1226 = vld [vmem:[%s207 + $0x1f38] sm:$0xff]
        %v1227 = vld [vmem:[%s207 + $0x1f40] sm:$0xff]
        %v1228 = vld [vmem:[%s207 + $0x1f48] sm:$0xff]
        %v1229 = vld [vmem:[%s207 + $0x1f50] sm:$0xff]
        %v1230 = vld [vmem:[%s207 + $0x1f58] sm:$0xff]
        %v1231 = vld [vmem:[%s207 + $0x1f60] sm:$0xff]
        %v1232 = vld [vmem:[%s207 + $0x1f68] sm:$0xff]
        %v1233 = vld [vmem:[%s207 + $0x1f70] sm:$0xff]
        %v1234 = vld [vmem:[%s207 + $0x1f78] sm:$0xff]
        %v1235 = vld [vmem:[%s207 + $0x1f80] sm:$0xff]
        %v1236 = vld [vmem:[%s207 + $0x1f88] sm:$0xff]
        %v1237 = vld [vmem:[%s207 + $0x1f90] sm:$0xff]
        %v1238 = vld [vmem:[%s207 + $0x1f98] sm:$0xff]
        %v1239 = vld [vmem:[%s207 + $0x1fa0] sm:$0xff]
        %v1240 = vld [vmem:[%s207 + $0x1fa8] sm:$0xff]
        %v1241 = vld [vmem:[%s207 + $0x1fb0] sm:$0xff]
        %v1242 = vld [vmem:[%s207 + $0x1fb8] sm:$0xff]
        %v1243 = vld [vmem:[%s207 + $0x1fc0] sm:$0xff]
        %v1244 = vld [vmem:[%s207 + $0x1fc8] sm:$0xff]
        %v1245 = vld [vmem:[%s207 + $0x1fd0] sm:$0xff]
        %v1246 = vld [vmem:[%s207 + $0x1fd8] sm:$0xff]
        %v1247 = vld [vmem:[%s207 + $0x1fe0] sm:$0xff]
        %v1248 = vld [vmem:[%s207 + $0x1fe8] sm:$0xff]
        %v1249 = vld [vmem:[%s207 + $0x1ff0] sm:$0xff]
        %v1250 = vld [vmem:[%s207 + $0x1ff8] sm:$0xff]
        %v1251 = vlaneseq
        %v1252 = vshrl.u32 %v1251, 7
        %v1253 = vsub.s32 0, %v1252
        %v1254 = vrot.slane %v219, %v1253
        %1256 = vbcast.lane.b32.xlu0 %v1254, 256
        %v1257 = vpop.permute.xlu0 %1256
        %s1259 = sor.u32 256, 8
        %1260 = vbcast.lane.b32.xlu0 %v1254, %s1259
        %v1261 = vpop.permute.xlu0 %1260
        %s1263 = sor.u32 256, 16
        %1264 = vbcast.lane.b32.xlu0 %v1254, %s1263
        %v1265 = vpop.permute.xlu0 %1264
        %s1267 = sor.u32 256, 24
        %1268 = vbcast.lane.b32.xlu0 %v1254, %s1267
        %v1269 = vpop.permute.xlu0 %1268
        %s1271 = sor.u32 256, 32
        %1272 = vbcast.lane.b32.xlu0 %v1254, %s1271
        %v1273 = vpop.permute.xlu0 %1272
        %s1275 = sor.u32 256, 40
        %1276 = vbcast.lane.b32.xlu0 %v1254, %s1275
        %v1277 = vpop.permute.xlu0 %1276
        %s1279 = sor.u32 256, 48
        %1280 = vbcast.lane.b32.xlu0 %v1254, %s1279
        %v1281 = vpop.permute.xlu0 %1280
        %s1283 = sor.u32 256, 56
        %1284 = vbcast.lane.b32.xlu0 %v1254, %s1283
        %v1285 = vpop.permute.xlu0 %1284
        %s1287 = sor.u32 256, 64
        %1288 = vbcast.lane.b32.xlu0 %v1254, %s1287
        %v1289 = vpop.permute.xlu0 %1288
        %s1291 = sor.u32 256, 72
        %1292 = vbcast.lane.b32.xlu0 %v1254, %s1291
        %v1293 = vpop.permute.xlu0 %1292
        %s1295 = sor.u32 256, 80
        %1296 = vbcast.lane.b32.xlu0 %v1254, %s1295
        %v1297 = vpop.permute.xlu0 %1296
        %s1299 = sor.u32 256, 88
        %1300 = vbcast.lane.b32.xlu0 %v1254, %s1299
        %v1301 = vpop.permute.xlu0 %1300
        %s1303 = sor.u32 256, 96
        %1304 = vbcast.lane.b32.xlu0 %v1254, %s1303
        %v1305 = vpop.permute.xlu0 %1304
        %s1307 = sor.u32 256, 104
        %1308 = vbcast.lane.b32.xlu0 %v1254, %s1307
        %v1309 = vpop.permute.xlu0 %1308
        %s1311 = sor.u32 256, 112
        %1312 = vbcast.lane.b32.xlu0 %v1254, %s1311
        %v1313 = vpop.permute.xlu0 %1312
        %s1315 = sor.u32 256, 120
        %1316 = vbcast.lane.b32.xlu0 %v1254, %s1315
        %v1317 = vpop.permute.xlu0 %1316
        %v1318 = vlaneseq
        %v1319 = vshrl.u32 %v1318, 7
        %v1320 = vsub.s32 1, %v1319
        %v1321 = vrot.slane %v219, %v1320
        %1323 = vbcast.lane.b32.xlu0 %v1321, 256
        %v1324 = vpop.permute.xlu0 %1323
        %s1326 = sor.u32 256, 8
        %1327 = vbcast.lane.b32.xlu0 %v1321, %s1326
        %v1328 = vpop.permute.xlu0 %1327
        %s1330 = sor.u32 256, 16
        %1331 = vbcast.lane.b32.xlu0 %v1321, %s1330
        %v1332 = vpop.permute.xlu0 %1331
        %s1334 = sor.u32 256, 24
        %1335 = vbcast.lane.b32.xlu0 %v1321, %s1334
        %v1336 = vpop.permute.xlu0 %1335
        %s1338 = sor.u32 256, 32
        %1339 = vbcast.lane.b32.xlu0 %v1321, %s1338
        %v1340 = vpop.permute.xlu0 %1339
        %s1342 = sor.u32 256, 40
        %1343 = vbcast.lane.b32.xlu0 %v1321, %s1342
        %v1344 = vpop.permute.xlu0 %1343
        %s1346 = sor.u32 256, 48
        %1347 = vbcast.lane.b32.xlu0 %v1321, %s1346
        %v1348 = vpop.permute.xlu0 %1347
        %s1350 = sor.u32 256, 56
        %1351 = vbcast.lane.b32.xlu0 %v1321, %s1350
        %v1352 = vpop.permute.xlu0 %1351
        %s1354 = sor.u32 256, 64
        %1355 = vbcast.lane.b32.xlu0 %v1321, %s1354
        %v1356 = vpop.permute.xlu0 %1355
        %s1358 = sor.u32 256, 72
        %1359 = vbcast.lane.b32.xlu0 %v1321, %s1358
        %v1360 = vpop.permute.xlu0 %1359
        %s1362 = sor.u32 256, 80
        %1363 = vbcast.lane.b32.xlu0 %v1321, %s1362
        %v1364 = vpop.permute.xlu0 %1363
        %s1366 = sor.u32 256, 88
        %1367 = vbcast.lane.b32.xlu0 %v1321, %s1366
        %v1368 = vpop.permute.xlu0 %1367
        %s1370 = sor.u32 256, 96
        %1371 = vbcast.lane.b32.xlu0 %v1321, %s1370
        %v1372 = vpop.permute.xlu0 %1371
        %s1374 = sor.u32 256, 104
        %1375 = vbcast.lane.b32.xlu0 %v1321, %s1374
        %v1376 = vpop.permute.xlu0 %1375
        %s1378 = sor.u32 256, 112
        %1379 = vbcast.lane.b32.xlu0 %v1321, %s1378
        %v1380 = vpop.permute.xlu0 %1379
        %s1382 = sor.u32 256, 120
        %1383 = vbcast.lane.b32.xlu0 %v1321, %s1382
        %v1384 = vpop.permute.xlu0 %1383
        %v1385 = vlaneseq
        %v1386 = vshrl.u32 %v1385, 7
        %v1387 = vsub.s32 2, %v1386
        %v1388 = vrot.slane %v219, %v1387
        %1390 = vbcast.lane.b32.xlu0 %v1388, 256
        %v1391 = vpop.permute.xlu0 %1390
        %s1393 = sor.u32 256, 8
        %1394 = vbcast.lane.b32.xlu0 %v1388, %s1393
        %v1395 = vpop.permute.xlu0 %1394
        %s1397 = sor.u32 256, 16
        %1398 = vbcast.lane.b32.xlu0 %v1388, %s1397
        %v1399 = vpop.permute.xlu0 %1398
        %s1401 = sor.u32 256, 24
        %1402 = vbcast.lane.b32.xlu0 %v1388, %s1401
        %v1403 = vpop.permute.xlu0 %1402
        %s1405 = sor.u32 256, 32
        %1406 = vbcast.lane.b32.xlu0 %v1388, %s1405
        %v1407 = vpop.permute.xlu0 %1406
        %s1409 = sor.u32 256, 40
        %1410 = vbcast.lane.b32.xlu0 %v1388, %s1409
        %v1411 = vpop.permute.xlu0 %1410
        %s1413 = sor.u32 256, 48
        %1414 = vbcast.lane.b32.xlu0 %v1388, %s1413
        %v1415 = vpop.permute.xlu0 %1414
        %s1417 = sor.u32 256, 56
        %1418 = vbcast.lane.b32.xlu0 %v1388, %s1417
        %v1419 = vpop.permute.xlu0 %1418
        %s1421 = sor.u32 256, 64
        %1422 = vbcast.lane.b32.xlu0 %v1388, %s1421
        %v1423 = vpop.permute.xlu0 %1422
        %s1425 = sor.u32 256, 72
        %1426 = vbcast.lane.b32.xlu0 %v1388, %s1425
        %v1427 = vpop.permute.xlu0 %1426
        %s1429 = sor.u32 256, 80
        %1430 = vbcast.lane.b32.xlu0 %v1388, %s1429
        %v1431 = vpop.permute.xlu0 %1430
        %s1433 = sor.u32 256, 88
        %1434 = vbcast.lane.b32.xlu0 %v1388, %s1433
        %v1435 = vpop.permute.xlu0 %1434
        %s1437 = sor.u32 256, 96
        %1438 = vbcast.lane.b32.xlu0 %v1388, %s1437
        %v1439 = vpop.permute.xlu0 %1438
        %s1441 = sor.u32 256, 104
        %1442 = vbcast.lane.b32.xlu0 %v1388, %s1441
        %v1443 = vpop.permute.xlu0 %1442
        %s1445 = sor.u32 256, 112
        %1446 = vbcast.lane.b32.xlu0 %v1388, %s1445
        %v1447 = vpop.permute.xlu0 %1446
        %s1449 = sor.u32 256, 120
        %1450 = vbcast.lane.b32.xlu0 %v1388, %s1449
        %v1451 = vpop.permute.xlu0 %1450
        %v1452 = vlaneseq
        %v1453 = vshrl.u32 %v1452, 7
        %v1454 = vsub.s32 3, %v1453
        %v1455 = vrot.slane %v219, %v1454
        %1457 = vbcast.lane.b32.xlu0 %v1455, 256
        %v1458 = vpop.permute.xlu0 %1457
        %s1460 = sor.u32 256, 8
        %1461 = vbcast.lane.b32.xlu0 %v1455, %s1460
        %v1462 = vpop.permute.xlu0 %1461
        %s1464 = sor.u32 256, 16
        %1465 = vbcast.lane.b32.xlu0 %v1455, %s1464
        %v1466 = vpop.permute.xlu0 %1465
        %s1468 = sor.u32 256, 24
        %1469 = vbcast.lane.b32.xlu0 %v1455, %s1468
        %v1470 = vpop.permute.xlu0 %1469
        %s1472 = sor.u32 256, 32
        %1473 = vbcast.lane.b32.xlu0 %v1455, %s1472
        %v1474 = vpop.permute.xlu0 %1473
        %s1476 = sor.u32 256, 40
        %1477 = vbcast.lane.b32.xlu0 %v1455, %s1476
        %v1478 = vpop.permute.xlu0 %1477
        %s1480 = sor.u32 256, 48
        %1481 = vbcast.lane.b32.xlu0 %v1455, %s1480
        %v1482 = vpop.permute.xlu0 %1481
        %s1484 = sor.u32 256, 56
        %1485 = vbcast.lane.b32.xlu0 %v1455, %s1484
        %v1486 = vpop.permute.xlu0 %1485
        %s1488 = sor.u32 256, 64
        %1489 = vbcast.lane.b32.xlu0 %v1455, %s1488
        %v1490 = vpop.permute.xlu0 %1489
        %s1492 = sor.u32 256, 72
        %1493 = vbcast.lane.b32.xlu0 %v1455, %s1492
        %v1494 = vpop.permute.xlu0 %1493
        %s1496 = sor.u32 256, 80
        %1497 = vbcast.lane.b32.xlu0 %v1455, %s1496
        %v1498 = vpop.permute.xlu0 %1497
        %s1500 = sor.u32 256, 88
        %1501 = vbcast.lane.b32.xlu0 %v1455, %s1500
        %v1502 = vpop.permute.xlu0 %1501
        %s1504 = sor.u32 256, 96
        %1505 = vbcast.lane.b32.xlu0 %v1455, %s1504
        %v1506 = vpop.permute.xlu0 %1505
        %s1508 = sor.u32 256, 104
        %1509 = vbcast.lane.b32.xlu0 %v1455, %s1508
        %v1510 = vpop.permute.xlu0 %1509
        %s1512 = sor.u32 256, 112
        %1513 = vbcast.lane.b32.xlu0 %v1455, %s1512
        %v1514 = vpop.permute.xlu0 %1513
        %s1516 = sor.u32 256, 120
        %1517 = vbcast.lane.b32.xlu0 %v1455, %s1516
        %v1518 = vpop.permute.xlu0 %1517
        %v1519 = vlaneseq
        %v1520 = vshrl.u32 %v1519, 7
        %v1521 = vsub.s32 4, %v1520
        %v1522 = vrot.slane %v219, %v1521
        %1524 = vbcast.lane.b32.xlu0 %v1522, 256
        %v1525 = vpop.permute.xlu0 %1524
        %s1527 = sor.u32 256, 8
        %1528 = vbcast.lane.b32.xlu0 %v1522, %s1527
        %v1529 = vpop.permute.xlu0 %1528
        %s1531 = sor.u32 256, 16
        %1532 = vbcast.lane.b32.xlu0 %v1522, %s1531
        %v1533 = vpop.permute.xlu0 %1532
        %s1535 = sor.u32 256, 24
        %1536 = vbcast.lane.b32.xlu0 %v1522, %s1535
        %v1537 = vpop.permute.xlu0 %1536
        %s1539 = sor.u32 256, 32
        %1540 = vbcast.lane.b32.xlu0 %v1522, %s1539
        %v1541 = vpop.permute.xlu0 %1540
        %s1543 = sor.u32 256, 40
        %1544 = vbcast.lane.b32.xlu0 %v1522, %s1543
        %v1545 = vpop.permute.xlu0 %1544
        %s1547 = sor.u32 256, 48
        %1548 = vbcast.lane.b32.xlu0 %v1522, %s1547
        %v1549 = vpop.permute.xlu0 %1548
        %s1551 = sor.u32 256, 56
        %1552 = vbcast.lane.b32.xlu0 %v1522, %s1551
        %v1553 = vpop.permute.xlu0 %1552
        %s1555 = sor.u32 256, 64
        %1556 = vbcast.lane.b32.xlu0 %v1522, %s1555
        %v1557 = vpop.permute.xlu0 %1556
        %s1559 = sor.u32 256, 72
        %1560 = vbcast.lane.b32.xlu0 %v1522, %s1559
        %v1561 = vpop.permute.xlu0 %1560
        %s1563 = sor.u32 256, 80
        %1564 = vbcast.lane.b32.xlu0 %v1522, %s1563
        %v1565 = vpop.permute.xlu0 %1564
        %s1567 = sor.u32 256, 88
        %1568 = vbcast.lane.b32.xlu0 %v1522, %s1567
        %v1569 = vpop.permute.xlu0 %1568
        %s1571 = sor.u32 256, 96
        %1572 = vbcast.lane.b32.xlu0 %v1522, %s1571
        %v1573 = vpop.permute.xlu0 %1572
        %s1575 = sor.u32 256, 104
        %1576 = vbcast.lane.b32.xlu0 %v1522, %s1575
        %v1577 = vpop.permute.xlu0 %1576
        %s1579 = sor.u32 256, 112
        %1580 = vbcast.lane.b32.xlu0 %v1522, %s1579
        %v1581 = vpop.permute.xlu0 %1580
        %s1583 = sor.u32 256, 120
        %1584 = vbcast.lane.b32.xlu0 %v1522, %s1583
        %v1585 = vpop.permute.xlu0 %1584
        %v1586 = vlaneseq
        %v1587 = vshrl.u32 %v1586, 7
        %v1588 = vsub.s32 5, %v1587
        %v1589 = vrot.slane %v219, %v1588
        %1591 = vbcast.lane.b32.xlu0 %v1589, 256
        %v1592 = vpop.permute.xlu0 %1591
        %s1594 = sor.u32 256, 8
        %1595 = vbcast.lane.b32.xlu0 %v1589, %s1594
        %v1596 = vpop.permute.xlu0 %1595
        %s1598 = sor.u32 256, 16
        %1599 = vbcast.lane.b32.xlu0 %v1589, %s1598
        %v1600 = vpop.permute.xlu0 %1599
        %s1602 = sor.u32 256, 24
        %1603 = vbcast.lane.b32.xlu0 %v1589, %s1602
        %v1604 = vpop.permute.xlu0 %1603
        %s1606 = sor.u32 256, 32
        %1607 = vbcast.lane.b32.xlu0 %v1589, %s1606
        %v1608 = vpop.permute.xlu0 %1607
        %s1610 = sor.u32 256, 40
        %1611 = vbcast.lane.b32.xlu0 %v1589, %s1610
        %v1612 = vpop.permute.xlu0 %1611
        %s1614 = sor.u32 256, 48
        %1615 = vbcast.lane.b32.xlu0 %v1589, %s1614
        %v1616 = vpop.permute.xlu0 %1615
        %s1618 = sor.u32 256, 56
        %1619 = vbcast.lane.b32.xlu0 %v1589, %s1618
        %v1620 = vpop.permute.xlu0 %1619
        %s1622 = sor.u32 256, 64
        %1623 = vbcast.lane.b32.xlu0 %v1589, %s1622
        %v1624 = vpop.permute.xlu0 %1623
        %s1626 = sor.u32 256, 72
        %1627 = vbcast.lane.b32.xlu0 %v1589, %s1626
        %v1628 = vpop.permute.xlu0 %1627
        %s1630 = sor.u32 256, 80
        %1631 = vbcast.lane.b32.xlu0 %v1589, %s1630
        %v1632 = vpop.permute.xlu0 %1631
        %s1634 = sor.u32 256, 88
        %1635 = vbcast.lane.b32.xlu0 %v1589, %s1634
        %v1636 = vpop.permute.xlu0 %1635
        %s1638 = sor.u32 256, 96
        %1639 = vbcast.lane.b32.xlu0 %v1589, %s1638
        %v1640 = vpop.permute.xlu0 %1639
        %s1642 = sor.u32 256, 104
        %1643 = vbcast.lane.b32.xlu0 %v1589, %s1642
        %v1644 = vpop.permute.xlu0 %1643
        %s1646 = sor.u32 256, 112
        %1647 = vbcast.lane.b32.xlu0 %v1589, %s1646
        %v1648 = vpop.permute.xlu0 %1647
        %s1650 = sor.u32 256, 120
        %1651 = vbcast.lane.b32.xlu0 %v1589, %s1650
        %v1652 = vpop.permute.xlu0 %1651
        %v1653 = vlaneseq
        %v1654 = vshrl.u32 %v1653, 7
        %v1655 = vsub.s32 6, %v1654
        %v1656 = vrot.slane %v219, %v1655
        %1658 = vbcast.lane.b32.xlu0 %v1656, 256
        %v1659 = vpop.permute.xlu0 %1658
        %s1661 = sor.u32 256, 8
        %1662 = vbcast.lane.b32.xlu0 %v1656, %s1661
        %v1663 = vpop.permute.xlu0 %1662
        %s1665 = sor.u32 256, 16
        %1666 = vbcast.lane.b32.xlu0 %v1656, %s1665
        %v1667 = vpop.permute.xlu0 %1666
        %s1669 = sor.u32 256, 24
        %1670 = vbcast.lane.b32.xlu0 %v1656, %s1669
        %v1671 = vpop.permute.xlu0 %1670
        %s1673 = sor.u32 256, 32
        %1674 = vbcast.lane.b32.xlu0 %v1656, %s1673
        %v1675 = vpop.permute.xlu0 %1674
        %s1677 = sor.u32 256, 40
        %1678 = vbcast.lane.b32.xlu0 %v1656, %s1677
        %v1679 = vpop.permute.xlu0 %1678
        %s1681 = sor.u32 256, 48
        %1682 = vbcast.lane.b32.xlu0 %v1656, %s1681
        %v1683 = vpop.permute.xlu0 %1682
        %s1685 = sor.u32 256, 56
        %1686 = vbcast.lane.b32.xlu0 %v1656, %s1685
        %v1687 = vpop.permute.xlu0 %1686
        %s1689 = sor.u32 256, 64
        %1690 = vbcast.lane.b32.xlu0 %v1656, %s1689
        %v1691 = vpop.permute.xlu0 %1690
        %s1693 = sor.u32 256, 72
        %1694 = vbcast.lane.b32.xlu0 %v1656, %s1693
        %v1695 = vpop.permute.xlu0 %1694
        %s1697 = sor.u32 256, 80
        %1698 = vbcast.lane.b32.xlu0 %v1656, %s1697
        %v1699 = vpop.permute.xlu0 %1698
        %s1701 = sor.u32 256, 88
        %1702 = vbcast.lane.b32.xlu0 %v1656, %s1701
        %v1703 = vpop.permute.xlu0 %1702
        %s1705 = sor.u32 256, 96
        %1706 = vbcast.lane.b32.xlu0 %v1656, %s1705
        %v1707 = vpop.permute.xlu0 %1706
        %s1709 = sor.u32 256, 104
        %1710 = vbcast.lane.b32.xlu0 %v1656, %s1709
        %v1711 = vpop.permute.xlu0 %1710
        %s1713 = sor.u32 256, 112
        %1714 = vbcast.lane.b32.xlu0 %v1656, %s1713
        %v1715 = vpop.permute.xlu0 %1714
        %s1717 = sor.u32 256, 120
        %1718 = vbcast.lane.b32.xlu0 %v1656, %s1717
        %v1719 = vpop.permute.xlu0 %1718
        %v1720 = vlaneseq
        %v1721 = vshrl.u32 %v1720, 7
        %v1722 = vsub.s32 7, %v1721
        %v1723 = vrot.slane %v219, %v1722
        %1725 = vbcast.lane.b32.xlu0 %v1723, 256
        %v1726 = vpop.permute.xlu0 %1725
        %s1728 = sor.u32 256, 8
        %1729 = vbcast.lane.b32.xlu0 %v1723, %s1728
        %v1730 = vpop.permute.xlu0 %1729
        %s1732 = sor.u32 256, 16
        %1733 = vbcast.lane.b32.xlu0 %v1723, %s1732
        %v1734 = vpop.permute.xlu0 %1733
        %s1736 = sor.u32 256, 24
        %1737 = vbcast.lane.b32.xlu0 %v1723, %s1736
        %v1738 = vpop.permute.xlu0 %1737
        %s1740 = sor.u32 256, 32
        %1741 = vbcast.lane.b32.xlu0 %v1723, %s1740
        %v1742 = vpop.permute.xlu0 %1741
        %s1744 = sor.u32 256, 40
        %1745 = vbcast.lane.b32.xlu0 %v1723, %s1744
        %v1746 = vpop.permute.xlu0 %1745
        %s1748 = sor.u32 256, 48
        %1749 = vbcast.lane.b32.xlu0 %v1723, %s1748
        %v1750 = vpop.permute.xlu0 %1749
        %s1752 = sor.u32 256, 56
        %1753 = vbcast.lane.b32.xlu0 %v1723, %s1752
        %v1754 = vpop.permute.xlu0 %1753
        %s1756 = sor.u32 256, 64
        %1757 = vbcast.lane.b32.xlu0 %v1723, %s1756
        %v1758 = vpop.permute.xlu0 %1757
        %s1760 = sor.u32 256, 72
        %1761 = vbcast.lane.b32.xlu0 %v1723, %s1760
        %v1762 = vpop.permute.xlu0 %1761
        %s1764 = sor.u32 256, 80
        %1765 = vbcast.lane.b32.xlu0 %v1723, %s1764
        %v1766 = vpop.permute.xlu0 %1765
        %s1768 = sor.u32 256, 88
        %1769 = vbcast.lane.b32.xlu0 %v1723, %s1768
        %v1770 = vpop.permute.xlu0 %1769
        %s1772 = sor.u32 256, 96
        %1773 = vbcast.lane.b32.xlu0 %v1723, %s1772
        %v1774 = vpop.permute.xlu0 %1773
        %s1776 = sor.u32 256, 104
        %1777 = vbcast.lane.b32.xlu0 %v1723, %s1776
        %v1778 = vpop.permute.xlu0 %1777
        %s1780 = sor.u32 256, 112
        %1781 = vbcast.lane.b32.xlu0 %v1723, %s1780
        %v1782 = vpop.permute.xlu0 %1781
        %s1784 = sor.u32 256, 120
        %1785 = vbcast.lane.b32.xlu0 %v1723, %s1784
        %v1786 = vpop.permute.xlu0 %1785
        %v1787 = vlaneseq
        %v1788 = vshrl.u32 %v1787, 7
        %v1789 = vsub.s32 0, %v1788
        %v1790 = vrot.slane %v220, %v1789
        %1792 = vbcast.lane.b32.xlu0 %v1790, 256
        %v1793 = vpop.permute.xlu0 %1792
        %s1795 = sor.u32 256, 8
        %1796 = vbcast.lane.b32.xlu0 %v1790, %s1795
        %v1797 = vpop.permute.xlu0 %1796
        %s1799 = sor.u32 256, 16
        %1800 = vbcast.lane.b32.xlu0 %v1790, %s1799
        %v1801 = vpop.permute.xlu0 %1800
        %s1803 = sor.u32 256, 24
        %1804 = vbcast.lane.b32.xlu0 %v1790, %s1803
        %v1805 = vpop.permute.xlu0 %1804
        %s1807 = sor.u32 256, 32
        %1808 = vbcast.lane.b32.xlu0 %v1790, %s1807
        %v1809 = vpop.permute.xlu0 %1808
        %s1811 = sor.u32 256, 40
        %1812 = vbcast.lane.b32.xlu0 %v1790, %s1811
        %v1813 = vpop.permute.xlu0 %1812
        %s1815 = sor.u32 256, 48
        %1816 = vbcast.lane.b32.xlu0 %v1790, %s1815
        %v1817 = vpop.permute.xlu0 %1816
        %s1819 = sor.u32 256, 56
        %1820 = vbcast.lane.b32.xlu0 %v1790, %s1819
        %v1821 = vpop.permute.xlu0 %1820
        %s1823 = sor.u32 256, 64
        %1824 = vbcast.lane.b32.xlu0 %v1790, %s1823
        %v1825 = vpop.permute.xlu0 %1824
        %s1827 = sor.u32 256, 72
        %1828 = vbcast.lane.b32.xlu0 %v1790, %s1827
        %v1829 = vpop.permute.xlu0 %1828
        %s1831 = sor.u32 256, 80
        %1832 = vbcast.lane.b32.xlu0 %v1790, %s1831
        %v1833 = vpop.permute.xlu0 %1832
        %s1835 = sor.u32 256, 88
        %1836 = vbcast.lane.b32.xlu0 %v1790, %s1835
        %v1837 = vpop.permute.xlu0 %1836
        %s1839 = sor.u32 256, 96
        %1840 = vbcast.lane.b32.xlu0 %v1790, %s1839
        %v1841 = vpop.permute.xlu0 %1840
        %s1843 = sor.u32 256, 104
        %1844 = vbcast.lane.b32.xlu0 %v1790, %s1843
        %v1845 = vpop.permute.xlu0 %1844
        %s1847 = sor.u32 256, 112
        %1848 = vbcast.lane.b32.xlu0 %v1790, %s1847
        %v1849 = vpop.permute.xlu0 %1848
        %s1851 = sor.u32 256, 120
        %1852 = vbcast.lane.b32.xlu0 %v1790, %s1851
        %v1853 = vpop.permute.xlu0 %1852
        %v1854 = vlaneseq
        %v1855 = vshrl.u32 %v1854, 7
        %v1856 = vsub.s32 1, %v1855
        %v1857 = vrot.slane %v220, %v1856
        %1859 = vbcast.lane.b32.xlu0 %v1857, 256
        %v1860 = vpop.permute.xlu0 %1859
        %s1862 = sor.u32 256, 8
        %1863 = vbcast.lane.b32.xlu0 %v1857, %s1862
        %v1864 = vpop.permute.xlu0 %1863
        %s1866 = sor.u32 256, 16
        %1867 = vbcast.lane.b32.xlu0 %v1857, %s1866
        %v1868 = vpop.permute.xlu0 %1867
        %s1870 = sor.u32 256, 24
        %1871 = vbcast.lane.b32.xlu0 %v1857, %s1870
        %v1872 = vpop.permute.xlu0 %1871
        %s1874 = sor.u32 256, 32
        %1875 = vbcast.lane.b32.xlu0 %v1857, %s1874
        %v1876 = vpop.permute.xlu0 %1875
        %s1878 = sor.u32 256, 40
        %1879 = vbcast.lane.b32.xlu0 %v1857, %s1878
        %v1880 = vpop.permute.xlu0 %1879
        %s1882 = sor.u32 256, 48
        %1883 = vbcast.lane.b32.xlu0 %v1857, %s1882
        %v1884 = vpop.permute.xlu0 %1883
        %s1886 = sor.u32 256, 56
        %1887 = vbcast.lane.b32.xlu0 %v1857, %s1886
        %v1888 = vpop.permute.xlu0 %1887
        %s1890 = sor.u32 256, 64
        %1891 = vbcast.lane.b32.xlu0 %v1857, %s1890
        %v1892 = vpop.permute.xlu0 %1891
        %s1894 = sor.u32 256, 72
        %1895 = vbcast.lane.b32.xlu0 %v1857, %s1894
        %v1896 = vpop.permute.xlu0 %1895
        %s1898 = sor.u32 256, 80
        %1899 = vbcast.lane.b32.xlu0 %v1857, %s1898
        %v1900 = vpop.permute.xlu0 %1899
        %s1902 = sor.u32 256, 88
        %1903 = vbcast.lane.b32.xlu0 %v1857, %s1902
        %v1904 = vpop.permute.xlu0 %1903
        %s1906 = sor.u32 256, 96
        %1907 = vbcast.lane.b32.xlu0 %v1857, %s1906
        %v1908 = vpop.permute.xlu0 %1907
        %s1910 = sor.u32 256, 104
        %1911 = vbcast.lane.b32.xlu0 %v1857, %s1910
        %v1912 = vpop.permute.xlu0 %1911
        %s1914 = sor.u32 256, 112
        %1915 = vbcast.lane.b32.xlu0 %v1857, %s1914
        %v1916 = vpop.permute.xlu0 %1915
        %s1918 = sor.u32 256, 120
        %1919 = vbcast.lane.b32.xlu0 %v1857, %s1918
        %v1920 = vpop.permute.xlu0 %1919
        %v1921 = vlaneseq
        %v1922 = vshrl.u32 %v1921, 7
        %v1923 = vsub.s32 2, %v1922
        %v1924 = vrot.slane %v220, %v1923
        %1926 = vbcast.lane.b32.xlu0 %v1924, 256
        %v1927 = vpop.permute.xlu0 %1926
        %s1929 = sor.u32 256, 8
        %1930 = vbcast.lane.b32.xlu0 %v1924, %s1929
        %v1931 = vpop.permute.xlu0 %1930
        %s1933 = sor.u32 256, 16
        %1934 = vbcast.lane.b32.xlu0 %v1924, %s1933
        %v1935 = vpop.permute.xlu0 %1934
        %s1937 = sor.u32 256, 24
        %1938 = vbcast.lane.b32.xlu0 %v1924, %s1937
        %v1939 = vpop.permute.xlu0 %1938
        %s1941 = sor.u32 256, 32
        %1942 = vbcast.lane.b32.xlu0 %v1924, %s1941
        %v1943 = vpop.permute.xlu0 %1942
        %s1945 = sor.u32 256, 40
        %1946 = vbcast.lane.b32.xlu0 %v1924, %s1945
        %v1947 = vpop.permute.xlu0 %1946
        %s1949 = sor.u32 256, 48
        %1950 = vbcast.lane.b32.xlu0 %v1924, %s1949
        %v1951 = vpop.permute.xlu0 %1950
        %s1953 = sor.u32 256, 56
        %1954 = vbcast.lane.b32.xlu0 %v1924, %s1953
        %v1955 = vpop.permute.xlu0 %1954
        %s1957 = sor.u32 256, 64
        %1958 = vbcast.lane.b32.xlu0 %v1924, %s1957
        %v1959 = vpop.permute.xlu0 %1958
        %s1961 = sor.u32 256, 72
        %1962 = vbcast.lane.b32.xlu0 %v1924, %s1961
        %v1963 = vpop.permute.xlu0 %1962
        %s1965 = sor.u32 256, 80
        %1966 = vbcast.lane.b32.xlu0 %v1924, %s1965
        %v1967 = vpop.permute.xlu0 %1966
        %s1969 = sor.u32 256, 88
        %1970 = vbcast.lane.b32.xlu0 %v1924, %s1969
        %v1971 = vpop.permute.xlu0 %1970
        %s1973 = sor.u32 256, 96
        %1974 = vbcast.lane.b32.xlu0 %v1924, %s1973
        %v1975 = vpop.permute.xlu0 %1974
        %s1977 = sor.u32 256, 104
        %1978 = vbcast.lane.b32.xlu0 %v1924, %s1977
        %v1979 = vpop.permute.xlu0 %1978
        %s1981 = sor.u32 256, 112
        %1982 = vbcast.lane.b32.xlu0 %v1924, %s1981
        %v1983 = vpop.permute.xlu0 %1982
        %s1985 = sor.u32 256, 120
        %1986 = vbcast.lane.b32.xlu0 %v1924, %s1985
        %v1987 = vpop.permute.xlu0 %1986
        %v1988 = vlaneseq
        %v1989 = vshrl.u32 %v1988, 7
        %v1990 = vsub.s32 3, %v1989
        %v1991 = vrot.slane %v220, %v1990
        %1993 = vbcast.lane.b32.xlu0 %v1991, 256
        %v1994 = vpop.permute.xlu0 %1993
        %s1996 = sor.u32 256, 8
        %1997 = vbcast.lane.b32.xlu0 %v1991, %s1996
        %v1998 = vpop.permute.xlu0 %1997
        %s2000 = sor.u32 256, 16
        %2001 = vbcast.lane.b32.xlu0 %v1991, %s2000
        %v2002 = vpop.permute.xlu0 %2001
        %s2004 = sor.u32 256, 24
        %2005 = vbcast.lane.b32.xlu0 %v1991, %s2004
        %v2006 = vpop.permute.xlu0 %2005
        %s2008 = sor.u32 256, 32
        %2009 = vbcast.lane.b32.xlu0 %v1991, %s2008
        %v2010 = vpop.permute.xlu0 %2009
        %s2012 = sor.u32 256, 40
        %2013 = vbcast.lane.b32.xlu0 %v1991, %s2012
        %v2014 = vpop.permute.xlu0 %2013
        %s2016 = sor.u32 256, 48
        %2017 = vbcast.lane.b32.xlu0 %v1991, %s2016
        %v2018 = vpop.permute.xlu0 %2017
        %s2020 = sor.u32 256, 56
        %2021 = vbcast.lane.b32.xlu0 %v1991, %s2020
        %v2022 = vpop.permute.xlu0 %2021
        %s2024 = sor.u32 256, 64
        %2025 = vbcast.lane.b32.xlu0 %v1991, %s2024
        %v2026 = vpop.permute.xlu0 %2025
        %s2028 = sor.u32 256, 72
        %2029 = vbcast.lane.b32.xlu0 %v1991, %s2028
        %v2030 = vpop.permute.xlu0 %2029
        %s2032 = sor.u32 256, 80
        %2033 = vbcast.lane.b32.xlu0 %v1991, %s2032
        %v2034 = vpop.permute.xlu0 %2033
        %s2036 = sor.u32 256, 88
        %2037 = vbcast.lane.b32.xlu0 %v1991, %s2036
        %v2038 = vpop.permute.xlu0 %2037
        %s2040 = sor.u32 256, 96
        %2041 = vbcast.lane.b32.xlu0 %v1991, %s2040
        %v2042 = vpop.permute.xlu0 %2041
        %s2044 = sor.u32 256, 104
        %2045 = vbcast.lane.b32.xlu0 %v1991, %s2044
        %v2046 = vpop.permute.xlu0 %2045
        %s2048 = sor.u32 256, 112
        %2049 = vbcast.lane.b32.xlu0 %v1991, %s2048
        %v2050 = vpop.permute.xlu0 %2049
        %s2052 = sor.u32 256, 120
        %2053 = vbcast.lane.b32.xlu0 %v1991, %s2052
        %v2054 = vpop.permute.xlu0 %2053
        %v2055 = vlaneseq
        %v2056 = vshrl.u32 %v2055, 7
        %v2057 = vsub.s32 4, %v2056
        %v2058 = vrot.slane %v220, %v2057
        %2060 = vbcast.lane.b32.xlu0 %v2058, 256
        %v2061 = vpop.permute.xlu0 %2060
        %s2063 = sor.u32 256, 8
        %2064 = vbcast.lane.b32.xlu0 %v2058, %s2063
        %v2065 = vpop.permute.xlu0 %2064
        %s2067 = sor.u32 256, 16
        %2068 = vbcast.lane.b32.xlu0 %v2058, %s2067
        %v2069 = vpop.permute.xlu0 %2068
        %s2071 = sor.u32 256, 24
        %2072 = vbcast.lane.b32.xlu0 %v2058, %s2071
        %v2073 = vpop.permute.xlu0 %2072
        %s2075 = sor.u32 256, 32
        %2076 = vbcast.lane.b32.xlu0 %v2058, %s2075
        %v2077 = vpop.permute.xlu0 %2076
        %s2079 = sor.u32 256, 40
        %2080 = vbcast.lane.b32.xlu0 %v2058, %s2079
        %v2081 = vpop.permute.xlu0 %2080
        %s2083 = sor.u32 256, 48
        %2084 = vbcast.lane.b32.xlu0 %v2058, %s2083
        %v2085 = vpop.permute.xlu0 %2084
        %s2087 = sor.u32 256, 56
        %2088 = vbcast.lane.b32.xlu0 %v2058, %s2087
        %v2089 = vpop.permute.xlu0 %2088
        %s2091 = sor.u32 256, 64
        %2092 = vbcast.lane.b32.xlu0 %v2058, %s2091
        %v2093 = vpop.permute.xlu0 %2092
        %s2095 = sor.u32 256, 72
        %2096 = vbcast.lane.b32.xlu0 %v2058, %s2095
        %v2097 = vpop.permute.xlu0 %2096
        %s2099 = sor.u32 256, 80
        %2100 = vbcast.lane.b32.xlu0 %v2058, %s2099
        %v2101 = vpop.permute.xlu0 %2100
        %s2103 = sor.u32 256, 88
        %2104 = vbcast.lane.b32.xlu0 %v2058, %s2103
        %v2105 = vpop.permute.xlu0 %2104
        %s2107 = sor.u32 256, 96
        %2108 = vbcast.lane.b32.xlu0 %v2058, %s2107
        %v2109 = vpop.permute.xlu0 %2108
        %s2111 = sor.u32 256, 104
        %2112 = vbcast.lane.b32.xlu0 %v2058, %s2111
        %v2113 = vpop.permute.xlu0 %2112
        %s2115 = sor.u32 256, 112
        %2116 = vbcast.lane.b32.xlu0 %v2058, %s2115
        %v2117 = vpop.permute.xlu0 %2116
        %s2119 = sor.u32 256, 120
        %2120 = vbcast.lane.b32.xlu0 %v2058, %s2119
        %v2121 = vpop.permute.xlu0 %2120
        %v2122 = vlaneseq
        %v2123 = vshrl.u32 %v2122, 7
        %v2124 = vsub.s32 5, %v2123
        %v2125 = vrot.slane %v220, %v2124
        %2127 = vbcast.lane.b32.xlu0 %v2125, 256
        %v2128 = vpop.permute.xlu0 %2127
        %s2130 = sor.u32 256, 8
        %2131 = vbcast.lane.b32.xlu0 %v2125, %s2130
        %v2132 = vpop.permute.xlu0 %2131
        %s2134 = sor.u32 256, 16
        %2135 = vbcast.lane.b32.xlu0 %v2125, %s2134
        %v2136 = vpop.permute.xlu0 %2135
        %s2138 = sor.u32 256, 24
        %2139 = vbcast.lane.b32.xlu0 %v2125, %s2138
        %v2140 = vpop.permute.xlu0 %2139
        %s2142 = sor.u32 256, 32
        %2143 = vbcast.lane.b32.xlu0 %v2125, %s2142
        %v2144 = vpop.permute.xlu0 %2143
        %s2146 = sor.u32 256, 40
        %2147 = vbcast.lane.b32.xlu0 %v2125, %s2146
        %v2148 = vpop.permute.xlu0 %2147
        %s2150 = sor.u32 256, 48
        %2151 = vbcast.lane.b32.xlu0 %v2125, %s2150
        %v2152 = vpop.permute.xlu0 %2151
        %s2154 = sor.u32 256, 56
        %2155 = vbcast.lane.b32.xlu0 %v2125, %s2154
        %v2156 = vpop.permute.xlu0 %2155
        %s2158 = sor.u32 256, 64
        %2159 = vbcast.lane.b32.xlu0 %v2125, %s2158
        %v2160 = vpop.permute.xlu0 %2159
        %s2162 = sor.u32 256, 72
        %2163 = vbcast.lane.b32.xlu0 %v2125, %s2162
        %v2164 = vpop.permute.xlu0 %2163
        %s2166 = sor.u32 256, 80
        %2167 = vbcast.lane.b32.xlu0 %v2125, %s2166
        %v2168 = vpop.permute.xlu0 %2167
        %s2170 = sor.u32 256, 88
        %2171 = vbcast.lane.b32.xlu0 %v2125, %s2170
        %v2172 = vpop.permute.xlu0 %2171
        %s2174 = sor.u32 256, 96
        %2175 = vbcast.lane.b32.xlu0 %v2125, %s2174
        %v2176 = vpop.permute.xlu0 %2175
        %s2178 = sor.u32 256, 104
        %2179 = vbcast.lane.b32.xlu0 %v2125, %s2178
        %v2180 = vpop.permute.xlu0 %2179
        %s2182 = sor.u32 256, 112
        %2183 = vbcast.lane.b32.xlu0 %v2125, %s2182
        %v2184 = vpop.permute.xlu0 %2183
        %s2186 = sor.u32 256, 120
        %2187 = vbcast.lane.b32.xlu0 %v2125, %s2186
        %v2188 = vpop.permute.xlu0 %2187
        %v2189 = vlaneseq
        %v2190 = vshrl.u32 %v2189, 7
        %v2191 = vsub.s32 6, %v2190
        %v2192 = vrot.slane %v220, %v2191
        %2194 = vbcast.lane.b32.xlu0 %v2192, 256
        %v2195 = vpop.permute.xlu0 %2194
        %s2197 = sor.u32 256, 8
        %2198 = vbcast.lane.b32.xlu0 %v2192, %s2197
        %v2199 = vpop.permute.xlu0 %2198
        %s2201 = sor.u32 256, 16
        %2202 = vbcast.lane.b32.xlu0 %v2192, %s2201
        %v2203 = vpop.permute.xlu0 %2202
        %s2205 = sor.u32 256, 24
        %2206 = vbcast.lane.b32.xlu0 %v2192, %s2205
        %v2207 = vpop.permute.xlu0 %2206
        %s2209 = sor.u32 256, 32
        %2210 = vbcast.lane.b32.xlu0 %v2192, %s2209
        %v2211 = vpop.permute.xlu0 %2210
        %s2213 = sor.u32 256, 40
        %2214 = vbcast.lane.b32.xlu0 %v2192, %s2213
        %v2215 = vpop.permute.xlu0 %2214
        %s2217 = sor.u32 256, 48
        %2218 = vbcast.lane.b32.xlu0 %v2192, %s2217
        %v2219 = vpop.permute.xlu0 %2218
        %s2221 = sor.u32 256, 56
        %2222 = vbcast.lane.b32.xlu0 %v2192, %s2221
        %v2223 = vpop.permute.xlu0 %2222
        %s2225 = sor.u32 256, 64
        %2226 = vbcast.lane.b32.xlu0 %v2192, %s2225
        %v2227 = vpop.permute.xlu0 %2226
        %s2229 = sor.u32 256, 72
        %2230 = vbcast.lane.b32.xlu0 %v2192, %s2229
        %v2231 = vpop.permute.xlu0 %2230
        %s2233 = sor.u32 256, 80
        %2234 = vbcast.lane.b32.xlu0 %v2192, %s2233
        %v2235 = vpop.permute.xlu0 %2234
        %s2237 = sor.u32 256, 88
        %2238 = vbcast.lane.b32.xlu0 %v2192, %s2237
        %v2239 = vpop.permute.xlu0 %2238
        %s2241 = sor.u32 256, 96
        %2242 = vbcast.lane.b32.xlu0 %v2192, %s2241
        %v2243 = vpop.permute.xlu0 %2242
        %s2245 = sor.u32 256, 104
        %2246 = vbcast.lane.b32.xlu0 %v2192, %s2245
        %v2247 = vpop.permute.xlu0 %2246
        %s2249 = sor.u32 256, 112
        %2250 = vbcast.lane.b32.xlu0 %v2192, %s2249
        %v2251 = vpop.permute.xlu0 %2250
        %s2253 = sor.u32 256, 120
        %2254 = vbcast.lane.b32.xlu0 %v2192, %s2253
        %v2255 = vpop.permute.xlu0 %2254
        %v2256 = vlaneseq
        %v2257 = vshrl.u32 %v2256, 7
        %v2258 = vsub.s32 7, %v2257
        %v2259 = vrot.slane %v220, %v2258
        %2261 = vbcast.lane.b32.xlu0 %v2259, 256
        %v2262 = vpop.permute.xlu0 %2261
        %s2264 = sor.u32 256, 8
        %2265 = vbcast.lane.b32.xlu0 %v2259, %s2264
        %v2266 = vpop.permute.xlu0 %2265
        %s2268 = sor.u32 256, 16
        %2269 = vbcast.lane.b32.xlu0 %v2259, %s2268
        %v2270 = vpop.permute.xlu0 %2269
        %s2272 = sor.u32 256, 24
        %2273 = vbcast.lane.b32.xlu0 %v2259, %s2272
        %v2274 = vpop.permute.xlu0 %2273
        %s2276 = sor.u32 256, 32
        %2277 = vbcast.lane.b32.xlu0 %v2259, %s2276
        %v2278 = vpop.permute.xlu0 %2277
        %s2280 = sor.u32 256, 40
        %2281 = vbcast.lane.b32.xlu0 %v2259, %s2280
        %v2282 = vpop.permute.xlu0 %2281
        %s2284 = sor.u32 256, 48
        %2285 = vbcast.lane.b32.xlu0 %v2259, %s2284
        %v2286 = vpop.permute.xlu0 %2285
        %s2288 = sor.u32 256, 56
        %2289 = vbcast.lane.b32.xlu0 %v2259, %s2288
        %v2290 = vpop.permute.xlu0 %2289
        %s2292 = sor.u32 256, 64
        %2293 = vbcast.lane.b32.xlu0 %v2259, %s2292
        %v2294 = vpop.permute.xlu0 %2293
        %s2296 = sor.u32 256, 72
        %2297 = vbcast.lane.b32.xlu0 %v2259, %s2296
        %v2298 = vpop.permute.xlu0 %2297
        %s2300 = sor.u32 256, 80
        %2301 = vbcast.lane.b32.xlu0 %v2259, %s2300
        %v2302 = vpop.permute.xlu0 %2301
        %s2304 = sor.u32 256, 88
        %2305 = vbcast.lane.b32.xlu0 %v2259, %s2304
        %v2306 = vpop.permute.xlu0 %2305
        %s2308 = sor.u32 256, 96
        %2309 = vbcast.lane.b32.xlu0 %v2259, %s2308
        %v2310 = vpop.permute.xlu0 %2309
        %s2312 = sor.u32 256, 104
        %2313 = vbcast.lane.b32.xlu0 %v2259, %s2312
        %v2314 = vpop.permute.xlu0 %2313
        %s2316 = sor.u32 256, 112
        %2317 = vbcast.lane.b32.xlu0 %v2259, %s2316
        %v2318 = vpop.permute.xlu0 %2317
        %s2320 = sor.u32 256, 120
        %2321 = vbcast.lane.b32.xlu0 %v2259, %s2320
        %v2322 = vpop.permute.xlu0 %2321
        %v2323 = vlaneseq
        %v2324 = vshrl.u32 %v2323, 7
        %v2325 = vsub.s32 0, %v2324
        %v2326 = vrot.slane %v221, %v2325
        %2328 = vbcast.lane.b32.xlu0 %v2326, 256
        %v2329 = vpop.permute.xlu0 %2328
        %s2331 = sor.u32 256, 8
        %2332 = vbcast.lane.b32.xlu0 %v2326, %s2331
        %v2333 = vpop.permute.xlu0 %2332
        %s2335 = sor.u32 256, 16
        %2336 = vbcast.lane.b32.xlu0 %v2326, %s2335
        %v2337 = vpop.permute.xlu0 %2336
        %s2339 = sor.u32 256, 24
        %2340 = vbcast.lane.b32.xlu0 %v2326, %s2339
        %v2341 = vpop.permute.xlu0 %2340
        %s2343 = sor.u32 256, 32
        %2344 = vbcast.lane.b32.xlu0 %v2326, %s2343
        %v2345 = vpop.permute.xlu0 %2344
        %s2347 = sor.u32 256, 40
        %2348 = vbcast.lane.b32.xlu0 %v2326, %s2347
        %v2349 = vpop.permute.xlu0 %2348
        %s2351 = sor.u32 256, 48
        %2352 = vbcast.lane.b32.xlu0 %v2326, %s2351
        %v2353 = vpop.permute.xlu0 %2352
        %s2355 = sor.u32 256, 56
        %2356 = vbcast.lane.b32.xlu0 %v2326, %s2355
        %v2357 = vpop.permute.xlu0 %2356
        %s2359 = sor.u32 256, 64
        %2360 = vbcast.lane.b32.xlu0 %v2326, %s2359
        %v2361 = vpop.permute.xlu0 %2360
        %s2363 = sor.u32 256, 72
        %2364 = vbcast.lane.b32.xlu0 %v2326, %s2363
        %v2365 = vpop.permute.xlu0 %2364
        %s2367 = sor.u32 256, 80
        %2368 = vbcast.lane.b32.xlu0 %v2326, %s2367
        %v2369 = vpop.permute.xlu0 %2368
        %s2371 = sor.u32 256, 88
        %2372 = vbcast.lane.b32.xlu0 %v2326, %s2371
        %v2373 = vpop.permute.xlu0 %2372
        %s2375 = sor.u32 256, 96
        %2376 = vbcast.lane.b32.xlu0 %v2326, %s2375
        %v2377 = vpop.permute.xlu0 %2376
        %s2379 = sor.u32 256, 104
        %2380 = vbcast.lane.b32.xlu0 %v2326, %s2379
        %v2381 = vpop.permute.xlu0 %2380
        %s2383 = sor.u32 256, 112
        %2384 = vbcast.lane.b32.xlu0 %v2326, %s2383
        %v2385 = vpop.permute.xlu0 %2384
        %s2387 = sor.u32 256, 120
        %2388 = vbcast.lane.b32.xlu0 %v2326, %s2387
        %v2389 = vpop.permute.xlu0 %2388
        %v2390 = vlaneseq
        %v2391 = vshrl.u32 %v2390, 7
        %v2392 = vsub.s32 1, %v2391
        %v2393 = vrot.slane %v221, %v2392
        %2395 = vbcast.lane.b32.xlu0 %v2393, 256
        %v2396 = vpop.permute.xlu0 %2395
        %s2398 = sor.u32 256, 8
        %2399 = vbcast.lane.b32.xlu0 %v2393, %s2398
        %v2400 = vpop.permute.xlu0 %2399
        %s2402 = sor.u32 256, 16
        %2403 = vbcast.lane.b32.xlu0 %v2393, %s2402
        %v2404 = vpop.permute.xlu0 %2403
        %s2406 = sor.u32 256, 24
        %2407 = vbcast.lane.b32.xlu0 %v2393, %s2406
        %v2408 = vpop.permute.xlu0 %2407
        %s2410 = sor.u32 256, 32
        %2411 = vbcast.lane.b32.xlu0 %v2393, %s2410
        %v2412 = vpop.permute.xlu0 %2411
        %s2414 = sor.u32 256, 40
        %2415 = vbcast.lane.b32.xlu0 %v2393, %s2414
        %v2416 = vpop.permute.xlu0 %2415
        %s2418 = sor.u32 256, 48
        %2419 = vbcast.lane.b32.xlu0 %v2393, %s2418
        %v2420 = vpop.permute.xlu0 %2419
        %s2422 = sor.u32 256, 56
        %2423 = vbcast.lane.b32.xlu0 %v2393, %s2422
        %v2424 = vpop.permute.xlu0 %2423
        %s2426 = sor.u32 256, 64
        %2427 = vbcast.lane.b32.xlu0 %v2393, %s2426
        %v2428 = vpop.permute.xlu0 %2427
        %s2430 = sor.u32 256, 72
        %2431 = vbcast.lane.b32.xlu0 %v2393, %s2430
        %v2432 = vpop.permute.xlu0 %2431
        %s2434 = sor.u32 256, 80
        %2435 = vbcast.lane.b32.xlu0 %v2393, %s2434
        %v2436 = vpop.permute.xlu0 %2435
        %s2438 = sor.u32 256, 88
        %2439 = vbcast.lane.b32.xlu0 %v2393, %s2438
        %v2440 = vpop.permute.xlu0 %2439
        %s2442 = sor.u32 256, 96
        %2443 = vbcast.lane.b32.xlu0 %v2393, %s2442
        %v2444 = vpop.permute.xlu0 %2443
        %s2446 = sor.u32 256, 104
        %2447 = vbcast.lane.b32.xlu0 %v2393, %s2446
        %v2448 = vpop.permute.xlu0 %2447
        %s2450 = sor.u32 256, 112
        %2451 = vbcast.lane.b32.xlu0 %v2393, %s2450
        %v2452 = vpop.permute.xlu0 %2451
        %s2454 = sor.u32 256, 120
        %2455 = vbcast.lane.b32.xlu0 %v2393, %s2454
        %v2456 = vpop.permute.xlu0 %2455
        %v2457 = vlaneseq
        %v2458 = vshrl.u32 %v2457, 7
        %v2459 = vsub.s32 2, %v2458
        %v2460 = vrot.slane %v221, %v2459
        %2462 = vbcast.lane.b32.xlu0 %v2460, 256
        %v2463 = vpop.permute.xlu0 %2462
        %s2465 = sor.u32 256, 8
        %2466 = vbcast.lane.b32.xlu0 %v2460, %s2465
        %v2467 = vpop.permute.xlu0 %2466
        %s2469 = sor.u32 256, 16
        %2470 = vbcast.lane.b32.xlu0 %v2460, %s2469
        %v2471 = vpop.permute.xlu0 %2470
        %s2473 = sor.u32 256, 24
        %2474 = vbcast.lane.b32.xlu0 %v2460, %s2473
        %v2475 = vpop.permute.xlu0 %2474
        %s2477 = sor.u32 256, 32
        %2478 = vbcast.lane.b32.xlu0 %v2460, %s2477
        %v2479 = vpop.permute.xlu0 %2478
        %s2481 = sor.u32 256, 40
        %2482 = vbcast.lane.b32.xlu0 %v2460, %s2481
        %v2483 = vpop.permute.xlu0 %2482
        %s2485 = sor.u32 256, 48
        %2486 = vbcast.lane.b32.xlu0 %v2460, %s2485
        %v2487 = vpop.permute.xlu0 %2486
        %s2489 = sor.u32 256, 56
        %2490 = vbcast.lane.b32.xlu0 %v2460, %s2489
        %v2491 = vpop.permute.xlu0 %2490
        %s2493 = sor.u32 256, 64
        %2494 = vbcast.lane.b32.xlu0 %v2460, %s2493
        %v2495 = vpop.permute.xlu0 %2494
        %s2497 = sor.u32 256, 72
        %2498 = vbcast.lane.b32.xlu0 %v2460, %s2497
        %v2499 = vpop.permute.xlu0 %2498
        %s2501 = sor.u32 256, 80
        %2502 = vbcast.lane.b32.xlu0 %v2460, %s2501
        %v2503 = vpop.permute.xlu0 %2502
        %s2505 = sor.u32 256, 88
        %2506 = vbcast.lane.b32.xlu0 %v2460, %s2505
        %v2507 = vpop.permute.xlu0 %2506
        %s2509 = sor.u32 256, 96
        %2510 = vbcast.lane.b32.xlu0 %v2460, %s2509
        %v2511 = vpop.permute.xlu0 %2510
        %s2513 = sor.u32 256, 104
        %2514 = vbcast.lane.b32.xlu0 %v2460, %s2513
        %v2515 = vpop.permute.xlu0 %2514
        %s2517 = sor.u32 256, 112
        %2518 = vbcast.lane.b32.xlu0 %v2460, %s2517
        %v2519 = vpop.permute.xlu0 %2518
        %s2521 = sor.u32 256, 120
        %2522 = vbcast.lane.b32.xlu0 %v2460, %s2521
        %v2523 = vpop.permute.xlu0 %2522
        %v2524 = vlaneseq
        %v2525 = vshrl.u32 %v2524, 7
        %v2526 = vsub.s32 3, %v2525
        %v2527 = vrot.slane %v221, %v2526
        %2529 = vbcast.lane.b32.xlu0 %v2527, 256
        %v2530 = vpop.permute.xlu0 %2529
        %s2532 = sor.u32 256, 8
        %2533 = vbcast.lane.b32.xlu0 %v2527, %s2532
        %v2534 = vpop.permute.xlu0 %2533
        %s2536 = sor.u32 256, 16
        %2537 = vbcast.lane.b32.xlu0 %v2527, %s2536
        %v2538 = vpop.permute.xlu0 %2537
        %s2540 = sor.u32 256, 24
        %2541 = vbcast.lane.b32.xlu0 %v2527, %s2540
        %v2542 = vpop.permute.xlu0 %2541
        %s2544 = sor.u32 256, 32
        %2545 = vbcast.lane.b32.xlu0 %v2527, %s2544
        %v2546 = vpop.permute.xlu0 %2545
        %s2548 = sor.u32 256, 40
        %2549 = vbcast.lane.b32.xlu0 %v2527, %s2548
        %v2550 = vpop.permute.xlu0 %2549
        %s2552 = sor.u32 256, 48
        %2553 = vbcast.lane.b32.xlu0 %v2527, %s2552
        %v2554 = vpop.permute.xlu0 %2553
        %s2556 = sor.u32 256, 56
        %2557 = vbcast.lane.b32.xlu0 %v2527, %s2556
        %v2558 = vpop.permute.xlu0 %2557
        %s2560 = sor.u32 256, 64
        %2561 = vbcast.lane.b32.xlu0 %v2527, %s2560
        %v2562 = vpop.permute.xlu0 %2561
        %s2564 = sor.u32 256, 72
        %2565 = vbcast.lane.b32.xlu0 %v2527, %s2564
        %v2566 = vpop.permute.xlu0 %2565
        %s2568 = sor.u32 256, 80
        %2569 = vbcast.lane.b32.xlu0 %v2527, %s2568
        %v2570 = vpop.permute.xlu0 %2569
        %s2572 = sor.u32 256, 88
        %2573 = vbcast.lane.b32.xlu0 %v2527, %s2572
        %v2574 = vpop.permute.xlu0 %2573
        %s2576 = sor.u32 256, 96
        %2577 = vbcast.lane.b32.xlu0 %v2527, %s2576
        %v2578 = vpop.permute.xlu0 %2577
        %s2580 = sor.u32 256, 104
        %2581 = vbcast.lane.b32.xlu0 %v2527, %s2580
        %v2582 = vpop.permute.xlu0 %2581
        %s2584 = sor.u32 256, 112
        %2585 = vbcast.lane.b32.xlu0 %v2527, %s2584
        %v2586 = vpop.permute.xlu0 %2585
        %s2588 = sor.u32 256, 120
        %2589 = vbcast.lane.b32.xlu0 %v2527, %s2588
        %v2590 = vpop.permute.xlu0 %2589
        %v2591 = vlaneseq
        %v2592 = vshrl.u32 %v2591, 7
        %v2593 = vsub.s32 4, %v2592
        %v2594 = vrot.slane %v221, %v2593
        %2596 = vbcast.lane.b32.xlu0 %v2594, 256
        %v2597 = vpop.permute.xlu0 %2596
        %s2599 = sor.u32 256, 8
        %2600 = vbcast.lane.b32.xlu0 %v2594, %s2599
        %v2601 = vpop.permute.xlu0 %2600
        %s2603 = sor.u32 256, 16
        %2604 = vbcast.lane.b32.xlu0 %v2594, %s2603
        %v2605 = vpop.permute.xlu0 %2604
        %s2607 = sor.u32 256, 24
        %2608 = vbcast.lane.b32.xlu0 %v2594, %s2607
        %v2609 = vpop.permute.xlu0 %2608
        %s2611 = sor.u32 256, 32
        %2612 = vbcast.lane.b32.xlu0 %v2594, %s2611
        %v2613 = vpop.permute.xlu0 %2612
        %s2615 = sor.u32 256, 40
        %2616 = vbcast.lane.b32.xlu0 %v2594, %s2615
        %v2617 = vpop.permute.xlu0 %2616
        %s2619 = sor.u32 256, 48
        %2620 = vbcast.lane.b32.xlu0 %v2594, %s2619
        %v2621 = vpop.permute.xlu0 %2620
        %s2623 = sor.u32 256, 56
        %2624 = vbcast.lane.b32.xlu0 %v2594, %s2623
        %v2625 = vpop.permute.xlu0 %2624
        %s2627 = sor.u32 256, 64
        %2628 = vbcast.lane.b32.xlu0 %v2594, %s2627
        %v2629 = vpop.permute.xlu0 %2628
        %s2631 = sor.u32 256, 72
        %2632 = vbcast.lane.b32.xlu0 %v2594, %s2631
        %v2633 = vpop.permute.xlu0 %2632
        %s2635 = sor.u32 256, 80
        %2636 = vbcast.lane.b32.xlu0 %v2594, %s2635
        %v2637 = vpop.permute.xlu0 %2636
        %s2639 = sor.u32 256, 88
        %2640 = vbcast.lane.b32.xlu0 %v2594, %s2639
        %v2641 = vpop.permute.xlu0 %2640
        %s2643 = sor.u32 256, 96
        %2644 = vbcast.lane.b32.xlu0 %v2594, %s2643
        %v2645 = vpop.permute.xlu0 %2644
        %s2647 = sor.u32 256, 104
        %2648 = vbcast.lane.b32.xlu0 %v2594, %s2647
        %v2649 = vpop.permute.xlu0 %2648
        %s2651 = sor.u32 256, 112
        %2652 = vbcast.lane.b32.xlu0 %v2594, %s2651
        %v2653 = vpop.permute.xlu0 %2652
        %s2655 = sor.u32 256, 120
        %2656 = vbcast.lane.b32.xlu0 %v2594, %s2655
        %v2657 = vpop.permute.xlu0 %2656
        %v2658 = vlaneseq
        %v2659 = vshrl.u32 %v2658, 7
        %v2660 = vsub.s32 5, %v2659
        %v2661 = vrot.slane %v221, %v2660
        %2663 = vbcast.lane.b32.xlu0 %v2661, 256
        %v2664 = vpop.permute.xlu0 %2663
        %s2666 = sor.u32 256, 8
        %2667 = vbcast.lane.b32.xlu0 %v2661, %s2666
        %v2668 = vpop.permute.xlu0 %2667
        %s2670 = sor.u32 256, 16
        %2671 = vbcast.lane.b32.xlu0 %v2661, %s2670
        %v2672 = vpop.permute.xlu0 %2671
        %s2674 = sor.u32 256, 24
        %2675 = vbcast.lane.b32.xlu0 %v2661, %s2674
        %v2676 = vpop.permute.xlu0 %2675
        %s2678 = sor.u32 256, 32
        %2679 = vbcast.lane.b32.xlu0 %v2661, %s2678
        %v2680 = vpop.permute.xlu0 %2679
        %s2682 = sor.u32 256, 40
        %2683 = vbcast.lane.b32.xlu0 %v2661, %s2682
        %v2684 = vpop.permute.xlu0 %2683
        %s2686 = sor.u32 256, 48
        %2687 = vbcast.lane.b32.xlu0 %v2661, %s2686
        %v2688 = vpop.permute.xlu0 %2687
        %s2690 = sor.u32 256, 56
        %2691 = vbcast.lane.b32.xlu0 %v2661, %s2690
        %v2692 = vpop.permute.xlu0 %2691
        %s2694 = sor.u32 256, 64
        %2695 = vbcast.lane.b32.xlu0 %v2661, %s2694
        %v2696 = vpop.permute.xlu0 %2695
        %s2698 = sor.u32 256, 72
        %2699 = vbcast.lane.b32.xlu0 %v2661, %s2698
        %v2700 = vpop.permute.xlu0 %2699
        %s2702 = sor.u32 256, 80
        %2703 = vbcast.lane.b32.xlu0 %v2661, %s2702
        %v2704 = vpop.permute.xlu0 %2703
        %s2706 = sor.u32 256, 88
        %2707 = vbcast.lane.b32.xlu0 %v2661, %s2706
        %v2708 = vpop.permute.xlu0 %2707
        %s2710 = sor.u32 256, 96
        %2711 = vbcast.lane.b32.xlu0 %v2661, %s2710
        %v2712 = vpop.permute.xlu0 %2711
        %s2714 = sor.u32 256, 104
        %2715 = vbcast.lane.b32.xlu0 %v2661, %s2714
        %v2716 = vpop.permute.xlu0 %2715
        %s2718 = sor.u32 256, 112
        %2719 = vbcast.lane.b32.xlu0 %v2661, %s2718
        %v2720 = vpop.permute.xlu0 %2719
        %s2722 = sor.u32 256, 120
        %2723 = vbcast.lane.b32.xlu0 %v2661, %s2722
        %v2724 = vpop.permute.xlu0 %2723
        %v2725 = vlaneseq
        %v2726 = vshrl.u32 %v2725, 7
        %v2727 = vsub.s32 6, %v2726
        %v2728 = vrot.slane %v221, %v2727
        %2730 = vbcast.lane.b32.xlu0 %v2728, 256
        %v2731 = vpop.permute.xlu0 %2730
        %s2733 = sor.u32 256, 8
        %2734 = vbcast.lane.b32.xlu0 %v2728, %s2733
        %v2735 = vpop.permute.xlu0 %2734
        %s2737 = sor.u32 256, 16
        %2738 = vbcast.lane.b32.xlu0 %v2728, %s2737
        %v2739 = vpop.permute.xlu0 %2738
        %s2741 = sor.u32 256, 24
        %2742 = vbcast.lane.b32.xlu0 %v2728, %s2741
        %v2743 = vpop.permute.xlu0 %2742
        %s2745 = sor.u32 256, 32
        %2746 = vbcast.lane.b32.xlu0 %v2728, %s2745
        %v2747 = vpop.permute.xlu0 %2746
        %s2749 = sor.u32 256, 40
        %2750 = vbcast.lane.b32.xlu0 %v2728, %s2749
        %v2751 = vpop.permute.xlu0 %2750
        %s2753 = sor.u32 256, 48
        %2754 = vbcast.lane.b32.xlu0 %v2728, %s2753
        %v2755 = vpop.permute.xlu0 %2754
        %s2757 = sor.u32 256, 56
        %2758 = vbcast.lane.b32.xlu0 %v2728, %s2757
        %v2759 = vpop.permute.xlu0 %2758
        %s2761 = sor.u32 256, 64
        %2762 = vbcast.lane.b32.xlu0 %v2728, %s2761
        %v2763 = vpop.permute.xlu0 %2762
        %s2765 = sor.u32 256, 72
        %2766 = vbcast.lane.b32.xlu0 %v2728, %s2765
        %v2767 = vpop.permute.xlu0 %2766
        %s2769 = sor.u32 256, 80
        %2770 = vbcast.lane.b32.xlu0 %v2728, %s2769
        %v2771 = vpop.permute.xlu0 %2770
        %s2773 = sor.u32 256, 88
        %2774 = vbcast.lane.b32.xlu0 %v2728, %s2773
        %v2775 = vpop.permute.xlu0 %2774
        %s2777 = sor.u32 256, 96
        %2778 = vbcast.lane.b32.xlu0 %v2728, %s2777
        %v2779 = vpop.permute.xlu0 %2778
        %s2781 = sor.u32 256, 104
        %2782 = vbcast.lane.b32.xlu0 %v2728, %s2781
        %v2783 = vpop.permute.xlu0 %2782
        %s2785 = sor.u32 256, 112
        %2786 = vbcast.lane.b32.xlu0 %v2728, %s2785
        %v2787 = vpop.permute.xlu0 %2786
        %s2789 = sor.u32 256, 120
        %2790 = vbcast.lane.b32.xlu0 %v2728, %s2789
        %v2791 = vpop.permute.xlu0 %2790
        %v2792 = vlaneseq
        %v2793 = vshrl.u32 %v2792, 7
        %v2794 = vsub.s32 7, %v2793
        %v2795 = vrot.slane %v221, %v2794
        %2797 = vbcast.lane.b32.xlu0 %v2795, 256
        %v2798 = vpop.permute.xlu0 %2797
        %s2800 = sor.u32 256, 8
        %2801 = vbcast.lane.b32.xlu0 %v2795, %s2800
        %v2802 = vpop.permute.xlu0 %2801
        %s2804 = sor.u32 256, 16
        %2805 = vbcast.lane.b32.xlu0 %v2795, %s2804
        %v2806 = vpop.permute.xlu0 %2805
        %s2808 = sor.u32 256, 24
        %2809 = vbcast.lane.b32.xlu0 %v2795, %s2808
        %v2810 = vpop.permute.xlu0 %2809
        %s2812 = sor.u32 256, 32
        %2813 = vbcast.lane.b32.xlu0 %v2795, %s2812
        %v2814 = vpop.permute.xlu0 %2813
        %s2816 = sor.u32 256, 40
        %2817 = vbcast.lane.b32.xlu0 %v2795, %s2816
        %v2818 = vpop.permute.xlu0 %2817
        %s2820 = sor.u32 256, 48
        %2821 = vbcast.lane.b32.xlu0 %v2795, %s2820
        %v2822 = vpop.permute.xlu0 %2821
        %s2824 = sor.u32 256, 56
        %2825 = vbcast.lane.b32.xlu0 %v2795, %s2824
        %v2826 = vpop.permute.xlu0 %2825
        %s2828 = sor.u32 256, 64
        %2829 = vbcast.lane.b32.xlu0 %v2795, %s2828
        %v2830 = vpop.permute.xlu0 %2829
        %s2832 = sor.u32 256, 72
        %2833 = vbcast.lane.b32.xlu0 %v2795, %s2832
        %v2834 = vpop.permute.xlu0 %2833
        %s2836 = sor.u32 256, 80
        %2837 = vbcast.lane.b32.xlu0 %v2795, %s2836
        %v2838 = vpop.permute.xlu0 %2837
        %s2840 = sor.u32 256, 88
        %2841 = vbcast.lane.b32.xlu0 %v2795, %s2840
        %v2842 = vpop.permute.xlu0 %2841
        %s2844 = sor.u32 256, 96
        %2845 = vbcast.lane.b32.xlu0 %v2795, %s2844
        %v2846 = vpop.permute.xlu0 %2845
        %s2848 = sor.u32 256, 104
        %2849 = vbcast.lane.b32.xlu0 %v2795, %s2848
        %v2850 = vpop.permute.xlu0 %2849
        %s2852 = sor.u32 256, 112
        %2853 = vbcast.lane.b32.xlu0 %v2795, %s2852
        %v2854 = vpop.permute.xlu0 %2853
        %s2856 = sor.u32 256, 120
        %2857 = vbcast.lane.b32.xlu0 %v2795, %s2856
        %v2858 = vpop.permute.xlu0 %2857
        %v2859 = vlaneseq
        %v2860 = vshrl.u32 %v2859, 7
        %v2861 = vsub.s32 0, %v2860
        %v2862 = vrot.slane %v222, %v2861
        %2864 = vbcast.lane.b32.xlu0 %v2862, 256
        %v2865 = vpop.permute.xlu0 %2864
        %s2867 = sor.u32 256, 8
        %2868 = vbcast.lane.b32.xlu0 %v2862, %s2867
        %v2869 = vpop.permute.xlu0 %2868
        %s2871 = sor.u32 256, 16
        %2872 = vbcast.lane.b32.xlu0 %v2862, %s2871
        %v2873 = vpop.permute.xlu0 %2872
        %s2875 = sor.u32 256, 24
        %2876 = vbcast.lane.b32.xlu0 %v2862, %s2875
        %v2877 = vpop.permute.xlu0 %2876
        %s2879 = sor.u32 256, 32
        %2880 = vbcast.lane.b32.xlu0 %v2862, %s2879
        %v2881 = vpop.permute.xlu0 %2880
        %s2883 = sor.u32 256, 40
        %2884 = vbcast.lane.b32.xlu0 %v2862, %s2883
        %v2885 = vpop.permute.xlu0 %2884
        %s2887 = sor.u32 256, 48
        %2888 = vbcast.lane.b32.xlu0 %v2862, %s2887
        %v2889 = vpop.permute.xlu0 %2888
        %s2891 = sor.u32 256, 56
        %2892 = vbcast.lane.b32.xlu0 %v2862, %s2891
        %v2893 = vpop.permute.xlu0 %2892
        %s2895 = sor.u32 256, 64
        %2896 = vbcast.lane.b32.xlu0 %v2862, %s2895
        %v2897 = vpop.permute.xlu0 %2896
        %s2899 = sor.u32 256, 72
        %2900 = vbcast.lane.b32.xlu0 %v2862, %s2899
        %v2901 = vpop.permute.xlu0 %2900
        %s2903 = sor.u32 256, 80
        %2904 = vbcast.lane.b32.xlu0 %v2862, %s2903
        %v2905 = vpop.permute.xlu0 %2904
        %s2907 = sor.u32 256, 88
        %2908 = vbcast.lane.b32.xlu0 %v2862, %s2907
        %v2909 = vpop.permute.xlu0 %2908
        %s2911 = sor.u32 256, 96
        %2912 = vbcast.lane.b32.xlu0 %v2862, %s2911
        %v2913 = vpop.permute.xlu0 %2912
        %s2915 = sor.u32 256, 104
        %2916 = vbcast.lane.b32.xlu0 %v2862, %s2915
        %v2917 = vpop.permute.xlu0 %2916
        %s2919 = sor.u32 256, 112
        %2920 = vbcast.lane.b32.xlu0 %v2862, %s2919
        %v2921 = vpop.permute.xlu0 %2920
        %s2923 = sor.u32 256, 120
        %2924 = vbcast.lane.b32.xlu0 %v2862, %s2923
        %v2925 = vpop.permute.xlu0 %2924
        %v2926 = vlaneseq
        %v2927 = vshrl.u32 %v2926, 7
        %v2928 = vsub.s32 1, %v2927
        %v2929 = vrot.slane %v222, %v2928
        %2931 = vbcast.lane.b32.xlu0 %v2929, 256
        %v2932 = vpop.permute.xlu0 %2931
        %s2934 = sor.u32 256, 8
        %2935 = vbcast.lane.b32.xlu0 %v2929, %s2934
        %v2936 = vpop.permute.xlu0 %2935
        %s2938 = sor.u32 256, 16
        %2939 = vbcast.lane.b32.xlu0 %v2929, %s2938
        %v2940 = vpop.permute.xlu0 %2939
        %s2942 = sor.u32 256, 24
        %2943 = vbcast.lane.b32.xlu0 %v2929, %s2942
        %v2944 = vpop.permute.xlu0 %2943
        %s2946 = sor.u32 256, 32
        %2947 = vbcast.lane.b32.xlu0 %v2929, %s2946
        %v2948 = vpop.permute.xlu0 %2947
        %s2950 = sor.u32 256, 40
        %2951 = vbcast.lane.b32.xlu0 %v2929, %s2950
        %v2952 = vpop.permute.xlu0 %2951
        %s2954 = sor.u32 256, 48
        %2955 = vbcast.lane.b32.xlu0 %v2929, %s2954
        %v2956 = vpop.permute.xlu0 %2955
        %s2958 = sor.u32 256, 56
        %2959 = vbcast.lane.b32.xlu0 %v2929, %s2958
        %v2960 = vpop.permute.xlu0 %2959
        %s2962 = sor.u32 256, 64
        %2963 = vbcast.lane.b32.xlu0 %v2929, %s2962
        %v2964 = vpop.permute.xlu0 %2963
        %s2966 = sor.u32 256, 72
        %2967 = vbcast.lane.b32.xlu0 %v2929, %s2966
        %v2968 = vpop.permute.xlu0 %2967
        %s2970 = sor.u32 256, 80
        %2971 = vbcast.lane.b32.xlu0 %v2929, %s2970
        %v2972 = vpop.permute.xlu0 %2971
        %s2974 = sor.u32 256, 88
        %2975 = vbcast.lane.b32.xlu0 %v2929, %s2974
        %v2976 = vpop.permute.xlu0 %2975
        %s2978 = sor.u32 256, 96
        %2979 = vbcast.lane.b32.xlu0 %v2929, %s2978
        %v2980 = vpop.permute.xlu0 %2979
        %s2982 = sor.u32 256, 104
        %2983 = vbcast.lane.b32.xlu0 %v2929, %s2982
        %v2984 = vpop.permute.xlu0 %2983
        %s2986 = sor.u32 256, 112
        %2987 = vbcast.lane.b32.xlu0 %v2929, %s2986
        %v2988 = vpop.permute.xlu0 %2987
        %s2990 = sor.u32 256, 120
        %2991 = vbcast.lane.b32.xlu0 %v2929, %s2990
        %v2992 = vpop.permute.xlu0 %2991
        %v2993 = vlaneseq
        %v2994 = vshrl.u32 %v2993, 7
        %v2995 = vsub.s32 2, %v2994
        %v2996 = vrot.slane %v222, %v2995
        %2998 = vbcast.lane.b32.xlu0 %v2996, 256
        %v2999 = vpop.permute.xlu0 %2998
        %s3001 = sor.u32 256, 8
        %3002 = vbcast.lane.b32.xlu0 %v2996, %s3001
        %v3003 = vpop.permute.xlu0 %3002
        %s3005 = sor.u32 256, 16
        %3006 = vbcast.lane.b32.xlu0 %v2996, %s3005
        %v3007 = vpop.permute.xlu0 %3006
        %s3009 = sor.u32 256, 24
        %3010 = vbcast.lane.b32.xlu0 %v2996, %s3009
        %v3011 = vpop.permute.xlu0 %3010
        %s3013 = sor.u32 256, 32
        %3014 = vbcast.lane.b32.xlu0 %v2996, %s3013
        %v3015 = vpop.permute.xlu0 %3014
        %s3017 = sor.u32 256, 40
        %3018 = vbcast.lane.b32.xlu0 %v2996, %s3017
        %v3019 = vpop.permute.xlu0 %3018
        %s3021 = sor.u32 256, 48
        %3022 = vbcast.lane.b32.xlu0 %v2996, %s3021
        %v3023 = vpop.permute.xlu0 %3022
        %s3025 = sor.u32 256, 56
        %3026 = vbcast.lane.b32.xlu0 %v2996, %s3025
        %v3027 = vpop.permute.xlu0 %3026
        %s3029 = sor.u32 256, 64
        %3030 = vbcast.lane.b32.xlu0 %v2996, %s3029
        %v3031 = vpop.permute.xlu0 %3030
        %s3033 = sor.u32 256, 72
        %3034 = vbcast.lane.b32.xlu0 %v2996, %s3033
        %v3035 = vpop.permute.xlu0 %3034
        %s3037 = sor.u32 256, 80
        %3038 = vbcast.lane.b32.xlu0 %v2996, %s3037
        %v3039 = vpop.permute.xlu0 %3038
        %s3041 = sor.u32 256, 88
        %3042 = vbcast.lane.b32.xlu0 %v2996, %s3041
        %v3043 = vpop.permute.xlu0 %3042
        %s3045 = sor.u32 256, 96
        %3046 = vbcast.lane.b32.xlu0 %v2996, %s3045
        %v3047 = vpop.permute.xlu0 %3046
        %s3049 = sor.u32 256, 104
        %3050 = vbcast.lane.b32.xlu0 %v2996, %s3049
        %v3051 = vpop.permute.xlu0 %3050
        %s3053 = sor.u32 256, 112
        %3054 = vbcast.lane.b32.xlu0 %v2996, %s3053
        %v3055 = vpop.permute.xlu0 %3054
        %s3057 = sor.u32 256, 120
        %3058 = vbcast.lane.b32.xlu0 %v2996, %s3057
        %v3059 = vpop.permute.xlu0 %3058
        %v3060 = vlaneseq
        %v3061 = vshrl.u32 %v3060, 7
        %v3062 = vsub.s32 3, %v3061
        %v3063 = vrot.slane %v222, %v3062
        %3065 = vbcast.lane.b32.xlu0 %v3063, 256
        %v3066 = vpop.permute.xlu0 %3065
        %s3068 = sor.u32 256, 8
        %3069 = vbcast.lane.b32.xlu0 %v3063, %s3068
        %v3070 = vpop.permute.xlu0 %3069
        %s3072 = sor.u32 256, 16
        %3073 = vbcast.lane.b32.xlu0 %v3063, %s3072
        %v3074 = vpop.permute.xlu0 %3073
        %s3076 = sor.u32 256, 24
        %3077 = vbcast.lane.b32.xlu0 %v3063, %s3076
        %v3078 = vpop.permute.xlu0 %3077
        %s3080 = sor.u32 256, 32
        %3081 = vbcast.lane.b32.xlu0 %v3063, %s3080
        %v3082 = vpop.permute.xlu0 %3081
        %s3084 = sor.u32 256, 40
        %3085 = vbcast.lane.b32.xlu0 %v3063, %s3084
        %v3086 = vpop.permute.xlu0 %3085
        %s3088 = sor.u32 256, 48
        %3089 = vbcast.lane.b32.xlu0 %v3063, %s3088
        %v3090 = vpop.permute.xlu0 %3089
        %s3092 = sor.u32 256, 56
        %3093 = vbcast.lane.b32.xlu0 %v3063, %s3092
        %v3094 = vpop.permute.xlu0 %3093
        %s3096 = sor.u32 256, 64
        %3097 = vbcast.lane.b32.xlu0 %v3063, %s3096
        %v3098 = vpop.permute.xlu0 %3097
        %s3100 = sor.u32 256, 72
        %3101 = vbcast.lane.b32.xlu0 %v3063, %s3100
        %v3102 = vpop.permute.xlu0 %3101
        %s3104 = sor.u32 256, 80
        %3105 = vbcast.lane.b32.xlu0 %v3063, %s3104
        %v3106 = vpop.permute.xlu0 %3105
        %s3108 = sor.u32 256, 88
        %3109 = vbcast.lane.b32.xlu0 %v3063, %s3108
        %v3110 = vpop.permute.xlu0 %3109
        %s3112 = sor.u32 256, 96
        %3113 = vbcast.lane.b32.xlu0 %v3063, %s3112
        %v3114 = vpop.permute.xlu0 %3113
        %s3116 = sor.u32 256, 104
        %3117 = vbcast.lane.b32.xlu0 %v3063, %s3116
        %v3118 = vpop.permute.xlu0 %3117
        %s3120 = sor.u32 256, 112
        %3121 = vbcast.lane.b32.xlu0 %v3063, %s3120
        %v3122 = vpop.permute.xlu0 %3121
        %s3124 = sor.u32 256, 120
        %3125 = vbcast.lane.b32.xlu0 %v3063, %s3124
        %v3126 = vpop.permute.xlu0 %3125
        %v3127 = vlaneseq
        %v3128 = vshrl.u32 %v3127, 7
        %v3129 = vsub.s32 4, %v3128
        %v3130 = vrot.slane %v222, %v3129
        %3132 = vbcast.lane.b32.xlu0 %v3130, 256
        %v3133 = vpop.permute.xlu0 %3132
        %s3135 = sor.u32 256, 8
        %3136 = vbcast.lane.b32.xlu0 %v3130, %s3135
        %v3137 = vpop.permute.xlu0 %3136
        %s3139 = sor.u32 256, 16
        %3140 = vbcast.lane.b32.xlu0 %v3130, %s3139
        %v3141 = vpop.permute.xlu0 %3140
        %s3143 = sor.u32 256, 24
        %3144 = vbcast.lane.b32.xlu0 %v3130, %s3143
        %v3145 = vpop.permute.xlu0 %3144
        %s3147 = sor.u32 256, 32
        %3148 = vbcast.lane.b32.xlu0 %v3130, %s3147
        %v3149 = vpop.permute.xlu0 %3148
        %s3151 = sor.u32 256, 40
        %3152 = vbcast.lane.b32.xlu0 %v3130, %s3151
        %v3153 = vpop.permute.xlu0 %3152
        %s3155 = sor.u32 256, 48
        %3156 = vbcast.lane.b32.xlu0 %v3130, %s3155
        %v3157 = vpop.permute.xlu0 %3156
        %s3159 = sor.u32 256, 56
        %3160 = vbcast.lane.b32.xlu0 %v3130, %s3159
        %v3161 = vpop.permute.xlu0 %3160
        %s3163 = sor.u32 256, 64
        %3164 = vbcast.lane.b32.xlu0 %v3130, %s3163
        %v3165 = vpop.permute.xlu0 %3164
        %s3167 = sor.u32 256, 72
        %3168 = vbcast.lane.b32.xlu0 %v3130, %s3167
        %v3169 = vpop.permute.xlu0 %3168
        %s3171 = sor.u32 256, 80
        %3172 = vbcast.lane.b32.xlu0 %v3130, %s3171
        %v3173 = vpop.permute.xlu0 %3172
        %s3175 = sor.u32 256, 88
        %3176 = vbcast.lane.b32.xlu0 %v3130, %s3175
        %v3177 = vpop.permute.xlu0 %3176
        %s3179 = sor.u32 256, 96
        %3180 = vbcast.lane.b32.xlu0 %v3130, %s3179
        %v3181 = vpop.permute.xlu0 %3180
        %s3183 = sor.u32 256, 104
        %3184 = vbcast.lane.b32.xlu0 %v3130, %s3183
        %v3185 = vpop.permute.xlu0 %3184
        %s3187 = sor.u32 256, 112
        %3188 = vbcast.lane.b32.xlu0 %v3130, %s3187
        %v3189 = vpop.permute.xlu0 %3188
        %s3191 = sor.u32 256, 120
        %3192 = vbcast.lane.b32.xlu0 %v3130, %s3191
        %v3193 = vpop.permute.xlu0 %3192
        %v3194 = vlaneseq
        %v3195 = vshrl.u32 %v3194, 7
        %v3196 = vsub.s32 5, %v3195
        %v3197 = vrot.slane %v222, %v3196
        %3199 = vbcast.lane.b32.xlu0 %v3197, 256
        %v3200 = vpop.permute.xlu0 %3199
        %s3202 = sor.u32 256, 8
        %3203 = vbcast.lane.b32.xlu0 %v3197, %s3202
        %v3204 = vpop.permute.xlu0 %3203
        %s3206 = sor.u32 256, 16
        %3207 = vbcast.lane.b32.xlu0 %v3197, %s3206
        %v3208 = vpop.permute.xlu0 %3207
        %s3210 = sor.u32 256, 24
        %3211 = vbcast.lane.b32.xlu0 %v3197, %s3210
        %v3212 = vpop.permute.xlu0 %3211
        %s3214 = sor.u32 256, 32
        %3215 = vbcast.lane.b32.xlu0 %v3197, %s3214
        %v3216 = vpop.permute.xlu0 %3215
        %s3218 = sor.u32 256, 40
        %3219 = vbcast.lane.b32.xlu0 %v3197, %s3218
        %v3220 = vpop.permute.xlu0 %3219
        %s3222 = sor.u32 256, 48
        %3223 = vbcast.lane.b32.xlu0 %v3197, %s3222
        %v3224 = vpop.permute.xlu0 %3223
        %s3226 = sor.u32 256, 56
        %3227 = vbcast.lane.b32.xlu0 %v3197, %s3226
        %v3228 = vpop.permute.xlu0 %3227
        %s3230 = sor.u32 256, 64
        %3231 = vbcast.lane.b32.xlu0 %v3197, %s3230
        %v3232 = vpop.permute.xlu0 %3231
        %s3234 = sor.u32 256, 72
        %3235 = vbcast.lane.b32.xlu0 %v3197, %s3234
        %v3236 = vpop.permute.xlu0 %3235
        %s3238 = sor.u32 256, 80
        %3239 = vbcast.lane.b32.xlu0 %v3197, %s3238
        %v3240 = vpop.permute.xlu0 %3239
        %s3242 = sor.u32 256, 88
        %3243 = vbcast.lane.b32.xlu0 %v3197, %s3242
        %v3244 = vpop.permute.xlu0 %3243
        %s3246 = sor.u32 256, 96
        %3247 = vbcast.lane.b32.xlu0 %v3197, %s3246
        %v3248 = vpop.permute.xlu0 %3247
        %s3250 = sor.u32 256, 104
        %3251 = vbcast.lane.b32.xlu0 %v3197, %s3250
        %v3252 = vpop.permute.xlu0 %3251
        %s3254 = sor.u32 256, 112
        %3255 = vbcast.lane.b32.xlu0 %v3197, %s3254
        %v3256 = vpop.permute.xlu0 %3255
        %s3258 = sor.u32 256, 120
        %3259 = vbcast.lane.b32.xlu0 %v3197, %s3258
        %v3260 = vpop.permute.xlu0 %3259
        %v3261 = vlaneseq
        %v3262 = vshrl.u32 %v3261, 7
        %v3263 = vsub.s32 6, %v3262
        %v3264 = vrot.slane %v222, %v3263
        %3266 = vbcast.lane.b32.xlu0 %v3264, 256
        %v3267 = vpop.permute.xlu0 %3266
        %s3269 = sor.u32 256, 8
        %3270 = vbcast.lane.b32.xlu0 %v3264, %s3269
        %v3271 = vpop.permute.xlu0 %3270
        %s3273 = sor.u32 256, 16
        %3274 = vbcast.lane.b32.xlu0 %v3264, %s3273
        %v3275 = vpop.permute.xlu0 %3274
        %s3277 = sor.u32 256, 24
        %3278 = vbcast.lane.b32.xlu0 %v3264, %s3277
        %v3279 = vpop.permute.xlu0 %3278
        %s3281 = sor.u32 256, 32
        %3282 = vbcast.lane.b32.xlu0 %v3264, %s3281
        %v3283 = vpop.permute.xlu0 %3282
        %s3285 = sor.u32 256, 40
        %3286 = vbcast.lane.b32.xlu0 %v3264, %s3285
        %v3287 = vpop.permute.xlu0 %3286
        %s3289 = sor.u32 256, 48
        %3290 = vbcast.lane.b32.xlu0 %v3264, %s3289
        %v3291 = vpop.permute.xlu0 %3290
        %s3293 = sor.u32 256, 56
        %3294 = vbcast.lane.b32.xlu0 %v3264, %s3293
        %v3295 = vpop.permute.xlu0 %3294
        %s3297 = sor.u32 256, 64
        %3298 = vbcast.lane.b32.xlu0 %v3264, %s3297
        %v3299 = vpop.permute.xlu0 %3298
        %s3301 = sor.u32 256, 72
        %3302 = vbcast.lane.b32.xlu0 %v3264, %s3301
        %v3303 = vpop.permute.xlu0 %3302
        %s3305 = sor.u32 256, 80
        %3306 = vbcast.lane.b32.xlu0 %v3264, %s3305
        %v3307 = vpop.permute.xlu0 %3306
        %s3309 = sor.u32 256, 88
        %3310 = vbcast.lane.b32.xlu0 %v3264, %s3309
        %v3311 = vpop.permute.xlu0 %3310
        %s3313 = sor.u32 256, 96
        %3314 = vbcast.lane.b32.xlu0 %v3264, %s3313
        %v3315 = vpop.permute.xlu0 %3314
        %s3317 = sor.u32 256, 104
        %3318 = vbcast.lane.b32.xlu0 %v3264, %s3317
        %v3319 = vpop.permute.xlu0 %3318
        %s3321 = sor.u32 256, 112
        %3322 = vbcast.lane.b32.xlu0 %v3264, %s3321
        %v3323 = vpop.permute.xlu0 %3322
        %s3325 = sor.u32 256, 120
        %3326 = vbcast.lane.b32.xlu0 %v3264, %s3325
        %v3327 = vpop.permute.xlu0 %3326
        %v3328 = vlaneseq
        %v3329 = vshrl.u32 %v3328, 7
        %v3330 = vsub.s32 7, %v3329
        %v3331 = vrot.slane %v222, %v3330
        %3333 = vbcast.lane.b32.xlu0 %v3331, 256
        %v3334 = vpop.permute.xlu0 %3333
        %s3336 = sor.u32 256, 8
        %3337 = vbcast.lane.b32.xlu0 %v3331, %s3336
        %v3338 = vpop.permute.xlu0 %3337
        %s3340 = sor.u32 256, 16
        %3341 = vbcast.lane.b32.xlu0 %v3331, %s3340
        %v3342 = vpop.permute.xlu0 %3341
        %s3344 = sor.u32 256, 24
        %3345 = vbcast.lane.b32.xlu0 %v3331, %s3344
        %v3346 = vpop.permute.xlu0 %3345
        %s3348 = sor.u32 256, 32
        %3349 = vbcast.lane.b32.xlu0 %v3331, %s3348
        %v3350 = vpop.permute.xlu0 %3349
        %s3352 = sor.u32 256, 40
        %3353 = vbcast.lane.b32.xlu0 %v3331, %s3352
        %v3354 = vpop.permute.xlu0 %3353
        %s3356 = sor.u32 256, 48
        %3357 = vbcast.lane.b32.xlu0 %v3331, %s3356
        %v3358 = vpop.permute.xlu0 %3357
        %s3360 = sor.u32 256, 56
        %3361 = vbcast.lane.b32.xlu0 %v3331, %s3360
        %v3362 = vpop.permute.xlu0 %3361
        %s3364 = sor.u32 256, 64
        %3365 = vbcast.lane.b32.xlu0 %v3331, %s3364
        %v3366 = vpop.permute.xlu0 %3365
        %s3368 = sor.u32 256, 72
        %3369 = vbcast.lane.b32.xlu0 %v3331, %s3368
        %v3370 = vpop.permute.xlu0 %3369
        %s3372 = sor.u32 256, 80
        %3373 = vbcast.lane.b32.xlu0 %v3331, %s3372
        %v3374 = vpop.permute.xlu0 %3373
        %s3376 = sor.u32 256, 88
        %3377 = vbcast.lane.b32.xlu0 %v3331, %s3376
        %v3378 = vpop.permute.xlu0 %3377
        %s3380 = sor.u32 256, 96
        %3381 = vbcast.lane.b32.xlu0 %v3331, %s3380
        %v3382 = vpop.permute.xlu0 %3381
        %s3384 = sor.u32 256, 104
        %3385 = vbcast.lane.b32.xlu0 %v3331, %s3384
        %v3386 = vpop.permute.xlu0 %3385
        %s3388 = sor.u32 256, 112
        %3389 = vbcast.lane.b32.xlu0 %v3331, %s3388
        %v3390 = vpop.permute.xlu0 %3389
        %s3392 = sor.u32 256, 120
        %3393 = vbcast.lane.b32.xlu0 %v3331, %s3392
        %v3394 = vpop.permute.xlu0 %3393
        %v3395 = vlaneseq
        %v3396 = vshrl.u32 %v3395, 7
        %v3397 = vsub.s32 0, %v3396
        %v3398 = vrot.slane %v223, %v3397
        %3400 = vbcast.lane.b32.xlu0 %v3398, 256
        %v3401 = vpop.permute.xlu0 %3400
        %s3403 = sor.u32 256, 8
        %3404 = vbcast.lane.b32.xlu0 %v3398, %s3403
        %v3405 = vpop.permute.xlu0 %3404
        %s3407 = sor.u32 256, 16
        %3408 = vbcast.lane.b32.xlu0 %v3398, %s3407
        %v3409 = vpop.permute.xlu0 %3408
        %s3411 = sor.u32 256, 24
        %3412 = vbcast.lane.b32.xlu0 %v3398, %s3411
        %v3413 = vpop.permute.xlu0 %3412
        %s3415 = sor.u32 256, 32
        %3416 = vbcast.lane.b32.xlu0 %v3398, %s3415
        %v3417 = vpop.permute.xlu0 %3416
        %s3419 = sor.u32 256, 40
        %3420 = vbcast.lane.b32.xlu0 %v3398, %s3419
        %v3421 = vpop.permute.xlu0 %3420
        %s3423 = sor.u32 256, 48
        %3424 = vbcast.lane.b32.xlu0 %v3398, %s3423
        %v3425 = vpop.permute.xlu0 %3424
        %s3427 = sor.u32 256, 56
        %3428 = vbcast.lane.b32.xlu0 %v3398, %s3427
        %v3429 = vpop.permute.xlu0 %3428
        %s3431 = sor.u32 256, 64
        %3432 = vbcast.lane.b32.xlu0 %v3398, %s3431
        %v3433 = vpop.permute.xlu0 %3432
        %s3435 = sor.u32 256, 72
        %3436 = vbcast.lane.b32.xlu0 %v3398, %s3435
        %v3437 = vpop.permute.xlu0 %3436
        %s3439 = sor.u32 256, 80
        %3440 = vbcast.lane.b32.xlu0 %v3398, %s3439
        %v3441 = vpop.permute.xlu0 %3440
        %s3443 = sor.u32 256, 88
        %3444 = vbcast.lane.b32.xlu0 %v3398, %s3443
        %v3445 = vpop.permute.xlu0 %3444
        %s3447 = sor.u32 256, 96
        %3448 = vbcast.lane.b32.xlu0 %v3398, %s3447
        %v3449 = vpop.permute.xlu0 %3448
        %s3451 = sor.u32 256, 104
        %3452 = vbcast.lane.b32.xlu0 %v3398, %s3451
        %v3453 = vpop.permute.xlu0 %3452
        %s3455 = sor.u32 256, 112
        %3456 = vbcast.lane.b32.xlu0 %v3398, %s3455
        %v3457 = vpop.permute.xlu0 %3456
        %s3459 = sor.u32 256, 120
        %3460 = vbcast.lane.b32.xlu0 %v3398, %s3459
        %v3461 = vpop.permute.xlu0 %3460
        %v3462 = vlaneseq
        %v3463 = vshrl.u32 %v3462, 7
        %v3464 = vsub.s32 1, %v3463
        %v3465 = vrot.slane %v223, %v3464
        %3467 = vbcast.lane.b32.xlu0 %v3465, 256
        %v3468 = vpop.permute.xlu0 %3467
        %s3470 = sor.u32 256, 8
        %3471 = vbcast.lane.b32.xlu0 %v3465, %s3470
        %v3472 = vpop.permute.xlu0 %3471
        %s3474 = sor.u32 256, 16
        %3475 = vbcast.lane.b32.xlu0 %v3465, %s3474
        %v3476 = vpop.permute.xlu0 %3475
        %s3478 = sor.u32 256, 24
        %3479 = vbcast.lane.b32.xlu0 %v3465, %s3478
        %v3480 = vpop.permute.xlu0 %3479
        %s3482 = sor.u32 256, 32
        %3483 = vbcast.lane.b32.xlu0 %v3465, %s3482
        %v3484 = vpop.permute.xlu0 %3483
        %s3486 = sor.u32 256, 40
        %3487 = vbcast.lane.b32.xlu0 %v3465, %s3486
        %v3488 = vpop.permute.xlu0 %3487
        %s3490 = sor.u32 256, 48
        %3491 = vbcast.lane.b32.xlu0 %v3465, %s3490
        %v3492 = vpop.permute.xlu0 %3491
        %s3494 = sor.u32 256, 56
        %3495 = vbcast.lane.b32.xlu0 %v3465, %s3494
        %v3496 = vpop.permute.xlu0 %3495
        %s3498 = sor.u32 256, 64
        %3499 = vbcast.lane.b32.xlu0 %v3465, %s3498
        %v3500 = vpop.permute.xlu0 %3499
        %s3502 = sor.u32 256, 72
        %3503 = vbcast.lane.b32.xlu0 %v3465, %s3502
        %v3504 = vpop.permute.xlu0 %3503
        %s3506 = sor.u32 256, 80
        %3507 = vbcast.lane.b32.xlu0 %v3465, %s3506
        %v3508 = vpop.permute.xlu0 %3507
        %s3510 = sor.u32 256, 88
        %3511 = vbcast.lane.b32.xlu0 %v3465, %s3510
        %v3512 = vpop.permute.xlu0 %3511
        %s3514 = sor.u32 256, 96
        %3515 = vbcast.lane.b32.xlu0 %v3465, %s3514
        %v3516 = vpop.permute.xlu0 %3515
        %s3518 = sor.u32 256, 104
        %3519 = vbcast.lane.b32.xlu0 %v3465, %s3518
        %v3520 = vpop.permute.xlu0 %3519
        %s3522 = sor.u32 256, 112
        %3523 = vbcast.lane.b32.xlu0 %v3465, %s3522
        %v3524 = vpop.permute.xlu0 %3523
        %s3526 = sor.u32 256, 120
        %3527 = vbcast.lane.b32.xlu0 %v3465, %s3526
        %v3528 = vpop.permute.xlu0 %3527
        %v3529 = vlaneseq
        %v3530 = vshrl.u32 %v3529, 7
        %v3531 = vsub.s32 2, %v3530
        %v3532 = vrot.slane %v223, %v3531
        %3534 = vbcast.lane.b32.xlu0 %v3532, 256
        %v3535 = vpop.permute.xlu0 %3534
        %s3537 = sor.u32 256, 8
        %3538 = vbcast.lane.b32.xlu0 %v3532, %s3537
        %v3539 = vpop.permute.xlu0 %3538
        %s3541 = sor.u32 256, 16
        %3542 = vbcast.lane.b32.xlu0 %v3532, %s3541
        %v3543 = vpop.permute.xlu0 %3542
        %s3545 = sor.u32 256, 24
        %3546 = vbcast.lane.b32.xlu0 %v3532, %s3545
        %v3547 = vpop.permute.xlu0 %3546
        %s3549 = sor.u32 256, 32
        %3550 = vbcast.lane.b32.xlu0 %v3532, %s3549
        %v3551 = vpop.permute.xlu0 %3550
        %s3553 = sor.u32 256, 40
        %3554 = vbcast.lane.b32.xlu0 %v3532, %s3553
        %v3555 = vpop.permute.xlu0 %3554
        %s3557 = sor.u32 256, 48
        %3558 = vbcast.lane.b32.xlu0 %v3532, %s3557
        %v3559 = vpop.permute.xlu0 %3558
        %s3561 = sor.u32 256, 56
        %3562 = vbcast.lane.b32.xlu0 %v3532, %s3561
        %v3563 = vpop.permute.xlu0 %3562
        %s3565 = sor.u32 256, 64
        %3566 = vbcast.lane.b32.xlu0 %v3532, %s3565
        %v3567 = vpop.permute.xlu0 %3566
        %s3569 = sor.u32 256, 72
        %3570 = vbcast.lane.b32.xlu0 %v3532, %s3569
        %v3571 = vpop.permute.xlu0 %3570
        %s3573 = sor.u32 256, 80
        %3574 = vbcast.lane.b32.xlu0 %v3532, %s3573
        %v3575 = vpop.permute.xlu0 %3574
        %s3577 = sor.u32 256, 88
        %3578 = vbcast.lane.b32.xlu0 %v3532, %s3577
        %v3579 = vpop.permute.xlu0 %3578
        %s3581 = sor.u32 256, 96
        %3582 = vbcast.lane.b32.xlu0 %v3532, %s3581
        %v3583 = vpop.permute.xlu0 %3582
        %s3585 = sor.u32 256, 104
        %3586 = vbcast.lane.b32.xlu0 %v3532, %s3585
        %v3587 = vpop.permute.xlu0 %3586
        %s3589 = sor.u32 256, 112
        %3590 = vbcast.lane.b32.xlu0 %v3532, %s3589
        %v3591 = vpop.permute.xlu0 %3590
        %s3593 = sor.u32 256, 120
        %3594 = vbcast.lane.b32.xlu0 %v3532, %s3593
        %v3595 = vpop.permute.xlu0 %3594
        %v3596 = vlaneseq
        %v3597 = vshrl.u32 %v3596, 7
        %v3598 = vsub.s32 3, %v3597
        %v3599 = vrot.slane %v223, %v3598
        %3601 = vbcast.lane.b32.xlu0 %v3599, 256
        %v3602 = vpop.permute.xlu0 %3601
        %s3604 = sor.u32 256, 8
        %3605 = vbcast.lane.b32.xlu0 %v3599, %s3604
        %v3606 = vpop.permute.xlu0 %3605
        %s3608 = sor.u32 256, 16
        %3609 = vbcast.lane.b32.xlu0 %v3599, %s3608
        %v3610 = vpop.permute.xlu0 %3609
        %s3612 = sor.u32 256, 24
        %3613 = vbcast.lane.b32.xlu0 %v3599, %s3612
        %v3614 = vpop.permute.xlu0 %3613
        %s3616 = sor.u32 256, 32
        %3617 = vbcast.lane.b32.xlu0 %v3599, %s3616
        %v3618 = vpop.permute.xlu0 %3617
        %s3620 = sor.u32 256, 40
        %3621 = vbcast.lane.b32.xlu0 %v3599, %s3620
        %v3622 = vpop.permute.xlu0 %3621
        %s3624 = sor.u32 256, 48
        %3625 = vbcast.lane.b32.xlu0 %v3599, %s3624
        %v3626 = vpop.permute.xlu0 %3625
        %s3628 = sor.u32 256, 56
        %3629 = vbcast.lane.b32.xlu0 %v3599, %s3628
        %v3630 = vpop.permute.xlu0 %3629
        %s3632 = sor.u32 256, 64
        %3633 = vbcast.lane.b32.xlu0 %v3599, %s3632
        %v3634 = vpop.permute.xlu0 %3633
        %s3636 = sor.u32 256, 72
        %3637 = vbcast.lane.b32.xlu0 %v3599, %s3636
        %v3638 = vpop.permute.xlu0 %3637
        %s3640 = sor.u32 256, 80
        %3641 = vbcast.lane.b32.xlu0 %v3599, %s3640
        %v3642 = vpop.permute.xlu0 %3641
        %s3644 = sor.u32 256, 88
        %3645 = vbcast.lane.b32.xlu0 %v3599, %s3644
        %v3646 = vpop.permute.xlu0 %3645
        %s3648 = sor.u32 256, 96
        %3649 = vbcast.lane.b32.xlu0 %v3599, %s3648
        %v3650 = vpop.permute.xlu0 %3649
        %s3652 = sor.u32 256, 104
        %3653 = vbcast.lane.b32.xlu0 %v3599, %s3652
        %v3654 = vpop.permute.xlu0 %3653
        %s3656 = sor.u32 256, 112
        %3657 = vbcast.lane.b32.xlu0 %v3599, %s3656
        %v3658 = vpop.permute.xlu0 %3657
        %s3660 = sor.u32 256, 120
        %3661 = vbcast.lane.b32.xlu0 %v3599, %s3660
        %v3662 = vpop.permute.xlu0 %3661
        %v3663 = vlaneseq
        %v3664 = vshrl.u32 %v3663, 7
        %v3665 = vsub.s32 4, %v3664
        %v3666 = vrot.slane %v223, %v3665
        %3668 = vbcast.lane.b32.xlu0 %v3666, 256
        %v3669 = vpop.permute.xlu0 %3668
        %s3671 = sor.u32 256, 8
        %3672 = vbcast.lane.b32.xlu0 %v3666, %s3671
        %v3673 = vpop.permute.xlu0 %3672
        %s3675 = sor.u32 256, 16
        %3676 = vbcast.lane.b32.xlu0 %v3666, %s3675
        %v3677 = vpop.permute.xlu0 %3676
        %s3679 = sor.u32 256, 24
        %3680 = vbcast.lane.b32.xlu0 %v3666, %s3679
        %v3681 = vpop.permute.xlu0 %3680
        %s3683 = sor.u32 256, 32
        %3684 = vbcast.lane.b32.xlu0 %v3666, %s3683
        %v3685 = vpop.permute.xlu0 %3684
        %s3687 = sor.u32 256, 40
        %3688 = vbcast.lane.b32.xlu0 %v3666, %s3687
        %v3689 = vpop.permute.xlu0 %3688
        %s3691 = sor.u32 256, 48
        %3692 = vbcast.lane.b32.xlu0 %v3666, %s3691
        %v3693 = vpop.permute.xlu0 %3692
        %s3695 = sor.u32 256, 56
        %3696 = vbcast.lane.b32.xlu0 %v3666, %s3695
        %v3697 = vpop.permute.xlu0 %3696
        %s3699 = sor.u32 256, 64
        %3700 = vbcast.lane.b32.xlu0 %v3666, %s3699
        %v3701 = vpop.permute.xlu0 %3700
        %s3703 = sor.u32 256, 72
        %3704 = vbcast.lane.b32.xlu0 %v3666, %s3703
        %v3705 = vpop.permute.xlu0 %3704
        %s3707 = sor.u32 256, 80
        %3708 = vbcast.lane.b32.xlu0 %v3666, %s3707
        %v3709 = vpop.permute.xlu0 %3708
        %s3711 = sor.u32 256, 88
        %3712 = vbcast.lane.b32.xlu0 %v3666, %s3711
        %v3713 = vpop.permute.xlu0 %3712
        %s3715 = sor.u32 256, 96
        %3716 = vbcast.lane.b32.xlu0 %v3666, %s3715
        %v3717 = vpop.permute.xlu0 %3716
        %s3719 = sor.u32 256, 104
        %3720 = vbcast.lane.b32.xlu0 %v3666, %s3719
        %v3721 = vpop.permute.xlu0 %3720
        %s3723 = sor.u32 256, 112
        %3724 = vbcast.lane.b32.xlu0 %v3666, %s3723
        %v3725 = vpop.permute.xlu0 %3724
        %s3727 = sor.u32 256, 120
        %3728 = vbcast.lane.b32.xlu0 %v3666, %s3727
        %v3729 = vpop.permute.xlu0 %3728
        %v3730 = vlaneseq
        %v3731 = vshrl.u32 %v3730, 7
        %v3732 = vsub.s32 5, %v3731
        %v3733 = vrot.slane %v223, %v3732
        %3735 = vbcast.lane.b32.xlu0 %v3733, 256
        %v3736 = vpop.permute.xlu0 %3735
        %s3738 = sor.u32 256, 8
        %3739 = vbcast.lane.b32.xlu0 %v3733, %s3738
        %v3740 = vpop.permute.xlu0 %3739
        %s3742 = sor.u32 256, 16
        %3743 = vbcast.lane.b32.xlu0 %v3733, %s3742
        %v3744 = vpop.permute.xlu0 %3743
        %s3746 = sor.u32 256, 24
        %3747 = vbcast.lane.b32.xlu0 %v3733, %s3746
        %v3748 = vpop.permute.xlu0 %3747
        %s3750 = sor.u32 256, 32
        %3751 = vbcast.lane.b32.xlu0 %v3733, %s3750
        %v3752 = vpop.permute.xlu0 %3751
        %s3754 = sor.u32 256, 40
        %3755 = vbcast.lane.b32.xlu0 %v3733, %s3754
        %v3756 = vpop.permute.xlu0 %3755
        %s3758 = sor.u32 256, 48
        %3759 = vbcast.lane.b32.xlu0 %v3733, %s3758
        %v3760 = vpop.permute.xlu0 %3759
        %s3762 = sor.u32 256, 56
        %3763 = vbcast.lane.b32.xlu0 %v3733, %s3762
        %v3764 = vpop.permute.xlu0 %3763
        %s3766 = sor.u32 256, 64
        %3767 = vbcast.lane.b32.xlu0 %v3733, %s3766
        %v3768 = vpop.permute.xlu0 %3767
        %s3770 = sor.u32 256, 72
        %3771 = vbcast.lane.b32.xlu0 %v3733, %s3770
        %v3772 = vpop.permute.xlu0 %3771
        %s3774 = sor.u32 256, 80
        %3775 = vbcast.lane.b32.xlu0 %v3733, %s3774
        %v3776 = vpop.permute.xlu0 %3775
        %s3778 = sor.u32 256, 88
        %3779 = vbcast.lane.b32.xlu0 %v3733, %s3778
        %v3780 = vpop.permute.xlu0 %3779
        %s3782 = sor.u32 256, 96
        %3783 = vbcast.lane.b32.xlu0 %v3733, %s3782
        %v3784 = vpop.permute.xlu0 %3783
        %s3786 = sor.u32 256, 104
        %3787 = vbcast.lane.b32.xlu0 %v3733, %s3786
        %v3788 = vpop.permute.xlu0 %3787
        %s3790 = sor.u32 256, 112
        %3791 = vbcast.lane.b32.xlu0 %v3733, %s3790
        %v3792 = vpop.permute.xlu0 %3791
        %s3794 = sor.u32 256, 120
        %3795 = vbcast.lane.b32.xlu0 %v3733, %s3794
        %v3796 = vpop.permute.xlu0 %3795
        %v3797 = vlaneseq
        %v3798 = vshrl.u32 %v3797, 7
        %v3799 = vsub.s32 6, %v3798
        %v3800 = vrot.slane %v223, %v3799
        %3802 = vbcast.lane.b32.xlu0 %v3800, 256
        %v3803 = vpop.permute.xlu0 %3802
        %s3805 = sor.u32 256, 8
        %3806 = vbcast.lane.b32.xlu0 %v3800, %s3805
        %v3807 = vpop.permute.xlu0 %3806
        %s3809 = sor.u32 256, 16
        %3810 = vbcast.lane.b32.xlu0 %v3800, %s3809
        %v3811 = vpop.permute.xlu0 %3810
        %s3813 = sor.u32 256, 24
        %3814 = vbcast.lane.b32.xlu0 %v3800, %s3813
        %v3815 = vpop.permute.xlu0 %3814
        %s3817 = sor.u32 256, 32
        %3818 = vbcast.lane.b32.xlu0 %v3800, %s3817
        %v3819 = vpop.permute.xlu0 %3818
        %s3821 = sor.u32 256, 40
        %3822 = vbcast.lane.b32.xlu0 %v3800, %s3821
        %v3823 = vpop.permute.xlu0 %3822
        %s3825 = sor.u32 256, 48
        %3826 = vbcast.lane.b32.xlu0 %v3800, %s3825
        %v3827 = vpop.permute.xlu0 %3826
        %s3829 = sor.u32 256, 56
        %3830 = vbcast.lane.b32.xlu0 %v3800, %s3829
        %v3831 = vpop.permute.xlu0 %3830
        %s3833 = sor.u32 256, 64
        %3834 = vbcast.lane.b32.xlu0 %v3800, %s3833
        %v3835 = vpop.permute.xlu0 %3834
        %s3837 = sor.u32 256, 72
        %3838 = vbcast.lane.b32.xlu0 %v3800, %s3837
        %v3839 = vpop.permute.xlu0 %3838
        %s3841 = sor.u32 256, 80
        %3842 = vbcast.lane.b32.xlu0 %v3800, %s3841
        %v3843 = vpop.permute.xlu0 %3842
        %s3845 = sor.u32 256, 88
        %3846 = vbcast.lane.b32.xlu0 %v3800, %s3845
        %v3847 = vpop.permute.xlu0 %3846
        %s3849 = sor.u32 256, 96
        %3850 = vbcast.lane.b32.xlu0 %v3800, %s3849
        %v3851 = vpop.permute.xlu0 %3850
        %s3853 = sor.u32 256, 104
        %3854 = vbcast.lane.b32.xlu0 %v3800, %s3853
        %v3855 = vpop.permute.xlu0 %3854
        %s3857 = sor.u32 256, 112
        %3858 = vbcast.lane.b32.xlu0 %v3800, %s3857
        %v3859 = vpop.permute.xlu0 %3858
        %s3861 = sor.u32 256, 120
        %3862 = vbcast.lane.b32.xlu0 %v3800, %s3861
        %v3863 = vpop.permute.xlu0 %3862
        %v3864 = vlaneseq
        %v3865 = vshrl.u32 %v3864, 7
        %v3866 = vsub.s32 7, %v3865
        %v3867 = vrot.slane %v223, %v3866
        %3869 = vbcast.lane.b32.xlu0 %v3867, 256
        %v3870 = vpop.permute.xlu0 %3869
        %s3872 = sor.u32 256, 8
        %3873 = vbcast.lane.b32.xlu0 %v3867, %s3872
        %v3874 = vpop.permute.xlu0 %3873
        %s3876 = sor.u32 256, 16
        %3877 = vbcast.lane.b32.xlu0 %v3867, %s3876
        %v3878 = vpop.permute.xlu0 %3877
        %s3880 = sor.u32 256, 24
        %3881 = vbcast.lane.b32.xlu0 %v3867, %s3880
        %v3882 = vpop.permute.xlu0 %3881
        %s3884 = sor.u32 256, 32
        %3885 = vbcast.lane.b32.xlu0 %v3867, %s3884
        %v3886 = vpop.permute.xlu0 %3885
        %s3888 = sor.u32 256, 40
        %3889 = vbcast.lane.b32.xlu0 %v3867, %s3888
        %v3890 = vpop.permute.xlu0 %3889
        %s3892 = sor.u32 256, 48
        %3893 = vbcast.lane.b32.xlu0 %v3867, %s3892
        %v3894 = vpop.permute.xlu0 %3893
        %s3896 = sor.u32 256, 56
        %3897 = vbcast.lane.b32.xlu0 %v3867, %s3896
        %v3898 = vpop.permute.xlu0 %3897
        %s3900 = sor.u32 256, 64
        %3901 = vbcast.lane.b32.xlu0 %v3867, %s3900
        %v3902 = vpop.permute.xlu0 %3901
        %s3904 = sor.u32 256, 72
        %3905 = vbcast.lane.b32.xlu0 %v3867, %s3904
        %v3906 = vpop.permute.xlu0 %3905
        %s3908 = sor.u32 256, 80
        %3909 = vbcast.lane.b32.xlu0 %v3867, %s3908
        %v3910 = vpop.permute.xlu0 %3909
        %s3912 = sor.u32 256, 88
        %3913 = vbcast.lane.b32.xlu0 %v3867, %s3912
        %v3914 = vpop.permute.xlu0 %3913
        %s3916 = sor.u32 256, 96
        %3917 = vbcast.lane.b32.xlu0 %v3867, %s3916
        %v3918 = vpop.permute.xlu0 %3917
        %s3920 = sor.u32 256, 104
        %3921 = vbcast.lane.b32.xlu0 %v3867, %s3920
        %v3922 = vpop.permute.xlu0 %3921
        %s3924 = sor.u32 256, 112
        %3925 = vbcast.lane.b32.xlu0 %v3867, %s3924
        %v3926 = vpop.permute.xlu0 %3925
        %s3928 = sor.u32 256, 120
        %3929 = vbcast.lane.b32.xlu0 %v3867, %s3928
        %v3930 = vpop.permute.xlu0 %3929
        %v3931 = vlaneseq
        %v3932 = vshrl.u32 %v3931, 7
        %v3933 = vsub.s32 0, %v3932
        %v3934 = vrot.slane %v224, %v3933
        %3936 = vbcast.lane.b32.xlu0 %v3934, 256
        %v3937 = vpop.permute.xlu0 %3936
        %s3939 = sor.u32 256, 8
        %3940 = vbcast.lane.b32.xlu0 %v3934, %s3939
        %v3941 = vpop.permute.xlu0 %3940
        %s3943 = sor.u32 256, 16
        %3944 = vbcast.lane.b32.xlu0 %v3934, %s3943
        %v3945 = vpop.permute.xlu0 %3944
        %s3947 = sor.u32 256, 24
        %3948 = vbcast.lane.b32.xlu0 %v3934, %s3947
        %v3949 = vpop.permute.xlu0 %3948
        %s3951 = sor.u32 256, 32
        %3952 = vbcast.lane.b32.xlu0 %v3934, %s3951
        %v3953 = vpop.permute.xlu0 %3952
        %s3955 = sor.u32 256, 40
        %3956 = vbcast.lane.b32.xlu0 %v3934, %s3955
        %v3957 = vpop.permute.xlu0 %3956
        %s3959 = sor.u32 256, 48
        %3960 = vbcast.lane.b32.xlu0 %v3934, %s3959
        %v3961 = vpop.permute.xlu0 %3960
        %s3963 = sor.u32 256, 56
        %3964 = vbcast.lane.b32.xlu0 %v3934, %s3963
        %v3965 = vpop.permute.xlu0 %3964
        %s3967 = sor.u32 256, 64
        %3968 = vbcast.lane.b32.xlu0 %v3934, %s3967
        %v3969 = vpop.permute.xlu0 %3968
        %s3971 = sor.u32 256, 72
        %3972 = vbcast.lane.b32.xlu0 %v3934, %s3971
        %v3973 = vpop.permute.xlu0 %3972
        %s3975 = sor.u32 256, 80
        %3976 = vbcast.lane.b32.xlu0 %v3934, %s3975
        %v3977 = vpop.permute.xlu0 %3976
        %s3979 = sor.u32 256, 88
        %3980 = vbcast.lane.b32.xlu0 %v3934, %s3979
        %v3981 = vpop.permute.xlu0 %3980
        %s3983 = sor.u32 256, 96
        %3984 = vbcast.lane.b32.xlu0 %v3934, %s3983
        %v3985 = vpop.permute.xlu0 %3984
        %s3987 = sor.u32 256, 104
        %3988 = vbcast.lane.b32.xlu0 %v3934, %s3987
        %v3989 = vpop.permute.xlu0 %3988
        %s3991 = sor.u32 256, 112
        %3992 = vbcast.lane.b32.xlu0 %v3934, %s3991
        %v3993 = vpop.permute.xlu0 %3992
        %s3995 = sor.u32 256, 120
        %3996 = vbcast.lane.b32.xlu0 %v3934, %s3995
        %v3997 = vpop.permute.xlu0 %3996
        %v3998 = vlaneseq
        %v3999 = vshrl.u32 %v3998, 7
        %v4000 = vsub.s32 1, %v3999
        %v4001 = vrot.slane %v224, %v4000
        %4003 = vbcast.lane.b32.xlu0 %v4001, 256
        %v4004 = vpop.permute.xlu0 %4003
        %s4006 = sor.u32 256, 8
        %4007 = vbcast.lane.b32.xlu0 %v4001, %s4006
        %v4008 = vpop.permute.xlu0 %4007
        %s4010 = sor.u32 256, 16
        %4011 = vbcast.lane.b32.xlu0 %v4001, %s4010
        %v4012 = vpop.permute.xlu0 %4011
        %s4014 = sor.u32 256, 24
        %4015 = vbcast.lane.b32.xlu0 %v4001, %s4014
        %v4016 = vpop.permute.xlu0 %4015
        %s4018 = sor.u32 256, 32
        %4019 = vbcast.lane.b32.xlu0 %v4001, %s4018
        %v4020 = vpop.permute.xlu0 %4019
        %s4022 = sor.u32 256, 40
        %4023 = vbcast.lane.b32.xlu0 %v4001, %s4022
        %v4024 = vpop.permute.xlu0 %4023
        %s4026 = sor.u32 256, 48
        %4027 = vbcast.lane.b32.xlu0 %v4001, %s4026
        %v4028 = vpop.permute.xlu0 %4027
        %s4030 = sor.u32 256, 56
        %4031 = vbcast.lane.b32.xlu0 %v4001, %s4030
        %v4032 = vpop.permute.xlu0 %4031
        %s4034 = sor.u32 256, 64
        %4035 = vbcast.lane.b32.xlu0 %v4001, %s4034
        %v4036 = vpop.permute.xlu0 %4035
        %s4038 = sor.u32 256, 72
        %4039 = vbcast.lane.b32.xlu0 %v4001, %s4038
        %v4040 = vpop.permute.xlu0 %4039
        %s4042 = sor.u32 256, 80
        %4043 = vbcast.lane.b32.xlu0 %v4001, %s4042
        %v4044 = vpop.permute.xlu0 %4043
        %s4046 = sor.u32 256, 88
        %4047 = vbcast.lane.b32.xlu0 %v4001, %s4046
        %v4048 = vpop.permute.xlu0 %4047
        %s4050 = sor.u32 256, 96
        %4051 = vbcast.lane.b32.xlu0 %v4001, %s4050
        %v4052 = vpop.permute.xlu0 %4051
        %s4054 = sor.u32 256, 104
        %4055 = vbcast.lane.b32.xlu0 %v4001, %s4054
        %v4056 = vpop.permute.xlu0 %4055
        %s4058 = sor.u32 256, 112
        %4059 = vbcast.lane.b32.xlu0 %v4001, %s4058
        %v4060 = vpop.permute.xlu0 %4059
        %s4062 = sor.u32 256, 120
        %4063 = vbcast.lane.b32.xlu0 %v4001, %s4062
        %v4064 = vpop.permute.xlu0 %4063
        %v4065 = vlaneseq
        %v4066 = vshrl.u32 %v4065, 7
        %v4067 = vsub.s32 2, %v4066
        %v4068 = vrot.slane %v224, %v4067
        %4070 = vbcast.lane.b32.xlu0 %v4068, 256
        %v4071 = vpop.permute.xlu0 %4070
        %s4073 = sor.u32 256, 8
        %4074 = vbcast.lane.b32.xlu0 %v4068, %s4073
        %v4075 = vpop.permute.xlu0 %4074
        %s4077 = sor.u32 256, 16
        %4078 = vbcast.lane.b32.xlu0 %v4068, %s4077
        %v4079 = vpop.permute.xlu0 %4078
        %s4081 = sor.u32 256, 24
        %4082 = vbcast.lane.b32.xlu0 %v4068, %s4081
        %v4083 = vpop.permute.xlu0 %4082
        %s4085 = sor.u32 256, 32
        %4086 = vbcast.lane.b32.xlu0 %v4068, %s4085
        %v4087 = vpop.permute.xlu0 %4086
        %s4089 = sor.u32 256, 40
        %4090 = vbcast.lane.b32.xlu0 %v4068, %s4089
        %v4091 = vpop.permute.xlu0 %4090
        %s4093 = sor.u32 256, 48
        %4094 = vbcast.lane.b32.xlu0 %v4068, %s4093
        %v4095 = vpop.permute.xlu0 %4094
        %s4097 = sor.u32 256, 56
        %4098 = vbcast.lane.b32.xlu0 %v4068, %s4097
        %v4099 = vpop.permute.xlu0 %4098
        %s4101 = sor.u32 256, 64
        %4102 = vbcast.lane.b32.xlu0 %v4068, %s4101
        %v4103 = vpop.permute.xlu0 %4102
        %s4105 = sor.u32 256, 72
        %4106 = vbcast.lane.b32.xlu0 %v4068, %s4105
        %v4107 = vpop.permute.xlu0 %4106
        %s4109 = sor.u32 256, 80
        %4110 = vbcast.lane.b32.xlu0 %v4068, %s4109
        %v4111 = vpop.permute.xlu0 %4110
        %s4113 = sor.u32 256, 88
        %4114 = vbcast.lane.b32.xlu0 %v4068, %s4113
        %v4115 = vpop.permute.xlu0 %4114
        %s4117 = sor.u32 256, 96
        %4118 = vbcast.lane.b32.xlu0 %v4068, %s4117
        %v4119 = vpop.permute.xlu0 %4118
        %s4121 = sor.u32 256, 104
        %4122 = vbcast.lane.b32.xlu0 %v4068, %s4121
        %v4123 = vpop.permute.xlu0 %4122
        %s4125 = sor.u32 256, 112
        %4126 = vbcast.lane.b32.xlu0 %v4068, %s4125
        %v4127 = vpop.permute.xlu0 %4126
        %s4129 = sor.u32 256, 120
        %4130 = vbcast.lane.b32.xlu0 %v4068, %s4129
        %v4131 = vpop.permute.xlu0 %4130
        %v4132 = vlaneseq
        %v4133 = vshrl.u32 %v4132, 7
        %v4134 = vsub.s32 3, %v4133
        %v4135 = vrot.slane %v224, %v4134
        %4137 = vbcast.lane.b32.xlu0 %v4135, 256
        %v4138 = vpop.permute.xlu0 %4137
        %s4140 = sor.u32 256, 8
        %4141 = vbcast.lane.b32.xlu0 %v4135, %s4140
        %v4142 = vpop.permute.xlu0 %4141
        %s4144 = sor.u32 256, 16
        %4145 = vbcast.lane.b32.xlu0 %v4135, %s4144
        %v4146 = vpop.permute.xlu0 %4145
        %s4148 = sor.u32 256, 24
        %4149 = vbcast.lane.b32.xlu0 %v4135, %s4148
        %v4150 = vpop.permute.xlu0 %4149
        %s4152 = sor.u32 256, 32
        %4153 = vbcast.lane.b32.xlu0 %v4135, %s4152
        %v4154 = vpop.permute.xlu0 %4153
        %s4156 = sor.u32 256, 40
        %4157 = vbcast.lane.b32.xlu0 %v4135, %s4156
        %v4158 = vpop.permute.xlu0 %4157
        %s4160 = sor.u32 256, 48
        %4161 = vbcast.lane.b32.xlu0 %v4135, %s4160
        %v4162 = vpop.permute.xlu0 %4161
        %s4164 = sor.u32 256, 56
        %4165 = vbcast.lane.b32.xlu0 %v4135, %s4164
        %v4166 = vpop.permute.xlu0 %4165
        %s4168 = sor.u32 256, 64
        %4169 = vbcast.lane.b32.xlu0 %v4135, %s4168
        %v4170 = vpop.permute.xlu0 %4169
        %s4172 = sor.u32 256, 72
        %4173 = vbcast.lane.b32.xlu0 %v4135, %s4172
        %v4174 = vpop.permute.xlu0 %4173
        %s4176 = sor.u32 256, 80
        %4177 = vbcast.lane.b32.xlu0 %v4135, %s4176
        %v4178 = vpop.permute.xlu0 %4177
        %s4180 = sor.u32 256, 88
        %4181 = vbcast.lane.b32.xlu0 %v4135, %s4180
        %v4182 = vpop.permute.xlu0 %4181
        %s4184 = sor.u32 256, 96
        %4185 = vbcast.lane.b32.xlu0 %v4135, %s4184
        %v4186 = vpop.permute.xlu0 %4185
        %s4188 = sor.u32 256, 104
        %4189 = vbcast.lane.b32.xlu0 %v4135, %s4188
        %v4190 = vpop.permute.xlu0 %4189
        %s4192 = sor.u32 256, 112
        %4193 = vbcast.lane.b32.xlu0 %v4135, %s4192
        %v4194 = vpop.permute.xlu0 %4193
        %s4196 = sor.u32 256, 120
        %4197 = vbcast.lane.b32.xlu0 %v4135, %s4196
        %v4198 = vpop.permute.xlu0 %4197
        %v4199 = vlaneseq
        %v4200 = vshrl.u32 %v4199, 7
        %v4201 = vsub.s32 4, %v4200
        %v4202 = vrot.slane %v224, %v4201
        %4204 = vbcast.lane.b32.xlu0 %v4202, 256
        %v4205 = vpop.permute.xlu0 %4204
        %s4207 = sor.u32 256, 8
        %4208 = vbcast.lane.b32.xlu0 %v4202, %s4207
        %v4209 = vpop.permute.xlu0 %4208
        %s4211 = sor.u32 256, 16
        %4212 = vbcast.lane.b32.xlu0 %v4202, %s4211
        %v4213 = vpop.permute.xlu0 %4212
        %s4215 = sor.u32 256, 24
        %4216 = vbcast.lane.b32.xlu0 %v4202, %s4215
        %v4217 = vpop.permute.xlu0 %4216
        %s4219 = sor.u32 256, 32
        %4220 = vbcast.lane.b32.xlu0 %v4202, %s4219
        %v4221 = vpop.permute.xlu0 %4220
        %s4223 = sor.u32 256, 40
        %4224 = vbcast.lane.b32.xlu0 %v4202, %s4223
        %v4225 = vpop.permute.xlu0 %4224
        %s4227 = sor.u32 256, 48
        %4228 = vbcast.lane.b32.xlu0 %v4202, %s4227
        %v4229 = vpop.permute.xlu0 %4228
        %s4231 = sor.u32 256, 56
        %4232 = vbcast.lane.b32.xlu0 %v4202, %s4231
        %v4233 = vpop.permute.xlu0 %4232
        %s4235 = sor.u32 256, 64
        %4236 = vbcast.lane.b32.xlu0 %v4202, %s4235
        %v4237 = vpop.permute.xlu0 %4236
        %s4239 = sor.u32 256, 72
        %4240 = vbcast.lane.b32.xlu0 %v4202, %s4239
        %v4241 = vpop.permute.xlu0 %4240
        %s4243 = sor.u32 256, 80
        %4244 = vbcast.lane.b32.xlu0 %v4202, %s4243
        %v4245 = vpop.permute.xlu0 %4244
        %s4247 = sor.u32 256, 88
        %4248 = vbcast.lane.b32.xlu0 %v4202, %s4247
        %v4249 = vpop.permute.xlu0 %4248
        %s4251 = sor.u32 256, 96
        %4252 = vbcast.lane.b32.xlu0 %v4202, %s4251
        %v4253 = vpop.permute.xlu0 %4252
        %s4255 = sor.u32 256, 104
        %4256 = vbcast.lane.b32.xlu0 %v4202, %s4255
        %v4257 = vpop.permute.xlu0 %4256
        %s4259 = sor.u32 256, 112
        %4260 = vbcast.lane.b32.xlu0 %v4202, %s4259
        %v4261 = vpop.permute.xlu0 %4260
        %s4263 = sor.u32 256, 120
        %4264 = vbcast.lane.b32.xlu0 %v4202, %s4263
        %v4265 = vpop.permute.xlu0 %4264
        %v4266 = vlaneseq
        %v4267 = vshrl.u32 %v4266, 7
        %v4268 = vsub.s32 5, %v4267
        %v4269 = vrot.slane %v224, %v4268
        %4271 = vbcast.lane.b32.xlu0 %v4269, 256
        %v4272 = vpop.permute.xlu0 %4271
        %s4274 = sor.u32 256, 8
        %4275 = vbcast.lane.b32.xlu0 %v4269, %s4274
        %v4276 = vpop.permute.xlu0 %4275
        %s4278 = sor.u32 256, 16
        %4279 = vbcast.lane.b32.xlu0 %v4269, %s4278
        %v4280 = vpop.permute.xlu0 %4279
        %s4282 = sor.u32 256, 24
        %4283 = vbcast.lane.b32.xlu0 %v4269, %s4282
        %v4284 = vpop.permute.xlu0 %4283
        %s4286 = sor.u32 256, 32
        %4287 = vbcast.lane.b32.xlu0 %v4269, %s4286
        %v4288 = vpop.permute.xlu0 %4287
        %s4290 = sor.u32 256, 40
        %4291 = vbcast.lane.b32.xlu0 %v4269, %s4290
        %v4292 = vpop.permute.xlu0 %4291
        %s4294 = sor.u32 256, 48
        %4295 = vbcast.lane.b32.xlu0 %v4269, %s4294
        %v4296 = vpop.permute.xlu0 %4295
        %s4298 = sor.u32 256, 56
        %4299 = vbcast.lane.b32.xlu0 %v4269, %s4298
        %v4300 = vpop.permute.xlu0 %4299
        %s4302 = sor.u32 256, 64
        %4303 = vbcast.lane.b32.xlu0 %v4269, %s4302
        %v4304 = vpop.permute.xlu0 %4303
        %s4306 = sor.u32 256, 72
        %4307 = vbcast.lane.b32.xlu0 %v4269, %s4306
        %v4308 = vpop.permute.xlu0 %4307
        %s4310 = sor.u32 256, 80
        %4311 = vbcast.lane.b32.xlu0 %v4269, %s4310
        %v4312 = vpop.permute.xlu0 %4311
        %s4314 = sor.u32 256, 88
        %4315 = vbcast.lane.b32.xlu0 %v4269, %s4314
        %v4316 = vpop.permute.xlu0 %4315
        %s4318 = sor.u32 256, 96
        %4319 = vbcast.lane.b32.xlu0 %v4269, %s4318
        %v4320 = vpop.permute.xlu0 %4319
        %s4322 = sor.u32 256, 104
        %4323 = vbcast.lane.b32.xlu0 %v4269, %s4322
        %v4324 = vpop.permute.xlu0 %4323
        %s4326 = sor.u32 256, 112
        %4327 = vbcast.lane.b32.xlu0 %v4269, %s4326
        %v4328 = vpop.permute.xlu0 %4327
        %s4330 = sor.u32 256, 120
        %4331 = vbcast.lane.b32.xlu0 %v4269, %s4330
        %v4332 = vpop.permute.xlu0 %4331
        %v4333 = vlaneseq
        %v4334 = vshrl.u32 %v4333, 7
        %v4335 = vsub.s32 6, %v4334
        %v4336 = vrot.slane %v224, %v4335
        %4338 = vbcast.lane.b32.xlu0 %v4336, 256
        %v4339 = vpop.permute.xlu0 %4338
        %s4341 = sor.u32 256, 8
        %4342 = vbcast.lane.b32.xlu0 %v4336, %s4341
        %v4343 = vpop.permute.xlu0 %4342
        %s4345 = sor.u32 256, 16
        %4346 = vbcast.lane.b32.xlu0 %v4336, %s4345
        %v4347 = vpop.permute.xlu0 %4346
        %s4349 = sor.u32 256, 24
        %4350 = vbcast.lane.b32.xlu0 %v4336, %s4349
        %v4351 = vpop.permute.xlu0 %4350
        %s4353 = sor.u32 256, 32
        %4354 = vbcast.lane.b32.xlu0 %v4336, %s4353
        %v4355 = vpop.permute.xlu0 %4354
        %s4357 = sor.u32 256, 40
        %4358 = vbcast.lane.b32.xlu0 %v4336, %s4357
        %v4359 = vpop.permute.xlu0 %4358
        %s4361 = sor.u32 256, 48
        %4362 = vbcast.lane.b32.xlu0 %v4336, %s4361
        %v4363 = vpop.permute.xlu0 %4362
        %s4365 = sor.u32 256, 56
        %4366 = vbcast.lane.b32.xlu0 %v4336, %s4365
        %v4367 = vpop.permute.xlu0 %4366
        %s4369 = sor.u32 256, 64
        %4370 = vbcast.lane.b32.xlu0 %v4336, %s4369
        %v4371 = vpop.permute.xlu0 %4370
        %s4373 = sor.u32 256, 72
        %4374 = vbcast.lane.b32.xlu0 %v4336, %s4373
        %v4375 = vpop.permute.xlu0 %4374
        %s4377 = sor.u32 256, 80
        %4378 = vbcast.lane.b32.xlu0 %v4336, %s4377
        %v4379 = vpop.permute.xlu0 %4378
        %s4381 = sor.u32 256, 88
        %4382 = vbcast.lane.b32.xlu0 %v4336, %s4381
        %v4383 = vpop.permute.xlu0 %4382
        %s4385 = sor.u32 256, 96
        %4386 = vbcast.lane.b32.xlu0 %v4336, %s4385
        %v4387 = vpop.permute.xlu0 %4386
        %s4389 = sor.u32 256, 104
        %4390 = vbcast.lane.b32.xlu0 %v4336, %s4389
        %v4391 = vpop.permute.xlu0 %4390
        %s4393 = sor.u32 256, 112
        %4394 = vbcast.lane.b32.xlu0 %v4336, %s4393
        %v4395 = vpop.permute.xlu0 %4394
        %s4397 = sor.u32 256, 120
        %4398 = vbcast.lane.b32.xlu0 %v4336, %s4397
        %v4399 = vpop.permute.xlu0 %4398
        %v4400 = vlaneseq
        %v4401 = vshrl.u32 %v4400, 7
        %v4402 = vsub.s32 7, %v4401
        %v4403 = vrot.slane %v224, %v4402
        %4405 = vbcast.lane.b32.xlu0 %v4403, 256
        %v4406 = vpop.permute.xlu0 %4405
        %s4408 = sor.u32 256, 8
        %4409 = vbcast.lane.b32.xlu0 %v4403, %s4408
        %v4410 = vpop.permute.xlu0 %4409
        %s4412 = sor.u32 256, 16
        %4413 = vbcast.lane.b32.xlu0 %v4403, %s4412
        %v4414 = vpop.permute.xlu0 %4413
        %s4416 = sor.u32 256, 24
        %4417 = vbcast.lane.b32.xlu0 %v4403, %s4416
        %v4418 = vpop.permute.xlu0 %4417
        %s4420 = sor.u32 256, 32
        %4421 = vbcast.lane.b32.xlu0 %v4403, %s4420
        %v4422 = vpop.permute.xlu0 %4421
        %s4424 = sor.u32 256, 40
        %4425 = vbcast.lane.b32.xlu0 %v4403, %s4424
        %v4426 = vpop.permute.xlu0 %4425
        %s4428 = sor.u32 256, 48
        %4429 = vbcast.lane.b32.xlu0 %v4403, %s4428
        %v4430 = vpop.permute.xlu0 %4429
        %s4432 = sor.u32 256, 56
        %4433 = vbcast.lane.b32.xlu0 %v4403, %s4432
        %v4434 = vpop.permute.xlu0 %4433
        %s4436 = sor.u32 256, 64
        %4437 = vbcast.lane.b32.xlu0 %v4403, %s4436
        %v4438 = vpop.permute.xlu0 %4437
        %s4440 = sor.u32 256, 72
        %4441 = vbcast.lane.b32.xlu0 %v4403, %s4440
        %v4442 = vpop.permute.xlu0 %4441
        %s4444 = sor.u32 256, 80
        %4445 = vbcast.lane.b32.xlu0 %v4403, %s4444
        %v4446 = vpop.permute.xlu0 %4445
        %s4448 = sor.u32 256, 88
        %4449 = vbcast.lane.b32.xlu0 %v4403, %s4448
        %v4450 = vpop.permute.xlu0 %4449
        %s4452 = sor.u32 256, 96
        %4453 = vbcast.lane.b32.xlu0 %v4403, %s4452
        %v4454 = vpop.permute.xlu0 %4453
        %s4456 = sor.u32 256, 104
        %4457 = vbcast.lane.b32.xlu0 %v4403, %s4456
        %v4458 = vpop.permute.xlu0 %4457
        %s4460 = sor.u32 256, 112
        %4461 = vbcast.lane.b32.xlu0 %v4403, %s4460
        %v4462 = vpop.permute.xlu0 %4461
        %s4464 = sor.u32 256, 120
        %4465 = vbcast.lane.b32.xlu0 %v4403, %s4464
        %v4466 = vpop.permute.xlu0 %4465
        %v4467 = vlaneseq
        %v4468 = vshrl.u32 %v4467, 7
        %v4469 = vsub.s32 0, %v4468
        %v4470 = vrot.slane %v225, %v4469
        %4472 = vbcast.lane.b32.xlu0 %v4470, 256
        %v4473 = vpop.permute.xlu0 %4472
        %s4475 = sor.u32 256, 8
        %4476 = vbcast.lane.b32.xlu0 %v4470, %s4475
        %v4477 = vpop.permute.xlu0 %4476
        %s4479 = sor.u32 256, 16
        %4480 = vbcast.lane.b32.xlu0 %v4470, %s4479
        %v4481 = vpop.permute.xlu0 %4480
        %s4483 = sor.u32 256, 24
        %4484 = vbcast.lane.b32.xlu0 %v4470, %s4483
        %v4485 = vpop.permute.xlu0 %4484
        %s4487 = sor.u32 256, 32
        %4488 = vbcast.lane.b32.xlu0 %v4470, %s4487
        %v4489 = vpop.permute.xlu0 %4488
        %s4491 = sor.u32 256, 40
        %4492 = vbcast.lane.b32.xlu0 %v4470, %s4491
        %v4493 = vpop.permute.xlu0 %4492
        %s4495 = sor.u32 256, 48
        %4496 = vbcast.lane.b32.xlu0 %v4470, %s4495
        %v4497 = vpop.permute.xlu0 %4496
        %s4499 = sor.u32 256, 56
        %4500 = vbcast.lane.b32.xlu0 %v4470, %s4499
        %v4501 = vpop.permute.xlu0 %4500
        %s4503 = sor.u32 256, 64
        %4504 = vbcast.lane.b32.xlu0 %v4470, %s4503
        %v4505 = vpop.permute.xlu0 %4504
        %s4507 = sor.u32 256, 72
        %4508 = vbcast.lane.b32.xlu0 %v4470, %s4507
        %v4509 = vpop.permute.xlu0 %4508
        %s4511 = sor.u32 256, 80
        %4512 = vbcast.lane.b32.xlu0 %v4470, %s4511
        %v4513 = vpop.permute.xlu0 %4512
        %s4515 = sor.u32 256, 88
        %4516 = vbcast.lane.b32.xlu0 %v4470, %s4515
        %v4517 = vpop.permute.xlu0 %4516
        %s4519 = sor.u32 256, 96
        %4520 = vbcast.lane.b32.xlu0 %v4470, %s4519
        %v4521 = vpop.permute.xlu0 %4520
        %s4523 = sor.u32 256, 104
        %4524 = vbcast.lane.b32.xlu0 %v4470, %s4523
        %v4525 = vpop.permute.xlu0 %4524
        %s4527 = sor.u32 256, 112
        %4528 = vbcast.lane.b32.xlu0 %v4470, %s4527
        %v4529 = vpop.permute.xlu0 %4528
        %s4531 = sor.u32 256, 120
        %4532 = vbcast.lane.b32.xlu0 %v4470, %s4531
        %v4533 = vpop.permute.xlu0 %4532
        %v4534 = vlaneseq
        %v4535 = vshrl.u32 %v4534, 7
        %v4536 = vsub.s32 1, %v4535
        %v4537 = vrot.slane %v225, %v4536
        %4539 = vbcast.lane.b32.xlu0 %v4537, 256
        %v4540 = vpop.permute.xlu0 %4539
        %s4542 = sor.u32 256, 8
        %4543 = vbcast.lane.b32.xlu0 %v4537, %s4542
        %v4544 = vpop.permute.xlu0 %4543
        %s4546 = sor.u32 256, 16
        %4547 = vbcast.lane.b32.xlu0 %v4537, %s4546
        %v4548 = vpop.permute.xlu0 %4547
        %s4550 = sor.u32 256, 24
        %4551 = vbcast.lane.b32.xlu0 %v4537, %s4550
        %v4552 = vpop.permute.xlu0 %4551
        %s4554 = sor.u32 256, 32
        %4555 = vbcast.lane.b32.xlu0 %v4537, %s4554
        %v4556 = vpop.permute.xlu0 %4555
        %s4558 = sor.u32 256, 40
        %4559 = vbcast.lane.b32.xlu0 %v4537, %s4558
        %v4560 = vpop.permute.xlu0 %4559
        %s4562 = sor.u32 256, 48
        %4563 = vbcast.lane.b32.xlu0 %v4537, %s4562
        %v4564 = vpop.permute.xlu0 %4563
        %s4566 = sor.u32 256, 56
        %4567 = vbcast.lane.b32.xlu0 %v4537, %s4566
        %v4568 = vpop.permute.xlu0 %4567
        %s4570 = sor.u32 256, 64
        %4571 = vbcast.lane.b32.xlu0 %v4537, %s4570
        %v4572 = vpop.permute.xlu0 %4571
        %s4574 = sor.u32 256, 72
        %4575 = vbcast.lane.b32.xlu0 %v4537, %s4574
        %v4576 = vpop.permute.xlu0 %4575
        %s4578 = sor.u32 256, 80
        %4579 = vbcast.lane.b32.xlu0 %v4537, %s4578
        %v4580 = vpop.permute.xlu0 %4579
        %s4582 = sor.u32 256, 88
        %4583 = vbcast.lane.b32.xlu0 %v4537, %s4582
        %v4584 = vpop.permute.xlu0 %4583
        %s4586 = sor.u32 256, 96
        %4587 = vbcast.lane.b32.xlu0 %v4537, %s4586
        %v4588 = vpop.permute.xlu0 %4587
        %s4590 = sor.u32 256, 104
        %4591 = vbcast.lane.b32.xlu0 %v4537, %s4590
        %v4592 = vpop.permute.xlu0 %4591
        %s4594 = sor.u32 256, 112
        %4595 = vbcast.lane.b32.xlu0 %v4537, %s4594
        %v4596 = vpop.permute.xlu0 %4595
        %s4598 = sor.u32 256, 120
        %4599 = vbcast.lane.b32.xlu0 %v4537, %s4598
        %v4600 = vpop.permute.xlu0 %4599
        %v4601 = vlaneseq
        %v4602 = vshrl.u32 %v4601, 7
        %v4603 = vsub.s32 2, %v4602
        %v4604 = vrot.slane %v225, %v4603
        %4606 = vbcast.lane.b32.xlu0 %v4604, 256
        %v4607 = vpop.permute.xlu0 %4606
        %s4609 = sor.u32 256, 8
        %4610 = vbcast.lane.b32.xlu0 %v4604, %s4609
        %v4611 = vpop.permute.xlu0 %4610
        %s4613 = sor.u32 256, 16
        %4614 = vbcast.lane.b32.xlu0 %v4604, %s4613
        %v4615 = vpop.permute.xlu0 %4614
        %s4617 = sor.u32 256, 24
        %4618 = vbcast.lane.b32.xlu0 %v4604, %s4617
        %v4619 = vpop.permute.xlu0 %4618
        %s4621 = sor.u32 256, 32
        %4622 = vbcast.lane.b32.xlu0 %v4604, %s4621
        %v4623 = vpop.permute.xlu0 %4622
        %s4625 = sor.u32 256, 40
        %4626 = vbcast.lane.b32.xlu0 %v4604, %s4625
        %v4627 = vpop.permute.xlu0 %4626
        %s4629 = sor.u32 256, 48
        %4630 = vbcast.lane.b32.xlu0 %v4604, %s4629
        %v4631 = vpop.permute.xlu0 %4630
        %s4633 = sor.u32 256, 56
        %4634 = vbcast.lane.b32.xlu0 %v4604, %s4633
        %v4635 = vpop.permute.xlu0 %4634
        %s4637 = sor.u32 256, 64
        %4638 = vbcast.lane.b32.xlu0 %v4604, %s4637
        %v4639 = vpop.permute.xlu0 %4638
        %s4641 = sor.u32 256, 72
        %4642 = vbcast.lane.b32.xlu0 %v4604, %s4641
        %v4643 = vpop.permute.xlu0 %4642
        %s4645 = sor.u32 256, 80
        %4646 = vbcast.lane.b32.xlu0 %v4604, %s4645
        %v4647 = vpop.permute.xlu0 %4646
        %s4649 = sor.u32 256, 88
        %4650 = vbcast.lane.b32.xlu0 %v4604, %s4649
        %v4651 = vpop.permute.xlu0 %4650
        %s4653 = sor.u32 256, 96
        %4654 = vbcast.lane.b32.xlu0 %v4604, %s4653
        %v4655 = vpop.permute.xlu0 %4654
        %s4657 = sor.u32 256, 104
        %4658 = vbcast.lane.b32.xlu0 %v4604, %s4657
        %v4659 = vpop.permute.xlu0 %4658
        %s4661 = sor.u32 256, 112
        %4662 = vbcast.lane.b32.xlu0 %v4604, %s4661
        %v4663 = vpop.permute.xlu0 %4662
        %s4665 = sor.u32 256, 120
        %4666 = vbcast.lane.b32.xlu0 %v4604, %s4665
        %v4667 = vpop.permute.xlu0 %4666
        %v4668 = vlaneseq
        %v4669 = vshrl.u32 %v4668, 7
        %v4670 = vsub.s32 3, %v4669
        %v4671 = vrot.slane %v225, %v4670
        %4673 = vbcast.lane.b32.xlu0 %v4671, 256
        %v4674 = vpop.permute.xlu0 %4673
        %s4676 = sor.u32 256, 8
        %4677 = vbcast.lane.b32.xlu0 %v4671, %s4676
        %v4678 = vpop.permute.xlu0 %4677
        %s4680 = sor.u32 256, 16
        %4681 = vbcast.lane.b32.xlu0 %v4671, %s4680
        %v4682 = vpop.permute.xlu0 %4681
        %s4684 = sor.u32 256, 24
        %4685 = vbcast.lane.b32.xlu0 %v4671, %s4684
        %v4686 = vpop.permute.xlu0 %4685
        %s4688 = sor.u32 256, 32
        %4689 = vbcast.lane.b32.xlu0 %v4671, %s4688
        %v4690 = vpop.permute.xlu0 %4689
        %s4692 = sor.u32 256, 40
        %4693 = vbcast.lane.b32.xlu0 %v4671, %s4692
        %v4694 = vpop.permute.xlu0 %4693
        %s4696 = sor.u32 256, 48
        %4697 = vbcast.lane.b32.xlu0 %v4671, %s4696
        %v4698 = vpop.permute.xlu0 %4697
        %s4700 = sor.u32 256, 56
        %4701 = vbcast.lane.b32.xlu0 %v4671, %s4700
        %v4702 = vpop.permute.xlu0 %4701
        %s4704 = sor.u32 256, 64
        %4705 = vbcast.lane.b32.xlu0 %v4671, %s4704
        %v4706 = vpop.permute.xlu0 %4705
        %s4708 = sor.u32 256, 72
        %4709 = vbcast.lane.b32.xlu0 %v4671, %s4708
        %v4710 = vpop.permute.xlu0 %4709
        %s4712 = sor.u32 256, 80
        %4713 = vbcast.lane.b32.xlu0 %v4671, %s4712
        %v4714 = vpop.permute.xlu0 %4713
        %s4716 = sor.u32 256, 88
        %4717 = vbcast.lane.b32.xlu0 %v4671, %s4716
        %v4718 = vpop.permute.xlu0 %4717
        %s4720 = sor.u32 256, 96
        %4721 = vbcast.lane.b32.xlu0 %v4671, %s4720
        %v4722 = vpop.permute.xlu0 %4721
        %s4724 = sor.u32 256, 104
        %4725 = vbcast.lane.b32.xlu0 %v4671, %s4724
        %v4726 = vpop.permute.xlu0 %4725
        %s4728 = sor.u32 256, 112
        %4729 = vbcast.lane.b32.xlu0 %v4671, %s4728
        %v4730 = vpop.permute.xlu0 %4729
        %s4732 = sor.u32 256, 120
        %4733 = vbcast.lane.b32.xlu0 %v4671, %s4732
        %v4734 = vpop.permute.xlu0 %4733
        %v4735 = vlaneseq
        %v4736 = vshrl.u32 %v4735, 7
        %v4737 = vsub.s32 4, %v4736
        %v4738 = vrot.slane %v225, %v4737
        %4740 = vbcast.lane.b32.xlu0 %v4738, 256
        %v4741 = vpop.permute.xlu0 %4740
        %s4743 = sor.u32 256, 8
        %4744 = vbcast.lane.b32.xlu0 %v4738, %s4743
        %v4745 = vpop.permute.xlu0 %4744
        %s4747 = sor.u32 256, 16
        %4748 = vbcast.lane.b32.xlu0 %v4738, %s4747
        %v4749 = vpop.permute.xlu0 %4748
        %s4751 = sor.u32 256, 24
        %4752 = vbcast.lane.b32.xlu0 %v4738, %s4751
        %v4753 = vpop.permute.xlu0 %4752
        %s4755 = sor.u32 256, 32
        %4756 = vbcast.lane.b32.xlu0 %v4738, %s4755
        %v4757 = vpop.permute.xlu0 %4756
        %s4759 = sor.u32 256, 40
        %4760 = vbcast.lane.b32.xlu0 %v4738, %s4759
        %v4761 = vpop.permute.xlu0 %4760
        %s4763 = sor.u32 256, 48
        %4764 = vbcast.lane.b32.xlu0 %v4738, %s4763
        %v4765 = vpop.permute.xlu0 %4764
        %s4767 = sor.u32 256, 56
        %4768 = vbcast.lane.b32.xlu0 %v4738, %s4767
        %v4769 = vpop.permute.xlu0 %4768
        %s4771 = sor.u32 256, 64
        %4772 = vbcast.lane.b32.xlu0 %v4738, %s4771
        %v4773 = vpop.permute.xlu0 %4772
        %s4775 = sor.u32 256, 72
        %4776 = vbcast.lane.b32.xlu0 %v4738, %s4775
        %v4777 = vpop.permute.xlu0 %4776
        %s4779 = sor.u32 256, 80
        %4780 = vbcast.lane.b32.xlu0 %v4738, %s4779
        %v4781 = vpop.permute.xlu0 %4780
        %s4783 = sor.u32 256, 88
        %4784 = vbcast.lane.b32.xlu0 %v4738, %s4783
        %v4785 = vpop.permute.xlu0 %4784
        %s4787 = sor.u32 256, 96
        %4788 = vbcast.lane.b32.xlu0 %v4738, %s4787
        %v4789 = vpop.permute.xlu0 %4788
        %s4791 = sor.u32 256, 104
        %4792 = vbcast.lane.b32.xlu0 %v4738, %s4791
        %v4793 = vpop.permute.xlu0 %4792
        %s4795 = sor.u32 256, 112
        %4796 = vbcast.lane.b32.xlu0 %v4738, %s4795
        %v4797 = vpop.permute.xlu0 %4796
        %s4799 = sor.u32 256, 120
        %4800 = vbcast.lane.b32.xlu0 %v4738, %s4799
        %v4801 = vpop.permute.xlu0 %4800
        %v4802 = vlaneseq
        %v4803 = vshrl.u32 %v4802, 7
        %v4804 = vsub.s32 5, %v4803
        %v4805 = vrot.slane %v225, %v4804
        %4807 = vbcast.lane.b32.xlu0 %v4805, 256
        %v4808 = vpop.permute.xlu0 %4807
        %s4810 = sor.u32 256, 8
        %4811 = vbcast.lane.b32.xlu0 %v4805, %s4810
        %v4812 = vpop.permute.xlu0 %4811
        %s4814 = sor.u32 256, 16
        %4815 = vbcast.lane.b32.xlu0 %v4805, %s4814
        %v4816 = vpop.permute.xlu0 %4815
        %s4818 = sor.u32 256, 24
        %4819 = vbcast.lane.b32.xlu0 %v4805, %s4818
        %v4820 = vpop.permute.xlu0 %4819
        %s4822 = sor.u32 256, 32
        %4823 = vbcast.lane.b32.xlu0 %v4805, %s4822
        %v4824 = vpop.permute.xlu0 %4823
        %s4826 = sor.u32 256, 40
        %4827 = vbcast.lane.b32.xlu0 %v4805, %s4826
        %v4828 = vpop.permute.xlu0 %4827
        %s4830 = sor.u32 256, 48
        %4831 = vbcast.lane.b32.xlu0 %v4805, %s4830
        %v4832 = vpop.permute.xlu0 %4831
        %s4834 = sor.u32 256, 56
        %4835 = vbcast.lane.b32.xlu0 %v4805, %s4834
        %v4836 = vpop.permute.xlu0 %4835
        %s4838 = sor.u32 256, 64
        %4839 = vbcast.lane.b32.xlu0 %v4805, %s4838
        %v4840 = vpop.permute.xlu0 %4839
        %s4842 = sor.u32 256, 72
        %4843 = vbcast.lane.b32.xlu0 %v4805, %s4842
        %v4844 = vpop.permute.xlu0 %4843
        %s4846 = sor.u32 256, 80
        %4847 = vbcast.lane.b32.xlu0 %v4805, %s4846
        %v4848 = vpop.permute.xlu0 %4847
        %s4850 = sor.u32 256, 88
        %4851 = vbcast.lane.b32.xlu0 %v4805, %s4850
        %v4852 = vpop.permute.xlu0 %4851
        %s4854 = sor.u32 256, 96
        %4855 = vbcast.lane.b32.xlu0 %v4805, %s4854
        %v4856 = vpop.permute.xlu0 %4855
        %s4858 = sor.u32 256, 104
        %4859 = vbcast.lane.b32.xlu0 %v4805, %s4858
        %v4860 = vpop.permute.xlu0 %4859
        %s4862 = sor.u32 256, 112
        %4863 = vbcast.lane.b32.xlu0 %v4805, %s4862
        %v4864 = vpop.permute.xlu0 %4863
        %s4866 = sor.u32 256, 120
        %4867 = vbcast.lane.b32.xlu0 %v4805, %s4866
        %v4868 = vpop.permute.xlu0 %4867
        %v4869 = vlaneseq
        %v4870 = vshrl.u32 %v4869, 7
        %v4871 = vsub.s32 6, %v4870
        %v4872 = vrot.slane %v225, %v4871
        %4874 = vbcast.lane.b32.xlu0 %v4872, 256
        %v4875 = vpop.permute.xlu0 %4874
        %s4877 = sor.u32 256, 8
        %4878 = vbcast.lane.b32.xlu0 %v4872, %s4877
        %v4879 = vpop.permute.xlu0 %4878
        %s4881 = sor.u32 256, 16
        %4882 = vbcast.lane.b32.xlu0 %v4872, %s4881
        %v4883 = vpop.permute.xlu0 %4882
        %s4885 = sor.u32 256, 24
        %4886 = vbcast.lane.b32.xlu0 %v4872, %s4885
        %v4887 = vpop.permute.xlu0 %4886
        %s4889 = sor.u32 256, 32
        %4890 = vbcast.lane.b32.xlu0 %v4872, %s4889
        %v4891 = vpop.permute.xlu0 %4890
        %s4893 = sor.u32 256, 40
        %4894 = vbcast.lane.b32.xlu0 %v4872, %s4893
        %v4895 = vpop.permute.xlu0 %4894
        %s4897 = sor.u32 256, 48
        %4898 = vbcast.lane.b32.xlu0 %v4872, %s4897
        %v4899 = vpop.permute.xlu0 %4898
        %s4901 = sor.u32 256, 56
        %4902 = vbcast.lane.b32.xlu0 %v4872, %s4901
        %v4903 = vpop.permute.xlu0 %4902
        %s4905 = sor.u32 256, 64
        %4906 = vbcast.lane.b32.xlu0 %v4872, %s4905
        %v4907 = vpop.permute.xlu0 %4906
        %s4909 = sor.u32 256, 72
        %4910 = vbcast.lane.b32.xlu0 %v4872, %s4909
        %v4911 = vpop.permute.xlu0 %4910
        %s4913 = sor.u32 256, 80
        %4914 = vbcast.lane.b32.xlu0 %v4872, %s4913
        %v4915 = vpop.permute.xlu0 %4914
        %s4917 = sor.u32 256, 88
        %4918 = vbcast.lane.b32.xlu0 %v4872, %s4917
        %v4919 = vpop.permute.xlu0 %4918
        %s4921 = sor.u32 256, 96
        %4922 = vbcast.lane.b32.xlu0 %v4872, %s4921
        %v4923 = vpop.permute.xlu0 %4922
        %s4925 = sor.u32 256, 104
        %4926 = vbcast.lane.b32.xlu0 %v4872, %s4925
        %v4927 = vpop.permute.xlu0 %4926
        %s4929 = sor.u32 256, 112
        %4930 = vbcast.lane.b32.xlu0 %v4872, %s4929
        %v4931 = vpop.permute.xlu0 %4930
        %s4933 = sor.u32 256, 120
        %4934 = vbcast.lane.b32.xlu0 %v4872, %s4933
        %v4935 = vpop.permute.xlu0 %4934
        %v4936 = vlaneseq
        %v4937 = vshrl.u32 %v4936, 7
        %v4938 = vsub.s32 7, %v4937
        %v4939 = vrot.slane %v225, %v4938
        %4941 = vbcast.lane.b32.xlu0 %v4939, 256
        %v4942 = vpop.permute.xlu0 %4941
        %s4944 = sor.u32 256, 8
        %4945 = vbcast.lane.b32.xlu0 %v4939, %s4944
        %v4946 = vpop.permute.xlu0 %4945
        %s4948 = sor.u32 256, 16
        %4949 = vbcast.lane.b32.xlu0 %v4939, %s4948
        %v4950 = vpop.permute.xlu0 %4949
        %s4952 = sor.u32 256, 24
        %4953 = vbcast.lane.b32.xlu0 %v4939, %s4952
        %v4954 = vpop.permute.xlu0 %4953
        %s4956 = sor.u32 256, 32
        %4957 = vbcast.lane.b32.xlu0 %v4939, %s4956
        %v4958 = vpop.permute.xlu0 %4957
        %s4960 = sor.u32 256, 40
        %4961 = vbcast.lane.b32.xlu0 %v4939, %s4960
        %v4962 = vpop.permute.xlu0 %4961
        %s4964 = sor.u32 256, 48
        %4965 = vbcast.lane.b32.xlu0 %v4939, %s4964
        %v4966 = vpop.permute.xlu0 %4965
        %s4968 = sor.u32 256, 56
        %4969 = vbcast.lane.b32.xlu0 %v4939, %s4968
        %v4970 = vpop.permute.xlu0 %4969
        %s4972 = sor.u32 256, 64
        %4973 = vbcast.lane.b32.xlu0 %v4939, %s4972
        %v4974 = vpop.permute.xlu0 %4973
        %s4976 = sor.u32 256, 72
        %4977 = vbcast.lane.b32.xlu0 %v4939, %s4976
        %v4978 = vpop.permute.xlu0 %4977
        %s4980 = sor.u32 256, 80
        %4981 = vbcast.lane.b32.xlu0 %v4939, %s4980
        %v4982 = vpop.permute.xlu0 %4981
        %s4984 = sor.u32 256, 88
        %4985 = vbcast.lane.b32.xlu0 %v4939, %s4984
        %v4986 = vpop.permute.xlu0 %4985
        %s4988 = sor.u32 256, 96
        %4989 = vbcast.lane.b32.xlu0 %v4939, %s4988
        %v4990 = vpop.permute.xlu0 %4989
        %s4992 = sor.u32 256, 104
        %4993 = vbcast.lane.b32.xlu0 %v4939, %s4992
        %v4994 = vpop.permute.xlu0 %4993
        %s4996 = sor.u32 256, 112
        %4997 = vbcast.lane.b32.xlu0 %v4939, %s4996
        %v4998 = vpop.permute.xlu0 %4997
        %s5000 = sor.u32 256, 120
        %5001 = vbcast.lane.b32.xlu0 %v4939, %s5000
        %v5002 = vpop.permute.xlu0 %5001
        %v5003 = vlaneseq
        %v5004 = vshrl.u32 %v5003, 7
        %v5005 = vsub.s32 0, %v5004
        %v5006 = vrot.slane %v226, %v5005
        %5008 = vbcast.lane.b32.xlu0 %v5006, 256
        %v5009 = vpop.permute.xlu0 %5008
        %s5011 = sor.u32 256, 8
        %5012 = vbcast.lane.b32.xlu0 %v5006, %s5011
        %v5013 = vpop.permute.xlu0 %5012
        %s5015 = sor.u32 256, 16
        %5016 = vbcast.lane.b32.xlu0 %v5006, %s5015
        %v5017 = vpop.permute.xlu0 %5016
        %s5019 = sor.u32 256, 24
        %5020 = vbcast.lane.b32.xlu0 %v5006, %s5019
        %v5021 = vpop.permute.xlu0 %5020
        %s5023 = sor.u32 256, 32
        %5024 = vbcast.lane.b32.xlu0 %v5006, %s5023
        %v5025 = vpop.permute.xlu0 %5024
        %s5027 = sor.u32 256, 40
        %5028 = vbcast.lane.b32.xlu0 %v5006, %s5027
        %v5029 = vpop.permute.xlu0 %5028
        %s5031 = sor.u32 256, 48
        %5032 = vbcast.lane.b32.xlu0 %v5006, %s5031
        %v5033 = vpop.permute.xlu0 %5032
        %s5035 = sor.u32 256, 56
        %5036 = vbcast.lane.b32.xlu0 %v5006, %s5035
        %v5037 = vpop.permute.xlu0 %5036
        %s5039 = sor.u32 256, 64
        %5040 = vbcast.lane.b32.xlu0 %v5006, %s5039
        %v5041 = vpop.permute.xlu0 %5040
        %s5043 = sor.u32 256, 72
        %5044 = vbcast.lane.b32.xlu0 %v5006, %s5043
        %v5045 = vpop.permute.xlu0 %5044
        %s5047 = sor.u32 256, 80
        %5048 = vbcast.lane.b32.xlu0 %v5006, %s5047
        %v5049 = vpop.permute.xlu0 %5048
        %s5051 = sor.u32 256, 88
        %5052 = vbcast.lane.b32.xlu0 %v5006, %s5051
        %v5053 = vpop.permute.xlu0 %5052
        %s5055 = sor.u32 256, 96
        %5056 = vbcast.lane.b32.xlu0 %v5006, %s5055
        %v5057 = vpop.permute.xlu0 %5056
        %s5059 = sor.u32 256, 104
        %5060 = vbcast.lane.b32.xlu0 %v5006, %s5059
        %v5061 = vpop.permute.xlu0 %5060
        %s5063 = sor.u32 256, 112
        %5064 = vbcast.lane.b32.xlu0 %v5006, %s5063
        %v5065 = vpop.permute.xlu0 %5064
        %s5067 = sor.u32 256, 120
        %5068 = vbcast.lane.b32.xlu0 %v5006, %s5067
        %v5069 = vpop.permute.xlu0 %5068
        %v5070 = vlaneseq
        %v5071 = vshrl.u32 %v5070, 7
        %v5072 = vsub.s32 1, %v5071
        %v5073 = vrot.slane %v226, %v5072
        %5075 = vbcast.lane.b32.xlu0 %v5073, 256
        %v5076 = vpop.permute.xlu0 %5075
        %s5078 = sor.u32 256, 8
        %5079 = vbcast.lane.b32.xlu0 %v5073, %s5078
        %v5080 = vpop.permute.xlu0 %5079
        %s5082 = sor.u32 256, 16
        %5083 = vbcast.lane.b32.xlu0 %v5073, %s5082
        %v5084 = vpop.permute.xlu0 %5083
        %s5086 = sor.u32 256, 24
        %5087 = vbcast.lane.b32.xlu0 %v5073, %s5086
        %v5088 = vpop.permute.xlu0 %5087
        %s5090 = sor.u32 256, 32
        %5091 = vbcast.lane.b32.xlu0 %v5073, %s5090
        %v5092 = vpop.permute.xlu0 %5091
        %s5094 = sor.u32 256, 40
        %5095 = vbcast.lane.b32.xlu0 %v5073, %s5094
        %v5096 = vpop.permute.xlu0 %5095
        %s5098 = sor.u32 256, 48
        %5099 = vbcast.lane.b32.xlu0 %v5073, %s5098
        %v5100 = vpop.permute.xlu0 %5099
        %s5102 = sor.u32 256, 56
        %5103 = vbcast.lane.b32.xlu0 %v5073, %s5102
        %v5104 = vpop.permute.xlu0 %5103
        %s5106 = sor.u32 256, 64
        %5107 = vbcast.lane.b32.xlu0 %v5073, %s5106
        %v5108 = vpop.permute.xlu0 %5107
        %s5110 = sor.u32 256, 72
        %5111 = vbcast.lane.b32.xlu0 %v5073, %s5110
        %v5112 = vpop.permute.xlu0 %5111
        %s5114 = sor.u32 256, 80
        %5115 = vbcast.lane.b32.xlu0 %v5073, %s5114
        %v5116 = vpop.permute.xlu0 %5115
        %s5118 = sor.u32 256, 88
        %5119 = vbcast.lane.b32.xlu0 %v5073, %s5118
        %v5120 = vpop.permute.xlu0 %5119
        %s5122 = sor.u32 256, 96
        %5123 = vbcast.lane.b32.xlu0 %v5073, %s5122
        %v5124 = vpop.permute.xlu0 %5123
        %s5126 = sor.u32 256, 104
        %5127 = vbcast.lane.b32.xlu0 %v5073, %s5126
        %v5128 = vpop.permute.xlu0 %5127
        %s5130 = sor.u32 256, 112
        %5131 = vbcast.lane.b32.xlu0 %v5073, %s5130
        %v5132 = vpop.permute.xlu0 %5131
        %s5134 = sor.u32 256, 120
        %5135 = vbcast.lane.b32.xlu0 %v5073, %s5134
        %v5136 = vpop.permute.xlu0 %5135
        %v5137 = vlaneseq
        %v5138 = vshrl.u32 %v5137, 7
        %v5139 = vsub.s32 2, %v5138
        %v5140 = vrot.slane %v226, %v5139
        %5142 = vbcast.lane.b32.xlu0 %v5140, 256
        %v5143 = vpop.permute.xlu0 %5142
        %s5145 = sor.u32 256, 8
        %5146 = vbcast.lane.b32.xlu0 %v5140, %s5145
        %v5147 = vpop.permute.xlu0 %5146
        %s5149 = sor.u32 256, 16
        %5150 = vbcast.lane.b32.xlu0 %v5140, %s5149
        %v5151 = vpop.permute.xlu0 %5150
        %s5153 = sor.u32 256, 24
        %5154 = vbcast.lane.b32.xlu0 %v5140, %s5153
        %v5155 = vpop.permute.xlu0 %5154
        %s5157 = sor.u32 256, 32
        %5158 = vbcast.lane.b32.xlu0 %v5140, %s5157
        %v5159 = vpop.permute.xlu0 %5158
        %s5161 = sor.u32 256, 40
        %5162 = vbcast.lane.b32.xlu0 %v5140, %s5161
        %v5163 = vpop.permute.xlu0 %5162
        %s5165 = sor.u32 256, 48
        %5166 = vbcast.lane.b32.xlu0 %v5140, %s5165
        %v5167 = vpop.permute.xlu0 %5166
        %s5169 = sor.u32 256, 56
        %5170 = vbcast.lane.b32.xlu0 %v5140, %s5169
        %v5171 = vpop.permute.xlu0 %5170
        %s5173 = sor.u32 256, 64
        %5174 = vbcast.lane.b32.xlu0 %v5140, %s5173
        %v5175 = vpop.permute.xlu0 %5174
        %s5177 = sor.u32 256, 72
        %5178 = vbcast.lane.b32.xlu0 %v5140, %s5177
        %v5179 = vpop.permute.xlu0 %5178
        %s5181 = sor.u32 256, 80
        %5182 = vbcast.lane.b32.xlu0 %v5140, %s5181
        %v5183 = vpop.permute.xlu0 %5182
        %s5185 = sor.u32 256, 88
        %5186 = vbcast.lane.b32.xlu0 %v5140, %s5185
        %v5187 = vpop.permute.xlu0 %5186
        %s5189 = sor.u32 256, 96
        %5190 = vbcast.lane.b32.xlu0 %v5140, %s5189
        %v5191 = vpop.permute.xlu0 %5190
        %s5193 = sor.u32 256, 104
        %5194 = vbcast.lane.b32.xlu0 %v5140, %s5193
        %v5195 = vpop.permute.xlu0 %5194
        %s5197 = sor.u32 256, 112
        %5198 = vbcast.lane.b32.xlu0 %v5140, %s5197
        %v5199 = vpop.permute.xlu0 %5198
        %s5201 = sor.u32 256, 120
        %5202 = vbcast.lane.b32.xlu0 %v5140, %s5201
        %v5203 = vpop.permute.xlu0 %5202
        %v5204 = vlaneseq
        %v5205 = vshrl.u32 %v5204, 7
        %v5206 = vsub.s32 3, %v5205
        %v5207 = vrot.slane %v226, %v5206
        %5209 = vbcast.lane.b32.xlu0 %v5207, 256
        %v5210 = vpop.permute.xlu0 %5209
        %s5212 = sor.u32 256, 8
        %5213 = vbcast.lane.b32.xlu0 %v5207, %s5212
        %v5214 = vpop.permute.xlu0 %5213
        %s5216 = sor.u32 256, 16
        %5217 = vbcast.lane.b32.xlu0 %v5207, %s5216
        %v5218 = vpop.permute.xlu0 %5217
        %s5220 = sor.u32 256, 24
        %5221 = vbcast.lane.b32.xlu0 %v5207, %s5220
        %v5222 = vpop.permute.xlu0 %5221
        %s5224 = sor.u32 256, 32
        %5225 = vbcast.lane.b32.xlu0 %v5207, %s5224
        %v5226 = vpop.permute.xlu0 %5225
        %s5228 = sor.u32 256, 40
        %5229 = vbcast.lane.b32.xlu0 %v5207, %s5228
        %v5230 = vpop.permute.xlu0 %5229
        %s5232 = sor.u32 256, 48
        %5233 = vbcast.lane.b32.xlu0 %v5207, %s5232
        %v5234 = vpop.permute.xlu0 %5233
        %s5236 = sor.u32 256, 56
        %5237 = vbcast.lane.b32.xlu0 %v5207, %s5236
        %v5238 = vpop.permute.xlu0 %5237
        %s5240 = sor.u32 256, 64
        %5241 = vbcast.lane.b32.xlu0 %v5207, %s5240
        %v5242 = vpop.permute.xlu0 %5241
        %s5244 = sor.u32 256, 72
        %5245 = vbcast.lane.b32.xlu0 %v5207, %s5244
        %v5246 = vpop.permute.xlu0 %5245
        %s5248 = sor.u32 256, 80
        %5249 = vbcast.lane.b32.xlu0 %v5207, %s5248
        %v5250 = vpop.permute.xlu0 %5249
        %s5252 = sor.u32 256, 88
        %5253 = vbcast.lane.b32.xlu0 %v5207, %s5252
        %v5254 = vpop.permute.xlu0 %5253
        %s5256 = sor.u32 256, 96
        %5257 = vbcast.lane.b32.xlu0 %v5207, %s5256
        %v5258 = vpop.permute.xlu0 %5257
        %s5260 = sor.u32 256, 104
        %5261 = vbcast.lane.b32.xlu0 %v5207, %s5260
        %v5262 = vpop.permute.xlu0 %5261
        %s5264 = sor.u32 256, 112
        %5265 = vbcast.lane.b32.xlu0 %v5207, %s5264
        %v5266 = vpop.permute.xlu0 %5265
        %s5268 = sor.u32 256, 120
        %5269 = vbcast.lane.b32.xlu0 %v5207, %s5268
        %v5270 = vpop.permute.xlu0 %5269
        %v5271 = vlaneseq
        %v5272 = vshrl.u32 %v5271, 7
        %v5273 = vsub.s32 4, %v5272
        %v5274 = vrot.slane %v226, %v5273
        %5276 = vbcast.lane.b32.xlu0 %v5274, 256
        %v5277 = vpop.permute.xlu0 %5276
        %s5279 = sor.u32 256, 8
        %5280 = vbcast.lane.b32.xlu0 %v5274, %s5279
        %v5281 = vpop.permute.xlu0 %5280
        %s5283 = sor.u32 256, 16
        %5284 = vbcast.lane.b32.xlu0 %v5274, %s5283
        %v5285 = vpop.permute.xlu0 %5284
        %s5287 = sor.u32 256, 24
        %5288 = vbcast.lane.b32.xlu0 %v5274, %s5287
        %v5289 = vpop.permute.xlu0 %5288
        %s5291 = sor.u32 256, 32
        %5292 = vbcast.lane.b32.xlu0 %v5274, %s5291
        %v5293 = vpop.permute.xlu0 %5292
        %s5295 = sor.u32 256, 40
        %5296 = vbcast.lane.b32.xlu0 %v5274, %s5295
        %v5297 = vpop.permute.xlu0 %5296
        %s5299 = sor.u32 256, 48
        %5300 = vbcast.lane.b32.xlu0 %v5274, %s5299
        %v5301 = vpop.permute.xlu0 %5300
        %s5303 = sor.u32 256, 56
        %5304 = vbcast.lane.b32.xlu0 %v5274, %s5303
        %v5305 = vpop.permute.xlu0 %5304
        %s5307 = sor.u32 256, 64
        %5308 = vbcast.lane.b32.xlu0 %v5274, %s5307
        %v5309 = vpop.permute.xlu0 %5308
        %s5311 = sor.u32 256, 72
        %5312 = vbcast.lane.b32.xlu0 %v5274, %s5311
        %v5313 = vpop.permute.xlu0 %5312
        %s5315 = sor.u32 256, 80
        %5316 = vbcast.lane.b32.xlu0 %v5274, %s5315
        %v5317 = vpop.permute.xlu0 %5316
        %s5319 = sor.u32 256, 88
        %5320 = vbcast.lane.b32.xlu0 %v5274, %s5319
        %v5321 = vpop.permute.xlu0 %5320
        %s5323 = sor.u32 256, 96
        %5324 = vbcast.lane.b32.xlu0 %v5274, %s5323
        %v5325 = vpop.permute.xlu0 %5324
        %s5327 = sor.u32 256, 104
        %5328 = vbcast.lane.b32.xlu0 %v5274, %s5327
        %v5329 = vpop.permute.xlu0 %5328
        %s5331 = sor.u32 256, 112
        %5332 = vbcast.lane.b32.xlu0 %v5274, %s5331
        %v5333 = vpop.permute.xlu0 %5332
        %s5335 = sor.u32 256, 120
        %5336 = vbcast.lane.b32.xlu0 %v5274, %s5335
        %v5337 = vpop.permute.xlu0 %5336
        %v5338 = vlaneseq
        %v5339 = vshrl.u32 %v5338, 7
        %v5340 = vsub.s32 5, %v5339
        %v5341 = vrot.slane %v226, %v5340
        %5343 = vbcast.lane.b32.xlu0 %v5341, 256
        %v5344 = vpop.permute.xlu0 %5343
        %s5346 = sor.u32 256, 8
        %5347 = vbcast.lane.b32.xlu0 %v5341, %s5346
        %v5348 = vpop.permute.xlu0 %5347
        %s5350 = sor.u32 256, 16
        %5351 = vbcast.lane.b32.xlu0 %v5341, %s5350
        %v5352 = vpop.permute.xlu0 %5351
        %s5354 = sor.u32 256, 24
        %5355 = vbcast.lane.b32.xlu0 %v5341, %s5354
        %v5356 = vpop.permute.xlu0 %5355
        %s5358 = sor.u32 256, 32
        %5359 = vbcast.lane.b32.xlu0 %v5341, %s5358
        %v5360 = vpop.permute.xlu0 %5359
        %s5362 = sor.u32 256, 40
        %5363 = vbcast.lane.b32.xlu0 %v5341, %s5362
        %v5364 = vpop.permute.xlu0 %5363
        %s5366 = sor.u32 256, 48
        %5367 = vbcast.lane.b32.xlu0 %v5341, %s5366
        %v5368 = vpop.permute.xlu0 %5367
        %s5370 = sor.u32 256, 56
        %5371 = vbcast.lane.b32.xlu0 %v5341, %s5370
        %v5372 = vpop.permute.xlu0 %5371
        %s5374 = sor.u32 256, 64
        %5375 = vbcast.lane.b32.xlu0 %v5341, %s5374
        %v5376 = vpop.permute.xlu0 %5375
        %s5378 = sor.u32 256, 72
        %5379 = vbcast.lane.b32.xlu0 %v5341, %s5378
        %v5380 = vpop.permute.xlu0 %5379
        %s5382 = sor.u32 256, 80
        %5383 = vbcast.lane.b32.xlu0 %v5341, %s5382
        %v5384 = vpop.permute.xlu0 %5383
        %s5386 = sor.u32 256, 88
        %5387 = vbcast.lane.b32.xlu0 %v5341, %s5386
        %v5388 = vpop.permute.xlu0 %5387
        %s5390 = sor.u32 256, 96
        %5391 = vbcast.lane.b32.xlu0 %v5341, %s5390
        %v5392 = vpop.permute.xlu0 %5391
        %s5394 = sor.u32 256, 104
        %5395 = vbcast.lane.b32.xlu0 %v5341, %s5394
        %v5396 = vpop.permute.xlu0 %5395
        %s5398 = sor.u32 256, 112
        %5399 = vbcast.lane.b32.xlu0 %v5341, %s5398
        %v5400 = vpop.permute.xlu0 %5399
        %s5402 = sor.u32 256, 120
        %5403 = vbcast.lane.b32.xlu0 %v5341, %s5402
        %v5404 = vpop.permute.xlu0 %5403
        %v5405 = vlaneseq
        %v5406 = vshrl.u32 %v5405, 7
        %v5407 = vsub.s32 6, %v5406
        %v5408 = vrot.slane %v226, %v5407
        %5410 = vbcast.lane.b32.xlu0 %v5408, 256
        %v5411 = vpop.permute.xlu0 %5410
        %s5413 = sor.u32 256, 8
        %5414 = vbcast.lane.b32.xlu0 %v5408, %s5413
        %v5415 = vpop.permute.xlu0 %5414
        %s5417 = sor.u32 256, 16
        %5418 = vbcast.lane.b32.xlu0 %v5408, %s5417
        %v5419 = vpop.permute.xlu0 %5418
        %s5421 = sor.u32 256, 24
        %5422 = vbcast.lane.b32.xlu0 %v5408, %s5421
        %v5423 = vpop.permute.xlu0 %5422
        %s5425 = sor.u32 256, 32
        %5426 = vbcast.lane.b32.xlu0 %v5408, %s5425
        %v5427 = vpop.permute.xlu0 %5426
        %s5429 = sor.u32 256, 40
        %5430 = vbcast.lane.b32.xlu0 %v5408, %s5429
        %v5431 = vpop.permute.xlu0 %5430
        %s5433 = sor.u32 256, 48
        %5434 = vbcast.lane.b32.xlu0 %v5408, %s5433
        %v5435 = vpop.permute.xlu0 %5434
        %s5437 = sor.u32 256, 56
        %5438 = vbcast.lane.b32.xlu0 %v5408, %s5437
        %v5439 = vpop.permute.xlu0 %5438
        %s5441 = sor.u32 256, 64
        %5442 = vbcast.lane.b32.xlu0 %v5408, %s5441
        %v5443 = vpop.permute.xlu0 %5442
        %s5445 = sor.u32 256, 72
        %5446 = vbcast.lane.b32.xlu0 %v5408, %s5445
        %v5447 = vpop.permute.xlu0 %5446
        %s5449 = sor.u32 256, 80
        %5450 = vbcast.lane.b32.xlu0 %v5408, %s5449
        %v5451 = vpop.permute.xlu0 %5450
        %s5453 = sor.u32 256, 88
        %5454 = vbcast.lane.b32.xlu0 %v5408, %s5453
        %v5455 = vpop.permute.xlu0 %5454
        %s5457 = sor.u32 256, 96
        %5458 = vbcast.lane.b32.xlu0 %v5408, %s5457
        %v5459 = vpop.permute.xlu0 %5458
        %s5461 = sor.u32 256, 104
        %5462 = vbcast.lane.b32.xlu0 %v5408, %s5461
        %v5463 = vpop.permute.xlu0 %5462
        %s5465 = sor.u32 256, 112
        %5466 = vbcast.lane.b32.xlu0 %v5408, %s5465
        %v5467 = vpop.permute.xlu0 %5466
        %s5469 = sor.u32 256, 120
        %5470 = vbcast.lane.b32.xlu0 %v5408, %s5469
        %v5471 = vpop.permute.xlu0 %5470
        %v5472 = vlaneseq
        %v5473 = vshrl.u32 %v5472, 7
        %v5474 = vsub.s32 7, %v5473
        %v5475 = vrot.slane %v226, %v5474
        %5477 = vbcast.lane.b32.xlu0 %v5475, 256
        %v5478 = vpop.permute.xlu0 %5477
        %s5480 = sor.u32 256, 8
        %5481 = vbcast.lane.b32.xlu0 %v5475, %s5480
        %v5482 = vpop.permute.xlu0 %5481
        %s5484 = sor.u32 256, 16
        %5485 = vbcast.lane.b32.xlu0 %v5475, %s5484
        %v5486 = vpop.permute.xlu0 %5485
        %s5488 = sor.u32 256, 24
        %5489 = vbcast.lane.b32.xlu0 %v5475, %s5488
        %v5490 = vpop.permute.xlu0 %5489
        %s5492 = sor.u32 256, 32
        %5493 = vbcast.lane.b32.xlu0 %v5475, %s5492
        %v5494 = vpop.permute.xlu0 %5493
        %s5496 = sor.u32 256, 40
        %5497 = vbcast.lane.b32.xlu0 %v5475, %s5496
        %v5498 = vpop.permute.xlu0 %5497
        %s5500 = sor.u32 256, 48
        %5501 = vbcast.lane.b32.xlu0 %v5475, %s5500
        %v5502 = vpop.permute.xlu0 %5501
        %s5504 = sor.u32 256, 56
        %5505 = vbcast.lane.b32.xlu0 %v5475, %s5504
        %v5506 = vpop.permute.xlu0 %5505
        %s5508 = sor.u32 256, 64
        %5509 = vbcast.lane.b32.xlu0 %v5475, %s5508
        %v5510 = vpop.permute.xlu0 %5509
        %s5512 = sor.u32 256, 72
        %5513 = vbcast.lane.b32.xlu0 %v5475, %s5512
        %v5514 = vpop.permute.xlu0 %5513
        %s5516 = sor.u32 256, 80
        %5517 = vbcast.lane.b32.xlu0 %v5475, %s5516
        %v5518 = vpop.permute.xlu0 %5517
        %s5520 = sor.u32 256, 88
        %5521 = vbcast.lane.b32.xlu0 %v5475, %s5520
        %v5522 = vpop.permute.xlu0 %5521
        %s5524 = sor.u32 256, 96
        %5525 = vbcast.lane.b32.xlu0 %v5475, %s5524
        %v5526 = vpop.permute.xlu0 %5525
        %s5528 = sor.u32 256, 104
        %5529 = vbcast.lane.b32.xlu0 %v5475, %s5528
        %v5530 = vpop.permute.xlu0 %5529
        %s5532 = sor.u32 256, 112
        %5533 = vbcast.lane.b32.xlu0 %v5475, %s5532
        %v5534 = vpop.permute.xlu0 %5533
        %s5536 = sor.u32 256, 120
        %5537 = vbcast.lane.b32.xlu0 %v5475, %s5536
        %v5538 = vpop.permute.xlu0 %5537
        %v5539 = vmul.f32 %v1257, %v227
        %v5540 = vmul.f32 %v1261, %v228
        %v5541 = vmul.f32 %v1265, %v229
        %v5542 = vmul.f32 %v1269, %v230
        %v5543 = vmul.f32 %v1273, %v231
        %v5544 = vmul.f32 %v1277, %v232
        %v5545 = vmul.f32 %v1281, %v233
        %v5546 = vmul.f32 %v1285, %v234
        %v5547 = vmul.f32 %v1289, %v235
        %v5548 = vmul.f32 %v1293, %v236
        %v5549 = vmul.f32 %v1297, %v237
        %v5550 = vmul.f32 %v1301, %v238
        %v5551 = vmul.f32 %v1305, %v239
        %v5552 = vmul.f32 %v1309, %v240
        %v5553 = vmul.f32 %v1313, %v241
        %v5554 = vmul.f32 %v1317, %v242
        %v5555 = vmul.f32 %v1324, %v243
        %v5556 = vmul.f32 %v1328, %v244
        %v5557 = vmul.f32 %v1332, %v245
        %v5558 = vmul.f32 %v1336, %v246
        %v5559 = vmul.f32 %v1340, %v247
        %v5560 = vmul.f32 %v1344, %v248
        %v5561 = vmul.f32 %v1348, %v249
        %v5562 = vmul.f32 %v1352, %v250
        %v5563 = vmul.f32 %v1356, %v251
        %v5564 = vmul.f32 %v1360, %v252
        %v5565 = vmul.f32 %v1364, %v253
        %v5566 = vmul.f32 %v1368, %v254
        %v5567 = vmul.f32 %v1372, %v255
        %v5568 = vmul.f32 %v1376, %v256
        %v5569 = vmul.f32 %v1380, %v257
        %v5570 = vmul.f32 %v1384, %v258
        %v5571 = vmul.f32 %v1391, %v259
        %v5572 = vmul.f32 %v1395, %v260
        %v5573 = vmul.f32 %v1399, %v261
        %v5574 = vmul.f32 %v1403, %v262
        %v5575 = vmul.f32 %v1407, %v263
        %v5576 = vmul.f32 %v1411, %v264
        %v5577 = vmul.f32 %v1415, %v265
        %v5578 = vmul.f32 %v1419, %v266
        %v5579 = vmul.f32 %v1423, %v267
        %v5580 = vmul.f32 %v1427, %v268
        %v5581 = vmul.f32 %v1431, %v269
        %v5582 = vmul.f32 %v1435, %v270
        %v5583 = vmul.f32 %v1439, %v271
        %v5584 = vmul.f32 %v1443, %v272
        %v5585 = vmul.f32 %v1447, %v273
        %v5586 = vmul.f32 %v1451, %v274
        %v5587 = vmul.f32 %v1458, %v275
        %v5588 = vmul.f32 %v1462, %v276
        %v5589 = vmul.f32 %v1466, %v277
        %v5590 = vmul.f32 %v1470, %v278
        %v5591 = vmul.f32 %v1474, %v279
        %v5592 = vmul.f32 %v1478, %v280
        %v5593 = vmul.f32 %v1482, %v281
        %v5594 = vmul.f32 %v1486, %v282
        %v5595 = vmul.f32 %v1490, %v283
        %v5596 = vmul.f32 %v1494, %v284
        %v5597 = vmul.f32 %v1498, %v285
        %v5598 = vmul.f32 %v1502, %v286
        %v5599 = vmul.f32 %v1506, %v287
        %v5600 = vmul.f32 %v1510, %v288
        %v5601 = vmul.f32 %v1514, %v289
        %v5602 = vmul.f32 %v1518, %v290
        %v5603 = vmul.f32 %v1525, %v291
        %v5604 = vmul.f32 %v1529, %v292
        %v5605 = vmul.f32 %v1533, %v293
        %v5606 = vmul.f32 %v1537, %v294
        %v5607 = vmul.f32 %v1541, %v295
        %v5608 = vmul.f32 %v1545, %v296
        %v5609 = vmul.f32 %v1549, %v297
        %v5610 = vmul.f32 %v1553, %v298
        %v5611 = vmul.f32 %v1557, %v299
        %v5612 = vmul.f32 %v1561, %v300
        %v5613 = vmul.f32 %v1565, %v301
        %v5614 = vmul.f32 %v1569, %v302
        %v5615 = vmul.f32 %v1573, %v303
        %v5616 = vmul.f32 %v1577, %v304
        %v5617 = vmul.f32 %v1581, %v305
        %v5618 = vmul.f32 %v1585, %v306
        %v5619 = vmul.f32 %v1592, %v307
        %v5620 = vmul.f32 %v1596, %v308
        %v5621 = vmul.f32 %v1600, %v309
        %v5622 = vmul.f32 %v1604, %v310
        %v5623 = vmul.f32 %v1608, %v311
        %v5624 = vmul.f32 %v1612, %v312
        %v5625 = vmul.f32 %v1616, %v313
        %v5626 = vmul.f32 %v1620, %v314
        %v5627 = vmul.f32 %v1624, %v315
        %v5628 = vmul.f32 %v1628, %v316
        %v5629 = vmul.f32 %v1632, %v317
        %v5630 = vmul.f32 %v1636, %v318
        %v5631 = vmul.f32 %v1640, %v319
        %v5632 = vmul.f32 %v1644, %v320
        %v5633 = vmul.f32 %v1648, %v321
        %v5634 = vmul.f32 %v1652, %v322
        %v5635 = vmul.f32 %v1659, %v323
        %v5636 = vmul.f32 %v1663, %v324
        %v5637 = vmul.f32 %v1667, %v325
        %v5638 = vmul.f32 %v1671, %v326
        %v5639 = vmul.f32 %v1675, %v327
        %v5640 = vmul.f32 %v1679, %v328
        %v5641 = vmul.f32 %v1683, %v329
        %v5642 = vmul.f32 %v1687, %v330
        %v5643 = vmul.f32 %v1691, %v331
        %v5644 = vmul.f32 %v1695, %v332
        %v5645 = vmul.f32 %v1699, %v333
        %v5646 = vmul.f32 %v1703, %v334
        %v5647 = vmul.f32 %v1707, %v335
        %v5648 = vmul.f32 %v1711, %v336
        %v5649 = vmul.f32 %v1715, %v337
        %v5650 = vmul.f32 %v1719, %v338
        %v5651 = vmul.f32 %v1726, %v339
        %v5652 = vmul.f32 %v1730, %v340
        %v5653 = vmul.f32 %v1734, %v341
        %v5654 = vmul.f32 %v1738, %v342
        %v5655 = vmul.f32 %v1742, %v343
        %v5656 = vmul.f32 %v1746, %v344
        %v5657 = vmul.f32 %v1750, %v345
        %v5658 = vmul.f32 %v1754, %v346
        %v5659 = vmul.f32 %v1758, %v347
        %v5660 = vmul.f32 %v1762, %v348
        %v5661 = vmul.f32 %v1766, %v349
        %v5662 = vmul.f32 %v1770, %v350
        %v5663 = vmul.f32 %v1774, %v351
        %v5664 = vmul.f32 %v1778, %v352
        %v5665 = vmul.f32 %v1782, %v353
        %v5666 = vmul.f32 %v1786, %v354
        %v5667 = vmul.f32 %v1793, %v355
        %v5668 = vmul.f32 %v1797, %v356
        %v5669 = vmul.f32 %v1801, %v357
        %v5670 = vmul.f32 %v1805, %v358
        %v5671 = vmul.f32 %v1809, %v359
        %v5672 = vmul.f32 %v1813, %v360
        %v5673 = vmul.f32 %v1817, %v361
        %v5674 = vmul.f32 %v1821, %v362
        %v5675 = vmul.f32 %v1825, %v363
        %v5676 = vmul.f32 %v1829, %v364
        %v5677 = vmul.f32 %v1833, %v365
        %v5678 = vmul.f32 %v1837, %v366
        %v5679 = vmul.f32 %v1841, %v367
        %v5680 = vmul.f32 %v1845, %v368
        %v5681 = vmul.f32 %v1849, %v369
        %v5682 = vmul.f32 %v1853, %v370
        %v5683 = vmul.f32 %v1860, %v371
        %v5684 = vmul.f32 %v1864, %v372
        %v5685 = vmul.f32 %v1868, %v373
        %v5686 = vmul.f32 %v1872, %v374
        %v5687 = vmul.f32 %v1876, %v375
        %v5688 = vmul.f32 %v1880, %v376
        %v5689 = vmul.f32 %v1884, %v377
        %v5690 = vmul.f32 %v1888, %v378
        %v5691 = vmul.f32 %v1892, %v379
        %v5692 = vmul.f32 %v1896, %v380
        %v5693 = vmul.f32 %v1900, %v381
        %v5694 = vmul.f32 %v1904, %v382
        %v5695 = vmul.f32 %v1908, %v383
        %v5696 = vmul.f32 %v1912, %v384
        %v5697 = vmul.f32 %v1916, %v385
        %v5698 = vmul.f32 %v1920, %v386
        %v5699 = vmul.f32 %v1927, %v387
        %v5700 = vmul.f32 %v1931, %v388
        %v5701 = vmul.f32 %v1935, %v389
        %v5702 = vmul.f32 %v1939, %v390
        %v5703 = vmul.f32 %v1943, %v391
        %v5704 = vmul.f32 %v1947, %v392
        %v5705 = vmul.f32 %v1951, %v393
        %v5706 = vmul.f32 %v1955, %v394
        %v5707 = vmul.f32 %v1959, %v395
        %v5708 = vmul.f32 %v1963, %v396
        %v5709 = vmul.f32 %v1967, %v397
        %v5710 = vmul.f32 %v1971, %v398
        %v5711 = vmul.f32 %v1975, %v399
        %v5712 = vmul.f32 %v1979, %v400
        %v5713 = vmul.f32 %v1983, %v401
        %v5714 = vmul.f32 %v1987, %v402
        %v5715 = vmul.f32 %v1994, %v403
        %v5716 = vmul.f32 %v1998, %v404
        %v5717 = vmul.f32 %v2002, %v405
        %v5718 = vmul.f32 %v2006, %v406
        %v5719 = vmul.f32 %v2010, %v407
        %v5720 = vmul.f32 %v2014, %v408
        %v5721 = vmul.f32 %v2018, %v409
        %v5722 = vmul.f32 %v2022, %v410
        %v5723 = vmul.f32 %v2026, %v411
        %v5724 = vmul.f32 %v2030, %v412
        %v5725 = vmul.f32 %v2034, %v413
        %v5726 = vmul.f32 %v2038, %v414
        %v5727 = vmul.f32 %v2042, %v415
        %v5728 = vmul.f32 %v2046, %v416
        %v5729 = vmul.f32 %v2050, %v417
        %v5730 = vmul.f32 %v2054, %v418
        %v5731 = vmul.f32 %v2061, %v419
        %v5732 = vmul.f32 %v2065, %v420
        %v5733 = vmul.f32 %v2069, %v421
        %v5734 = vmul.f32 %v2073, %v422
        %v5735 = vmul.f32 %v2077, %v423
        %v5736 = vmul.f32 %v2081, %v424
        %v5737 = vmul.f32 %v2085, %v425
        %v5738 = vmul.f32 %v2089, %v426
        %v5739 = vmul.f32 %v2093, %v427
        %v5740 = vmul.f32 %v2097, %v428
        %v5741 = vmul.f32 %v2101, %v429
        %v5742 = vmul.f32 %v2105, %v430
        %v5743 = vmul.f32 %v2109, %v431
        %v5744 = vmul.f32 %v2113, %v432
        %v5745 = vmul.f32 %v2117, %v433
        %v5746 = vmul.f32 %v2121, %v434
        %v5747 = vmul.f32 %v2128, %v435
        %v5748 = vmul.f32 %v2132, %v436
        %v5749 = vmul.f32 %v2136, %v437
        %v5750 = vmul.f32 %v2140, %v438
        %v5751 = vmul.f32 %v2144, %v439
        %v5752 = vmul.f32 %v2148, %v440
        %v5753 = vmul.f32 %v2152, %v441
        %v5754 = vmul.f32 %v2156, %v442
        %v5755 = vmul.f32 %v2160, %v443
        %v5756 = vmul.f32 %v2164, %v444
        %v5757 = vmul.f32 %v2168, %v445
        %v5758 = vmul.f32 %v2172, %v446
        %v5759 = vmul.f32 %v2176, %v447
        %v5760 = vmul.f32 %v2180, %v448
        %v5761 = vmul.f32 %v2184, %v449
        %v5762 = vmul.f32 %v2188, %v450
        %v5763 = vmul.f32 %v2195, %v451
        %v5764 = vmul.f32 %v2199, %v452
        %v5765 = vmul.f32 %v2203, %v453
        %v5766 = vmul.f32 %v2207, %v454
        %v5767 = vmul.f32 %v2211, %v455
        %v5768 = vmul.f32 %v2215, %v456
        %v5769 = vmul.f32 %v2219, %v457
        %v5770 = vmul.f32 %v2223, %v458
        %v5771 = vmul.f32 %v2227, %v459
        %v5772 = vmul.f32 %v2231, %v460
        %v5773 = vmul.f32 %v2235, %v461
        %v5774 = vmul.f32 %v2239, %v462
        %v5775 = vmul.f32 %v2243, %v463
        %v5776 = vmul.f32 %v2247, %v464
        %v5777 = vmul.f32 %v2251, %v465
        %v5778 = vmul.f32 %v2255, %v466
        %v5779 = vmul.f32 %v2262, %v467
        %v5780 = vmul.f32 %v2266, %v468
        %v5781 = vmul.f32 %v2270, %v469
        %v5782 = vmul.f32 %v2274, %v470
        %v5783 = vmul.f32 %v2278, %v471
        %v5784 = vmul.f32 %v2282, %v472
        %v5785 = vmul.f32 %v2286, %v473
        %v5786 = vmul.f32 %v2290, %v474
        %v5787 = vmul.f32 %v2294, %v475
        %v5788 = vmul.f32 %v2298, %v476
        %v5789 = vmul.f32 %v2302, %v477
        %v5790 = vmul.f32 %v2306, %v478
        %v5791 = vmul.f32 %v2310, %v479
        %v5792 = vmul.f32 %v2314, %v480
        %v5793 = vmul.f32 %v2318, %v481
        %v5794 = vmul.f32 %v2322, %v482
        %v5795 = vmul.f32 %v2329, %v483
        %v5796 = vmul.f32 %v2333, %v484
        %v5797 = vmul.f32 %v2337, %v485
        %v5798 = vmul.f32 %v2341, %v486
        %v5799 = vmul.f32 %v2345, %v487
        %v5800 = vmul.f32 %v2349, %v488
        %v5801 = vmul.f32 %v2353, %v489
        %v5802 = vmul.f32 %v2357, %v490
        %v5803 = vmul.f32 %v2361, %v491
        %v5804 = vmul.f32 %v2365, %v492
        %v5805 = vmul.f32 %v2369, %v493
        %v5806 = vmul.f32 %v2373, %v494
        %v5807 = vmul.f32 %v2377, %v495
        %v5808 = vmul.f32 %v2381, %v496
        %v5809 = vmul.f32 %v2385, %v497
        %v5810 = vmul.f32 %v2389, %v498
        %v5811 = vmul.f32 %v2396, %v499
        %v5812 = vmul.f32 %v2400, %v500
        %v5813 = vmul.f32 %v2404, %v501
        %v5814 = vmul.f32 %v2408, %v502
        %v5815 = vmul.f32 %v2412, %v503
        %v5816 = vmul.f32 %v2416, %v504
        %v5817 = vmul.f32 %v2420, %v505
        %v5818 = vmul.f32 %v2424, %v506
        %v5819 = vmul.f32 %v2428, %v507
        %v5820 = vmul.f32 %v2432, %v508
        %v5821 = vmul.f32 %v2436, %v509
        %v5822 = vmul.f32 %v2440, %v510
        %v5823 = vmul.f32 %v2444, %v511
        %v5824 = vmul.f32 %v2448, %v512
        %v5825 = vmul.f32 %v2452, %v513
        %v5826 = vmul.f32 %v2456, %v514
        %v5827 = vmul.f32 %v2463, %v515
        %v5828 = vmul.f32 %v2467, %v516
        %v5829 = vmul.f32 %v2471, %v517
        %v5830 = vmul.f32 %v2475, %v518
        %v5831 = vmul.f32 %v2479, %v519
        %v5832 = vmul.f32 %v2483, %v520
        %v5833 = vmul.f32 %v2487, %v521
        %v5834 = vmul.f32 %v2491, %v522
        %v5835 = vmul.f32 %v2495, %v523
        %v5836 = vmul.f32 %v2499, %v524
        %v5837 = vmul.f32 %v2503, %v525
        %v5838 = vmul.f32 %v2507, %v526
        %v5839 = vmul.f32 %v2511, %v527
        %v5840 = vmul.f32 %v2515, %v528
        %v5841 = vmul.f32 %v2519, %v529
        %v5842 = vmul.f32 %v2523, %v530
        %v5843 = vmul.f32 %v2530, %v531
        %v5844 = vmul.f32 %v2534, %v532
        %v5845 = vmul.f32 %v2538, %v533
        %v5846 = vmul.f32 %v2542, %v534
        %v5847 = vmul.f32 %v2546, %v535
        %v5848 = vmul.f32 %v2550, %v536
        %v5849 = vmul.f32 %v2554, %v537
        %v5850 = vmul.f32 %v2558, %v538
        %v5851 = vmul.f32 %v2562, %v539
        %v5852 = vmul.f32 %v2566, %v540
        %v5853 = vmul.f32 %v2570, %v541
        %v5854 = vmul.f32 %v2574, %v542
        %v5855 = vmul.f32 %v2578, %v543
        %v5856 = vmul.f32 %v2582, %v544
        %v5857 = vmul.f32 %v2586, %v545
        %v5858 = vmul.f32 %v2590, %v546
        %v5859 = vmul.f32 %v2597, %v547
        %v5860 = vmul.f32 %v2601, %v548
        %v5861 = vmul.f32 %v2605, %v549
        %v5862 = vmul.f32 %v2609, %v550
        %v5863 = vmul.f32 %v2613, %v551
        %v5864 = vmul.f32 %v2617, %v552
        %v5865 = vmul.f32 %v2621, %v553
        %v5866 = vmul.f32 %v2625, %v554
        %v5867 = vmul.f32 %v2629, %v555
        %v5868 = vmul.f32 %v2633, %v556
        %v5869 = vmul.f32 %v2637, %v557
        %v5870 = vmul.f32 %v2641, %v558
        %v5871 = vmul.f32 %v2645, %v559
        %v5872 = vmul.f32 %v2649, %v560
        %v5873 = vmul.f32 %v2653, %v561
        %v5874 = vmul.f32 %v2657, %v562
        %v5875 = vmul.f32 %v2664, %v563
        %v5876 = vmul.f32 %v2668, %v564
        %v5877 = vmul.f32 %v2672, %v565
        %v5878 = vmul.f32 %v2676, %v566
        %v5879 = vmul.f32 %v2680, %v567
        %v5880 = vmul.f32 %v2684, %v568
        %v5881 = vmul.f32 %v2688, %v569
        %v5882 = vmul.f32 %v2692, %v570
        %v5883 = vmul.f32 %v2696, %v571
        %v5884 = vmul.f32 %v2700, %v572
        %v5885 = vmul.f32 %v2704, %v573
        %v5886 = vmul.f32 %v2708, %v574
        %v5887 = vmul.f32 %v2712, %v575
        %v5888 = vmul.f32 %v2716, %v576
        %v5889 = vmul.f32 %v2720, %v577
        %v5890 = vmul.f32 %v2724, %v578
        %v5891 = vmul.f32 %v2731, %v579
        %v5892 = vmul.f32 %v2735, %v580
        %v5893 = vmul.f32 %v2739, %v581
        %v5894 = vmul.f32 %v2743, %v582
        %v5895 = vmul.f32 %v2747, %v583
        %v5896 = vmul.f32 %v2751, %v584
        %v5897 = vmul.f32 %v2755, %v585
        %v5898 = vmul.f32 %v2759, %v586
        %v5899 = vmul.f32 %v2763, %v587
        %v5900 = vmul.f32 %v2767, %v588
        %v5901 = vmul.f32 %v2771, %v589
        %v5902 = vmul.f32 %v2775, %v590
        %v5903 = vmul.f32 %v2779, %v591
        %v5904 = vmul.f32 %v2783, %v592
        %v5905 = vmul.f32 %v2787, %v593
        %v5906 = vmul.f32 %v2791, %v594
        %v5907 = vmul.f32 %v2798, %v595
        %v5908 = vmul.f32 %v2802, %v596
        %v5909 = vmul.f32 %v2806, %v597
        %v5910 = vmul.f32 %v2810, %v598
        %v5911 = vmul.f32 %v2814, %v599
        %v5912 = vmul.f32 %v2818, %v600
        %v5913 = vmul.f32 %v2822, %v601
        %v5914 = vmul.f32 %v2826, %v602
        %v5915 = vmul.f32 %v2830, %v603
        %v5916 = vmul.f32 %v2834, %v604
        %v5917 = vmul.f32 %v2838, %v605
        %v5918 = vmul.f32 %v2842, %v606
        %v5919 = vmul.f32 %v2846, %v607
        %v5920 = vmul.f32 %v2850, %v608
        %v5921 = vmul.f32 %v2854, %v609
        %v5922 = vmul.f32 %v2858, %v610
        %v5923 = vmul.f32 %v2865, %v611
        %v5924 = vmul.f32 %v2869, %v612
        %v5925 = vmul.f32 %v2873, %v613
        %v5926 = vmul.f32 %v2877, %v614
        %v5927 = vmul.f32 %v2881, %v615
        %v5928 = vmul.f32 %v2885, %v616
        %v5929 = vmul.f32 %v2889, %v617
        %v5930 = vmul.f32 %v2893, %v618
        %v5931 = vmul.f32 %v2897, %v619
        %v5932 = vmul.f32 %v2901, %v620
        %v5933 = vmul.f32 %v2905, %v621
        %v5934 = vmul.f32 %v2909, %v622
        %v5935 = vmul.f32 %v2913, %v623
        %v5936 = vmul.f32 %v2917, %v624
        %v5937 = vmul.f32 %v2921, %v625
        %v5938 = vmul.f32 %v2925, %v626
        %v5939 = vmul.f32 %v2932, %v627
        %v5940 = vmul.f32 %v2936, %v628
        %v5941 = vmul.f32 %v2940, %v629
        %v5942 = vmul.f32 %v2944, %v630
        %v5943 = vmul.f32 %v2948, %v631
        %v5944 = vmul.f32 %v2952, %v632
        %v5945 = vmul.f32 %v2956, %v633
        %v5946 = vmul.f32 %v2960, %v634
        %v5947 = vmul.f32 %v2964, %v635
        %v5948 = vmul.f32 %v2968, %v636
        %v5949 = vmul.f32 %v2972, %v637
        %v5950 = vmul.f32 %v2976, %v638
        %v5951 = vmul.f32 %v2980, %v639
        %v5952 = vmul.f32 %v2984, %v640
        %v5953 = vmul.f32 %v2988, %v641
        %v5954 = vmul.f32 %v2992, %v642
        %v5955 = vmul.f32 %v2999, %v643
        %v5956 = vmul.f32 %v3003, %v644
        %v5957 = vmul.f32 %v3007, %v645
        %v5958 = vmul.f32 %v3011, %v646
        %v5959 = vmul.f32 %v3015, %v647
        %v5960 = vmul.f32 %v3019, %v648
        %v5961 = vmul.f32 %v3023, %v649
        %v5962 = vmul.f32 %v3027, %v650
        %v5963 = vmul.f32 %v3031, %v651
        %v5964 = vmul.f32 %v3035, %v652
        %v5965 = vmul.f32 %v3039, %v653
        %v5966 = vmul.f32 %v3043, %v654
        %v5967 = vmul.f32 %v3047, %v655
        %v5968 = vmul.f32 %v3051, %v656
        %v5969 = vmul.f32 %v3055, %v657
        %v5970 = vmul.f32 %v3059, %v658
        %v5971 = vmul.f32 %v3066, %v659
        %v5972 = vmul.f32 %v3070, %v660
        %v5973 = vmul.f32 %v3074, %v661
        %v5974 = vmul.f32 %v3078, %v662
        %v5975 = vmul.f32 %v3082, %v663
        %v5976 = vmul.f32 %v3086, %v664
        %v5977 = vmul.f32 %v3090, %v665
        %v5978 = vmul.f32 %v3094, %v666
        %v5979 = vmul.f32 %v3098, %v667
        %v5980 = vmul.f32 %v3102, %v668
        %v5981 = vmul.f32 %v3106, %v669
        %v5982 = vmul.f32 %v3110, %v670
        %v5983 = vmul.f32 %v3114, %v671
        %v5984 = vmul.f32 %v3118, %v672
        %v5985 = vmul.f32 %v3122, %v673
        %v5986 = vmul.f32 %v3126, %v674
        %v5987 = vmul.f32 %v3133, %v675
        %v5988 = vmul.f32 %v3137, %v676
        %v5989 = vmul.f32 %v3141, %v677
        %v5990 = vmul.f32 %v3145, %v678
        %v5991 = vmul.f32 %v3149, %v679
        %v5992 = vmul.f32 %v3153, %v680
        %v5993 = vmul.f32 %v3157, %v681
        %v5994 = vmul.f32 %v3161, %v682
        %v5995 = vmul.f32 %v3165, %v683
        %v5996 = vmul.f32 %v3169, %v684
        %v5997 = vmul.f32 %v3173, %v685
        %v5998 = vmul.f32 %v3177, %v686
        %v5999 = vmul.f32 %v3181, %v687
        %v6000 = vmul.f32 %v3185, %v688
        %v6001 = vmul.f32 %v3189, %v689
        %v6002 = vmul.f32 %v3193, %v690
        %v6003 = vmul.f32 %v3200, %v691
        %v6004 = vmul.f32 %v3204, %v692
        %v6005 = vmul.f32 %v3208, %v693
        %v6006 = vmul.f32 %v3212, %v694
        %v6007 = vmul.f32 %v3216, %v695
        %v6008 = vmul.f32 %v3220, %v696
        %v6009 = vmul.f32 %v3224, %v697
        %v6010 = vmul.f32 %v3228, %v698
        %v6011 = vmul.f32 %v3232, %v699
        %v6012 = vmul.f32 %v3236, %v700
        %v6013 = vmul.f32 %v3240, %v701
        %v6014 = vmul.f32 %v3244, %v702
        %v6015 = vmul.f32 %v3248, %v703
        %v6016 = vmul.f32 %v3252, %v704
        %v6017 = vmul.f32 %v3256, %v705
        %v6018 = vmul.f32 %v3260, %v706
        %v6019 = vmul.f32 %v3267, %v707
        %v6020 = vmul.f32 %v3271, %v708
        %v6021 = vmul.f32 %v3275, %v709
        %v6022 = vmul.f32 %v3279, %v710
        %v6023 = vmul.f32 %v3283, %v711
        %v6024 = vmul.f32 %v3287, %v712
        %v6025 = vmul.f32 %v3291, %v713
        %v6026 = vmul.f32 %v3295, %v714
        %v6027 = vmul.f32 %v3299, %v715
        %v6028 = vmul.f32 %v3303, %v716
        %v6029 = vmul.f32 %v3307, %v717
        %v6030 = vmul.f32 %v3311, %v718
        %v6031 = vmul.f32 %v3315, %v719
        %v6032 = vmul.f32 %v3319, %v720
        %v6033 = vmul.f32 %v3323, %v721
        %v6034 = vmul.f32 %v3327, %v722
        %v6035 = vmul.f32 %v3334, %v723
        %v6036 = vmul.f32 %v3338, %v724
        %v6037 = vmul.f32 %v3342, %v725
        %v6038 = vmul.f32 %v3346, %v726
        %v6039 = vmul.f32 %v3350, %v727
        %v6040 = vmul.f32 %v3354, %v728
        %v6041 = vmul.f32 %v3358, %v729
        %v6042 = vmul.f32 %v3362, %v730
        %v6043 = vmul.f32 %v3366, %v731
        %v6044 = vmul.f32 %v3370, %v732
        %v6045 = vmul.f32 %v3374, %v733
        %v6046 = vmul.f32 %v3378, %v734
        %v6047 = vmul.f32 %v3382, %v735
        %v6048 = vmul.f32 %v3386, %v736
        %v6049 = vmul.f32 %v3390, %v737
        %v6050 = vmul.f32 %v3394, %v738
        %v6051 = vmul.f32 %v3401, %v739
        %v6052 = vmul.f32 %v3405, %v740
        %v6053 = vmul.f32 %v3409, %v741
        %v6054 = vmul.f32 %v3413, %v742
        %v6055 = vmul.f32 %v3417, %v743
        %v6056 = vmul.f32 %v3421, %v744
        %v6057 = vmul.f32 %v3425, %v745
        %v6058 = vmul.f32 %v3429, %v746
        %v6059 = vmul.f32 %v3433, %v747
        %v6060 = vmul.f32 %v3437, %v748
        %v6061 = vmul.f32 %v3441, %v749
        %v6062 = vmul.f32 %v3445, %v750
        %v6063 = vmul.f32 %v3449, %v751
        %v6064 = vmul.f32 %v3453, %v752
        %v6065 = vmul.f32 %v3457, %v753
        %v6066 = vmul.f32 %v3461, %v754
        %v6067 = vmul.f32 %v3468, %v755
        %v6068 = vmul.f32 %v3472, %v756
        %v6069 = vmul.f32 %v3476, %v757
        %v6070 = vmul.f32 %v3480, %v758
        %v6071 = vmul.f32 %v3484, %v759
        %v6072 = vmul.f32 %v3488, %v760
        %v6073 = vmul.f32 %v3492, %v761
        %v6074 = vmul.f32 %v3496, %v762
        %v6075 = vmul.f32 %v3500, %v763
        %v6076 = vmul.f32 %v3504, %v764
        %v6077 = vmul.f32 %v3508, %v765
        %v6078 = vmul.f32 %v3512, %v766
        %v6079 = vmul.f32 %v3516, %v767
        %v6080 = vmul.f32 %v3520, %v768
        %v6081 = vmul.f32 %v3524, %v769
        %v6082 = vmul.f32 %v3528, %v770
        %v6083 = vmul.f32 %v3535, %v771
        %v6084 = vmul.f32 %v3539, %v772
        %v6085 = vmul.f32 %v3543, %v773
        %v6086 = vmul.f32 %v3547, %v774
        %v6087 = vmul.f32 %v3551, %v775
        %v6088 = vmul.f32 %v3555, %v776
        %v6089 = vmul.f32 %v3559, %v777
        %v6090 = vmul.f32 %v3563, %v778
        %v6091 = vmul.f32 %v3567, %v779
        %v6092 = vmul.f32 %v3571, %v780
        %v6093 = vmul.f32 %v3575, %v781
        %v6094 = vmul.f32 %v3579, %v782
        %v6095 = vmul.f32 %v3583, %v783
        %v6096 = vmul.f32 %v3587, %v784
        %v6097 = vmul.f32 %v3591, %v785
        %v6098 = vmul.f32 %v3595, %v786
        %v6099 = vmul.f32 %v3602, %v787
        %v6100 = vmul.f32 %v3606, %v788
        %v6101 = vmul.f32 %v3610, %v789
        %v6102 = vmul.f32 %v3614, %v790
        %v6103 = vmul.f32 %v3618, %v791
        %v6104 = vmul.f32 %v3622, %v792
        %v6105 = vmul.f32 %v3626, %v793
        %v6106 = vmul.f32 %v3630, %v794
        %v6107 = vmul.f32 %v3634, %v795
        %v6108 = vmul.f32 %v3638, %v796
        %v6109 = vmul.f32 %v3642, %v797
        %v6110 = vmul.f32 %v3646, %v798
        %v6111 = vmul.f32 %v3650, %v799
        %v6112 = vmul.f32 %v3654, %v800
        %v6113 = vmul.f32 %v3658, %v801
        %v6114 = vmul.f32 %v3662, %v802
        %v6115 = vmul.f32 %v3669, %v803
        %v6116 = vmul.f32 %v3673, %v804
        %v6117 = vmul.f32 %v3677, %v805
        %v6118 = vmul.f32 %v3681, %v806
        %v6119 = vmul.f32 %v3685, %v807
        %v6120 = vmul.f32 %v3689, %v808
        %v6121 = vmul.f32 %v3693, %v809
        %v6122 = vmul.f32 %v3697, %v810
        %v6123 = vmul.f32 %v3701, %v811
        %v6124 = vmul.f32 %v3705, %v812
        %v6125 = vmul.f32 %v3709, %v813
        %v6126 = vmul.f32 %v3713, %v814
        %v6127 = vmul.f32 %v3717, %v815
        %v6128 = vmul.f32 %v3721, %v816
        %v6129 = vmul.f32 %v3725, %v817
        %v6130 = vmul.f32 %v3729, %v818
        %v6131 = vmul.f32 %v3736, %v819
        %v6132 = vmul.f32 %v3740, %v820
        %v6133 = vmul.f32 %v3744, %v821
        %v6134 = vmul.f32 %v3748, %v822
        %v6135 = vmul.f32 %v3752, %v823
        %v6136 = vmul.f32 %v3756, %v824
        %v6137 = vmul.f32 %v3760, %v825
        %v6138 = vmul.f32 %v3764, %v826
        %v6139 = vmul.f32 %v3768, %v827
        %v6140 = vmul.f32 %v3772, %v828
        %v6141 = vmul.f32 %v3776, %v829
        %v6142 = vmul.f32 %v3780, %v830
        %v6143 = vmul.f32 %v3784, %v831
        %v6144 = vmul.f32 %v3788, %v832
        %v6145 = vmul.f32 %v3792, %v833
        %v6146 = vmul.f32 %v3796, %v834
        %v6147 = vmul.f32 %v3803, %v835
        %v6148 = vmul.f32 %v3807, %v836
        %v6149 = vmul.f32 %v3811, %v837
        %v6150 = vmul.f32 %v3815, %v838
        %v6151 = vmul.f32 %v3819, %v839
        %v6152 = vmul.f32 %v3823, %v840
        %v6153 = vmul.f32 %v3827, %v841
        %v6154 = vmul.f32 %v3831, %v842
        %v6155 = vmul.f32 %v3835, %v843
        %v6156 = vmul.f32 %v3839, %v844
        %v6157 = vmul.f32 %v3843, %v845
        %v6158 = vmul.f32 %v3847, %v846
        %v6159 = vmul.f32 %v3851, %v847
        %v6160 = vmul.f32 %v3855, %v848
        %v6161 = vmul.f32 %v3859, %v849
        %v6162 = vmul.f32 %v3863, %v850
        %v6163 = vmul.f32 %v3870, %v851
        %v6164 = vmul.f32 %v3874, %v852
        %v6165 = vmul.f32 %v3878, %v853
        %v6166 = vmul.f32 %v3882, %v854
        %v6167 = vmul.f32 %v3886, %v855
        %v6168 = vmul.f32 %v3890, %v856
        %v6169 = vmul.f32 %v3894, %v857
        %v6170 = vmul.f32 %v3898, %v858
        %v6171 = vmul.f32 %v3902, %v859
        %v6172 = vmul.f32 %v3906, %v860
        %v6173 = vmul.f32 %v3910, %v861
        %v6174 = vmul.f32 %v3914, %v862
        %v6175 = vmul.f32 %v3918, %v863
        %v6176 = vmul.f32 %v3922, %v864
        %v6177 = vmul.f32 %v3926, %v865
        %v6178 = vmul.f32 %v3930, %v866
        %v6179 = vmul.f32 %v3937, %v867
        %v6180 = vmul.f32 %v3941, %v868
        %v6181 = vmul.f32 %v3945, %v869
        %v6182 = vmul.f32 %v3949, %v870
        %v6183 = vmul.f32 %v3953, %v871
        %v6184 = vmul.f32 %v3957, %v872
        %v6185 = vmul.f32 %v3961, %v873
        %v6186 = vmul.f32 %v3965, %v874
        %v6187 = vmul.f32 %v3969, %v875
        %v6188 = vmul.f32 %v3973, %v876
        %v6189 = vmul.f32 %v3977, %v877
        %v6190 = vmul.f32 %v3981, %v878
        %v6191 = vmul.f32 %v3985, %v879
        %v6192 = vmul.f32 %v3989, %v880
        %v6193 = vmul.f32 %v3993, %v881
        %v6194 = vmul.f32 %v3997, %v882
        %v6195 = vmul.f32 %v4004, %v883
        %v6196 = vmul.f32 %v4008, %v884
        %v6197 = vmul.f32 %v4012, %v885
        %v6198 = vmul.f32 %v4016, %v886
        %v6199 = vmul.f32 %v4020, %v887
        %v6200 = vmul.f32 %v4024, %v888
        %v6201 = vmul.f32 %v4028, %v889
        %v6202 = vmul.f32 %v4032, %v890
        %v6203 = vmul.f32 %v4036, %v891
        %v6204 = vmul.f32 %v4040, %v892
        %v6205 = vmul.f32 %v4044, %v893
        %v6206 = vmul.f32 %v4048, %v894
        %v6207 = vmul.f32 %v4052, %v895
        %v6208 = vmul.f32 %v4056, %v896
        %v6209 = vmul.f32 %v4060, %v897
        %v6210 = vmul.f32 %v4064, %v898
        %v6211 = vmul.f32 %v4071, %v899
        %v6212 = vmul.f32 %v4075, %v900
        %v6213 = vmul.f32 %v4079, %v901
        %v6214 = vmul.f32 %v4083, %v902
        %v6215 = vmul.f32 %v4087, %v903
        %v6216 = vmul.f32 %v4091, %v904
        %v6217 = vmul.f32 %v4095, %v905
        %v6218 = vmul.f32 %v4099, %v906
        %v6219 = vmul.f32 %v4103, %v907
        %v6220 = vmul.f32 %v4107, %v908
        %v6221 = vmul.f32 %v4111, %v909
        %v6222 = vmul.f32 %v4115, %v910
        %v6223 = vmul.f32 %v4119, %v911
        %v6224 = vmul.f32 %v4123, %v912
        %v6225 = vmul.f32 %v4127, %v913
        %v6226 = vmul.f32 %v4131, %v914
        %v6227 = vmul.f32 %v4138, %v915
        %v6228 = vmul.f32 %v4142, %v916
        %v6229 = vmul.f32 %v4146, %v917
        %v6230 = vmul.f32 %v4150, %v918
        %v6231 = vmul.f32 %v4154, %v919
        %v6232 = vmul.f32 %v4158, %v920
        %v6233 = vmul.f32 %v4162, %v921
        %v6234 = vmul.f32 %v4166, %v922
        %v6235 = vmul.f32 %v4170, %v923
        %v6236 = vmul.f32 %v4174, %v924
        %v6237 = vmul.f32 %v4178, %v925
        %v6238 = vmul.f32 %v4182, %v926
        %v6239 = vmul.f32 %v4186, %v927
        %v6240 = vmul.f32 %v4190, %v928
        %v6241 = vmul.f32 %v4194, %v929
        %v6242 = vmul.f32 %v4198, %v930
        %v6243 = vmul.f32 %v4205, %v931
        %v6244 = vmul.f32 %v4209, %v932
        %v6245 = vmul.f32 %v4213, %v933
        %v6246 = vmul.f32 %v4217, %v934
        %v6247 = vmul.f32 %v4221, %v935
        %v6248 = vmul.f32 %v4225, %v936
        %v6249 = vmul.f32 %v4229, %v937
        %v6250 = vmul.f32 %v4233, %v938
        %v6251 = vmul.f32 %v4237, %v939
        %v6252 = vmul.f32 %v4241, %v940
        %v6253 = vmul.f32 %v4245, %v941
        %v6254 = vmul.f32 %v4249, %v942
        %v6255 = vmul.f32 %v4253, %v943
        %v6256 = vmul.f32 %v4257, %v944
        %v6257 = vmul.f32 %v4261, %v945
        %v6258 = vmul.f32 %v4265, %v946
        %v6259 = vmul.f32 %v4272, %v947
        %v6260 = vmul.f32 %v4276, %v948
        %v6261 = vmul.f32 %v4280, %v949
        %v6262 = vmul.f32 %v4284, %v950
        %v6263 = vmul.f32 %v4288, %v951
        %v6264 = vmul.f32 %v4292, %v952
        %v6265 = vmul.f32 %v4296, %v953
        %v6266 = vmul.f32 %v4300, %v954
        %v6267 = vmul.f32 %v4304, %v955
        %v6268 = vmul.f32 %v4308, %v956
        %v6269 = vmul.f32 %v4312, %v957
        %v6270 = vmul.f32 %v4316, %v958
        %v6271 = vmul.f32 %v4320, %v959
        %v6272 = vmul.f32 %v4324, %v960
        %v6273 = vmul.f32 %v4328, %v961
        %v6274 = vmul.f32 %v4332, %v962
        %v6275 = vmul.f32 %v4339, %v963
        %v6276 = vmul.f32 %v4343, %v964
        %v6277 = vmul.f32 %v4347, %v965
        %v6278 = vmul.f32 %v4351, %v966
        %v6279 = vmul.f32 %v4355, %v967
        %v6280 = vmul.f32 %v4359, %v968
        %v6281 = vmul.f32 %v4363, %v969
        %v6282 = vmul.f32 %v4367, %v970
        %v6283 = vmul.f32 %v4371, %v971
        %v6284 = vmul.f32 %v4375, %v972
        %v6285 = vmul.f32 %v4379, %v973
        %v6286 = vmul.f32 %v4383, %v974
        %v6287 = vmul.f32 %v4387, %v975
        %v6288 = vmul.f32 %v4391, %v976
        %v6289 = vmul.f32 %v4395, %v977
        %v6290 = vmul.f32 %v4399, %v978
        %v6291 = vmul.f32 %v4406, %v979
        %v6292 = vmul.f32 %v4410, %v980
        %v6293 = vmul.f32 %v4414, %v981
        %v6294 = vmul.f32 %v4418, %v982
        %v6295 = vmul.f32 %v4422, %v983
        %v6296 = vmul.f32 %v4426, %v984
        %v6297 = vmul.f32 %v4430, %v985
        %v6298 = vmul.f32 %v4434, %v986
        %v6299 = vmul.f32 %v4438, %v987
        %v6300 = vmul.f32 %v4442, %v988
        %v6301 = vmul.f32 %v4446, %v989
        %v6302 = vmul.f32 %v4450, %v990
        %v6303 = vmul.f32 %v4454, %v991
        %v6304 = vmul.f32 %v4458, %v992
        %v6305 = vmul.f32 %v4462, %v993
        %v6306 = vmul.f32 %v4466, %v994
        %v6307 = vmul.f32 %v4473, %v995
        %v6308 = vmul.f32 %v4477, %v996
        %v6309 = vmul.f32 %v4481, %v997
        %v6310 = vmul.f32 %v4485, %v998
        %v6311 = vmul.f32 %v4489, %v999
        %v6312 = vmul.f32 %v4493, %v1000
        %v6313 = vmul.f32 %v4497, %v1001
        %v6314 = vmul.f32 %v4501, %v1002
        %v6315 = vmul.f32 %v4505, %v1003
        %v6316 = vmul.f32 %v4509, %v1004
        %v6317 = vmul.f32 %v4513, %v1005
        %v6318 = vmul.f32 %v4517, %v1006
        %v6319 = vmul.f32 %v4521, %v1007
        %v6320 = vmul.f32 %v4525, %v1008
        %v6321 = vmul.f32 %v4529, %v1009
        %v6322 = vmul.f32 %v4533, %v1010
        %v6323 = vmul.f32 %v4540, %v1011
        %v6324 = vmul.f32 %v4544, %v1012
        %v6325 = vmul.f32 %v4548, %v1013
        %v6326 = vmul.f32 %v4552, %v1014
        %v6327 = vmul.f32 %v4556, %v1015
        %v6328 = vmul.f32 %v4560, %v1016
        %v6329 = vmul.f32 %v4564, %v1017
        %v6330 = vmul.f32 %v4568, %v1018
        %v6331 = vmul.f32 %v4572, %v1019
        %v6332 = vmul.f32 %v4576, %v1020
        %v6333 = vmul.f32 %v4580, %v1021
        %v6334 = vmul.f32 %v4584, %v1022
        %v6335 = vmul.f32 %v4588, %v1023
        %v6336 = vmul.f32 %v4592, %v1024
        %v6337 = vmul.f32 %v4596, %v1025
        %v6338 = vmul.f32 %v4600, %v1026
        %v6339 = vmul.f32 %v4607, %v1027
        %v6340 = vmul.f32 %v4611, %v1028
        %v6341 = vmul.f32 %v4615, %v1029
        %v6342 = vmul.f32 %v4619, %v1030
        %v6343 = vmul.f32 %v4623, %v1031
        %v6344 = vmul.f32 %v4627, %v1032
        %v6345 = vmul.f32 %v4631, %v1033
        %v6346 = vmul.f32 %v4635, %v1034
        %v6347 = vmul.f32 %v4639, %v1035
        %v6348 = vmul.f32 %v4643, %v1036
        %v6349 = vmul.f32 %v4647, %v1037
        %v6350 = vmul.f32 %v4651, %v1038
        %v6351 = vmul.f32 %v4655, %v1039
        %v6352 = vmul.f32 %v4659, %v1040
        %v6353 = vmul.f32 %v4663, %v1041
        %v6354 = vmul.f32 %v4667, %v1042
        %v6355 = vmul.f32 %v4674, %v1043
        %v6356 = vmul.f32 %v4678, %v1044
        %v6357 = vmul.f32 %v4682, %v1045
        %v6358 = vmul.f32 %v4686, %v1046
        %v6359 = vmul.f32 %v4690, %v1047
        %v6360 = vmul.f32 %v4694, %v1048
        %v6361 = vmul.f32 %v4698, %v1049
        %v6362 = vmul.f32 %v4702, %v1050
        %v6363 = vmul.f32 %v4706, %v1051
        %v6364 = vmul.f32 %v4710, %v1052
        %v6365 = vmul.f32 %v4714, %v1053
        %v6366 = vmul.f32 %v4718, %v1054
        %v6367 = vmul.f32 %v4722, %v1055
        %v6368 = vmul.f32 %v4726, %v1056
        %v6369 = vmul.f32 %v4730, %v1057
        %v6370 = vmul.f32 %v4734, %v1058
        %v6371 = vmul.f32 %v4741, %v1059
        %v6372 = vmul.f32 %v4745, %v1060
        %v6373 = vmul.f32 %v4749, %v1061
        %v6374 = vmul.f32 %v4753, %v1062
        %v6375 = vmul.f32 %v4757, %v1063
        %v6376 = vmul.f32 %v4761, %v1064
        %v6377 = vmul.f32 %v4765, %v1065
        %v6378 = vmul.f32 %v4769, %v1066
        %v6379 = vmul.f32 %v4773, %v1067
        %v6380 = vmul.f32 %v4777, %v1068
        %v6381 = vmul.f32 %v4781, %v1069
        %v6382 = vmul.f32 %v4785, %v1070
        %v6383 = vmul.f32 %v4789, %v1071
        %v6384 = vmul.f32 %v4793, %v1072
        %v6385 = vmul.f32 %v4797, %v1073
        %v6386 = vmul.f32 %v4801, %v1074
        %v6387 = vmul.f32 %v4808, %v1075
        %v6388 = vmul.f32 %v4812, %v1076
        %v6389 = vmul.f32 %v4816, %v1077
        %v6390 = vmul.f32 %v4820, %v1078
        %v6391 = vmul.f32 %v4824, %v1079
        %v6392 = vmul.f32 %v4828, %v1080
        %v6393 = vmul.f32 %v4832, %v1081
        %v6394 = vmul.f32 %v4836, %v1082
        %v6395 = vmul.f32 %v4840, %v1083
        %v6396 = vmul.f32 %v4844, %v1084
        %v6397 = vmul.f32 %v4848, %v1085
        %v6398 = vmul.f32 %v4852, %v1086
        %v6399 = vmul.f32 %v4856, %v1087
        %v6400 = vmul.f32 %v4860, %v1088
        %v6401 = vmul.f32 %v4864, %v1089
        %v6402 = vmul.f32 %v4868, %v1090
        %v6403 = vmul.f32 %v4875, %v1091
        %v6404 = vmul.f32 %v4879, %v1092
        %v6405 = vmul.f32 %v4883, %v1093
        %v6406 = vmul.f32 %v4887, %v1094
        %v6407 = vmul.f32 %v4891, %v1095
        %v6408 = vmul.f32 %v4895, %v1096
        %v6409 = vmul.f32 %v4899, %v1097
        %v6410 = vmul.f32 %v4903, %v1098
        %v6411 = vmul.f32 %v4907, %v1099
        %v6412 = vmul.f32 %v4911, %v1100
        %v6413 = vmul.f32 %v4915, %v1101
        %v6414 = vmul.f32 %v4919, %v1102
        %v6415 = vmul.f32 %v4923, %v1103
        %v6416 = vmul.f32 %v4927, %v1104
        %v6417 = vmul.f32 %v4931, %v1105
        %v6418 = vmul.f32 %v4935, %v1106
        %v6419 = vmul.f32 %v4942, %v1107
        %v6420 = vmul.f32 %v4946, %v1108
        %v6421 = vmul.f32 %v4950, %v1109
        %v6422 = vmul.f32 %v4954, %v1110
        %v6423 = vmul.f32 %v4958, %v1111
        %v6424 = vmul.f32 %v4962, %v1112
        %v6425 = vmul.f32 %v4966, %v1113
        %v6426 = vmul.f32 %v4970, %v1114
        %v6427 = vmul.f32 %v4974, %v1115
        %v6428 = vmul.f32 %v4978, %v1116
        %v6429 = vmul.f32 %v4982, %v1117
        %v6430 = vmul.f32 %v4986, %v1118
        %v6431 = vmul.f32 %v4990, %v1119
        %v6432 = vmul.f32 %v4994, %v1120
        %v6433 = vmul.f32 %v4998, %v1121
        %v6434 = vmul.f32 %v5002, %v1122
        %v6435 = vmul.f32 %v5009, %v1123
        %v6436 = vmul.f32 %v5013, %v1124
        %v6437 = vmul.f32 %v5017, %v1125
        %v6438 = vmul.f32 %v5021, %v1126
        %v6439 = vmul.f32 %v5025, %v1127
        %v6440 = vmul.f32 %v5029, %v1128
        %v6441 = vmul.f32 %v5033, %v1129
        %v6442 = vmul.f32 %v5037, %v1130
        %v6443 = vmul.f32 %v5041, %v1131
        %v6444 = vmul.f32 %v5045, %v1132
        %v6445 = vmul.f32 %v5049, %v1133
        %v6446 = vmul.f32 %v5053, %v1134
        %v6447 = vmul.f32 %v5057, %v1135
        %v6448 = vmul.f32 %v5061, %v1136
        %v6449 = vmul.f32 %v5065, %v1137
        %v6450 = vmul.f32 %v5069, %v1138
        %v6451 = vmul.f32 %v5076, %v1139
        %v6452 = vmul.f32 %v5080, %v1140
        %v6453 = vmul.f32 %v5084, %v1141
        %v6454 = vmul.f32 %v5088, %v1142
        %v6455 = vmul.f32 %v5092, %v1143
        %v6456 = vmul.f32 %v5096, %v1144
        %v6457 = vmul.f32 %v5100, %v1145
        %v6458 = vmul.f32 %v5104, %v1146
        %v6459 = vmul.f32 %v5108, %v1147
        %v6460 = vmul.f32 %v5112, %v1148
        %v6461 = vmul.f32 %v5116, %v1149
        %v6462 = vmul.f32 %v5120, %v1150
        %v6463 = vmul.f32 %v5124, %v1151
        %v6464 = vmul.f32 %v5128, %v1152
        %v6465 = vmul.f32 %v5132, %v1153
        %v6466 = vmul.f32 %v5136, %v1154
        %v6467 = vmul.f32 %v5143, %v1155
        %v6468 = vmul.f32 %v5147, %v1156
        %v6469 = vmul.f32 %v5151, %v1157
        %v6470 = vmul.f32 %v5155, %v1158
        %v6471 = vmul.f32 %v5159, %v1159
        %v6472 = vmul.f32 %v5163, %v1160
        %v6473 = vmul.f32 %v5167, %v1161
        %v6474 = vmul.f32 %v5171, %v1162
        %v6475 = vmul.f32 %v5175, %v1163
        %v6476 = vmul.f32 %v5179, %v1164
        %v6477 = vmul.f32 %v5183, %v1165
        %v6478 = vmul.f32 %v5187, %v1166
        %v6479 = vmul.f32 %v5191, %v1167
        %v6480 = vmul.f32 %v5195, %v1168
        %v6481 = vmul.f32 %v5199, %v1169
        %v6482 = vmul.f32 %v5203, %v1170
        %v6483 = vmul.f32 %v5210, %v1171
        %v6484 = vmul.f32 %v5214, %v1172
        %v6485 = vmul.f32 %v5218, %v1173
        %v6486 = vmul.f32 %v5222, %v1174
        %v6487 = vmul.f32 %v5226, %v1175
        %v6488 = vmul.f32 %v5230, %v1176
        %v6489 = vmul.f32 %v5234, %v1177
        %v6490 = vmul.f32 %v5238, %v1178
        %v6491 = vmul.f32 %v5242, %v1179
        %v6492 = vmul.f32 %v5246, %v1180
        %v6493 = vmul.f32 %v5250, %v1181
        %v6494 = vmul.f32 %v5254, %v1182
        %v6495 = vmul.f32 %v5258, %v1183
        %v6496 = vmul.f32 %v5262, %v1184
        %v6497 = vmul.f32 %v5266, %v1185
        %v6498 = vmul.f32 %v5270, %v1186
        %v6499 = vmul.f32 %v5277, %v1187
        %v6500 = vmul.f32 %v5281, %v1188
        %v6501 = vmul.f32 %v5285, %v1189
        %v6502 = vmul.f32 %v5289, %v1190
        %v6503 = vmul.f32 %v5293, %v1191
        %v6504 = vmul.f32 %v5297, %v1192
        %v6505 = vmul.f32 %v5301, %v1193
        %v6506 = vmul.f32 %v5305, %v1194
        %v6507 = vmul.f32 %v5309, %v1195
        %v6508 = vmul.f32 %v5313, %v1196
        %v6509 = vmul.f32 %v5317, %v1197
        %v6510 = vmul.f32 %v5321, %v1198
        %v6511 = vmul.f32 %v5325, %v1199
        %v6512 = vmul.f32 %v5329, %v1200
        %v6513 = vmul.f32 %v5333, %v1201
        %v6514 = vmul.f32 %v5337, %v1202
        %v6515 = vmul.f32 %v5344, %v1203
        %v6516 = vmul.f32 %v5348, %v1204
        %v6517 = vmul.f32 %v5352, %v1205
        %v6518 = vmul.f32 %v5356, %v1206
        %v6519 = vmul.f32 %v5360, %v1207
        %v6520 = vmul.f32 %v5364, %v1208
        %v6521 = vmul.f32 %v5368, %v1209
        %v6522 = vmul.f32 %v5372, %v1210
        %v6523 = vmul.f32 %v5376, %v1211
        %v6524 = vmul.f32 %v5380, %v1212
        %v6525 = vmul.f32 %v5384, %v1213
        %v6526 = vmul.f32 %v5388, %v1214
        %v6527 = vmul.f32 %v5392, %v1215
        %v6528 = vmul.f32 %v5396, %v1216
        %v6529 = vmul.f32 %v5400, %v1217
        %v6530 = vmul.f32 %v5404, %v1218
        %v6531 = vmul.f32 %v5411, %v1219
        %v6532 = vmul.f32 %v5415, %v1220
        %v6533 = vmul.f32 %v5419, %v1221
        %v6534 = vmul.f32 %v5423, %v1222
        %v6535 = vmul.f32 %v5427, %v1223
        %v6536 = vmul.f32 %v5431, %v1224
        %v6537 = vmul.f32 %v5435, %v1225
        %v6538 = vmul.f32 %v5439, %v1226
        %v6539 = vmul.f32 %v5443, %v1227
        %v6540 = vmul.f32 %v5447, %v1228
        %v6541 = vmul.f32 %v5451, %v1229
        %v6542 = vmul.f32 %v5455, %v1230
        %v6543 = vmul.f32 %v5459, %v1231
        %v6544 = vmul.f32 %v5463, %v1232
        %v6545 = vmul.f32 %v5467, %v1233
        %v6546 = vmul.f32 %v5471, %v1234
        %v6547 = vmul.f32 %v5478, %v1235
        %v6548 = vmul.f32 %v5482, %v1236
        %v6549 = vmul.f32 %v5486, %v1237
        %v6550 = vmul.f32 %v5490, %v1238
        %v6551 = vmul.f32 %v5494, %v1239
        %v6552 = vmul.f32 %v5498, %v1240
        %v6553 = vmul.f32 %v5502, %v1241
        %v6554 = vmul.f32 %v5506, %v1242
        %v6555 = vmul.f32 %v5510, %v1243
        %v6556 = vmul.f32 %v5514, %v1244
        %v6557 = vmul.f32 %v5518, %v1245
        %v6558 = vmul.f32 %v5522, %v1246
        %v6559 = vmul.f32 %v5526, %v1247
        %v6560 = vmul.f32 %v5530, %v1248
        %v6561 = vmul.f32 %v5534, %v1249
        %v6562 = vmul.f32 %v5538, %v1250
        %v6563 = vadd.f32 %v5539, %v5540
        %v6564 = vadd.f32 %v6563, %v5541
        %v6565 = vadd.f32 %v6564, %v5542
        %v6566 = vadd.f32 %v6565, %v5543
        %v6567 = vadd.f32 %v6566, %v5544
        %v6568 = vadd.f32 %v6567, %v5545
        %v6569 = vadd.f32 %v6568, %v5546
        %v6570 = vadd.f32 %v6569, %v5547
        %v6571 = vadd.f32 %v6570, %v5548
        %v6572 = vadd.f32 %v6571, %v5549
        %v6573 = vadd.f32 %v6572, %v5550
        %v6574 = vadd.f32 %v6573, %v5551
        %v6575 = vadd.f32 %v6574, %v5552
        %v6576 = vadd.f32 %v6575, %v5553
        %v6577 = vadd.f32 %v6576, %v5554
        %v6578 = vrot.slane %v6577, 4
        %v6579 = vadd.f32 %v6577, %v6578
        %v6580 = vrot.slane %v6579, 2
        %v6581 = vadd.f32 %v6579, %v6580
        %v6582 = vrot.slane %v6581, 1
        %v6583 = vadd.f32 %v6581, %v6582
        %v6584 = vadd.f32 %v5555, %v5556
        %v6585 = vadd.f32 %v6584, %v5557
        %v6586 = vadd.f32 %v6585, %v5558
        %v6587 = vadd.f32 %v6586, %v5559
        %v6588 = vadd.f32 %v6587, %v5560
        %v6589 = vadd.f32 %v6588, %v5561
        %v6590 = vadd.f32 %v6589, %v5562
        %v6591 = vadd.f32 %v6590, %v5563
        %v6592 = vadd.f32 %v6591, %v5564
        %v6593 = vadd.f32 %v6592, %v5565
        %v6594 = vadd.f32 %v6593, %v5566
        %v6595 = vadd.f32 %v6594, %v5567
        %v6596 = vadd.f32 %v6595, %v5568
        %v6597 = vadd.f32 %v6596, %v5569
        %v6598 = vadd.f32 %v6597, %v5570
        %v6599 = vrot.slane %v6598, 4
        %v6600 = vadd.f32 %v6598, %v6599
        %v6601 = vrot.slane %v6600, 2
        %v6602 = vadd.f32 %v6600, %v6601
        %v6603 = vrot.slane %v6602, 1
        %v6604 = vadd.f32 %v6602, %v6603
        %v6605 = vadd.f32 %v5571, %v5572
        %v6606 = vadd.f32 %v6605, %v5573
        %v6607 = vadd.f32 %v6606, %v5574
        %v6608 = vadd.f32 %v6607, %v5575
        %v6609 = vadd.f32 %v6608, %v5576
        %v6610 = vadd.f32 %v6609, %v5577
        %v6611 = vadd.f32 %v6610, %v5578
        %v6612 = vadd.f32 %v6611, %v5579
        %v6613 = vadd.f32 %v6612, %v5580
        %v6614 = vadd.f32 %v6613, %v5581
        %v6615 = vadd.f32 %v6614, %v5582
        %v6616 = vadd.f32 %v6615, %v5583
        %v6617 = vadd.f32 %v6616, %v5584
        %v6618 = vadd.f32 %v6617, %v5585
        %v6619 = vadd.f32 %v6618, %v5586
        %v6620 = vrot.slane %v6619, 4
        %v6621 = vadd.f32 %v6619, %v6620
        %v6622 = vrot.slane %v6621, 2
        %v6623 = vadd.f32 %v6621, %v6622
        %v6624 = vrot.slane %v6623, 1
        %v6625 = vadd.f32 %v6623, %v6624
        %v6626 = vadd.f32 %v5587, %v5588
        %v6627 = vadd.f32 %v6626, %v5589
        %v6628 = vadd.f32 %v6627, %v5590
        %v6629 = vadd.f32 %v6628, %v5591
        %v6630 = vadd.f32 %v6629, %v5592
        %v6631 = vadd.f32 %v6630, %v5593
        %v6632 = vadd.f32 %v6631, %v5594
        %v6633 = vadd.f32 %v6632, %v5595
        %v6634 = vadd.f32 %v6633, %v5596
        %v6635 = vadd.f32 %v6634, %v5597
        %v6636 = vadd.f32 %v6635, %v5598
        %v6637 = vadd.f32 %v6636, %v5599
        %v6638 = vadd.f32 %v6637, %v5600
        %v6639 = vadd.f32 %v6638, %v5601
        %v6640 = vadd.f32 %v6639, %v5602
        %v6641 = vrot.slane %v6640, 4
        %v6642 = vadd.f32 %v6640, %v6641
        %v6643 = vrot.slane %v6642, 2
        %v6644 = vadd.f32 %v6642, %v6643
        %v6645 = vrot.slane %v6644, 1
        %v6646 = vadd.f32 %v6644, %v6645
        %v6647 = vadd.f32 %v5603, %v5604
        %v6648 = vadd.f32 %v6647, %v5605
        %v6649 = vadd.f32 %v6648, %v5606
        %v6650 = vadd.f32 %v6649, %v5607
        %v6651 = vadd.f32 %v6650, %v5608
        %v6652 = vadd.f32 %v6651, %v5609
        %v6653 = vadd.f32 %v6652, %v5610
        %v6654 = vadd.f32 %v6653, %v5611
        %v6655 = vadd.f32 %v6654, %v5612
        %v6656 = vadd.f32 %v6655, %v5613
        %v6657 = vadd.f32 %v6656, %v5614
        %v6658 = vadd.f32 %v6657, %v5615
        %v6659 = vadd.f32 %v6658, %v5616
        %v6660 = vadd.f32 %v6659, %v5617
        %v6661 = vadd.f32 %v6660, %v5618
        %v6662 = vrot.slane %v6661, 4
        %v6663 = vadd.f32 %v6661, %v6662
        %v6664 = vrot.slane %v6663, 2
        %v6665 = vadd.f32 %v6663, %v6664
        %v6666 = vrot.slane %v6665, 1
        %v6667 = vadd.f32 %v6665, %v6666
        %v6668 = vadd.f32 %v5619, %v5620
        %v6669 = vadd.f32 %v6668, %v5621
        %v6670 = vadd.f32 %v6669, %v5622
        %v6671 = vadd.f32 %v6670, %v5623
        %v6672 = vadd.f32 %v6671, %v5624
        %v6673 = vadd.f32 %v6672, %v5625
        %v6674 = vadd.f32 %v6673, %v5626
        %v6675 = vadd.f32 %v6674, %v5627
        %v6676 = vadd.f32 %v6675, %v5628
        %v6677 = vadd.f32 %v6676, %v5629
        %v6678 = vadd.f32 %v6677, %v5630
        %v6679 = vadd.f32 %v6678, %v5631
        %v6680 = vadd.f32 %v6679, %v5632
        %v6681 = vadd.f32 %v6680, %v5633
        %v6682 = vadd.f32 %v6681, %v5634
        %v6683 = vrot.slane %v6682, 4
        %v6684 = vadd.f32 %v6682, %v6683
        %v6685 = vrot.slane %v6684, 2
        %v6686 = vadd.f32 %v6684, %v6685
        %v6687 = vrot.slane %v6686, 1
        %v6688 = vadd.f32 %v6686, %v6687
        %v6689 = vadd.f32 %v5635, %v5636
        %v6690 = vadd.f32 %v6689, %v5637
        %v6691 = vadd.f32 %v6690, %v5638
        %v6692 = vadd.f32 %v6691, %v5639
        %v6693 = vadd.f32 %v6692, %v5640
        %v6694 = vadd.f32 %v6693, %v5641
        %v6695 = vadd.f32 %v6694, %v5642
        %v6696 = vadd.f32 %v6695, %v5643
        %v6697 = vadd.f32 %v6696, %v5644
        %v6698 = vadd.f32 %v6697, %v5645
        %v6699 = vadd.f32 %v6698, %v5646
        %v6700 = vadd.f32 %v6699, %v5647
        %v6701 = vadd.f32 %v6700, %v5648
        %v6702 = vadd.f32 %v6701, %v5649
        %v6703 = vadd.f32 %v6702, %v5650
        %v6704 = vrot.slane %v6703, 4
        %v6705 = vadd.f32 %v6703, %v6704
        %v6706 = vrot.slane %v6705, 2
        %v6707 = vadd.f32 %v6705, %v6706
        %v6708 = vrot.slane %v6707, 1
        %v6709 = vadd.f32 %v6707, %v6708
        %v6710 = vadd.f32 %v5651, %v5652
        %v6711 = vadd.f32 %v6710, %v5653
        %v6712 = vadd.f32 %v6711, %v5654
        %v6713 = vadd.f32 %v6712, %v5655
        %v6714 = vadd.f32 %v6713, %v5656
        %v6715 = vadd.f32 %v6714, %v5657
        %v6716 = vadd.f32 %v6715, %v5658
        %v6717 = vadd.f32 %v6716, %v5659
        %v6718 = vadd.f32 %v6717, %v5660
        %v6719 = vadd.f32 %v6718, %v5661
        %v6720 = vadd.f32 %v6719, %v5662
        %v6721 = vadd.f32 %v6720, %v5663
        %v6722 = vadd.f32 %v6721, %v5664
        %v6723 = vadd.f32 %v6722, %v5665
        %v6724 = vadd.f32 %v6723, %v5666
        %v6725 = vrot.slane %v6724, 4
        %v6726 = vadd.f32 %v6724, %v6725
        %v6727 = vrot.slane %v6726, 2
        %v6728 = vadd.f32 %v6726, %v6727
        %v6729 = vrot.slane %v6728, 1
        %v6730 = vadd.f32 %v6728, %v6729
        %v6731 = vadd.f32 %v5667, %v5668
        %v6732 = vadd.f32 %v6731, %v5669
        %v6733 = vadd.f32 %v6732, %v5670
        %v6734 = vadd.f32 %v6733, %v5671
        %v6735 = vadd.f32 %v6734, %v5672
        %v6736 = vadd.f32 %v6735, %v5673
        %v6737 = vadd.f32 %v6736, %v5674
        %v6738 = vadd.f32 %v6737, %v5675
        %v6739 = vadd.f32 %v6738, %v5676
        %v6740 = vadd.f32 %v6739, %v5677
        %v6741 = vadd.f32 %v6740, %v5678
        %v6742 = vadd.f32 %v6741, %v5679
        %v6743 = vadd.f32 %v6742, %v5680
        %v6744 = vadd.f32 %v6743, %v5681
        %v6745 = vadd.f32 %v6744, %v5682
        %v6746 = vrot.slane %v6745, 4
        %v6747 = vadd.f32 %v6745, %v6746
        %v6748 = vrot.slane %v6747, 2
        %v6749 = vadd.f32 %v6747, %v6748
        %v6750 = vrot.slane %v6749, 1
        %v6751 = vadd.f32 %v6749, %v6750
        %v6752 = vadd.f32 %v5683, %v5684
        %v6753 = vadd.f32 %v6752, %v5685
        %v6754 = vadd.f32 %v6753, %v5686
        %v6755 = vadd.f32 %v6754, %v5687
        %v6756 = vadd.f32 %v6755, %v5688
        %v6757 = vadd.f32 %v6756, %v5689
        %v6758 = vadd.f32 %v6757, %v5690
        %v6759 = vadd.f32 %v6758, %v5691
        %v6760 = vadd.f32 %v6759, %v5692
        %v6761 = vadd.f32 %v6760, %v5693
        %v6762 = vadd.f32 %v6761, %v5694
        %v6763 = vadd.f32 %v6762, %v5695
        %v6764 = vadd.f32 %v6763, %v5696
        %v6765 = vadd.f32 %v6764, %v5697
        %v6766 = vadd.f32 %v6765, %v5698
        %v6767 = vrot.slane %v6766, 4
        %v6768 = vadd.f32 %v6766, %v6767
        %v6769 = vrot.slane %v6768, 2
        %v6770 = vadd.f32 %v6768, %v6769
        %v6771 = vrot.slane %v6770, 1
        %v6772 = vadd.f32 %v6770, %v6771
        %v6773 = vadd.f32 %v5699, %v5700
        %v6774 = vadd.f32 %v6773, %v5701
        %v6775 = vadd.f32 %v6774, %v5702
        %v6776 = vadd.f32 %v6775, %v5703
        %v6777 = vadd.f32 %v6776, %v5704
        %v6778 = vadd.f32 %v6777, %v5705
        %v6779 = vadd.f32 %v6778, %v5706
        %v6780 = vadd.f32 %v6779, %v5707
        %v6781 = vadd.f32 %v6780, %v5708
        %v6782 = vadd.f32 %v6781, %v5709
        %v6783 = vadd.f32 %v6782, %v5710
        %v6784 = vadd.f32 %v6783, %v5711
        %v6785 = vadd.f32 %v6784, %v5712
        %v6786 = vadd.f32 %v6785, %v5713
        %v6787 = vadd.f32 %v6786, %v5714
        %v6788 = vrot.slane %v6787, 4
        %v6789 = vadd.f32 %v6787, %v6788
        %v6790 = vrot.slane %v6789, 2
        %v6791 = vadd.f32 %v6789, %v6790
        %v6792 = vrot.slane %v6791, 1
        %v6793 = vadd.f32 %v6791, %v6792
        %v6794 = vadd.f32 %v5715, %v5716
        %v6795 = vadd.f32 %v6794, %v5717
        %v6796 = vadd.f32 %v6795, %v5718
        %v6797 = vadd.f32 %v6796, %v5719
        %v6798 = vadd.f32 %v6797, %v5720
        %v6799 = vadd.f32 %v6798, %v5721
        %v6800 = vadd.f32 %v6799, %v5722
        %v6801 = vadd.f32 %v6800, %v5723
        %v6802 = vadd.f32 %v6801, %v5724
        %v6803 = vadd.f32 %v6802, %v5725
        %v6804 = vadd.f32 %v6803, %v5726
        %v6805 = vadd.f32 %v6804, %v5727
        %v6806 = vadd.f32 %v6805, %v5728
        %v6807 = vadd.f32 %v6806, %v5729
        %v6808 = vadd.f32 %v6807, %v5730
        %v6809 = vrot.slane %v6808, 4
        %v6810 = vadd.f32 %v6808, %v6809
        %v6811 = vrot.slane %v6810, 2
        %v6812 = vadd.f32 %v6810, %v6811
        %v6813 = vrot.slane %v6812, 1
        %v6814 = vadd.f32 %v6812, %v6813
        %v6815 = vadd.f32 %v5731, %v5732
        %v6816 = vadd.f32 %v6815, %v5733
        %v6817 = vadd.f32 %v6816, %v5734
        %v6818 = vadd.f32 %v6817, %v5735
        %v6819 = vadd.f32 %v6818, %v5736
        %v6820 = vadd.f32 %v6819, %v5737
        %v6821 = vadd.f32 %v6820, %v5738
        %v6822 = vadd.f32 %v6821, %v5739
        %v6823 = vadd.f32 %v6822, %v5740
        %v6824 = vadd.f32 %v6823, %v5741
        %v6825 = vadd.f32 %v6824, %v5742
        %v6826 = vadd.f32 %v6825, %v5743
        %v6827 = vadd.f32 %v6826, %v5744
        %v6828 = vadd.f32 %v6827, %v5745
        %v6829 = vadd.f32 %v6828, %v5746
        %v6830 = vrot.slane %v6829, 4
        %v6831 = vadd.f32 %v6829, %v6830
        %v6832 = vrot.slane %v6831, 2
        %v6833 = vadd.f32 %v6831, %v6832
        %v6834 = vrot.slane %v6833, 1
        %v6835 = vadd.f32 %v6833, %v6834
        %v6836 = vadd.f32 %v5747, %v5748
        %v6837 = vadd.f32 %v6836, %v5749
        %v6838 = vadd.f32 %v6837, %v5750
        %v6839 = vadd.f32 %v6838, %v5751
        %v6840 = vadd.f32 %v6839, %v5752
        %v6841 = vadd.f32 %v6840, %v5753
        %v6842 = vadd.f32 %v6841, %v5754
        %v6843 = vadd.f32 %v6842, %v5755
        %v6844 = vadd.f32 %v6843, %v5756
        %v6845 = vadd.f32 %v6844, %v5757
        %v6846 = vadd.f32 %v6845, %v5758
        %v6847 = vadd.f32 %v6846, %v5759
        %v6848 = vadd.f32 %v6847, %v5760
        %v6849 = vadd.f32 %v6848, %v5761
        %v6850 = vadd.f32 %v6849, %v5762
        %v6851 = vrot.slane %v6850, 4
        %v6852 = vadd.f32 %v6850, %v6851
        %v6853 = vrot.slane %v6852, 2
        %v6854 = vadd.f32 %v6852, %v6853
        %v6855 = vrot.slane %v6854, 1
        %v6856 = vadd.f32 %v6854, %v6855
        %v6857 = vadd.f32 %v5763, %v5764
        %v6858 = vadd.f32 %v6857, %v5765
        %v6859 = vadd.f32 %v6858, %v5766
        %v6860 = vadd.f32 %v6859, %v5767
        %v6861 = vadd.f32 %v6860, %v5768
        %v6862 = vadd.f32 %v6861, %v5769
        %v6863 = vadd.f32 %v6862, %v5770
        %v6864 = vadd.f32 %v6863, %v5771
        %v6865 = vadd.f32 %v6864, %v5772
        %v6866 = vadd.f32 %v6865, %v5773
        %v6867 = vadd.f32 %v6866, %v5774
        %v6868 = vadd.f32 %v6867, %v5775
        %v6869 = vadd.f32 %v6868, %v5776
        %v6870 = vadd.f32 %v6869, %v5777
        %v6871 = vadd.f32 %v6870, %v5778
        %v6872 = vrot.slane %v6871, 4
        %v6873 = vadd.f32 %v6871, %v6872
        %v6874 = vrot.slane %v6873, 2
        %v6875 = vadd.f32 %v6873, %v6874
        %v6876 = vrot.slane %v6875, 1
        %v6877 = vadd.f32 %v6875, %v6876
        %v6878 = vadd.f32 %v5779, %v5780
        %v6879 = vadd.f32 %v6878, %v5781
        %v6880 = vadd.f32 %v6879, %v5782
        %v6881 = vadd.f32 %v6880, %v5783
        %v6882 = vadd.f32 %v6881, %v5784
        %v6883 = vadd.f32 %v6882, %v5785
        %v6884 = vadd.f32 %v6883, %v5786
        %v6885 = vadd.f32 %v6884, %v5787
        %v6886 = vadd.f32 %v6885, %v5788
        %v6887 = vadd.f32 %v6886, %v5789
        %v6888 = vadd.f32 %v6887, %v5790
        %v6889 = vadd.f32 %v6888, %v5791
        %v6890 = vadd.f32 %v6889, %v5792
        %v6891 = vadd.f32 %v6890, %v5793
        %v6892 = vadd.f32 %v6891, %v5794
        %v6893 = vrot.slane %v6892, 4
        %v6894 = vadd.f32 %v6892, %v6893
        %v6895 = vrot.slane %v6894, 2
        %v6896 = vadd.f32 %v6894, %v6895
        %v6897 = vrot.slane %v6896, 1
        %v6898 = vadd.f32 %v6896, %v6897
        %v6899 = vadd.f32 %v5795, %v5796
        %v6900 = vadd.f32 %v6899, %v5797
        %v6901 = vadd.f32 %v6900, %v5798
        %v6902 = vadd.f32 %v6901, %v5799
        %v6903 = vadd.f32 %v6902, %v5800
        %v6904 = vadd.f32 %v6903, %v5801
        %v6905 = vadd.f32 %v6904, %v5802
        %v6906 = vadd.f32 %v6905, %v5803
        %v6907 = vadd.f32 %v6906, %v5804
        %v6908 = vadd.f32 %v6907, %v5805
        %v6909 = vadd.f32 %v6908, %v5806
        %v6910 = vadd.f32 %v6909, %v5807
        %v6911 = vadd.f32 %v6910, %v5808
        %v6912 = vadd.f32 %v6911, %v5809
        %v6913 = vadd.f32 %v6912, %v5810
        %v6914 = vrot.slane %v6913, 4
        %v6915 = vadd.f32 %v6913, %v6914
        %v6916 = vrot.slane %v6915, 2
        %v6917 = vadd.f32 %v6915, %v6916
        %v6918 = vrot.slane %v6917, 1
        %v6919 = vadd.f32 %v6917, %v6918
        %v6920 = vadd.f32 %v5811, %v5812
        %v6921 = vadd.f32 %v6920, %v5813
        %v6922 = vadd.f32 %v6921, %v5814
        %v6923 = vadd.f32 %v6922, %v5815
        %v6924 = vadd.f32 %v6923, %v5816
        %v6925 = vadd.f32 %v6924, %v5817
        %v6926 = vadd.f32 %v6925, %v5818
        %v6927 = vadd.f32 %v6926, %v5819
        %v6928 = vadd.f32 %v6927, %v5820
        %v6929 = vadd.f32 %v6928, %v5821
        %v6930 = vadd.f32 %v6929, %v5822
        %v6931 = vadd.f32 %v6930, %v5823
        %v6932 = vadd.f32 %v6931, %v5824
        %v6933 = vadd.f32 %v6932, %v5825
        %v6934 = vadd.f32 %v6933, %v5826
        %v6935 = vrot.slane %v6934, 4
        %v6936 = vadd.f32 %v6934, %v6935
        %v6937 = vrot.slane %v6936, 2
        %v6938 = vadd.f32 %v6936, %v6937
        %v6939 = vrot.slane %v6938, 1
        %v6940 = vadd.f32 %v6938, %v6939
        %v6941 = vadd.f32 %v5827, %v5828
        %v6942 = vadd.f32 %v6941, %v5829
        %v6943 = vadd.f32 %v6942, %v5830
        %v6944 = vadd.f32 %v6943, %v5831
        %v6945 = vadd.f32 %v6944, %v5832
        %v6946 = vadd.f32 %v6945, %v5833
        %v6947 = vadd.f32 %v6946, %v5834
        %v6948 = vadd.f32 %v6947, %v5835
        %v6949 = vadd.f32 %v6948, %v5836
        %v6950 = vadd.f32 %v6949, %v5837
        %v6951 = vadd.f32 %v6950, %v5838
        %v6952 = vadd.f32 %v6951, %v5839
        %v6953 = vadd.f32 %v6952, %v5840
        %v6954 = vadd.f32 %v6953, %v5841
        %v6955 = vadd.f32 %v6954, %v5842
        %v6956 = vrot.slane %v6955, 4
        %v6957 = vadd.f32 %v6955, %v6956
        %v6958 = vrot.slane %v6957, 2
        %v6959 = vadd.f32 %v6957, %v6958
        %v6960 = vrot.slane %v6959, 1
        %v6961 = vadd.f32 %v6959, %v6960
        %v6962 = vadd.f32 %v5843, %v5844
        %v6963 = vadd.f32 %v6962, %v5845
        %v6964 = vadd.f32 %v6963, %v5846
        %v6965 = vadd.f32 %v6964, %v5847
        %v6966 = vadd.f32 %v6965, %v5848
        %v6967 = vadd.f32 %v6966, %v5849
        %v6968 = vadd.f32 %v6967, %v5850
        %v6969 = vadd.f32 %v6968, %v5851
        %v6970 = vadd.f32 %v6969, %v5852
        %v6971 = vadd.f32 %v6970, %v5853
        %v6972 = vadd.f32 %v6971, %v5854
        %v6973 = vadd.f32 %v6972, %v5855
        %v6974 = vadd.f32 %v6973, %v5856
        %v6975 = vadd.f32 %v6974, %v5857
        %v6976 = vadd.f32 %v6975, %v5858
        %v6977 = vrot.slane %v6976, 4
        %v6978 = vadd.f32 %v6976, %v6977
        %v6979 = vrot.slane %v6978, 2
        %v6980 = vadd.f32 %v6978, %v6979
        %v6981 = vrot.slane %v6980, 1
        %v6982 = vadd.f32 %v6980, %v6981
        %v6983 = vadd.f32 %v5859, %v5860
        %v6984 = vadd.f32 %v6983, %v5861
        %v6985 = vadd.f32 %v6984, %v5862
        %v6986 = vadd.f32 %v6985, %v5863
        %v6987 = vadd.f32 %v6986, %v5864
        %v6988 = vadd.f32 %v6987, %v5865
        %v6989 = vadd.f32 %v6988, %v5866
        %v6990 = vadd.f32 %v6989, %v5867
        %v6991 = vadd.f32 %v6990, %v5868
        %v6992 = vadd.f32 %v6991, %v5869
        %v6993 = vadd.f32 %v6992, %v5870
        %v6994 = vadd.f32 %v6993, %v5871
        %v6995 = vadd.f32 %v6994, %v5872
        %v6996 = vadd.f32 %v6995, %v5873
        %v6997 = vadd.f32 %v6996, %v5874
        %v6998 = vrot.slane %v6997, 4
        %v6999 = vadd.f32 %v6997, %v6998
        %v7000 = vrot.slane %v6999, 2
        %v7001 = vadd.f32 %v6999, %v7000
        %v7002 = vrot.slane %v7001, 1
        %v7003 = vadd.f32 %v7001, %v7002
        %v7004 = vadd.f32 %v5875, %v5876
        %v7005 = vadd.f32 %v7004, %v5877
        %v7006 = vadd.f32 %v7005, %v5878
        %v7007 = vadd.f32 %v7006, %v5879
        %v7008 = vadd.f32 %v7007, %v5880
        %v7009 = vadd.f32 %v7008, %v5881
        %v7010 = vadd.f32 %v7009, %v5882
        %v7011 = vadd.f32 %v7010, %v5883
        %v7012 = vadd.f32 %v7011, %v5884
        %v7013 = vadd.f32 %v7012, %v5885
        %v7014 = vadd.f32 %v7013, %v5886
        %v7015 = vadd.f32 %v7014, %v5887
        %v7016 = vadd.f32 %v7015, %v5888
        %v7017 = vadd.f32 %v7016, %v5889
        %v7018 = vadd.f32 %v7017, %v5890
        %v7019 = vrot.slane %v7018, 4
        %v7020 = vadd.f32 %v7018, %v7019
        %v7021 = vrot.slane %v7020, 2
        %v7022 = vadd.f32 %v7020, %v7021
        %v7023 = vrot.slane %v7022, 1
        %v7024 = vadd.f32 %v7022, %v7023
        %v7025 = vadd.f32 %v5891, %v5892
        %v7026 = vadd.f32 %v7025, %v5893
        %v7027 = vadd.f32 %v7026, %v5894
        %v7028 = vadd.f32 %v7027, %v5895
        %v7029 = vadd.f32 %v7028, %v5896
        %v7030 = vadd.f32 %v7029, %v5897
        %v7031 = vadd.f32 %v7030, %v5898
        %v7032 = vadd.f32 %v7031, %v5899
        %v7033 = vadd.f32 %v7032, %v5900
        %v7034 = vadd.f32 %v7033, %v5901
        %v7035 = vadd.f32 %v7034, %v5902
        %v7036 = vadd.f32 %v7035, %v5903
        %v7037 = vadd.f32 %v7036, %v5904
        %v7038 = vadd.f32 %v7037, %v5905
        %v7039 = vadd.f32 %v7038, %v5906
        %v7040 = vrot.slane %v7039, 4
        %v7041 = vadd.f32 %v7039, %v7040
        %v7042 = vrot.slane %v7041, 2
        %v7043 = vadd.f32 %v7041, %v7042
        %v7044 = vrot.slane %v7043, 1
        %v7045 = vadd.f32 %v7043, %v7044
        %v7046 = vadd.f32 %v5907, %v5908
        %v7047 = vadd.f32 %v7046, %v5909
        %v7048 = vadd.f32 %v7047, %v5910
        %v7049 = vadd.f32 %v7048, %v5911
        %v7050 = vadd.f32 %v7049, %v5912
        %v7051 = vadd.f32 %v7050, %v5913
        %v7052 = vadd.f32 %v7051, %v5914
        %v7053 = vadd.f32 %v7052, %v5915
        %v7054 = vadd.f32 %v7053, %v5916
        %v7055 = vadd.f32 %v7054, %v5917
        %v7056 = vadd.f32 %v7055, %v5918
        %v7057 = vadd.f32 %v7056, %v5919
        %v7058 = vadd.f32 %v7057, %v5920
        %v7059 = vadd.f32 %v7058, %v5921
        %v7060 = vadd.f32 %v7059, %v5922
        %v7061 = vrot.slane %v7060, 4
        %v7062 = vadd.f32 %v7060, %v7061
        %v7063 = vrot.slane %v7062, 2
        %v7064 = vadd.f32 %v7062, %v7063
        %v7065 = vrot.slane %v7064, 1
        %v7066 = vadd.f32 %v7064, %v7065
        %v7067 = vadd.f32 %v5923, %v5924
        %v7068 = vadd.f32 %v7067, %v5925
        %v7069 = vadd.f32 %v7068, %v5926
        %v7070 = vadd.f32 %v7069, %v5927
        %v7071 = vadd.f32 %v7070, %v5928
        %v7072 = vadd.f32 %v7071, %v5929
        %v7073 = vadd.f32 %v7072, %v5930
        %v7074 = vadd.f32 %v7073, %v5931
        %v7075 = vadd.f32 %v7074, %v5932
        %v7076 = vadd.f32 %v7075, %v5933
        %v7077 = vadd.f32 %v7076, %v5934
        %v7078 = vadd.f32 %v7077, %v5935
        %v7079 = vadd.f32 %v7078, %v5936
        %v7080 = vadd.f32 %v7079, %v5937
        %v7081 = vadd.f32 %v7080, %v5938
        %v7082 = vrot.slane %v7081, 4
        %v7083 = vadd.f32 %v7081, %v7082
        %v7084 = vrot.slane %v7083, 2
        %v7085 = vadd.f32 %v7083, %v7084
        %v7086 = vrot.slane %v7085, 1
        %v7087 = vadd.f32 %v7085, %v7086
        %v7088 = vadd.f32 %v5939, %v5940
        %v7089 = vadd.f32 %v7088, %v5941
        %v7090 = vadd.f32 %v7089, %v5942
        %v7091 = vadd.f32 %v7090, %v5943
        %v7092 = vadd.f32 %v7091, %v5944
        %v7093 = vadd.f32 %v7092, %v5945
        %v7094 = vadd.f32 %v7093, %v5946
        %v7095 = vadd.f32 %v7094, %v5947
        %v7096 = vadd.f32 %v7095, %v5948
        %v7097 = vadd.f32 %v7096, %v5949
        %v7098 = vadd.f32 %v7097, %v5950
        %v7099 = vadd.f32 %v7098, %v5951
        %v7100 = vadd.f32 %v7099, %v5952
        %v7101 = vadd.f32 %v7100, %v5953
        %v7102 = vadd.f32 %v7101, %v5954
        %v7103 = vrot.slane %v7102, 4
        %v7104 = vadd.f32 %v7102, %v7103
        %v7105 = vrot.slane %v7104, 2
        %v7106 = vadd.f32 %v7104, %v7105
        %v7107 = vrot.slane %v7106, 1
        %v7108 = vadd.f32 %v7106, %v7107
        %v7109 = vadd.f32 %v5955, %v5956
        %v7110 = vadd.f32 %v7109, %v5957
        %v7111 = vadd.f32 %v7110, %v5958
        %v7112 = vadd.f32 %v7111, %v5959
        %v7113 = vadd.f32 %v7112, %v5960
        %v7114 = vadd.f32 %v7113, %v5961
        %v7115 = vadd.f32 %v7114, %v5962
        %v7116 = vadd.f32 %v7115, %v5963
        %v7117 = vadd.f32 %v7116, %v5964
        %v7118 = vadd.f32 %v7117, %v5965
        %v7119 = vadd.f32 %v7118, %v5966
        %v7120 = vadd.f32 %v7119, %v5967
        %v7121 = vadd.f32 %v7120, %v5968
        %v7122 = vadd.f32 %v7121, %v5969
        %v7123 = vadd.f32 %v7122, %v5970
        %v7124 = vrot.slane %v7123, 4
        %v7125 = vadd.f32 %v7123, %v7124
        %v7126 = vrot.slane %v7125, 2
        %v7127 = vadd.f32 %v7125, %v7126
        %v7128 = vrot.slane %v7127, 1
        %v7129 = vadd.f32 %v7127, %v7128
        %v7130 = vadd.f32 %v5971, %v5972
        %v7131 = vadd.f32 %v7130, %v5973
        %v7132 = vadd.f32 %v7131, %v5974
        %v7133 = vadd.f32 %v7132, %v5975
        %v7134 = vadd.f32 %v7133, %v5976
        %v7135 = vadd.f32 %v7134, %v5977
        %v7136 = vadd.f32 %v7135, %v5978
        %v7137 = vadd.f32 %v7136, %v5979
        %v7138 = vadd.f32 %v7137, %v5980
        %v7139 = vadd.f32 %v7138, %v5981
        %v7140 = vadd.f32 %v7139, %v5982
        %v7141 = vadd.f32 %v7140, %v5983
        %v7142 = vadd.f32 %v7141, %v5984
        %v7143 = vadd.f32 %v7142, %v5985
        %v7144 = vadd.f32 %v7143, %v5986
        %v7145 = vrot.slane %v7144, 4
        %v7146 = vadd.f32 %v7144, %v7145
        %v7147 = vrot.slane %v7146, 2
        %v7148 = vadd.f32 %v7146, %v7147
        %v7149 = vrot.slane %v7148, 1
        %v7150 = vadd.f32 %v7148, %v7149
        %v7151 = vadd.f32 %v5987, %v5988
        %v7152 = vadd.f32 %v7151, %v5989
        %v7153 = vadd.f32 %v7152, %v5990
        %v7154 = vadd.f32 %v7153, %v5991
        %v7155 = vadd.f32 %v7154, %v5992
        %v7156 = vadd.f32 %v7155, %v5993
        %v7157 = vadd.f32 %v7156, %v5994
        %v7158 = vadd.f32 %v7157, %v5995
        %v7159 = vadd.f32 %v7158, %v5996
        %v7160 = vadd.f32 %v7159, %v5997
        %v7161 = vadd.f32 %v7160, %v5998
        %v7162 = vadd.f32 %v7161, %v5999
        %v7163 = vadd.f32 %v7162, %v6000
        %v7164 = vadd.f32 %v7163, %v6001
        %v7165 = vadd.f32 %v7164, %v6002
        %v7166 = vrot.slane %v7165, 4
        %v7167 = vadd.f32 %v7165, %v7166
        %v7168 = vrot.slane %v7167, 2
        %v7169 = vadd.f32 %v7167, %v7168
        %v7170 = vrot.slane %v7169, 1
        %v7171 = vadd.f32 %v7169, %v7170
        %v7172 = vadd.f32 %v6003, %v6004
        %v7173 = vadd.f32 %v7172, %v6005
        %v7174 = vadd.f32 %v7173, %v6006
        %v7175 = vadd.f32 %v7174, %v6007
        %v7176 = vadd.f32 %v7175, %v6008
        %v7177 = vadd.f32 %v7176, %v6009
        %v7178 = vadd.f32 %v7177, %v6010
        %v7179 = vadd.f32 %v7178, %v6011
        %v7180 = vadd.f32 %v7179, %v6012
        %v7181 = vadd.f32 %v7180, %v6013
        %v7182 = vadd.f32 %v7181, %v6014
        %v7183 = vadd.f32 %v7182, %v6015
        %v7184 = vadd.f32 %v7183, %v6016
        %v7185 = vadd.f32 %v7184, %v6017
        %v7186 = vadd.f32 %v7185, %v6018
        %v7187 = vrot.slane %v7186, 4
        %v7188 = vadd.f32 %v7186, %v7187
        %v7189 = vrot.slane %v7188, 2
        %v7190 = vadd.f32 %v7188, %v7189
        %v7191 = vrot.slane %v7190, 1
        %v7192 = vadd.f32 %v7190, %v7191
        %v7193 = vadd.f32 %v6019, %v6020
        %v7194 = vadd.f32 %v7193, %v6021
        %v7195 = vadd.f32 %v7194, %v6022
        %v7196 = vadd.f32 %v7195, %v6023
        %v7197 = vadd.f32 %v7196, %v6024
        %v7198 = vadd.f32 %v7197, %v6025
        %v7199 = vadd.f32 %v7198, %v6026
        %v7200 = vadd.f32 %v7199, %v6027
        %v7201 = vadd.f32 %v7200, %v6028
        %v7202 = vadd.f32 %v7201, %v6029
        %v7203 = vadd.f32 %v7202, %v6030
        %v7204 = vadd.f32 %v7203, %v6031
        %v7205 = vadd.f32 %v7204, %v6032
        %v7206 = vadd.f32 %v7205, %v6033
        %v7207 = vadd.f32 %v7206, %v6034
        %v7208 = vrot.slane %v7207, 4
        %v7209 = vadd.f32 %v7207, %v7208
        %v7210 = vrot.slane %v7209, 2
        %v7211 = vadd.f32 %v7209, %v7210
        %v7212 = vrot.slane %v7211, 1
        %v7213 = vadd.f32 %v7211, %v7212
        %v7214 = vadd.f32 %v6035, %v6036
        %v7215 = vadd.f32 %v7214, %v6037
        %v7216 = vadd.f32 %v7215, %v6038
        %v7217 = vadd.f32 %v7216, %v6039
        %v7218 = vadd.f32 %v7217, %v6040
        %v7219 = vadd.f32 %v7218, %v6041
        %v7220 = vadd.f32 %v7219, %v6042
        %v7221 = vadd.f32 %v7220, %v6043
        %v7222 = vadd.f32 %v7221, %v6044
        %v7223 = vadd.f32 %v7222, %v6045
        %v7224 = vadd.f32 %v7223, %v6046
        %v7225 = vadd.f32 %v7224, %v6047
        %v7226 = vadd.f32 %v7225, %v6048
        %v7227 = vadd.f32 %v7226, %v6049
        %v7228 = vadd.f32 %v7227, %v6050
        %v7229 = vrot.slane %v7228, 4
        %v7230 = vadd.f32 %v7228, %v7229
        %v7231 = vrot.slane %v7230, 2
        %v7232 = vadd.f32 %v7230, %v7231
        %v7233 = vrot.slane %v7232, 1
        %v7234 = vadd.f32 %v7232, %v7233
        %v7235 = vadd.f32 %v6051, %v6052
        %v7236 = vadd.f32 %v7235, %v6053
        %v7237 = vadd.f32 %v7236, %v6054
        %v7238 = vadd.f32 %v7237, %v6055
        %v7239 = vadd.f32 %v7238, %v6056
        %v7240 = vadd.f32 %v7239, %v6057
        %v7241 = vadd.f32 %v7240, %v6058
        %v7242 = vadd.f32 %v7241, %v6059
        %v7243 = vadd.f32 %v7242, %v6060
        %v7244 = vadd.f32 %v7243, %v6061
        %v7245 = vadd.f32 %v7244, %v6062
        %v7246 = vadd.f32 %v7245, %v6063
        %v7247 = vadd.f32 %v7246, %v6064
        %v7248 = vadd.f32 %v7247, %v6065
        %v7249 = vadd.f32 %v7248, %v6066
        %v7250 = vrot.slane %v7249, 4
        %v7251 = vadd.f32 %v7249, %v7250
        %v7252 = vrot.slane %v7251, 2
        %v7253 = vadd.f32 %v7251, %v7252
        %v7254 = vrot.slane %v7253, 1
        %v7255 = vadd.f32 %v7253, %v7254
        %v7256 = vadd.f32 %v6067, %v6068
        %v7257 = vadd.f32 %v7256, %v6069
        %v7258 = vadd.f32 %v7257, %v6070
        %v7259 = vadd.f32 %v7258, %v6071
        %v7260 = vadd.f32 %v7259, %v6072
        %v7261 = vadd.f32 %v7260, %v6073
        %v7262 = vadd.f32 %v7261, %v6074
        %v7263 = vadd.f32 %v7262, %v6075
        %v7264 = vadd.f32 %v7263, %v6076
        %v7265 = vadd.f32 %v7264, %v6077
        %v7266 = vadd.f32 %v7265, %v6078
        %v7267 = vadd.f32 %v7266, %v6079
        %v7268 = vadd.f32 %v7267, %v6080
        %v7269 = vadd.f32 %v7268, %v6081
        %v7270 = vadd.f32 %v7269, %v6082
        %v7271 = vrot.slane %v7270, 4
        %v7272 = vadd.f32 %v7270, %v7271
        %v7273 = vrot.slane %v7272, 2
        %v7274 = vadd.f32 %v7272, %v7273
        %v7275 = vrot.slane %v7274, 1
        %v7276 = vadd.f32 %v7274, %v7275
        %v7277 = vadd.f32 %v6083, %v6084
        %v7278 = vadd.f32 %v7277, %v6085
        %v7279 = vadd.f32 %v7278, %v6086
        %v7280 = vadd.f32 %v7279, %v6087
        %v7281 = vadd.f32 %v7280, %v6088
        %v7282 = vadd.f32 %v7281, %v6089
        %v7283 = vadd.f32 %v7282, %v6090
        %v7284 = vadd.f32 %v7283, %v6091
        %v7285 = vadd.f32 %v7284, %v6092
        %v7286 = vadd.f32 %v7285, %v6093
        %v7287 = vadd.f32 %v7286, %v6094
        %v7288 = vadd.f32 %v7287, %v6095
        %v7289 = vadd.f32 %v7288, %v6096
        %v7290 = vadd.f32 %v7289, %v6097
        %v7291 = vadd.f32 %v7290, %v6098
        %v7292 = vrot.slane %v7291, 4
        %v7293 = vadd.f32 %v7291, %v7292
        %v7294 = vrot.slane %v7293, 2
        %v7295 = vadd.f32 %v7293, %v7294
        %v7296 = vrot.slane %v7295, 1
        %v7297 = vadd.f32 %v7295, %v7296
        %v7298 = vadd.f32 %v6099, %v6100
        %v7299 = vadd.f32 %v7298, %v6101
        %v7300 = vadd.f32 %v7299, %v6102
        %v7301 = vadd.f32 %v7300, %v6103
        %v7302 = vadd.f32 %v7301, %v6104
        %v7303 = vadd.f32 %v7302, %v6105
        %v7304 = vadd.f32 %v7303, %v6106
        %v7305 = vadd.f32 %v7304, %v6107
        %v7306 = vadd.f32 %v7305, %v6108
        %v7307 = vadd.f32 %v7306, %v6109
        %v7308 = vadd.f32 %v7307, %v6110
        %v7309 = vadd.f32 %v7308, %v6111
        %v7310 = vadd.f32 %v7309, %v6112
        %v7311 = vadd.f32 %v7310, %v6113
        %v7312 = vadd.f32 %v7311, %v6114
        %v7313 = vrot.slane %v7312, 4
        %v7314 = vadd.f32 %v7312, %v7313
        %v7315 = vrot.slane %v7314, 2
        %v7316 = vadd.f32 %v7314, %v7315
        %v7317 = vrot.slane %v7316, 1
        %v7318 = vadd.f32 %v7316, %v7317
        %v7319 = vadd.f32 %v6115, %v6116
        %v7320 = vadd.f32 %v7319, %v6117
        %v7321 = vadd.f32 %v7320, %v6118
        %v7322 = vadd.f32 %v7321, %v6119
        %v7323 = vadd.f32 %v7322, %v6120
        %v7324 = vadd.f32 %v7323, %v6121
        %v7325 = vadd.f32 %v7324, %v6122
        %v7326 = vadd.f32 %v7325, %v6123
        %v7327 = vadd.f32 %v7326, %v6124
        %v7328 = vadd.f32 %v7327, %v6125
        %v7329 = vadd.f32 %v7328, %v6126
        %v7330 = vadd.f32 %v7329, %v6127
        %v7331 = vadd.f32 %v7330, %v6128
        %v7332 = vadd.f32 %v7331, %v6129
        %v7333 = vadd.f32 %v7332, %v6130
        %v7334 = vrot.slane %v7333, 4
        %v7335 = vadd.f32 %v7333, %v7334
        %v7336 = vrot.slane %v7335, 2
        %v7337 = vadd.f32 %v7335, %v7336
        %v7338 = vrot.slane %v7337, 1
        %v7339 = vadd.f32 %v7337, %v7338
        %v7340 = vadd.f32 %v6131, %v6132
        %v7341 = vadd.f32 %v7340, %v6133
        %v7342 = vadd.f32 %v7341, %v6134
        %v7343 = vadd.f32 %v7342, %v6135
        %v7344 = vadd.f32 %v7343, %v6136
        %v7345 = vadd.f32 %v7344, %v6137
        %v7346 = vadd.f32 %v7345, %v6138
        %v7347 = vadd.f32 %v7346, %v6139
        %v7348 = vadd.f32 %v7347, %v6140
        %v7349 = vadd.f32 %v7348, %v6141
        %v7350 = vadd.f32 %v7349, %v6142
        %v7351 = vadd.f32 %v7350, %v6143
        %v7352 = vadd.f32 %v7351, %v6144
        %v7353 = vadd.f32 %v7352, %v6145
        %v7354 = vadd.f32 %v7353, %v6146
        %v7355 = vrot.slane %v7354, 4
        %v7356 = vadd.f32 %v7354, %v7355
        %v7357 = vrot.slane %v7356, 2
        %v7358 = vadd.f32 %v7356, %v7357
        %v7359 = vrot.slane %v7358, 1
        %v7360 = vadd.f32 %v7358, %v7359
        %v7361 = vadd.f32 %v6147, %v6148
        %v7362 = vadd.f32 %v7361, %v6149
        %v7363 = vadd.f32 %v7362, %v6150
        %v7364 = vadd.f32 %v7363, %v6151
        %v7365 = vadd.f32 %v7364, %v6152
        %v7366 = vadd.f32 %v7365, %v6153
        %v7367 = vadd.f32 %v7366, %v6154
        %v7368 = vadd.f32 %v7367, %v6155
        %v7369 = vadd.f32 %v7368, %v6156
        %v7370 = vadd.f32 %v7369, %v6157
        %v7371 = vadd.f32 %v7370, %v6158
        %v7372 = vadd.f32 %v7371, %v6159
        %v7373 = vadd.f32 %v7372, %v6160
        %v7374 = vadd.f32 %v7373, %v6161
        %v7375 = vadd.f32 %v7374, %v6162
        %v7376 = vrot.slane %v7375, 4
        %v7377 = vadd.f32 %v7375, %v7376
        %v7378 = vrot.slane %v7377, 2
        %v7379 = vadd.f32 %v7377, %v7378
        %v7380 = vrot.slane %v7379, 1
        %v7381 = vadd.f32 %v7379, %v7380
        %v7382 = vadd.f32 %v6163, %v6164
        %v7383 = vadd.f32 %v7382, %v6165
        %v7384 = vadd.f32 %v7383, %v6166
        %v7385 = vadd.f32 %v7384, %v6167
        %v7386 = vadd.f32 %v7385, %v6168
        %v7387 = vadd.f32 %v7386, %v6169
        %v7388 = vadd.f32 %v7387, %v6170
        %v7389 = vadd.f32 %v7388, %v6171
        %v7390 = vadd.f32 %v7389, %v6172
        %v7391 = vadd.f32 %v7390, %v6173
        %v7392 = vadd.f32 %v7391, %v6174
        %v7393 = vadd.f32 %v7392, %v6175
        %v7394 = vadd.f32 %v7393, %v6176
        %v7395 = vadd.f32 %v7394, %v6177
        %v7396 = vadd.f32 %v7395, %v6178
        %v7397 = vrot.slane %v7396, 4
        %v7398 = vadd.f32 %v7396, %v7397
        %v7399 = vrot.slane %v7398, 2
        %v7400 = vadd.f32 %v7398, %v7399
        %v7401 = vrot.slane %v7400, 1
        %v7402 = vadd.f32 %v7400, %v7401
        %v7403 = vadd.f32 %v6179, %v6180
        %v7404 = vadd.f32 %v7403, %v6181
        %v7405 = vadd.f32 %v7404, %v6182
        %v7406 = vadd.f32 %v7405, %v6183
        %v7407 = vadd.f32 %v7406, %v6184
        %v7408 = vadd.f32 %v7407, %v6185
        %v7409 = vadd.f32 %v7408, %v6186
        %v7410 = vadd.f32 %v7409, %v6187
        %v7411 = vadd.f32 %v7410, %v6188
        %v7412 = vadd.f32 %v7411, %v6189
        %v7413 = vadd.f32 %v7412, %v6190
        %v7414 = vadd.f32 %v7413, %v6191
        %v7415 = vadd.f32 %v7414, %v6192
        %v7416 = vadd.f32 %v7415, %v6193
        %v7417 = vadd.f32 %v7416, %v6194
        %v7418 = vrot.slane %v7417, 4
        %v7419 = vadd.f32 %v7417, %v7418
        %v7420 = vrot.slane %v7419, 2
        %v7421 = vadd.f32 %v7419, %v7420
        %v7422 = vrot.slane %v7421, 1
        %v7423 = vadd.f32 %v7421, %v7422
        %v7424 = vadd.f32 %v6195, %v6196
        %v7425 = vadd.f32 %v7424, %v6197
        %v7426 = vadd.f32 %v7425, %v6198
        %v7427 = vadd.f32 %v7426, %v6199
        %v7428 = vadd.f32 %v7427, %v6200
        %v7429 = vadd.f32 %v7428, %v6201
        %v7430 = vadd.f32 %v7429, %v6202
        %v7431 = vadd.f32 %v7430, %v6203
        %v7432 = vadd.f32 %v7431, %v6204
        %v7433 = vadd.f32 %v7432, %v6205
        %v7434 = vadd.f32 %v7433, %v6206
        %v7435 = vadd.f32 %v7434, %v6207
        %v7436 = vadd.f32 %v7435, %v6208
        %v7437 = vadd.f32 %v7436, %v6209
        %v7438 = vadd.f32 %v7437, %v6210
        %v7439 = vrot.slane %v7438, 4
        %v7440 = vadd.f32 %v7438, %v7439
        %v7441 = vrot.slane %v7440, 2
        %v7442 = vadd.f32 %v7440, %v7441
        %v7443 = vrot.slane %v7442, 1
        %v7444 = vadd.f32 %v7442, %v7443
        %v7445 = vadd.f32 %v6211, %v6212
        %v7446 = vadd.f32 %v7445, %v6213
        %v7447 = vadd.f32 %v7446, %v6214
        %v7448 = vadd.f32 %v7447, %v6215
        %v7449 = vadd.f32 %v7448, %v6216
        %v7450 = vadd.f32 %v7449, %v6217
        %v7451 = vadd.f32 %v7450, %v6218
        %v7452 = vadd.f32 %v7451, %v6219
        %v7453 = vadd.f32 %v7452, %v6220
        %v7454 = vadd.f32 %v7453, %v6221
        %v7455 = vadd.f32 %v7454, %v6222
        %v7456 = vadd.f32 %v7455, %v6223
        %v7457 = vadd.f32 %v7456, %v6224
        %v7458 = vadd.f32 %v7457, %v6225
        %v7459 = vadd.f32 %v7458, %v6226
        %v7460 = vrot.slane %v7459, 4
        %v7461 = vadd.f32 %v7459, %v7460
        %v7462 = vrot.slane %v7461, 2
        %v7463 = vadd.f32 %v7461, %v7462
        %v7464 = vrot.slane %v7463, 1
        %v7465 = vadd.f32 %v7463, %v7464
        %v7466 = vadd.f32 %v6227, %v6228
        %v7467 = vadd.f32 %v7466, %v6229
        %v7468 = vadd.f32 %v7467, %v6230
        %v7469 = vadd.f32 %v7468, %v6231
        %v7470 = vadd.f32 %v7469, %v6232
        %v7471 = vadd.f32 %v7470, %v6233
        %v7472 = vadd.f32 %v7471, %v6234
        %v7473 = vadd.f32 %v7472, %v6235
        %v7474 = vadd.f32 %v7473, %v6236
        %v7475 = vadd.f32 %v7474, %v6237
        %v7476 = vadd.f32 %v7475, %v6238
        %v7477 = vadd.f32 %v7476, %v6239
        %v7478 = vadd.f32 %v7477, %v6240
        %v7479 = vadd.f32 %v7478, %v6241
        %v7480 = vadd.f32 %v7479, %v6242
        %v7481 = vrot.slane %v7480, 4
        %v7482 = vadd.f32 %v7480, %v7481
        %v7483 = vrot.slane %v7482, 2
        %v7484 = vadd.f32 %v7482, %v7483
        %v7485 = vrot.slane %v7484, 1
        %v7486 = vadd.f32 %v7484, %v7485
        %v7487 = vadd.f32 %v6243, %v6244
        %v7488 = vadd.f32 %v7487, %v6245
        %v7489 = vadd.f32 %v7488, %v6246
        %v7490 = vadd.f32 %v7489, %v6247
        %v7491 = vadd.f32 %v7490, %v6248
        %v7492 = vadd.f32 %v7491, %v6249
        %v7493 = vadd.f32 %v7492, %v6250
        %v7494 = vadd.f32 %v7493, %v6251
        %v7495 = vadd.f32 %v7494, %v6252
        %v7496 = vadd.f32 %v7495, %v6253
        %v7497 = vadd.f32 %v7496, %v6254
        %v7498 = vadd.f32 %v7497, %v6255
        %v7499 = vadd.f32 %v7498, %v6256
        %v7500 = vadd.f32 %v7499, %v6257
        %v7501 = vadd.f32 %v7500, %v6258
        %v7502 = vrot.slane %v7501, 4
        %v7503 = vadd.f32 %v7501, %v7502
        %v7504 = vrot.slane %v7503, 2
        %v7505 = vadd.f32 %v7503, %v7504
        %v7506 = vrot.slane %v7505, 1
        %v7507 = vadd.f32 %v7505, %v7506
        %v7508 = vadd.f32 %v6259, %v6260
        %v7509 = vadd.f32 %v7508, %v6261
        %v7510 = vadd.f32 %v7509, %v6262
        %v7511 = vadd.f32 %v7510, %v6263
        %v7512 = vadd.f32 %v7511, %v6264
        %v7513 = vadd.f32 %v7512, %v6265
        %v7514 = vadd.f32 %v7513, %v6266
        %v7515 = vadd.f32 %v7514, %v6267
        %v7516 = vadd.f32 %v7515, %v6268
        %v7517 = vadd.f32 %v7516, %v6269
        %v7518 = vadd.f32 %v7517, %v6270
        %v7519 = vadd.f32 %v7518, %v6271
        %v7520 = vadd.f32 %v7519, %v6272
        %v7521 = vadd.f32 %v7520, %v6273
        %v7522 = vadd.f32 %v7521, %v6274
        %v7523 = vrot.slane %v7522, 4
        %v7524 = vadd.f32 %v7522, %v7523
        %v7525 = vrot.slane %v7524, 2
        %v7526 = vadd.f32 %v7524, %v7525
        %v7527 = vrot.slane %v7526, 1
        %v7528 = vadd.f32 %v7526, %v7527
        %v7529 = vadd.f32 %v6275, %v6276
        %v7530 = vadd.f32 %v7529, %v6277
        %v7531 = vadd.f32 %v7530, %v6278
        %v7532 = vadd.f32 %v7531, %v6279
        %v7533 = vadd.f32 %v7532, %v6280
        %v7534 = vadd.f32 %v7533, %v6281
        %v7535 = vadd.f32 %v7534, %v6282
        %v7536 = vadd.f32 %v7535, %v6283
        %v7537 = vadd.f32 %v7536, %v6284
        %v7538 = vadd.f32 %v7537, %v6285
        %v7539 = vadd.f32 %v7538, %v6286
        %v7540 = vadd.f32 %v7539, %v6287
        %v7541 = vadd.f32 %v7540, %v6288
        %v7542 = vadd.f32 %v7541, %v6289
        %v7543 = vadd.f32 %v7542, %v6290
        %v7544 = vrot.slane %v7543, 4
        %v7545 = vadd.f32 %v7543, %v7544
        %v7546 = vrot.slane %v7545, 2
        %v7547 = vadd.f32 %v7545, %v7546
        %v7548 = vrot.slane %v7547, 1
        %v7549 = vadd.f32 %v7547, %v7548
        %v7550 = vadd.f32 %v6291, %v6292
        %v7551 = vadd.f32 %v7550, %v6293
        %v7552 = vadd.f32 %v7551, %v6294
        %v7553 = vadd.f32 %v7552, %v6295
        %v7554 = vadd.f32 %v7553, %v6296
        %v7555 = vadd.f32 %v7554, %v6297
        %v7556 = vadd.f32 %v7555, %v6298
        %v7557 = vadd.f32 %v7556, %v6299
        %v7558 = vadd.f32 %v7557, %v6300
        %v7559 = vadd.f32 %v7558, %v6301
        %v7560 = vadd.f32 %v7559, %v6302
        %v7561 = vadd.f32 %v7560, %v6303
        %v7562 = vadd.f32 %v7561, %v6304
        %v7563 = vadd.f32 %v7562, %v6305
        %v7564 = vadd.f32 %v7563, %v6306
        %v7565 = vrot.slane %v7564, 4
        %v7566 = vadd.f32 %v7564, %v7565
        %v7567 = vrot.slane %v7566, 2
        %v7568 = vadd.f32 %v7566, %v7567
        %v7569 = vrot.slane %v7568, 1
        %v7570 = vadd.f32 %v7568, %v7569
        %v7571 = vadd.f32 %v6307, %v6308
        %v7572 = vadd.f32 %v7571, %v6309
        %v7573 = vadd.f32 %v7572, %v6310
        %v7574 = vadd.f32 %v7573, %v6311
        %v7575 = vadd.f32 %v7574, %v6312
        %v7576 = vadd.f32 %v7575, %v6313
        %v7577 = vadd.f32 %v7576, %v6314
        %v7578 = vadd.f32 %v7577, %v6315
        %v7579 = vadd.f32 %v7578, %v6316
        %v7580 = vadd.f32 %v7579, %v6317
        %v7581 = vadd.f32 %v7580, %v6318
        %v7582 = vadd.f32 %v7581, %v6319
        %v7583 = vadd.f32 %v7582, %v6320
        %v7584 = vadd.f32 %v7583, %v6321
        %v7585 = vadd.f32 %v7584, %v6322
        %v7586 = vrot.slane %v7585, 4
        %v7587 = vadd.f32 %v7585, %v7586
        %v7588 = vrot.slane %v7587, 2
        %v7589 = vadd.f32 %v7587, %v7588
        %v7590 = vrot.slane %v7589, 1
        %v7591 = vadd.f32 %v7589, %v7590
        %v7592 = vadd.f32 %v6323, %v6324
        %v7593 = vadd.f32 %v7592, %v6325
        %v7594 = vadd.f32 %v7593, %v6326
        %v7595 = vadd.f32 %v7594, %v6327
        %v7596 = vadd.f32 %v7595, %v6328
        %v7597 = vadd.f32 %v7596, %v6329
        %v7598 = vadd.f32 %v7597, %v6330
        %v7599 = vadd.f32 %v7598, %v6331
        %v7600 = vadd.f32 %v7599, %v6332
        %v7601 = vadd.f32 %v7600, %v6333
        %v7602 = vadd.f32 %v7601, %v6334
        %v7603 = vadd.f32 %v7602, %v6335
        %v7604 = vadd.f32 %v7603, %v6336
        %v7605 = vadd.f32 %v7604, %v6337
        %v7606 = vadd.f32 %v7605, %v6338
        %v7607 = vrot.slane %v7606, 4
        %v7608 = vadd.f32 %v7606, %v7607
        %v7609 = vrot.slane %v7608, 2
        %v7610 = vadd.f32 %v7608, %v7609
        %v7611 = vrot.slane %v7610, 1
        %v7612 = vadd.f32 %v7610, %v7611
        %v7613 = vadd.f32 %v6339, %v6340
        %v7614 = vadd.f32 %v7613, %v6341
        %v7615 = vadd.f32 %v7614, %v6342
        %v7616 = vadd.f32 %v7615, %v6343
        %v7617 = vadd.f32 %v7616, %v6344
        %v7618 = vadd.f32 %v7617, %v6345
        %v7619 = vadd.f32 %v7618, %v6346
        %v7620 = vadd.f32 %v7619, %v6347
        %v7621 = vadd.f32 %v7620, %v6348
        %v7622 = vadd.f32 %v7621, %v6349
        %v7623 = vadd.f32 %v7622, %v6350
        %v7624 = vadd.f32 %v7623, %v6351
        %v7625 = vadd.f32 %v7624, %v6352
        %v7626 = vadd.f32 %v7625, %v6353
        %v7627 = vadd.f32 %v7626, %v6354
        %v7628 = vrot.slane %v7627, 4
        %v7629 = vadd.f32 %v7627, %v7628
        %v7630 = vrot.slane %v7629, 2
        %v7631 = vadd.f32 %v7629, %v7630
        %v7632 = vrot.slane %v7631, 1
        %v7633 = vadd.f32 %v7631, %v7632
        %v7634 = vadd.f32 %v6355, %v6356
        %v7635 = vadd.f32 %v7634, %v6357
        %v7636 = vadd.f32 %v7635, %v6358
        %v7637 = vadd.f32 %v7636, %v6359
        %v7638 = vadd.f32 %v7637, %v6360
        %v7639 = vadd.f32 %v7638, %v6361
        %v7640 = vadd.f32 %v7639, %v6362
        %v7641 = vadd.f32 %v7640, %v6363
        %v7642 = vadd.f32 %v7641, %v6364
        %v7643 = vadd.f32 %v7642, %v6365
        %v7644 = vadd.f32 %v7643, %v6366
        %v7645 = vadd.f32 %v7644, %v6367
        %v7646 = vadd.f32 %v7645, %v6368
        %v7647 = vadd.f32 %v7646, %v6369
        %v7648 = vadd.f32 %v7647, %v6370
        %v7649 = vrot.slane %v7648, 4
        %v7650 = vadd.f32 %v7648, %v7649
        %v7651 = vrot.slane %v7650, 2
        %v7652 = vadd.f32 %v7650, %v7651
        %v7653 = vrot.slane %v7652, 1
        %v7654 = vadd.f32 %v7652, %v7653
        %v7655 = vadd.f32 %v6371, %v6372
        %v7656 = vadd.f32 %v7655, %v6373
        %v7657 = vadd.f32 %v7656, %v6374
        %v7658 = vadd.f32 %v7657, %v6375
        %v7659 = vadd.f32 %v7658, %v6376
        %v7660 = vadd.f32 %v7659, %v6377
        %v7661 = vadd.f32 %v7660, %v6378
        %v7662 = vadd.f32 %v7661, %v6379
        %v7663 = vadd.f32 %v7662, %v6380
        %v7664 = vadd.f32 %v7663, %v6381
        %v7665 = vadd.f32 %v7664, %v6382
        %v7666 = vadd.f32 %v7665, %v6383
        %v7667 = vadd.f32 %v7666, %v6384
        %v7668 = vadd.f32 %v7667, %v6385
        %v7669 = vadd.f32 %v7668, %v6386
        %v7670 = vrot.slane %v7669, 4
        %v7671 = vadd.f32 %v7669, %v7670
        %v7672 = vrot.slane %v7671, 2
        %v7673 = vadd.f32 %v7671, %v7672
        %v7674 = vrot.slane %v7673, 1
        %v7675 = vadd.f32 %v7673, %v7674
        %v7676 = vadd.f32 %v6387, %v6388
        %v7677 = vadd.f32 %v7676, %v6389
        %v7678 = vadd.f32 %v7677, %v6390
        %v7679 = vadd.f32 %v7678, %v6391
        %v7680 = vadd.f32 %v7679, %v6392
        %v7681 = vadd.f32 %v7680, %v6393
        %v7682 = vadd.f32 %v7681, %v6394
        %v7683 = vadd.f32 %v7682, %v6395
        %v7684 = vadd.f32 %v7683, %v6396
        %v7685 = vadd.f32 %v7684, %v6397
        %v7686 = vadd.f32 %v7685, %v6398
        %v7687 = vadd.f32 %v7686, %v6399
        %v7688 = vadd.f32 %v7687, %v6400
        %v7689 = vadd.f32 %v7688, %v6401
        %v7690 = vadd.f32 %v7689, %v6402
        %v7691 = vrot.slane %v7690, 4
        %v7692 = vadd.f32 %v7690, %v7691
        %v7693 = vrot.slane %v7692, 2
        %v7694 = vadd.f32 %v7692, %v7693
        %v7695 = vrot.slane %v7694, 1
        %v7696 = vadd.f32 %v7694, %v7695
        %v7697 = vadd.f32 %v6403, %v6404
        %v7698 = vadd.f32 %v7697, %v6405
        %v7699 = vadd.f32 %v7698, %v6406
        %v7700 = vadd.f32 %v7699, %v6407
        %v7701 = vadd.f32 %v7700, %v6408
        %v7702 = vadd.f32 %v7701, %v6409
        %v7703 = vadd.f32 %v7702, %v6410
        %v7704 = vadd.f32 %v7703, %v6411
        %v7705 = vadd.f32 %v7704, %v6412
        %v7706 = vadd.f32 %v7705, %v6413
        %v7707 = vadd.f32 %v7706, %v6414
        %v7708 = vadd.f32 %v7707, %v6415
        %v7709 = vadd.f32 %v7708, %v6416
        %v7710 = vadd.f32 %v7709, %v6417
        %v7711 = vadd.f32 %v7710, %v6418
        %v7712 = vrot.slane %v7711, 4
        %v7713 = vadd.f32 %v7711, %v7712
        %v7714 = vrot.slane %v7713, 2
        %v7715 = vadd.f32 %v7713, %v7714
        %v7716 = vrot.slane %v7715, 1
        %v7717 = vadd.f32 %v7715, %v7716
        %v7718 = vadd.f32 %v6419, %v6420
        %v7719 = vadd.f32 %v7718, %v6421
        %v7720 = vadd.f32 %v7719, %v6422
        %v7721 = vadd.f32 %v7720, %v6423
        %v7722 = vadd.f32 %v7721, %v6424
        %v7723 = vadd.f32 %v7722, %v6425
        %v7724 = vadd.f32 %v7723, %v6426
        %v7725 = vadd.f32 %v7724, %v6427
        %v7726 = vadd.f32 %v7725, %v6428
        %v7727 = vadd.f32 %v7726, %v6429
        %v7728 = vadd.f32 %v7727, %v6430
        %v7729 = vadd.f32 %v7728, %v6431
        %v7730 = vadd.f32 %v7729, %v6432
        %v7731 = vadd.f32 %v7730, %v6433
        %v7732 = vadd.f32 %v7731, %v6434
        %v7733 = vrot.slane %v7732, 4
        %v7734 = vadd.f32 %v7732, %v7733
        %v7735 = vrot.slane %v7734, 2
        %v7736 = vadd.f32 %v7734, %v7735
        %v7737 = vrot.slane %v7736, 1
        %v7738 = vadd.f32 %v7736, %v7737
        %v7739 = vadd.f32 %v6435, %v6436
        %v7740 = vadd.f32 %v7739, %v6437
        %v7741 = vadd.f32 %v7740, %v6438
        %v7742 = vadd.f32 %v7741, %v6439
        %v7743 = vadd.f32 %v7742, %v6440
        %v7744 = vadd.f32 %v7743, %v6441
        %v7745 = vadd.f32 %v7744, %v6442
        %v7746 = vadd.f32 %v7745, %v6443
        %v7747 = vadd.f32 %v7746, %v6444
        %v7748 = vadd.f32 %v7747, %v6445
        %v7749 = vadd.f32 %v7748, %v6446
        %v7750 = vadd.f32 %v7749, %v6447
        %v7751 = vadd.f32 %v7750, %v6448
        %v7752 = vadd.f32 %v7751, %v6449
        %v7753 = vadd.f32 %v7752, %v6450
        %v7754 = vrot.slane %v7753, 4
        %v7755 = vadd.f32 %v7753, %v7754
        %v7756 = vrot.slane %v7755, 2
        %v7757 = vadd.f32 %v7755, %v7756
        %v7758 = vrot.slane %v7757, 1
        %v7759 = vadd.f32 %v7757, %v7758
        %v7760 = vadd.f32 %v6451, %v6452
        %v7761 = vadd.f32 %v7760, %v6453
        %v7762 = vadd.f32 %v7761, %v6454
        %v7763 = vadd.f32 %v7762, %v6455
        %v7764 = vadd.f32 %v7763, %v6456
        %v7765 = vadd.f32 %v7764, %v6457
        %v7766 = vadd.f32 %v7765, %v6458
        %v7767 = vadd.f32 %v7766, %v6459
        %v7768 = vadd.f32 %v7767, %v6460
        %v7769 = vadd.f32 %v7768, %v6461
        %v7770 = vadd.f32 %v7769, %v6462
        %v7771 = vadd.f32 %v7770, %v6463
        %v7772 = vadd.f32 %v7771, %v6464
        %v7773 = vadd.f32 %v7772, %v6465
        %v7774 = vadd.f32 %v7773, %v6466
        %v7775 = vrot.slane %v7774, 4
        %v7776 = vadd.f32 %v7774, %v7775
        %v7777 = vrot.slane %v7776, 2
        %v7778 = vadd.f32 %v7776, %v7777
        %v7779 = vrot.slane %v7778, 1
        %v7780 = vadd.f32 %v7778, %v7779
        %v7781 = vadd.f32 %v6467, %v6468
        %v7782 = vadd.f32 %v7781, %v6469
        %v7783 = vadd.f32 %v7782, %v6470
        %v7784 = vadd.f32 %v7783, %v6471
        %v7785 = vadd.f32 %v7784, %v6472
        %v7786 = vadd.f32 %v7785, %v6473
        %v7787 = vadd.f32 %v7786, %v6474
        %v7788 = vadd.f32 %v7787, %v6475
        %v7789 = vadd.f32 %v7788, %v6476
        %v7790 = vadd.f32 %v7789, %v6477
        %v7791 = vadd.f32 %v7790, %v6478
        %v7792 = vadd.f32 %v7791, %v6479
        %v7793 = vadd.f32 %v7792, %v6480
        %v7794 = vadd.f32 %v7793, %v6481
        %v7795 = vadd.f32 %v7794, %v6482
        %v7796 = vrot.slane %v7795, 4
        %v7797 = vadd.f32 %v7795, %v7796
        %v7798 = vrot.slane %v7797, 2
        %v7799 = vadd.f32 %v7797, %v7798
        %v7800 = vrot.slane %v7799, 1
        %v7801 = vadd.f32 %v7799, %v7800
        %v7802 = vadd.f32 %v6483, %v6484
        %v7803 = vadd.f32 %v7802, %v6485
        %v7804 = vadd.f32 %v7803, %v6486
        %v7805 = vadd.f32 %v7804, %v6487
        %v7806 = vadd.f32 %v7805, %v6488
        %v7807 = vadd.f32 %v7806, %v6489
        %v7808 = vadd.f32 %v7807, %v6490
        %v7809 = vadd.f32 %v7808, %v6491
        %v7810 = vadd.f32 %v7809, %v6492
        %v7811 = vadd.f32 %v7810, %v6493
        %v7812 = vadd.f32 %v7811, %v6494
        %v7813 = vadd.f32 %v7812, %v6495
        %v7814 = vadd.f32 %v7813, %v6496
        %v7815 = vadd.f32 %v7814, %v6497
        %v7816 = vadd.f32 %v7815, %v6498
        %v7817 = vrot.slane %v7816, 4
        %v7818 = vadd.f32 %v7816, %v7817
        %v7819 = vrot.slane %v7818, 2
        %v7820 = vadd.f32 %v7818, %v7819
        %v7821 = vrot.slane %v7820, 1
        %v7822 = vadd.f32 %v7820, %v7821
        %v7823 = vadd.f32 %v6499, %v6500
        %v7824 = vadd.f32 %v7823, %v6501
        %v7825 = vadd.f32 %v7824, %v6502
        %v7826 = vadd.f32 %v7825, %v6503
        %v7827 = vadd.f32 %v7826, %v6504
        %v7828 = vadd.f32 %v7827, %v6505
        %v7829 = vadd.f32 %v7828, %v6506
        %v7830 = vadd.f32 %v7829, %v6507
        %v7831 = vadd.f32 %v7830, %v6508
        %v7832 = vadd.f32 %v7831, %v6509
        %v7833 = vadd.f32 %v7832, %v6510
        %v7834 = vadd.f32 %v7833, %v6511
        %v7835 = vadd.f32 %v7834, %v6512
        %v7836 = vadd.f32 %v7835, %v6513
        %v7837 = vadd.f32 %v7836, %v6514
        %v7838 = vrot.slane %v7837, 4
        %v7839 = vadd.f32 %v7837, %v7838
        %v7840 = vrot.slane %v7839, 2
        %v7841 = vadd.f32 %v7839, %v7840
        %v7842 = vrot.slane %v7841, 1
        %v7843 = vadd.f32 %v7841, %v7842
        %v7844 = vadd.f32 %v6515, %v6516
        %v7845 = vadd.f32 %v7844, %v6517
        %v7846 = vadd.f32 %v7845, %v6518
        %v7847 = vadd.f32 %v7846, %v6519
        %v7848 = vadd.f32 %v7847, %v6520
        %v7849 = vadd.f32 %v7848, %v6521
        %v7850 = vadd.f32 %v7849, %v6522
        %v7851 = vadd.f32 %v7850, %v6523
        %v7852 = vadd.f32 %v7851, %v6524
        %v7853 = vadd.f32 %v7852, %v6525
        %v7854 = vadd.f32 %v7853, %v6526
        %v7855 = vadd.f32 %v7854, %v6527
        %v7856 = vadd.f32 %v7855, %v6528
        %v7857 = vadd.f32 %v7856, %v6529
        %v7858 = vadd.f32 %v7857, %v6530
        %v7859 = vrot.slane %v7858, 4
        %v7860 = vadd.f32 %v7858, %v7859
        %v7861 = vrot.slane %v7860, 2
        %v7862 = vadd.f32 %v7860, %v7861
        %v7863 = vrot.slane %v7862, 1
        %v7864 = vadd.f32 %v7862, %v7863
        %v7865 = vadd.f32 %v6531, %v6532
        %v7866 = vadd.f32 %v7865, %v6533
        %v7867 = vadd.f32 %v7866, %v6534
        %v7868 = vadd.f32 %v7867, %v6535
        %v7869 = vadd.f32 %v7868, %v6536
        %v7870 = vadd.f32 %v7869, %v6537
        %v7871 = vadd.f32 %v7870, %v6538
        %v7872 = vadd.f32 %v7871, %v6539
        %v7873 = vadd.f32 %v7872, %v6540
        %v7874 = vadd.f32 %v7873, %v6541
        %v7875 = vadd.f32 %v7874, %v6542
        %v7876 = vadd.f32 %v7875, %v6543
        %v7877 = vadd.f32 %v7876, %v6544
        %v7878 = vadd.f32 %v7877, %v6545
        %v7879 = vadd.f32 %v7878, %v6546
        %v7880 = vrot.slane %v7879, 4
        %v7881 = vadd.f32 %v7879, %v7880
        %v7882 = vrot.slane %v7881, 2
        %v7883 = vadd.f32 %v7881, %v7882
        %v7884 = vrot.slane %v7883, 1
        %v7885 = vadd.f32 %v7883, %v7884
        %v7886 = vadd.f32 %v6547, %v6548
        %v7887 = vadd.f32 %v7886, %v6549
        %v7888 = vadd.f32 %v7887, %v6550
        %v7889 = vadd.f32 %v7888, %v6551
        %v7890 = vadd.f32 %v7889, %v6552
        %v7891 = vadd.f32 %v7890, %v6553
        %v7892 = vadd.f32 %v7891, %v6554
        %v7893 = vadd.f32 %v7892, %v6555
        %v7894 = vadd.f32 %v7893, %v6556
        %v7895 = vadd.f32 %v7894, %v6557
        %v7896 = vadd.f32 %v7895, %v6558
        %v7897 = vadd.f32 %v7896, %v6559
        %v7898 = vadd.f32 %v7897, %v6560
        %v7899 = vadd.f32 %v7898, %v6561
        %v7900 = vadd.f32 %v7899, %v6562
        %v7901 = vrot.slane %v7900, 4
        %v7902 = vadd.f32 %v7900, %v7901
        %v7903 = vrot.slane %v7902, 2
        %v7904 = vadd.f32 %v7902, %v7903
        %v7905 = vrot.slane %v7904, 1
        %v7906 = vadd.f32 %v7904, %v7905
        %vm7971 = vcmask 1041409
        %v7972 = vsel %vm7971, %v6604, %v6583
        %vm7973 = vcmask 1042434
        %v7974 = vsel %vm7973, %v6625, %v7972
        %vm7975 = vcmask 1043459
        %v7976 = vsel %vm7975, %v6646, %v7974
        %vm7977 = vcmask 1044484
        %v7978 = vsel %vm7977, %v6667, %v7976
        %vm7979 = vcmask 1045509
        %v7980 = vsel %vm7979, %v6688, %v7978
        %vm7981 = vcmask 1046534
        %v7982 = vsel %vm7981, %v6709, %v7980
        %vm7983 = vcmask 1047559
        %v7984 = vsel %vm7983, %v6730, %v7982
        %v7985 = vsel %vm7971, %v6772, %v6751
        %v7986 = vsel %vm7973, %v6793, %v7985
        %v7987 = vsel %vm7975, %v6814, %v7986
        %v7988 = vsel %vm7977, %v6835, %v7987
        %v7989 = vsel %vm7979, %v6856, %v7988
        %v7990 = vsel %vm7981, %v6877, %v7989
        %v7991 = vsel %vm7983, %v6898, %v7990
        %v7992 = vsel %vm7971, %v6940, %v6919
        %v7993 = vsel %vm7973, %v6961, %v7992
        %v7994 = vsel %vm7975, %v6982, %v7993
        %v7995 = vsel %vm7977, %v7003, %v7994
        %v7996 = vsel %vm7979, %v7024, %v7995
        %v7997 = vsel %vm7981, %v7045, %v7996
        %v7998 = vsel %vm7983, %v7066, %v7997
        %v7999 = vsel %vm7971, %v7108, %v7087
        %v8000 = vsel %vm7973, %v7129, %v7999
        %v8001 = vsel %vm7975, %v7150, %v8000
        %v8002 = vsel %vm7977, %v7171, %v8001
        %v8003 = vsel %vm7979, %v7192, %v8002
        %v8004 = vsel %vm7981, %v7213, %v8003
        %v8005 = vsel %vm7983, %v7234, %v8004
        %v8006 = vsel %vm7971, %v7276, %v7255
        %v8007 = vsel %vm7973, %v7297, %v8006
        %v8008 = vsel %vm7975, %v7318, %v8007
        %v8009 = vsel %vm7977, %v7339, %v8008
        %v8010 = vsel %vm7979, %v7360, %v8009
        %v8011 = vsel %vm7981, %v7381, %v8010
        %v8012 = vsel %vm7983, %v7402, %v8011
        %v8013 = vsel %vm7971, %v7444, %v7423
        %v8014 = vsel %vm7973, %v7465, %v8013
        %v8015 = vsel %vm7975, %v7486, %v8014
        %v8016 = vsel %vm7977, %v7507, %v8015
        %v8017 = vsel %vm7979, %v7528, %v8016
        %v8018 = vsel %vm7981, %v7549, %v8017
        %v8019 = vsel %vm7983, %v7570, %v8018
        %v8020 = vsel %vm7971, %v7612, %v7591
        %v8021 = vsel %vm7973, %v7633, %v8020
        %v8022 = vsel %vm7975, %v7654, %v8021
        %v8023 = vsel %vm7977, %v7675, %v8022
        %v8024 = vsel %vm7979, %v7696, %v8023
        %v8025 = vsel %vm7981, %v7717, %v8024
        %v8026 = vsel %vm7983, %v7738, %v8025
        %v8027 = vsel %vm7971, %v7780, %v7759
        %v8028 = vsel %vm7973, %v7801, %v8027
        %v8029 = vsel %vm7975, %v7822, %v8028
        %v8030 = vsel %vm7977, %v7843, %v8029
        %v8031 = vsel %vm7979, %v7864, %v8030
        %v8032 = vsel %vm7981, %v7885, %v8031
        %v8033 = vsel %vm7983, %v7906, %v8032
        %8042 = vst [vmem:[%s182] sm:$0xff] %v7984
        %8043 = vst [vmem:[%s182 + $0x8] sm:$0xff] %v7991
        %8044 = vst [vmem:[%s182 + $0x10] sm:$0xff] %v7998
        %8045 = vst [vmem:[%s182 + $0x18] sm:$0xff] %v8005
        %8046 = vst [vmem:[%s182 + $0x20] sm:$0xff] %v8012
        %8047 = vst [vmem:[%s182 + $0x28] sm:$0xff] %v8019
        %8048 = vst [vmem:[%s182 + $0x30] sm:$0xff] %v8026
        %8049 = vst [vmem:[%s182 + $0x38] sm:$0xff] %v8033
        %s8050 = sand.u32 %s76, 1
        %s8051 = scalar_lea.sflag [#allocation3], %s8050
        %s8052 = sand.u32 %s76, 1
        %s8053 = smul.addr %s8052, 64
        %s8054 = scalar_lea.vmem [#allocation2], %s8053
        // Predicated region
        $region29: #{rescal_forward.1} parent=27 // pred_check
          %p8055 = pneg %p86
        $region30: #{rescal_forward.1} parent=27 // pred_check_branch
          %8057 = sbr.rel (%p8055) target = $region32
        $region31: #{rescal_forward.1} parent=27 // pred_region
          %s8058 = smul.u32 8, %s16
          %s8059 = ssub.s32 12, %s8058
          %p8060 = scmp.lt.s32.totalorder %s8059, 8
          %s8061 = scalar_select %p8060, %s8059, 8
          %s8062 = smul.u32 128, %s8061
          %s8064 = ssub.s32 1024, %s8062
          %8065 = vsyncadd %s8051, %s8064
          %p8066 = scmp.ne.s32.totalorder 0, %s8062
          %s8067 = smul.addr %s8058, 128
          %s8068 = scalar_lea.hbm %s2, %s8067
          %s8069 = smul.u32 8, %s8061
          %s8070 = sshll.u32 %s8054, 4
          %s8071 = int_to_ptr.vmem [resolvable:$true] %s8070
          %s8072 = sshll.u32 %s8069, 4
          %8076 = dma.vmem_to_hbm [thread:$0]  (%p8066), %s8071, %s8072, %s8068, %s8051, 128, 128, 8
        $region32: #{rescal_forward.1} parent=27 // pred_fallthru
          _
      $region28: #{rescal_forward.1} parent=5 // pred_fallthru
        _
      %p8077 = scmp.le.s32.totalorder 2, %s11
      // Predicated region
      $region33: #{rescal_forward.1} parent=5 // pred_check
        %p8078 = pneg %p8077
      $region34: #{rescal_forward.1} parent=5 // pred_check_branch
        %8080 = sbr.rel (%p8078) target = $region36
      $region35: #{rescal_forward.1} parent=5 // pred_region
        %s8081 = ssub.s32 %s11, 2
        // Predicated region
        $region37: #{rescal_forward.1} parent=35 // pred_check
          %p8082 = pneg %p92
        $region38: #{rescal_forward.1} parent=35 // pred_check_branch
          %8084 = sbr.rel (%p8082) target = $region40
        $region39: #{rescal_forward.1} parent=35 // pred_region
          %s8085 = sand.u32 %s77, 1
          %s8086 = scalar_lea.sflag [#allocation3], %s8085
          %s8087 = sand.u32 %s77, 1
          %s8088 = smul.addr %s8087, 64
          %s8089 = scalar_lea.vmem [#allocation2], %s8088
          %8090 = dma.done %s8086, 1024
        $region40: #{rescal_forward.1} parent=35 // pred_fallthru
          _
      $region36: #{rescal_forward.1} parent=5 // pred_fallthru
        _
    $region6: #{rescal_forward.1} parent=1 // loop_footer
      %s15 = sadd.s32 1, %s11
    $region7: #{rescal_forward.1} parent=1 // loop_footer_branch
      %10 = sbr.rel target = $region3
    $region8: #{rescal_forward.1} parent=1 // loop_exit
      _
    %8091 = vsyncpa [#allocation3], 1
    %s8092 = scalar_lea.sflag [#allocation3], 1
    %8093 = vsyncpa %s8092, 1

</llo_original>
